<compile_context>
chip_gen: v7x
topology: tpu7x:2x2x1
jax: 0.10.0
libtpu: 0.0.40
codegen_flags: <defaults>
</compile_context>

<pallas_src>
import functools

import jax
import jax.numpy as jnp
from jax.experimental import pallas as pl
from jax.experimental.pallas import tpu as pltpu


def _mlp_kernel(x_ref, wgu_ref, wd_ref, o_ref, *, inter_size, matmul_dtype):
    # x_ref:   (tm, H)      token tile (f32)
    # wgu_ref: (H, 2I)      fused [gate_proj | up_proj] weight, (in, out) layout
    # wd_ref:  (I, H)       down_proj weight, (in, out) layout
    # o_ref:   (tm, H)
    xm = x_ref[...].astype(matmul_dtype)

    # One fused MXU matmul for gate + up, f32 accumulation.
    gu = jnp.dot(xm, wgu_ref[...], preferred_element_type=jnp.float32)
    g = gu[:, :inter_size]
    u = gu[:, inter_size:]

    # SwiGLU gating in f32 on the VPU/EUP (only the matmul inputs are narrowed).
    h = (g * jax.nn.sigmoid(g)) * u

    o_ref[...] = jnp.dot(
        h.astype(matmul_dtype), wd_ref[...], preferred_element_type=jnp.float32
    ).astype(o_ref.dtype)


@functools.partial(jax.jit, static_argnames=("tm", "matmul_dtype"))
def smollm2_mlp(x, wg, wu, wd, *, tm=256, matmul_dtype=jnp.float32):
    """SwiGLU MLP forward.

    x:  (B, S, H) float32
    wg: (H, I)  gate_proj weight (in, out)  -- transpose of nn.Linear.weight
    wu: (H, I)  up_proj weight   (in, out)
    wd: (I, H)  down_proj weight (in, out)
    matmul_dtype: dtype of MXU matmul inputs (use jnp.bfloat16 on v6e/v7x for
                  ~2x MXU throughput and half the weight HBM traffic; SwiGLU
                  gating and accumulation stay f32).
    """
    B, S, H = x.shape
    I = wg.shape[1]
    T = B * S

    # Clamp the token tile for small inputs so we don't burn MXU cycles on
    # padded rows; sublane dim only needs to be a multiple of 8.
    tm_eff = min(tm, max(8, ((T + 7) // 8) * 8))
    n_tiles = pl.cdiv(T, tm_eff)
    Tp = n_tiles * tm_eff

    x2d = x.reshape(T, H)
    if Tp != T:
        # Zero-pad the token tail; padded rows produce zeros and are sliced off.
        x2d = jnp.pad(x2d, ((0, Tp - T), (0, 0)))

    # Fuse gate+up into one (H, 2I) weight; cast resident weights once.
    wgu = jnp.concatenate([wg, wu], axis=1).astype(matmul_dtype)
    wdm = wd.astype(matmul_dtype)

    kernel = functools.partial(_mlp_kernel, inter_size=I, matmul_dtype=matmul_dtype)

    out2d = pl.pallas_call(
        kernel,
        out_shape=jax.ShapeDtypeStruct((Tp, H), x.dtype),
        grid_spec=pltpu.PrefetchScalarGridSpec(
            num_scalar_prefetch=0,
            grid=(n_tiles,),
            in_specs=[
                # Token tile: pipelined (double-buffered) across the grid.
                pl.BlockSpec((tm_eff, H), lambda i: (i, 0)),
                # Weights: constant index_map -> fetched once; single-buffer to
                # halve their VMEM footprint.
                pl.BlockSpec((H, 2 * I), lambda i: (0, 0),
                             pipeline_mode=pl.Buffered(1)),
                pl.BlockSpec((I, H), lambda i: (0, 0),
                             pipeline_mode=pl.Buffered(1)),
            ],
            out_specs=pl.BlockSpec((tm_eff, H), lambda i: (i, 0)),
        ),
        compiler_params=pltpu.CompilerParams(
            # Token axis is independent -> shard across TensorCores (megacore).
            dimension_semantics=("parallel",),
            # Actual footprint (weights once + x/out tiles + gu/h intermediates)
            # is ~18 MiB f32 / ~11 MiB bf16; 40 MiB leaves headroom on v7x's
            # 64 MiB VMEM.
            vmem_limit_bytes=40 << 20,
        ),
    )(x2d, wgu, wdm)

    return out2d[:T].reshape(B, S, H)


def _init_linear_weight(key, in_features, out_features):
    # nn.Linear default init: U(-1/sqrt(in), 1/sqrt(in)) on weight (out, in).
    # Stored transposed as (in, out) so the kernel computes plain y = x @ W.
    bound = 1.0 / (in_features ** 0.5)
    w = jax.random.uniform(
        key, (out_features, in_features), dtype=jnp.float32,
        minval=-bound, maxval=bound)
    return w.T  # (in, out)


if __name__ == "__main__":
    # SmolLM2 config dims (hidden=576, intermediate=1536); small batch/seq.
    hidden_size = 576
    intermediate_size = 1536
    batch, seq = 2, 8

    key = jax.random.PRNGKey(0)
    kx, kg, ku, kd = jax.random.split(key, 4)

    x = jax.random.normal(kx, (batch, seq, hidden_size), dtype=jnp.float32)
    wg = _init_linear_weight(kg, hidden_size, intermediate_size)   # (H, I)
    wu = _init_linear_weight(ku, hidden_size, intermediate_size)   # (H, I)
    wd = _init_linear_weight(kd, intermediate_size, hidden_size)   # (I, H)

    # Reference in plain JAX (same math as the PyTorch forward), f32.
    g_ref = x @ wg
    u_ref = x @ wu
    ref = (g_ref * jax.nn.sigmoid(g_ref) * u_ref) @ wd

    # 1) Exact-semantics f32 path (default).
    out = smollm2_mlp(x, wg, wu, wd)
    out = jax.block_until_ready(out)
    assert out.shape == (batch, seq, hidden_size)
    assert jnp.allclose(out, ref, atol=1e-4, rtol=1e-4)

    # 2) v6e/v7x fast path: bf16 matmul inputs, f32 accumulation + f32 SwiGLU.
    out_bf16 = smollm2_mlp(x, wg, wu, wd, matmul_dtype=jnp.bfloat16)
    out_bf16 = jax.block_until_ready(out_bf16)
    assert out_bf16.shape == (batch, seq, hidden_size)
    assert jnp.allclose(out_bf16, ref, atol=5e-2, rtol=5e-2)

    print("KERNEL_OK")
</pallas_src>

<mosaic_0001>
module attributes {stable_mosaic.version = 11 : i64} {
  func.func @_mlp_kernel(%arg0: i32, %arg1: memref<16x576xf32, #tpu.memory_space<vmem>>, %arg2: memref<576x3072xf32, #tpu.memory_space<vmem>>, %arg3: memref<1536x576xf32, #tpu.memory_space<vmem>>, %arg4: memref<16x576xf32, #tpu.memory_space<vmem>>) attributes {dimension_semantics = [#tpu.dimension_semantics<parallel>], iteration_bounds = array<i64: 1>, scalar_prefetch = 0 : i64, scratch_operands = 0 : i64, tpu.core_type = #tpu.core_type<tc>, window_params = [{transform_indices = @transform_0, window_bounds = array<i64: 16, 576>}, {pipeline_mode = #tpu.pipeline_mode<synchronous>, transform_indices = @transform_1, window_bounds = array<i64: 576, 3072>}, {pipeline_mode = #tpu.pipeline_mode<synchronous>, transform_indices = @transform_2, window_bounds = array<i64: 1536, 576>}, {transform_indices = @transform_3, window_bounds = array<i64: 16, 576>}]} {
    %c0 = arith.constant 0 : index
    %c0_0 = arith.constant 0 : index
    %0 = vector.load %arg1[%c0, %c0_0] : memref<16x576xf32, #tpu.memory_space<vmem>>, vector<16x576xf32>
    %c0_1 = arith.constant 0 : index
    %c0_2 = arith.constant 0 : index
    %1 = vector.load %arg2[%c0_1, %c0_2] : memref<576x3072xf32, #tpu.memory_space<vmem>>, vector<576x3072xf32>
    %cst = arith.constant dense<0.000000e+00> : vector<16x3072xf32>
    %2 = tpu.matmul %0, %1, %cst {dimension_numbers = #tpu.dot_dimension_numbers<[1], [0], [0], [1], [0, 0, 1, 1], [], []>} : vector<16x576xf32>, vector<576x3072xf32>, vector<16x3072xf32> -> vector<16x3072xf32>
    %3 = vector.extract_strided_slice %2 {offsets = [0, 0], sizes = [16, 1536], strides = [1, 1]} : vector<16x3072xf32> to vector<16x1536xf32>
    %4 = vector.extract_strided_slice %2 {offsets = [0, 1536], sizes = [16, 1536], strides = [1, 1]} : vector<16x3072xf32> to vector<16x1536xf32>
    %5 = arith.negf %3 : vector<16x1536xf32>
    %6 = math.exp %5 : vector<16x1536xf32>
    %cst_3 = arith.constant 1.000000e+00 : f32
    %7 = vector.broadcast %cst_3 : f32 to vector<16x1536xf32>
    %8 = arith.addf %7, %6 : vector<16x1536xf32>
    %9 = arith.divf %7, %8 : vector<16x1536xf32>
    %10 = arith.mulf %3, %9 : vector<16x1536xf32>
    %11 = arith.mulf %10, %4 : vector<16x1536xf32>
    %c0_4 = arith.constant 0 : index
    %c0_5 = arith.constant 0 : index
    %12 = vector.load %arg3[%c0_4, %c0_5] : memref<1536x576xf32, #tpu.memory_space<vmem>>, vector<1536x576xf32>
    %cst_6 = arith.constant dense<0.000000e+00> : vector<16x576xf32>
    %13 = tpu.matmul %11, %12, %cst_6 {dimension_numbers = #tpu.dot_dimension_numbers<[1], [0], [0], [1], [0, 0, 1, 1], [], []>} : vector<16x1536xf32>, vector<1536x576xf32>, vector<16x576xf32> -> vector<16x576xf32>
    %c0_7 = arith.constant 0 : index
    %c0_8 = arith.constant 0 : index
    %14 = vector.load %arg4[%c0_7, %c0_8] : memref<16x576xf32, #tpu.memory_space<vmem>>, vector<16x576xf32>
    tpu.vector_store %arg4[%c0_7, %c0_8], %13 {strides = array<i32>} : memref<16x576xf32, #tpu.memory_space<vmem>>, vector<16x576xf32>,
    return
  }
  func.func @transform_0(%arg0: i32) -> (i32, i32) {
    %c0_i32 = arith.constant 0 : i32
    %c0_i32_0 = arith.constant 0 : i32
    return %arg0, %c0_i32 : i32, i32
  }
  func.func @transform_1(%arg0: i32) -> (i32, i32) {
    %c0_i32 = arith.constant 0 : i32
    %c0_i32_0 = arith.constant 0 : i32
    %c0_i32_1 = arith.constant 0 : i32
    return %c0_i32, %c0_i32_0 : i32, i32
  }
  func.func @transform_2(%arg0: i32) -> (i32, i32) {
    %c0_i32 = arith.constant 0 : i32
    %c0_i32_0 = arith.constant 0 : i32
    %c0_i32_1 = arith.constant 0 : i32
    return %c0_i32, %c0_i32_0 : i32, i32
  }
  func.func @transform_3(%arg0: i32) -> (i32, i32) {
    %c0_i32 = arith.constant 0 : i32
    %c0_i32_0 = arith.constant 0 : i32
    return %arg0, %c0_i32 : i32, i32
  }
}

</mosaic_0001>

<llo_original>
// kernel: smollm2_mlp.1
$region0: #{smollm2_mlp.1}
  #allocation0 [shape = 'u32[]', space=smem, size = 0x4, offset = 0x4, fixed_abs, tag = 'smem constant byte address 0x4 - core index']
  #allocation1 [shape = 'u32[144,128]{1,0:T(1,128)}', space=vmem, size = 0x12000, scoped, tag = 'internal scratch']
  %s0 = inlined_call_operand.vmem [shape: f32[16,576], index: 0, kind: input, shape index: {}]
  %s1 = inlined_call_operand.vmem [shape: f32[576,3072], index: 1, kind: input, shape index: {}]
  %s2 = inlined_call_operand.vmem [shape: f32[1536,576], index: 2, kind: input, shape index: {}]
  %s3 = inlined_call_operand.hbm [shape: f32[16,576], index: 3, kind: output, shape index: {}]
  %s4 = sld [smem:[#allocation0]]
  $region22: #{smollm2_mlp.1} parent=0
    _
  %s6 = ssub.s32 1, %s4
  %s7 = scalar_select 0, %s6, %s4
  $region1: #{smollm2_mlp.1} parent=0
    #allocation2 [shape = 'u8[40960]{0}', space=vmem, size = 0xa000, scoped, tag = 'output window, operand 0, single buffered']
    #allocation3 [shape = 's32[1]{0}', space=sflag, size = 0x4, scoped, tag = 'scoped memory for smollm2_mlp.1']
    %8 = vsyncpa [#allocation3], 0
    // Predicated region
    $region2: #{smollm2_mlp.1} parent=1 // pred_check
      _
    $region3: #{smollm2_mlp.1} parent=1 // pred_check_branch
      %10 = sbr.rel (0) target = $region5
    $region4: #{smollm2_mlp.1} parent=1 // pred_region
      _
    $region5: #{smollm2_mlp.1} parent=1 // pred_fallthru
      _
    // Predicated region
    $region6: #{smollm2_mlp.1} parent=1 // pred_check
      _
    $region7: #{smollm2_mlp.1} parent=1 // pred_check_branch
      %12 = sbr.rel (0) target = $region9
    $region8: #{smollm2_mlp.1} parent=1 // pred_region
      _
    $region9: #{smollm2_mlp.1} parent=1 // pred_fallthru
      _
    // Predicated region
    $region10: #{smollm2_mlp.1} parent=1 // pred_check
      _
    $region11: #{smollm2_mlp.1} parent=1 // pred_check_branch
      %14 = sbr.rel (0) target = $region13
    $region12: #{smollm2_mlp.1} parent=1 // pred_region
      _
    $region13: #{smollm2_mlp.1} parent=1 // pred_fallthru
      _
    %v15 = vld [vmem:[%s0] sm:$0xff]
    %v16 = vld [vmem:[%s0 + $0x8] sm:$0xff]
    %v17 = vld [vmem:[%s0 + $0x10] sm:$0xff]
    %v18 = vld [vmem:[%s0 + $0x18] sm:$0xff]
    %v19 = vld [vmem:[%s0 + $0x20] sm:$0xff]
    %v20 = vld [vmem:[%s0 + $0x28] sm:$0xff]
    %v21 = vld [vmem:[%s0 + $0x30] sm:$0xff]
    %v22 = vld [vmem:[%s0 + $0x38] sm:$0xff]
    %v23 = vld [vmem:[%s0 + $0x40] sm:$0xff]
    %v24 = vld [vmem:[%s0 + $0x48] sm:$0xff]
    %v25 = vld [vmem:[%s1] sm:$0xff]
    %v26 = vld [vmem:[%s1 + $0x8] sm:$0xff]
    %v27 = vld [vmem:[%s1 + $0x10] sm:$0xff]
    %v28 = vld [vmem:[%s1 + $0x18] sm:$0xff]
    %v29 = vld [vmem:[%s1 + $0x20] sm:$0xff]
    %v30 = vld [vmem:[%s1 + $0x28] sm:$0xff]
    %v31 = vld [vmem:[%s1 + $0x30] sm:$0xff]
    %v32 = vld [vmem:[%s1 + $0x38] sm:$0xff]
    %v33 = vld [vmem:[%s1 + $0x40] sm:$0xff]
    %v34 = vld [vmem:[%s1 + $0x48] sm:$0xff]
    %v35 = vld [vmem:[%s1 + $0x50] sm:$0xff]
    %v36 = vld [vmem:[%s1 + $0x58] sm:$0xff]
    %v37 = vld [vmem:[%s1 + $0x60] sm:$0xff]
    %v38 = vld [vmem:[%s1 + $0x68] sm:$0xff]
    %v39 = vld [vmem:[%s1 + $0x70] sm:$0xff]
    %v40 = vld [vmem:[%s1 + $0x78] sm:$0xff]
    %v41 = vld [vmem:[%s1 + $0x80] sm:$0xff]
    %v42 = vld [vmem:[%s1 + $0x88] sm:$0xff]
    %v43 = vld [vmem:[%s1 + $0x90] sm:$0xff]
    %v44 = vld [vmem:[%s1 + $0x98] sm:$0xff]
    %v45 = vld [vmem:[%s1 + $0xa0] sm:$0xff]
    %v46 = vld [vmem:[%s1 + $0xa8] sm:$0xff]
    %v47 = vld [vmem:[%s1 + $0xb0] sm:$0xff]
    %v48 = vld [vmem:[%s1 + $0xb8] sm:$0xff]
    %v49 = vld [vmem:[%s1 + $0xc0] sm:$0xff]
    %v50 = vld [vmem:[%s1 + $0xc8] sm:$0xff]
    %v51 = vld [vmem:[%s1 + $0xd0] sm:$0xff]
    %v52 = vld [vmem:[%s1 + $0xd8] sm:$0xff]
    %v53 = vld [vmem:[%s1 + $0xe0] sm:$0xff]
    %v54 = vld [vmem:[%s1 + $0xe8] sm:$0xff]
    %v55 = vld [vmem:[%s1 + $0xf0] sm:$0xff]
    %v56 = vld [vmem:[%s1 + $0xf8] sm:$0xff]
    %v57 = vld [vmem:[%s1 + $0x100] sm:$0xff]
    %v58 = vld [vmem:[%s1 + $0x108] sm:$0xff]
    %v59 = vld [vmem:[%s1 + $0x110] sm:$0xff]
    %v60 = vld [vmem:[%s1 + $0x118] sm:$0xff]
    %v61 = vld [vmem:[%s1 + $0x120] sm:$0xff]
    %v62 = vld [vmem:[%s1 + $0x128] sm:$0xff]
    %v63 = vld [vmem:[%s1 + $0x130] sm:$0xff]
    %v64 = vld [vmem:[%s1 + $0x138] sm:$0xff]
    %v65 = vld [vmem:[%s1 + $0x140] sm:$0xff]
    %v66 = vld [vmem:[%s1 + $0x148] sm:$0xff]
    %v67 = vld [vmem:[%s1 + $0x150] sm:$0xff]
    %v68 = vld [vmem:[%s1 + $0x158] sm:$0xff]
    %v69 = vld [vmem:[%s1 + $0x160] sm:$0xff]
    %v70 = vld [vmem:[%s1 + $0x168] sm:$0xff]
    %v71 = vld [vmem:[%s1 + $0x170] sm:$0xff]
    %v72 = vld [vmem:[%s1 + $0x178] sm:$0xff]
    %v73 = vld [vmem:[%s1 + $0x180] sm:$0xff]
    %v74 = vld [vmem:[%s1 + $0x188] sm:$0xff]
    %v75 = vld [vmem:[%s1 + $0x190] sm:$0xff]
    %v76 = vld [vmem:[%s1 + $0x198] sm:$0xff]
    %v77 = vld [vmem:[%s1 + $0x1a0] sm:$0xff]
    %v78 = vld [vmem:[%s1 + $0x1a8] sm:$0xff]
    %v79 = vld [vmem:[%s1 + $0x1b0] sm:$0xff]
    %v80 = vld [vmem:[%s1 + $0x1b8] sm:$0xff]
    %v81 = vld [vmem:[%s1 + $0x1c0] sm:$0xff]
    %v82 = vld [vmem:[%s1 + $0x1c8] sm:$0xff]
    %v83 = vld [vmem:[%s1 + $0x1d0] sm:$0xff]
    %v84 = vld [vmem:[%s1 + $0x1d8] sm:$0xff]
    %v85 = vld [vmem:[%s1 + $0x1e0] sm:$0xff]
    %v86 = vld [vmem:[%s1 + $0x1e8] sm:$0xff]
    %v87 = vld [vmem:[%s1 + $0x1f0] sm:$0xff]
    %v88 = vld [vmem:[%s1 + $0x1f8] sm:$0xff]
    %v89 = vld [vmem:[%s1 + $0x200] sm:$0xff]
    %v90 = vld [vmem:[%s1 + $0x208] sm:$0xff]
    %v91 = vld [vmem:[%s1 + $0x210] sm:$0xff]
    %v92 = vld [vmem:[%s1 + $0x218] sm:$0xff]
    %v93 = vld [vmem:[%s1 + $0x220] sm:$0xff]
    %v94 = vld [vmem:[%s1 + $0x228] sm:$0xff]
    %v95 = vld [vmem:[%s1 + $0x230] sm:$0xff]
    %v96 = vld [vmem:[%s1 + $0x238] sm:$0xff]
    %v97 = vld [vmem:[%s1 + $0x240] sm:$0xff]
    %v98 = vld [vmem:[%s1 + $0x248] sm:$0xff]
    %v99 = vld [vmem:[%s1 + $0x250] sm:$0xff]
    %v100 = vld [vmem:[%s1 + $0x258] sm:$0xff]
    %v101 = vld [vmem:[%s1 + $0x260] sm:$0xff]
    %v102 = vld [vmem:[%s1 + $0x268] sm:$0xff]
    %v103 = vld [vmem:[%s1 + $0x270] sm:$0xff]
    %v104 = vld [vmem:[%s1 + $0x278] sm:$0xff]
    %v105 = vld [vmem:[%s1 + $0x280] sm:$0xff]
    %v106 = vld [vmem:[%s1 + $0x288] sm:$0xff]
    %v107 = vld [vmem:[%s1 + $0x290] sm:$0xff]
    %v108 = vld [vmem:[%s1 + $0x298] sm:$0xff]
    %v109 = vld [vmem:[%s1 + $0x2a0] sm:$0xff]
    %v110 = vld [vmem:[%s1 + $0x2a8] sm:$0xff]
    %v111 = vld [vmem:[%s1 + $0x2b0] sm:$0xff]
    %v112 = vld [vmem:[%s1 + $0x2b8] sm:$0xff]
    %v113 = vld [vmem:[%s1 + $0x2c0] sm:$0xff]
    %v114 = vld [vmem:[%s1 + $0x2c8] sm:$0xff]
    %v115 = vld [vmem:[%s1 + $0x2d0] sm:$0xff]
    %v116 = vld [vmem:[%s1 + $0x2d8] sm:$0xff]
    %v117 = vld [vmem:[%s1 + $0x2e0] sm:$0xff]
    %v118 = vld [vmem:[%s1 + $0x2e8] sm:$0xff]
    %v119 = vld [vmem:[%s1 + $0x2f0] sm:$0xff]
    %v120 = vld [vmem:[%s1 + $0x2f8] sm:$0xff]
    %v121 = vld [vmem:[%s1 + $0x300] sm:$0xff]
    %v122 = vld [vmem:[%s1 + $0x308] sm:$0xff]
    %v123 = vld [vmem:[%s1 + $0x310] sm:$0xff]
    %v124 = vld [vmem:[%s1 + $0x318] sm:$0xff]
    %v125 = vld [vmem:[%s1 + $0x320] sm:$0xff]
    %v126 = vld [vmem:[%s1 + $0x328] sm:$0xff]
    %v127 = vld [vmem:[%s1 + $0x330] sm:$0xff]
    %v128 = vld [vmem:[%s1 + $0x338] sm:$0xff]
    %v129 = vld [vmem:[%s1 + $0x340] sm:$0xff]
    %v130 = vld [vmem:[%s1 + $0x348] sm:$0xff]
    %v131 = vld [vmem:[%s1 + $0x350] sm:$0xff]
    %v132 = vld [vmem:[%s1 + $0x358] sm:$0xff]
    %v133 = vld [vmem:[%s1 + $0x360] sm:$0xff]
    %v134 = vld [vmem:[%s1 + $0x368] sm:$0xff]
    %v135 = vld [vmem:[%s1 + $0x370] sm:$0xff]
    %v136 = vld [vmem:[%s1 + $0x378] sm:$0xff]
    %v137 = vld [vmem:[%s1 + $0x380] sm:$0xff]
    %v138 = vld [vmem:[%s1 + $0x388] sm:$0xff]
    %v139 = vld [vmem:[%s1 + $0x390] sm:$0xff]
    %v140 = vld [vmem:[%s1 + $0x398] sm:$0xff]
    %v141 = vld [vmem:[%s1 + $0x3a0] sm:$0xff]
    %v142 = vld [vmem:[%s1 + $0x3a8] sm:$0xff]
    %v143 = vld [vmem:[%s1 + $0x3b0] sm:$0xff]
    %v144 = vld [vmem:[%s1 + $0x3b8] sm:$0xff]
    %v145 = vld [vmem:[%s1 + $0x3c0] sm:$0xff]
    %v146 = vld [vmem:[%s1 + $0x3c8] sm:$0xff]
    %v147 = vld [vmem:[%s1 + $0x3d0] sm:$0xff]
    %v148 = vld [vmem:[%s1 + $0x3d8] sm:$0xff]
    %v149 = vld [vmem:[%s1 + $0x3e0] sm:$0xff]
    %v150 = vld [vmem:[%s1 + $0x3e8] sm:$0xff]
    %v151 = vld [vmem:[%s1 + $0x3f0] sm:$0xff]
    %v152 = vld [vmem:[%s1 + $0x3f8] sm:$0xff]
    %v153 = vld [vmem:[%s1 + $0x400] sm:$0xff]
    %v154 = vld [vmem:[%s1 + $0x408] sm:$0xff]
    %v155 = vld [vmem:[%s1 + $0x410] sm:$0xff]
    %v156 = vld [vmem:[%s1 + $0x418] sm:$0xff]
    %v157 = vld [vmem:[%s1 + $0x420] sm:$0xff]
    %v158 = vld [vmem:[%s1 + $0x428] sm:$0xff]
    %v159 = vld [vmem:[%s1 + $0x430] sm:$0xff]
    %v160 = vld [vmem:[%s1 + $0x438] sm:$0xff]
    %v161 = vld [vmem:[%s1 + $0x440] sm:$0xff]
    %v162 = vld [vmem:[%s1 + $0x448] sm:$0xff]
    %v163 = vld [vmem:[%s1 + $0x450] sm:$0xff]
    %v164 = vld [vmem:[%s1 + $0x458] sm:$0xff]
    %v165 = vld [vmem:[%s1 + $0x460] sm:$0xff]
    %v166 = vld [vmem:[%s1 + $0x468] sm:$0xff]
    %v167 = vld [vmem:[%s1 + $0x470] sm:$0xff]
    %v168 = vld [vmem:[%s1 + $0x478] sm:$0xff]
    %v169 = vld [vmem:[%s1 + $0x480] sm:$0xff]
    %v170 = vld [vmem:[%s1 + $0x488] sm:$0xff]
    %v171 = vld [vmem:[%s1 + $0x490] sm:$0xff]
    %v172 = vld [vmem:[%s1 + $0x498] sm:$0xff]
    %v173 = vld [vmem:[%s1 + $0x4a0] sm:$0xff]
    %v174 = vld [vmem:[%s1 + $0x4a8] sm:$0xff]
    %v175 = vld [vmem:[%s1 + $0x4b0] sm:$0xff]
    %v176 = vld [vmem:[%s1 + $0x4b8] sm:$0xff]
    %v177 = vld [vmem:[%s1 + $0x4c0] sm:$0xff]
    %v178 = vld [vmem:[%s1 + $0x4c8] sm:$0xff]
    %v179 = vld [vmem:[%s1 + $0x4d0] sm:$0xff]
    %v180 = vld [vmem:[%s1 + $0x4d8] sm:$0xff]
    %v181 = vld [vmem:[%s1 + $0x4e0] sm:$0xff]
    %v182 = vld [vmem:[%s1 + $0x4e8] sm:$0xff]
    %v183 = vld [vmem:[%s1 + $0x4f0] sm:$0xff]
    %v184 = vld [vmem:[%s1 + $0x4f8] sm:$0xff]
    %v185 = vld [vmem:[%s1 + $0x500] sm:$0xff]
    %v186 = vld [vmem:[%s1 + $0x508] sm:$0xff]
    %v187 = vld [vmem:[%s1 + $0x510] sm:$0xff]
    %v188 = vld [vmem:[%s1 + $0x518] sm:$0xff]
    %v189 = vld [vmem:[%s1 + $0x520] sm:$0xff]
    %v190 = vld [vmem:[%s1 + $0x528] sm:$0xff]
    %v191 = vld [vmem:[%s1 + $0x530] sm:$0xff]
    %v192 = vld [vmem:[%s1 + $0x538] sm:$0xff]
    %v193 = vld [vmem:[%s1 + $0x540] sm:$0xff]
    %v194 = vld [vmem:[%s1 + $0x548] sm:$0xff]
    %v195 = vld [vmem:[%s1 + $0x550] sm:$0xff]
    %v196 = vld [vmem:[%s1 + $0x558] sm:$0xff]
    %v197 = vld [vmem:[%s1 + $0x560] sm:$0xff]
    %v198 = vld [vmem:[%s1 + $0x568] sm:$0xff]
    %v199 = vld [vmem:[%s1 + $0x570] sm:$0xff]
    %v200 = vld [vmem:[%s1 + $0x578] sm:$0xff]
    %v201 = vld [vmem:[%s1 + $0x580] sm:$0xff]
    %v202 = vld [vmem:[%s1 + $0x588] sm:$0xff]
    %v203 = vld [vmem:[%s1 + $0x590] sm:$0xff]
    %v204 = vld [vmem:[%s1 + $0x598] sm:$0xff]
    %v205 = vld [vmem:[%s1 + $0x5a0] sm:$0xff]
    %v206 = vld [vmem:[%s1 + $0x5a8] sm:$0xff]
    %v207 = vld [vmem:[%s1 + $0x5b0] sm:$0xff]
    %v208 = vld [vmem:[%s1 + $0x5b8] sm:$0xff]
    %v209 = vld [vmem:[%s1 + $0x5c0] sm:$0xff]
    %v210 = vld [vmem:[%s1 + $0x5c8] sm:$0xff]
    %v211 = vld [vmem:[%s1 + $0x5d0] sm:$0xff]
    %v212 = vld [vmem:[%s1 + $0x5d8] sm:$0xff]
    %v213 = vld [vmem:[%s1 + $0x5e0] sm:$0xff]
    %v214 = vld [vmem:[%s1 + $0x5e8] sm:$0xff]
    %v215 = vld [vmem:[%s1 + $0x5f0] sm:$0xff]
    %v216 = vld [vmem:[%s1 + $0x5f8] sm:$0xff]
    %v217 = vld [vmem:[%s1 + $0x600] sm:$0xff]
    %v218 = vld [vmem:[%s1 + $0x608] sm:$0xff]
    %v219 = vld [vmem:[%s1 + $0x610] sm:$0xff]
    %v220 = vld [vmem:[%s1 + $0x618] sm:$0xff]
    %v221 = vld [vmem:[%s1 + $0x620] sm:$0xff]
    %v222 = vld [vmem:[%s1 + $0x628] sm:$0xff]
    %v223 = vld [vmem:[%s1 + $0x630] sm:$0xff]
    %v224 = vld [vmem:[%s1 + $0x638] sm:$0xff]
    %v225 = vld [vmem:[%s1 + $0x640] sm:$0xff]
    %v226 = vld [vmem:[%s1 + $0x648] sm:$0xff]
    %v227 = vld [vmem:[%s1 + $0x650] sm:$0xff]
    %v228 = vld [vmem:[%s1 + $0x658] sm:$0xff]
    %v229 = vld [vmem:[%s1 + $0x660] sm:$0xff]
    %v230 = vld [vmem:[%s1 + $0x668] sm:$0xff]
    %v231 = vld [vmem:[%s1 + $0x670] sm:$0xff]
    %v232 = vld [vmem:[%s1 + $0x678] sm:$0xff]
    %v233 = vld [vmem:[%s1 + $0x680] sm:$0xff]
    %v234 = vld [vmem:[%s1 + $0x688] sm:$0xff]
    %v235 = vld [vmem:[%s1 + $0x690] sm:$0xff]
    %v236 = vld [vmem:[%s1 + $0x698] sm:$0xff]
    %v237 = vld [vmem:[%s1 + $0x6a0] sm:$0xff]
    %v238 = vld [vmem:[%s1 + $0x6a8] sm:$0xff]
    %v239 = vld [vmem:[%s1 + $0x6b0] sm:$0xff]
    %v240 = vld [vmem:[%s1 + $0x6b8] sm:$0xff]
    %v241 = vld [vmem:[%s1 + $0x6c0] sm:$0xff]
    %v242 = vld [vmem:[%s1 + $0x6c8] sm:$0xff]
    %v243 = vld [vmem:[%s1 + $0x6d0] sm:$0xff]
    %v244 = vld [vmem:[%s1 + $0x6d8] sm:$0xff]
    %v245 = vld [vmem:[%s1 + $0x6e0] sm:$0xff]
    %v246 = vld [vmem:[%s1 + $0x6e8] sm:$0xff]
    %v247 = vld [vmem:[%s1 + $0x6f0] sm:$0xff]
    %v248 = vld [vmem:[%s1 + $0x6f8] sm:$0xff]
    %v249 = vld [vmem:[%s1 + $0x700] sm:$0xff]
    %v250 = vld [vmem:[%s1 + $0x708] sm:$0xff]
    %v251 = vld [vmem:[%s1 + $0x710] sm:$0xff]
    %v252 = vld [vmem:[%s1 + $0x718] sm:$0xff]
    %v253 = vld [vmem:[%s1 + $0x720] sm:$0xff]
    %v254 = vld [vmem:[%s1 + $0x728] sm:$0xff]
    %v255 = vld [vmem:[%s1 + $0x730] sm:$0xff]
    %v256 = vld [vmem:[%s1 + $0x738] sm:$0xff]
    %v257 = vld [vmem:[%s1 + $0x740] sm:$0xff]
    %v258 = vld [vmem:[%s1 + $0x748] sm:$0xff]
    %v259 = vld [vmem:[%s1 + $0x750] sm:$0xff]
    %v260 = vld [vmem:[%s1 + $0x758] sm:$0xff]
    %v261 = vld [vmem:[%s1 + $0x760] sm:$0xff]
    %v262 = vld [vmem:[%s1 + $0x768] sm:$0xff]
    %v263 = vld [vmem:[%s1 + $0x770] sm:$0xff]
    %v264 = vld [vmem:[%s1 + $0x778] sm:$0xff]
    %v265 = vld [vmem:[%s1 + $0x780] sm:$0xff]
    %v266 = vld [vmem:[%s1 + $0x788] sm:$0xff]
    %v267 = vld [vmem:[%s1 + $0x790] sm:$0xff]
    %v268 = vld [vmem:[%s1 + $0x798] sm:$0xff]
    %v269 = vld [vmem:[%s1 + $0x7a0] sm:$0xff]
    %v270 = vld [vmem:[%s1 + $0x7a8] sm:$0xff]
    %v271 = vld [vmem:[%s1 + $0x7b0] sm:$0xff]
    %v272 = vld [vmem:[%s1 + $0x7b8] sm:$0xff]
    %v273 = vld [vmem:[%s1 + $0x7c0] sm:$0xff]
    %v274 = vld [vmem:[%s1 + $0x7c8] sm:$0xff]
    %v275 = vld [vmem:[%s1 + $0x7d0] sm:$0xff]
    %v276 = vld [vmem:[%s1 + $0x7d8] sm:$0xff]
    %v277 = vld [vmem:[%s1 + $0x7e0] sm:$0xff]
    %v278 = vld [vmem:[%s1 + $0x7e8] sm:$0xff]
    %v279 = vld [vmem:[%s1 + $0x7f0] sm:$0xff]
    %v280 = vld [vmem:[%s1 + $0x7f8] sm:$0xff]
    %v281 = vld [vmem:[%s1 + $0x800] sm:$0xff]
    %v282 = vld [vmem:[%s1 + $0x808] sm:$0xff]
    %v283 = vld [vmem:[%s1 + $0x810] sm:$0xff]
    %v284 = vld [vmem:[%s1 + $0x818] sm:$0xff]
    %v285 = vld [vmem:[%s1 + $0x820] sm:$0xff]
    %v286 = vld [vmem:[%s1 + $0x828] sm:$0xff]
    %v287 = vld [vmem:[%s1 + $0x830] sm:$0xff]
    %v288 = vld [vmem:[%s1 + $0x838] sm:$0xff]
    %v289 = vld [vmem:[%s1 + $0x840] sm:$0xff]
    %v290 = vld [vmem:[%s1 + $0x848] sm:$0xff]
    %v291 = vld [vmem:[%s1 + $0x850] sm:$0xff]
    %v292 = vld [vmem:[%s1 + $0x858] sm:$0xff]
    %v293 = vld [vmem:[%s1 + $0x860] sm:$0xff]
    %v294 = vld [vmem:[%s1 + $0x868] sm:$0xff]
    %v295 = vld [vmem:[%s1 + $0x870] sm:$0xff]
    %v296 = vld [vmem:[%s1 + $0x878] sm:$0xff]
    %v297 = vld [vmem:[%s1 + $0x880] sm:$0xff]
    %v298 = vld [vmem:[%s1 + $0x888] sm:$0xff]
    %v299 = vld [vmem:[%s1 + $0x890] sm:$0xff]
    %v300 = vld [vmem:[%s1 + $0x898] sm:$0xff]
    %v301 = vld [vmem:[%s1 + $0x8a0] sm:$0xff]
    %v302 = vld [vmem:[%s1 + $0x8a8] sm:$0xff]
    %v303 = vld [vmem:[%s1 + $0x8b0] sm:$0xff]
    %v304 = vld [vmem:[%s1 + $0x8b8] sm:$0xff]
    %v305 = vld [vmem:[%s1 + $0x8c0] sm:$0xff]
    %v306 = vld [vmem:[%s1 + $0x8c8] sm:$0xff]
    %v307 = vld [vmem:[%s1 + $0x8d0] sm:$0xff]
    %v308 = vld [vmem:[%s1 + $0x8d8] sm:$0xff]
    %v309 = vld [vmem:[%s1 + $0x8e0] sm:$0xff]
    %v310 = vld [vmem:[%s1 + $0x8e8] sm:$0xff]
    %v311 = vld [vmem:[%s1 + $0x8f0] sm:$0xff]
    %v312 = vld [vmem:[%s1 + $0x8f8] sm:$0xff]
    %v313 = vld [vmem:[%s1 + $0x900] sm:$0xff]
    %v314 = vld [vmem:[%s1 + $0x908] sm:$0xff]
    %v315 = vld [vmem:[%s1 + $0x910] sm:$0xff]
    %v316 = vld [vmem:[%s1 + $0x918] sm:$0xff]
    %v317 = vld [vmem:[%s1 + $0x920] sm:$0xff]
    %v318 = vld [vmem:[%s1 + $0x928] sm:$0xff]
    %v319 = vld [vmem:[%s1 + $0x930] sm:$0xff]
    %v320 = vld [vmem:[%s1 + $0x938] sm:$0xff]
    %v321 = vld [vmem:[%s1 + $0x940] sm:$0xff]
    %v322 = vld [vmem:[%s1 + $0x948] sm:$0xff]
    %v323 = vld [vmem:[%s1 + $0x950] sm:$0xff]
    %v324 = vld [vmem:[%s1 + $0x958] sm:$0xff]
    %v325 = vld [vmem:[%s1 + $0x960] sm:$0xff]
    %v326 = vld [vmem:[%s1 + $0x968] sm:$0xff]
    %v327 = vld [vmem:[%s1 + $0x970] sm:$0xff]
    %v328 = vld [vmem:[%s1 + $0x978] sm:$0xff]
    %v329 = vld [vmem:[%s1 + $0x980] sm:$0xff]
    %v330 = vld [vmem:[%s1 + $0x988] sm:$0xff]
    %v331 = vld [vmem:[%s1 + $0x990] sm:$0xff]
    %v332 = vld [vmem:[%s1 + $0x998] sm:$0xff]
    %v333 = vld [vmem:[%s1 + $0x9a0] sm:$0xff]
    %v334 = vld [vmem:[%s1 + $0x9a8] sm:$0xff]
    %v335 = vld [vmem:[%s1 + $0x9b0] sm:$0xff]
    %v336 = vld [vmem:[%s1 + $0x9b8] sm:$0xff]
    %v337 = vld [vmem:[%s1 + $0x9c0] sm:$0xff]
    %v338 = vld [vmem:[%s1 + $0x9c8] sm:$0xff]
    %v339 = vld [vmem:[%s1 + $0x9d0] sm:$0xff]
    %v340 = vld [vmem:[%s1 + $0x9d8] sm:$0xff]
    %v341 = vld [vmem:[%s1 + $0x9e0] sm:$0xff]
    %v342 = vld [vmem:[%s1 + $0x9e8] sm:$0xff]
    %v343 = vld [vmem:[%s1 + $0x9f0] sm:$0xff]
    %v344 = vld [vmem:[%s1 + $0x9f8] sm:$0xff]
    %v345 = vld [vmem:[%s1 + $0xa00] sm:$0xff]
    %v346 = vld [vmem:[%s1 + $0xa08] sm:$0xff]
    %v347 = vld [vmem:[%s1 + $0xa10] sm:$0xff]
    %v348 = vld [vmem:[%s1 + $0xa18] sm:$0xff]
    %v349 = vld [vmem:[%s1 + $0xa20] sm:$0xff]
    %v350 = vld [vmem:[%s1 + $0xa28] sm:$0xff]
    %v351 = vld [vmem:[%s1 + $0xa30] sm:$0xff]
    %v352 = vld [vmem:[%s1 + $0xa38] sm:$0xff]
    %v353 = vld [vmem:[%s1 + $0xa40] sm:$0xff]
    %v354 = vld [vmem:[%s1 + $0xa48] sm:$0xff]
    %v355 = vld [vmem:[%s1 + $0xa50] sm:$0xff]
    %v356 = vld [vmem:[%s1 + $0xa58] sm:$0xff]
    %v357 = vld [vmem:[%s1 + $0xa60] sm:$0xff]
    %v358 = vld [vmem:[%s1 + $0xa68] sm:$0xff]
    %v359 = vld [vmem:[%s1 + $0xa70] sm:$0xff]
    %v360 = vld [vmem:[%s1 + $0xa78] sm:$0xff]
    %v361 = vld [vmem:[%s1 + $0xa80] sm:$0xff]
    %v362 = vld [vmem:[%s1 + $0xa88] sm:$0xff]
    %v363 = vld [vmem:[%s1 + $0xa90] sm:$0xff]
    %v364 = vld [vmem:[%s1 + $0xa98] sm:$0xff]
    %v365 = vld [vmem:[%s1 + $0xaa0] sm:$0xff]
    %v366 = vld [vmem:[%s1 + $0xaa8] sm:$0xff]
    %v367 = vld [vmem:[%s1 + $0xab0] sm:$0xff]
    %v368 = vld [vmem:[%s1 + $0xab8] sm:$0xff]
    %v369 = vld [vmem:[%s1 + $0xac0] sm:$0xff]
    %v370 = vld [vmem:[%s1 + $0xac8] sm:$0xff]
    %v371 = vld [vmem:[%s1 + $0xad0] sm:$0xff]
    %v372 = vld [vmem:[%s1 + $0xad8] sm:$0xff]
    %v373 = vld [vmem:[%s1 + $0xae0] sm:$0xff]
    %v374 = vld [vmem:[%s1 + $0xae8] sm:$0xff]
    %v375 = vld [vmem:[%s1 + $0xaf0] sm:$0xff]
    %v376 = vld [vmem:[%s1 + $0xaf8] sm:$0xff]
    %v377 = vld [vmem:[%s1 + $0xb00] sm:$0xff]
    %v378 = vld [vmem:[%s1 + $0xb08] sm:$0xff]
    %v379 = vld [vmem:[%s1 + $0xb10] sm:$0xff]
    %v380 = vld [vmem:[%s1 + $0xb18] sm:$0xff]
    %v381 = vld [vmem:[%s1 + $0xb20] sm:$0xff]
    %v382 = vld [vmem:[%s1 + $0xb28] sm:$0xff]
    %v383 = vld [vmem:[%s1 + $0xb30] sm:$0xff]
    %v384 = vld [vmem:[%s1 + $0xb38] sm:$0xff]
    %v385 = vld [vmem:[%s1 + $0xb40] sm:$0xff]
    %v386 = vld [vmem:[%s1 + $0xb48] sm:$0xff]
    %v387 = vld [vmem:[%s1 + $0xb50] sm:$0xff]
    %v388 = vld [vmem:[%s1 + $0xb58] sm:$0xff]
    %v389 = vld [vmem:[%s1 + $0xb60] sm:$0xff]
    %v390 = vld [vmem:[%s1 + $0xb68] sm:$0xff]
    %v391 = vld [vmem:[%s1 + $0xb70] sm:$0xff]
    %v392 = vld [vmem:[%s1 + $0xb78] sm:$0xff]
    %v393 = vld [vmem:[%s1 + $0xb80] sm:$0xff]
    %v394 = vld [vmem:[%s1 + $0xb88] sm:$0xff]
    %v395 = vld [vmem:[%s1 + $0xb90] sm:$0xff]
    %v396 = vld [vmem:[%s1 + $0xb98] sm:$0xff]
    %v397 = vld [vmem:[%s1 + $0xba0] sm:$0xff]
    %v398 = vld [vmem:[%s1 + $0xba8] sm:$0xff]
    %v399 = vld [vmem:[%s1 + $0xbb0] sm:$0xff]
    %v400 = vld [vmem:[%s1 + $0xbb8] sm:$0xff]
    %v401 = vld [vmem:[%s1 + $0xbc0] sm:$0xff]
    %v402 = vld [vmem:[%s1 + $0xbc8] sm:$0xff]
    %v403 = vld [vmem:[%s1 + $0xbd0] sm:$0xff]
    %v404 = vld [vmem:[%s1 + $0xbd8] sm:$0xff]
    %v405 = vld [vmem:[%s1 + $0xbe0] sm:$0xff]
    %v406 = vld [vmem:[%s1 + $0xbe8] sm:$0xff]
    %v407 = vld [vmem:[%s1 + $0xbf0] sm:$0xff]
    %v408 = vld [vmem:[%s1 + $0xbf8] sm:$0xff]
    %v409 = vld [vmem:[%s1 + $0xc00] sm:$0xff]
    %v410 = vld [vmem:[%s1 + $0xc08] sm:$0xff]
    %v411 = vld [vmem:[%s1 + $0xc10] sm:$0xff]
    %v412 = vld [vmem:[%s1 + $0xc18] sm:$0xff]
    %v413 = vld [vmem:[%s1 + $0xc20] sm:$0xff]
    %v414 = vld [vmem:[%s1 + $0xc28] sm:$0xff]
    %v415 = vld [vmem:[%s1 + $0xc30] sm:$0xff]
    %v416 = vld [vmem:[%s1 + $0xc38] sm:$0xff]
    %v417 = vld [vmem:[%s1 + $0xc40] sm:$0xff]
    %v418 = vld [vmem:[%s1 + $0xc48] sm:$0xff]
    %v419 = vld [vmem:[%s1 + $0xc50] sm:$0xff]
    %v420 = vld [vmem:[%s1 + $0xc58] sm:$0xff]
    %v421 = vld [vmem:[%s1 + $0xc60] sm:$0xff]
    %v422 = vld [vmem:[%s1 + $0xc68] sm:$0xff]
    %v423 = vld [vmem:[%s1 + $0xc70] sm:$0xff]
    %v424 = vld [vmem:[%s1 + $0xc78] sm:$0xff]
    %v425 = vld [vmem:[%s1 + $0xc80] sm:$0xff]
    %v426 = vld [vmem:[%s1 + $0xc88] sm:$0xff]
    %v427 = vld [vmem:[%s1 + $0xc90] sm:$0xff]
    %v428 = vld [vmem:[%s1 + $0xc98] sm:$0xff]
    %v429 = vld [vmem:[%s1 + $0xca0] sm:$0xff]
    %v430 = vld [vmem:[%s1 + $0xca8] sm:$0xff]
    %v431 = vld [vmem:[%s1 + $0xcb0] sm:$0xff]
    %v432 = vld [vmem:[%s1 + $0xcb8] sm:$0xff]
    %v433 = vld [vmem:[%s1 + $0xcc0] sm:$0xff]
    %v434 = vld [vmem:[%s1 + $0xcc8] sm:$0xff]
    %v435 = vld [vmem:[%s1 + $0xcd0] sm:$0xff]
    %v436 = vld [vmem:[%s1 + $0xcd8] sm:$0xff]
    %v437 = vld [vmem:[%s1 + $0xce0] sm:$0xff]
    %v438 = vld [vmem:[%s1 + $0xce8] sm:$0xff]
    %v439 = vld [vmem:[%s1 + $0xcf0] sm:$0xff]
    %v440 = vld [vmem:[%s1 + $0xcf8] sm:$0xff]
    %v441 = vld [vmem:[%s1 + $0xd00] sm:$0xff]
    %v442 = vld [vmem:[%s1 + $0xd08] sm:$0xff]
    %v443 = vld [vmem:[%s1 + $0xd10] sm:$0xff]
    %v444 = vld [vmem:[%s1 + $0xd18] sm:$0xff]
    %v445 = vld [vmem:[%s1 + $0xd20] sm:$0xff]
    %v446 = vld [vmem:[%s1 + $0xd28] sm:$0xff]
    %v447 = vld [vmem:[%s1 + $0xd30] sm:$0xff]
    %v448 = vld [vmem:[%s1 + $0xd38] sm:$0xff]
    %v449 = vld [vmem:[%s1 + $0xd40] sm:$0xff]
    %v450 = vld [vmem:[%s1 + $0xd48] sm:$0xff]
    %v451 = vld [vmem:[%s1 + $0xd50] sm:$0xff]
    %v452 = vld [vmem:[%s1 + $0xd58] sm:$0xff]
    %v453 = vld [vmem:[%s1 + $0xd60] sm:$0xff]
    %v454 = vld [vmem:[%s1 + $0xd68] sm:$0xff]
    %v455 = vld [vmem:[%s1 + $0xd70] sm:$0xff]
    %v456 = vld [vmem:[%s1 + $0xd78] sm:$0xff]
    %v457 = vld [vmem:[%s1 + $0xd80] sm:$0xff]
    %v458 = vld [vmem:[%s1 + $0xd88] sm:$0xff]
    %v459 = vld [vmem:[%s1 + $0xd90] sm:$0xff]
    %v460 = vld [vmem:[%s1 + $0xd98] sm:$0xff]
    %v461 = vld [vmem:[%s1 + $0xda0] sm:$0xff]
    %v462 = vld [vmem:[%s1 + $0xda8] sm:$0xff]
    %v463 = vld [vmem:[%s1 + $0xdb0] sm:$0xff]
    %v464 = vld [vmem:[%s1 + $0xdb8] sm:$0xff]
    %v465 = vld [vmem:[%s1 + $0xdc0] sm:$0xff]
    %v466 = vld [vmem:[%s1 + $0xdc8] sm:$0xff]
    %v467 = vld [vmem:[%s1 + $0xdd0] sm:$0xff]
    %v468 = vld [vmem:[%s1 + $0xdd8] sm:$0xff]
    %v469 = vld [vmem:[%s1 + $0xde0] sm:$0xff]
    %v470 = vld [vmem:[%s1 + $0xde8] sm:$0xff]
    %v471 = vld [vmem:[%s1 + $0xdf0] sm:$0xff]
    %v472 = vld [vmem:[%s1 + $0xdf8] sm:$0xff]
    %v473 = vld [vmem:[%s1 + $0xe00] sm:$0xff]
    %v474 = vld [vmem:[%s1 + $0xe08] sm:$0xff]
    %v475 = vld [vmem:[%s1 + $0xe10] sm:$0xff]
    %v476 = vld [vmem:[%s1 + $0xe18] sm:$0xff]
    %v477 = vld [vmem:[%s1 + $0xe20] sm:$0xff]
    %v478 = vld [vmem:[%s1 + $0xe28] sm:$0xff]
    %v479 = vld [vmem:[%s1 + $0xe30] sm:$0xff]
    %v480 = vld [vmem:[%s1 + $0xe38] sm:$0xff]
    %v481 = vld [vmem:[%s1 + $0xe40] sm:$0xff]
    %v482 = vld [vmem:[%s1 + $0xe48] sm:$0xff]
    %v483 = vld [vmem:[%s1 + $0xe50] sm:$0xff]
    %v484 = vld [vmem:[%s1 + $0xe58] sm:$0xff]
    %v485 = vld [vmem:[%s1 + $0xe60] sm:$0xff]
    %v486 = vld [vmem:[%s1 + $0xe68] sm:$0xff]
    %v487 = vld [vmem:[%s1 + $0xe70] sm:$0xff]
    %v488 = vld [vmem:[%s1 + $0xe78] sm:$0xff]
    %v489 = vld [vmem:[%s1 + $0xe80] sm:$0xff]
    %v490 = vld [vmem:[%s1 + $0xe88] sm:$0xff]
    %v491 = vld [vmem:[%s1 + $0xe90] sm:$0xff]
    %v492 = vld [vmem:[%s1 + $0xe98] sm:$0xff]
    %v493 = vld [vmem:[%s1 + $0xea0] sm:$0xff]
    %v494 = vld [vmem:[%s1 + $0xea8] sm:$0xff]
    %v495 = vld [vmem:[%s1 + $0xeb0] sm:$0xff]
    %v496 = vld [vmem:[%s1 + $0xeb8] sm:$0xff]
    %v497 = vld [vmem:[%s1 + $0xec0] sm:$0xff]
    %v498 = vld [vmem:[%s1 + $0xec8] sm:$0xff]
    %v499 = vld [vmem:[%s1 + $0xed0] sm:$0xff]
    %v500 = vld [vmem:[%s1 + $0xed8] sm:$0xff]
    %v501 = vld [vmem:[%s1 + $0xee0] sm:$0xff]
    %v502 = vld [vmem:[%s1 + $0xee8] sm:$0xff]
    %v503 = vld [vmem:[%s1 + $0xef0] sm:$0xff]
    %v504 = vld [vmem:[%s1 + $0xef8] sm:$0xff]
    %v505 = vld [vmem:[%s1 + $0xf00] sm:$0xff]
    %v506 = vld [vmem:[%s1 + $0xf08] sm:$0xff]
    %v507 = vld [vmem:[%s1 + $0xf10] sm:$0xff]
    %v508 = vld [vmem:[%s1 + $0xf18] sm:$0xff]
    %v509 = vld [vmem:[%s1 + $0xf20] sm:$0xff]
    %v510 = vld [vmem:[%s1 + $0xf28] sm:$0xff]
    %v511 = vld [vmem:[%s1 + $0xf30] sm:$0xff]
    %v512 = vld [vmem:[%s1 + $0xf38] sm:$0xff]
    %v513 = vld [vmem:[%s1 + $0xf40] sm:$0xff]
    %v514 = vld [vmem:[%s1 + $0xf48] sm:$0xff]
    %v515 = vld [vmem:[%s1 + $0xf50] sm:$0xff]
    %v516 = vld [vmem:[%s1 + $0xf58] sm:$0xff]
    %v517 = vld [vmem:[%s1 + $0xf60] sm:$0xff]
    %v518 = vld [vmem:[%s1 + $0xf68] sm:$0xff]
    %v519 = vld [vmem:[%s1 + $0xf70] sm:$0xff]
    %v520 = vld [vmem:[%s1 + $0xf78] sm:$0xff]
    %v521 = vld [vmem:[%s1 + $0xf80] sm:$0xff]
    %v522 = vld [vmem:[%s1 + $0xf88] sm:$0xff]
    %v523 = vld [vmem:[%s1 + $0xf90] sm:$0xff]
    %v524 = vld [vmem:[%s1 + $0xf98] sm:$0xff]
    %v525 = vld [vmem:[%s1 + $0xfa0] sm:$0xff]
    %v526 = vld [vmem:[%s1 + $0xfa8] sm:$0xff]
    %v527 = vld [vmem:[%s1 + $0xfb0] sm:$0xff]
    %v528 = vld [vmem:[%s1 + $0xfb8] sm:$0xff]
    %v529 = vld [vmem:[%s1 + $0xfc0] sm:$0xff]
    %v530 = vld [vmem:[%s1 + $0xfc8] sm:$0xff]
    %v531 = vld [vmem:[%s1 + $0xfd0] sm:$0xff]
    %v532 = vld [vmem:[%s1 + $0xfd8] sm:$0xff]
    %v533 = vld [vmem:[%s1 + $0xfe0] sm:$0xff]
    %v534 = vld [vmem:[%s1 + $0xfe8] sm:$0xff]
    %v535 = vld [vmem:[%s1 + $0xff0] sm:$0xff]
    %v536 = vld [vmem:[%s1 + $0xff8] sm:$0xff]
    %v537 = vld [vmem:[%s1 + $0x1000] sm:$0xff]
    %v538 = vld [vmem:[%s1 + $0x1008] sm:$0xff]
    %v539 = vld [vmem:[%s1 + $0x1010] sm:$0xff]
    %v540 = vld [vmem:[%s1 + $0x1018] sm:$0xff]
    %v541 = vld [vmem:[%s1 + $0x1020] sm:$0xff]
    %v542 = vld [vmem:[%s1 + $0x1028] sm:$0xff]
    %v543 = vld [vmem:[%s1 + $0x1030] sm:$0xff]
    %v544 = vld [vmem:[%s1 + $0x1038] sm:$0xff]
    %v545 = vld [vmem:[%s1 + $0x1040] sm:$0xff]
    %v546 = vld [vmem:[%s1 + $0x1048] sm:$0xff]
    %v547 = vld [vmem:[%s1 + $0x1050] sm:$0xff]
    %v548 = vld [vmem:[%s1 + $0x1058] sm:$0xff]
    %v549 = vld [vmem:[%s1 + $0x1060] sm:$0xff]
    %v550 = vld [vmem:[%s1 + $0x1068] sm:$0xff]
    %v551 = vld [vmem:[%s1 + $0x1070] sm:$0xff]
    %v552 = vld [vmem:[%s1 + $0x1078] sm:$0xff]
    %v553 = vld [vmem:[%s1 + $0x1080] sm:$0xff]
    %v554 = vld [vmem:[%s1 + $0x1088] sm:$0xff]
    %v555 = vld [vmem:[%s1 + $0x1090] sm:$0xff]
    %v556 = vld [vmem:[%s1 + $0x1098] sm:$0xff]
    %v557 = vld [vmem:[%s1 + $0x10a0] sm:$0xff]
    %v558 = vld [vmem:[%s1 + $0x10a8] sm:$0xff]
    %v559 = vld [vmem:[%s1 + $0x10b0] sm:$0xff]
    %v560 = vld [vmem:[%s1 + $0x10b8] sm:$0xff]
    %v561 = vld [vmem:[%s1 + $0x10c0] sm:$0xff]
    %v562 = vld [vmem:[%s1 + $0x10c8] sm:$0xff]
    %v563 = vld [vmem:[%s1 + $0x10d0] sm:$0xff]
    %v564 = vld [vmem:[%s1 + $0x10d8] sm:$0xff]
    %v565 = vld [vmem:[%s1 + $0x10e0] sm:$0xff]
    %v566 = vld [vmem:[%s1 + $0x10e8] sm:$0xff]
    %v567 = vld [vmem:[%s1 + $0x10f0] sm:$0xff]
    %v568 = vld [vmem:[%s1 + $0x10f8] sm:$0xff]
    %v569 = vld [vmem:[%s1 + $0x1100] sm:$0xff]
    %v570 = vld [vmem:[%s1 + $0x1108] sm:$0xff]
    %v571 = vld [vmem:[%s1 + $0x1110] sm:$0xff]
    %v572 = vld [vmem:[%s1 + $0x1118] sm:$0xff]
    %v573 = vld [vmem:[%s1 + $0x1120] sm:$0xff]
    %v574 = vld [vmem:[%s1 + $0x1128] sm:$0xff]
    %v575 = vld [vmem:[%s1 + $0x1130] sm:$0xff]
    %v576 = vld [vmem:[%s1 + $0x1138] sm:$0xff]
    %v577 = vld [vmem:[%s1 + $0x1140] sm:$0xff]
    %v578 = vld [vmem:[%s1 + $0x1148] sm:$0xff]
    %v579 = vld [vmem:[%s1 + $0x1150] sm:$0xff]
    %v580 = vld [vmem:[%s1 + $0x1158] sm:$0xff]
    %v581 = vld [vmem:[%s1 + $0x1160] sm:$0xff]
    %v582 = vld [vmem:[%s1 + $0x1168] sm:$0xff]
    %v583 = vld [vmem:[%s1 + $0x1170] sm:$0xff]
    %v584 = vld [vmem:[%s1 + $0x1178] sm:$0xff]
    %v585 = vld [vmem:[%s1 + $0x1180] sm:$0xff]
    %v586 = vld [vmem:[%s1 + $0x1188] sm:$0xff]
    %v587 = vld [vmem:[%s1 + $0x1190] sm:$0xff]
    %v588 = vld [vmem:[%s1 + $0x1198] sm:$0xff]
    %v589 = vld [vmem:[%s1 + $0x11a0] sm:$0xff]
    %v590 = vld [vmem:[%s1 + $0x11a8] sm:$0xff]
    %v591 = vld [vmem:[%s1 + $0x11b0] sm:$0xff]
    %v592 = vld [vmem:[%s1 + $0x11b8] sm:$0xff]
    %v593 = vld [vmem:[%s1 + $0x11c0] sm:$0xff]
    %v594 = vld [vmem:[%s1 + $0x11c8] sm:$0xff]
    %v595 = vld [vmem:[%s1 + $0x11d0] sm:$0xff]
    %v596 = vld [vmem:[%s1 + $0x11d8] sm:$0xff]
    %v597 = vld [vmem:[%s1 + $0x11e0] sm:$0xff]
    %v598 = vld [vmem:[%s1 + $0x11e8] sm:$0xff]
    %v599 = vld [vmem:[%s1 + $0x11f0] sm:$0xff]
    %v600 = vld [vmem:[%s1 + $0x11f8] sm:$0xff]
    %v601 = vld [vmem:[%s1 + $0x1200] sm:$0xff]
    %v602 = vld [vmem:[%s1 + $0x1208] sm:$0xff]
    %v603 = vld [vmem:[%s1 + $0x1210] sm:$0xff]
    %v604 = vld [vmem:[%s1 + $0x1218] sm:$0xff]
    %v605 = vld [vmem:[%s1 + $0x1220] sm:$0xff]
    %v606 = vld [vmem:[%s1 + $0x1228] sm:$0xff]
    %v607 = vld [vmem:[%s1 + $0x1230] sm:$0xff]
    %v608 = vld [vmem:[%s1 + $0x1238] sm:$0xff]
    %v609 = vld [vmem:[%s1 + $0x1240] sm:$0xff]
    %v610 = vld [vmem:[%s1 + $0x1248] sm:$0xff]
    %v611 = vld [vmem:[%s1 + $0x1250] sm:$0xff]
    %v612 = vld [vmem:[%s1 + $0x1258] sm:$0xff]
    %v613 = vld [vmem:[%s1 + $0x1260] sm:$0xff]
    %v614 = vld [vmem:[%s1 + $0x1268] sm:$0xff]
    %v615 = vld [vmem:[%s1 + $0x1270] sm:$0xff]
    %v616 = vld [vmem:[%s1 + $0x1278] sm:$0xff]
    %v617 = vld [vmem:[%s1 + $0x1280] sm:$0xff]
    %v618 = vld [vmem:[%s1 + $0x1288] sm:$0xff]
    %v619 = vld [vmem:[%s1 + $0x1290] sm:$0xff]
    %v620 = vld [vmem:[%s1 + $0x1298] sm:$0xff]
    %v621 = vld [vmem:[%s1 + $0x12a0] sm:$0xff]
    %v622 = vld [vmem:[%s1 + $0x12a8] sm:$0xff]
    %v623 = vld [vmem:[%s1 + $0x12b0] sm:$0xff]
    %v624 = vld [vmem:[%s1 + $0x12b8] sm:$0xff]
    %v625 = vld [vmem:[%s1 + $0x12c0] sm:$0xff]
    %v626 = vld [vmem:[%s1 + $0x12c8] sm:$0xff]
    %v627 = vld [vmem:[%s1 + $0x12d0] sm:$0xff]
    %v628 = vld [vmem:[%s1 + $0x12d8] sm:$0xff]
    %v629 = vld [vmem:[%s1 + $0x12e0] sm:$0xff]
    %v630 = vld [vmem:[%s1 + $0x12e8] sm:$0xff]
    %v631 = vld [vmem:[%s1 + $0x12f0] sm:$0xff]
    %v632 = vld [vmem:[%s1 + $0x12f8] sm:$0xff]
    %v633 = vld [vmem:[%s1 + $0x1300] sm:$0xff]
    %v634 = vld [vmem:[%s1 + $0x1308] sm:$0xff]
    %v635 = vld [vmem:[%s1 + $0x1310] sm:$0xff]
    %v636 = vld [vmem:[%s1 + $0x1318] sm:$0xff]
    %v637 = vld [vmem:[%s1 + $0x1320] sm:$0xff]
    %v638 = vld [vmem:[%s1 + $0x1328] sm:$0xff]
    %v639 = vld [vmem:[%s1 + $0x1330] sm:$0xff]
    %v640 = vld [vmem:[%s1 + $0x1338] sm:$0xff]
    %v641 = vld [vmem:[%s1 + $0x1340] sm:$0xff]
    %v642 = vld [vmem:[%s1 + $0x1348] sm:$0xff]
    %v643 = vld [vmem:[%s1 + $0x1350] sm:$0xff]
    %v644 = vld [vmem:[%s1 + $0x1358] sm:$0xff]
    %v645 = vld [vmem:[%s1 + $0x1360] sm:$0xff]
    %v646 = vld [vmem:[%s1 + $0x1368] sm:$0xff]
    %v647 = vld [vmem:[%s1 + $0x1370] sm:$0xff]
    %v648 = vld [vmem:[%s1 + $0x1378] sm:$0xff]
    %v649 = vld [vmem:[%s1 + $0x1380] sm:$0xff]
    %v650 = vld [vmem:[%s1 + $0x1388] sm:$0xff]
    %v651 = vld [vmem:[%s1 + $0x1390] sm:$0xff]
    %v652 = vld [vmem:[%s1 + $0x1398] sm:$0xff]
    %v653 = vld [vmem:[%s1 + $0x13a0] sm:$0xff]
    %v654 = vld [vmem:[%s1 + $0x13a8] sm:$0xff]
    %v655 = vld [vmem:[%s1 + $0x13b0] sm:$0xff]
    %v656 = vld [vmem:[%s1 + $0x13b8] sm:$0xff]
    %v657 = vld [vmem:[%s1 + $0x13c0] sm:$0xff]
    %v658 = vld [vmem:[%s1 + $0x13c8] sm:$0xff]
    %v659 = vld [vmem:[%s1 + $0x13d0] sm:$0xff]
    %v660 = vld [vmem:[%s1 + $0x13d8] sm:$0xff]
    %v661 = vld [vmem:[%s1 + $0x13e0] sm:$0xff]
    %v662 = vld [vmem:[%s1 + $0x13e8] sm:$0xff]
    %v663 = vld [vmem:[%s1 + $0x13f0] sm:$0xff]
    %v664 = vld [vmem:[%s1 + $0x13f8] sm:$0xff]
    %v665 = vld [vmem:[%s1 + $0x1400] sm:$0xff]
    %v666 = vld [vmem:[%s1 + $0x1408] sm:$0xff]
    %v667 = vld [vmem:[%s1 + $0x1410] sm:$0xff]
    %v668 = vld [vmem:[%s1 + $0x1418] sm:$0xff]
    %v669 = vld [vmem:[%s1 + $0x1420] sm:$0xff]
    %v670 = vld [vmem:[%s1 + $0x1428] sm:$0xff]
    %v671 = vld [vmem:[%s1 + $0x1430] sm:$0xff]
    %v672 = vld [vmem:[%s1 + $0x1438] sm:$0xff]
    %v673 = vld [vmem:[%s1 + $0x1440] sm:$0xff]
    %v674 = vld [vmem:[%s1 + $0x1448] sm:$0xff]
    %v675 = vld [vmem:[%s1 + $0x1450] sm:$0xff]
    %v676 = vld [vmem:[%s1 + $0x1458] sm:$0xff]
    %v677 = vld [vmem:[%s1 + $0x1460] sm:$0xff]
    %v678 = vld [vmem:[%s1 + $0x1468] sm:$0xff]
    %v679 = vld [vmem:[%s1 + $0x1470] sm:$0xff]
    %v680 = vld [vmem:[%s1 + $0x1478] sm:$0xff]
    %v681 = vld [vmem:[%s1 + $0x1480] sm:$0xff]
    %v682 = vld [vmem:[%s1 + $0x1488] sm:$0xff]
    %v683 = vld [vmem:[%s1 + $0x1490] sm:$0xff]
    %v684 = vld [vmem:[%s1 + $0x1498] sm:$0xff]
    %v685 = vld [vmem:[%s1 + $0x14a0] sm:$0xff]
    %v686 = vld [vmem:[%s1 + $0x14a8] sm:$0xff]
    %v687 = vld [vmem:[%s1 + $0x14b0] sm:$0xff]
    %v688 = vld [vmem:[%s1 + $0x14b8] sm:$0xff]
    %v689 = vld [vmem:[%s1 + $0x14c0] sm:$0xff]
    %v690 = vld [vmem:[%s1 + $0x14c8] sm:$0xff]
    %v691 = vld [vmem:[%s1 + $0x14d0] sm:$0xff]
    %v692 = vld [vmem:[%s1 + $0x14d8] sm:$0xff]
    %v693 = vld [vmem:[%s1 + $0x14e0] sm:$0xff]
    %v694 = vld [vmem:[%s1 + $0x14e8] sm:$0xff]
    %v695 = vld [vmem:[%s1 + $0x14f0] sm:$0xff]
    %v696 = vld [vmem:[%s1 + $0x14f8] sm:$0xff]
    %v697 = vld [vmem:[%s1 + $0x1500] sm:$0xff]
    %v698 = vld [vmem:[%s1 + $0x1508] sm:$0xff]
    %v699 = vld [vmem:[%s1 + $0x1510] sm:$0xff]
    %v700 = vld [vmem:[%s1 + $0x1518] sm:$0xff]
    %v701 = vld [vmem:[%s1 + $0x1520] sm:$0xff]
    %v702 = vld [vmem:[%s1 + $0x1528] sm:$0xff]
    %v703 = vld [vmem:[%s1 + $0x1530] sm:$0xff]
    %v704 = vld [vmem:[%s1 + $0x1538] sm:$0xff]
    %v705 = vld [vmem:[%s1 + $0x1540] sm:$0xff]
    %v706 = vld [vmem:[%s1 + $0x1548] sm:$0xff]
    %v707 = vld [vmem:[%s1 + $0x1550] sm:$0xff]
    %v708 = vld [vmem:[%s1 + $0x1558] sm:$0xff]
    %v709 = vld [vmem:[%s1 + $0x1560] sm:$0xff]
    %v710 = vld [vmem:[%s1 + $0x1568] sm:$0xff]
    %v711 = vld [vmem:[%s1 + $0x1570] sm:$0xff]
    %v712 = vld [vmem:[%s1 + $0x1578] sm:$0xff]
    %v713 = vld [vmem:[%s1 + $0x1580] sm:$0xff]
    %v714 = vld [vmem:[%s1 + $0x1588] sm:$0xff]
    %v715 = vld [vmem:[%s1 + $0x1590] sm:$0xff]
    %v716 = vld [vmem:[%s1 + $0x1598] sm:$0xff]
    %v717 = vld [vmem:[%s1 + $0x15a0] sm:$0xff]
    %v718 = vld [vmem:[%s1 + $0x15a8] sm:$0xff]
    %v719 = vld [vmem:[%s1 + $0x15b0] sm:$0xff]
    %v720 = vld [vmem:[%s1 + $0x15b8] sm:$0xff]
    %v721 = vld [vmem:[%s1 + $0x15c0] sm:$0xff]
    %v722 = vld [vmem:[%s1 + $0x15c8] sm:$0xff]
    %v723 = vld [vmem:[%s1 + $0x15d0] sm:$0xff]
    %v724 = vld [vmem:[%s1 + $0x15d8] sm:$0xff]
    %v725 = vld [vmem:[%s1 + $0x15e0] sm:$0xff]
    %v726 = vld [vmem:[%s1 + $0x15e8] sm:$0xff]
    %v727 = vld [vmem:[%s1 + $0x15f0] sm:$0xff]
    %v728 = vld [vmem:[%s1 + $0x15f8] sm:$0xff]
    %v729 = vld [vmem:[%s1 + $0x1600] sm:$0xff]
    %v730 = vld [vmem:[%s1 + $0x1608] sm:$0xff]
    %v731 = vld [vmem:[%s1 + $0x1610] sm:$0xff]
    %v732 = vld [vmem:[%s1 + $0x1618] sm:$0xff]
    %v733 = vld [vmem:[%s1 + $0x1620] sm:$0xff]
    %v734 = vld [vmem:[%s1 + $0x1628] sm:$0xff]
    %v735 = vld [vmem:[%s1 + $0x1630] sm:$0xff]
    %v736 = vld [vmem:[%s1 + $0x1638] sm:$0xff]
    %v737 = vld [vmem:[%s1 + $0x1640] sm:$0xff]
    %v738 = vld [vmem:[%s1 + $0x1648] sm:$0xff]
    %v739 = vld [vmem:[%s1 + $0x1650] sm:$0xff]
    %v740 = vld [vmem:[%s1 + $0x1658] sm:$0xff]
    %v741 = vld [vmem:[%s1 + $0x1660] sm:$0xff]
    %v742 = vld [vmem:[%s1 + $0x1668] sm:$0xff]
    %v743 = vld [vmem:[%s1 + $0x1670] sm:$0xff]
    %v744 = vld [vmem:[%s1 + $0x1678] sm:$0xff]
    %v745 = vld [vmem:[%s1 + $0x1680] sm:$0xff]
    %v746 = vld [vmem:[%s1 + $0x1688] sm:$0xff]
    %v747 = vld [vmem:[%s1 + $0x1690] sm:$0xff]
    %v748 = vld [vmem:[%s1 + $0x1698] sm:$0xff]
    %v749 = vld [vmem:[%s1 + $0x16a0] sm:$0xff]
    %v750 = vld [vmem:[%s1 + $0x16a8] sm:$0xff]
    %v751 = vld [vmem:[%s1 + $0x16b0] sm:$0xff]
    %v752 = vld [vmem:[%s1 + $0x16b8] sm:$0xff]
    %v753 = vld [vmem:[%s1 + $0x16c0] sm:$0xff]
    %v754 = vld [vmem:[%s1 + $0x16c8] sm:$0xff]
    %v755 = vld [vmem:[%s1 + $0x16d0] sm:$0xff]
    %v756 = vld [vmem:[%s1 + $0x16d8] sm:$0xff]
    %v757 = vld [vmem:[%s1 + $0x16e0] sm:$0xff]
    %v758 = vld [vmem:[%s1 + $0x16e8] sm:$0xff]
    %v759 = vld [vmem:[%s1 + $0x16f0] sm:$0xff]
    %v760 = vld [vmem:[%s1 + $0x16f8] sm:$0xff]
    %v761 = vld [vmem:[%s1 + $0x1700] sm:$0xff]
    %v762 = vld [vmem:[%s1 + $0x1708] sm:$0xff]
    %v763 = vld [vmem:[%s1 + $0x1710] sm:$0xff]
    %v764 = vld [vmem:[%s1 + $0x1718] sm:$0xff]
    %v765 = vld [vmem:[%s1 + $0x1720] sm:$0xff]
    %v766 = vld [vmem:[%s1 + $0x1728] sm:$0xff]
    %v767 = vld [vmem:[%s1 + $0x1730] sm:$0xff]
    %v768 = vld [vmem:[%s1 + $0x1738] sm:$0xff]
    %v769 = vld [vmem:[%s1 + $0x1740] sm:$0xff]
    %v770 = vld [vmem:[%s1 + $0x1748] sm:$0xff]
    %v771 = vld [vmem:[%s1 + $0x1750] sm:$0xff]
    %v772 = vld [vmem:[%s1 + $0x1758] sm:$0xff]
    %v773 = vld [vmem:[%s1 + $0x1760] sm:$0xff]
    %v774 = vld [vmem:[%s1 + $0x1768] sm:$0xff]
    %v775 = vld [vmem:[%s1 + $0x1770] sm:$0xff]
    %v776 = vld [vmem:[%s1 + $0x1778] sm:$0xff]
    %v777 = vld [vmem:[%s1 + $0x1780] sm:$0xff]
    %v778 = vld [vmem:[%s1 + $0x1788] sm:$0xff]
    %v779 = vld [vmem:[%s1 + $0x1790] sm:$0xff]
    %v780 = vld [vmem:[%s1 + $0x1798] sm:$0xff]
    %v781 = vld [vmem:[%s1 + $0x17a0] sm:$0xff]
    %v782 = vld [vmem:[%s1 + $0x17a8] sm:$0xff]
    %v783 = vld [vmem:[%s1 + $0x17b0] sm:$0xff]
    %v784 = vld [vmem:[%s1 + $0x17b8] sm:$0xff]
    %v785 = vld [vmem:[%s1 + $0x17c0] sm:$0xff]
    %v786 = vld [vmem:[%s1 + $0x17c8] sm:$0xff]
    %v787 = vld [vmem:[%s1 + $0x17d0] sm:$0xff]
    %v788 = vld [vmem:[%s1 + $0x17d8] sm:$0xff]
    %v789 = vld [vmem:[%s1 + $0x17e0] sm:$0xff]
    %v790 = vld [vmem:[%s1 + $0x17e8] sm:$0xff]
    %v791 = vld [vmem:[%s1 + $0x17f0] sm:$0xff]
    %v792 = vld [vmem:[%s1 + $0x17f8] sm:$0xff]
    %v793 = vld [vmem:[%s1 + $0x1800] sm:$0xff]
    %v794 = vld [vmem:[%s1 + $0x1808] sm:$0xff]
    %v795 = vld [vmem:[%s1 + $0x1810] sm:$0xff]
    %v796 = vld [vmem:[%s1 + $0x1818] sm:$0xff]
    %v797 = vld [vmem:[%s1 + $0x1820] sm:$0xff]
    %v798 = vld [vmem:[%s1 + $0x1828] sm:$0xff]
    %v799 = vld [vmem:[%s1 + $0x1830] sm:$0xff]
    %v800 = vld [vmem:[%s1 + $0x1838] sm:$0xff]
    %v801 = vld [vmem:[%s1 + $0x1840] sm:$0xff]
    %v802 = vld [vmem:[%s1 + $0x1848] sm:$0xff]
    %v803 = vld [vmem:[%s1 + $0x1850] sm:$0xff]
    %v804 = vld [vmem:[%s1 + $0x1858] sm:$0xff]
    %v805 = vld [vmem:[%s1 + $0x1860] sm:$0xff]
    %v806 = vld [vmem:[%s1 + $0x1868] sm:$0xff]
    %v807 = vld [vmem:[%s1 + $0x1870] sm:$0xff]
    %v808 = vld [vmem:[%s1 + $0x1878] sm:$0xff]
    %v809 = vld [vmem:[%s1 + $0x1880] sm:$0xff]
    %v810 = vld [vmem:[%s1 + $0x1888] sm:$0xff]
    %v811 = vld [vmem:[%s1 + $0x1890] sm:$0xff]
    %v812 = vld [vmem:[%s1 + $0x1898] sm:$0xff]
    %v813 = vld [vmem:[%s1 + $0x18a0] sm:$0xff]
    %v814 = vld [vmem:[%s1 + $0x18a8] sm:$0xff]
    %v815 = vld [vmem:[%s1 + $0x18b0] sm:$0xff]
    %v816 = vld [vmem:[%s1 + $0x18b8] sm:$0xff]
    %v817 = vld [vmem:[%s1 + $0x18c0] sm:$0xff]
    %v818 = vld [vmem:[%s1 + $0x18c8] sm:$0xff]
    %v819 = vld [vmem:[%s1 + $0x18d0] sm:$0xff]
    %v820 = vld [vmem:[%s1 + $0x18d8] sm:$0xff]
    %v821 = vld [vmem:[%s1 + $0x18e0] sm:$0xff]
    %v822 = vld [vmem:[%s1 + $0x18e8] sm:$0xff]
    %v823 = vld [vmem:[%s1 + $0x18f0] sm:$0xff]
    %v824 = vld [vmem:[%s1 + $0x18f8] sm:$0xff]
    %v825 = vld [vmem:[%s1 + $0x1900] sm:$0xff]
    %v826 = vld [vmem:[%s1 + $0x1908] sm:$0xff]
    %v827 = vld [vmem:[%s1 + $0x1910] sm:$0xff]
    %v828 = vld [vmem:[%s1 + $0x1918] sm:$0xff]
    %v829 = vld [vmem:[%s1 + $0x1920] sm:$0xff]
    %v830 = vld [vmem:[%s1 + $0x1928] sm:$0xff]
    %v831 = vld [vmem:[%s1 + $0x1930] sm:$0xff]
    %v832 = vld [vmem:[%s1 + $0x1938] sm:$0xff]
    %v833 = vld [vmem:[%s1 + $0x1940] sm:$0xff]
    %v834 = vld [vmem:[%s1 + $0x1948] sm:$0xff]
    %v835 = vld [vmem:[%s1 + $0x1950] sm:$0xff]
    %v836 = vld [vmem:[%s1 + $0x1958] sm:$0xff]
    %v837 = vld [vmem:[%s1 + $0x1960] sm:$0xff]
    %v838 = vld [vmem:[%s1 + $0x1968] sm:$0xff]
    %v839 = vld [vmem:[%s1 + $0x1970] sm:$0xff]
    %v840 = vld [vmem:[%s1 + $0x1978] sm:$0xff]
    %v841 = vld [vmem:[%s1 + $0x1980] sm:$0xff]
    %v842 = vld [vmem:[%s1 + $0x1988] sm:$0xff]
    %v843 = vld [vmem:[%s1 + $0x1990] sm:$0xff]
    %v844 = vld [vmem:[%s1 + $0x1998] sm:$0xff]
    %v845 = vld [vmem:[%s1 + $0x19a0] sm:$0xff]
    %v846 = vld [vmem:[%s1 + $0x19a8] sm:$0xff]
    %v847 = vld [vmem:[%s1 + $0x19b0] sm:$0xff]
    %v848 = vld [vmem:[%s1 + $0x19b8] sm:$0xff]
    %v849 = vld [vmem:[%s1 + $0x19c0] sm:$0xff]
    %v850 = vld [vmem:[%s1 + $0x19c8] sm:$0xff]
    %v851 = vld [vmem:[%s1 + $0x19d0] sm:$0xff]
    %v852 = vld [vmem:[%s1 + $0x19d8] sm:$0xff]
    %v853 = vld [vmem:[%s1 + $0x19e0] sm:$0xff]
    %v854 = vld [vmem:[%s1 + $0x19e8] sm:$0xff]
    %v855 = vld [vmem:[%s1 + $0x19f0] sm:$0xff]
    %v856 = vld [vmem:[%s1 + $0x19f8] sm:$0xff]
    %v857 = vld [vmem:[%s1 + $0x1a00] sm:$0xff]
    %v858 = vld [vmem:[%s1 + $0x1a08] sm:$0xff]
    %v859 = vld [vmem:[%s1 + $0x1a10] sm:$0xff]
    %v860 = vld [vmem:[%s1 + $0x1a18] sm:$0xff]
    %v861 = vld [vmem:[%s1 + $0x1a20] sm:$0xff]
    %v862 = vld [vmem:[%s1 + $0x1a28] sm:$0xff]
    %v863 = vld [vmem:[%s1 + $0x1a30] sm:$0xff]
    %v864 = vld [vmem:[%s1 + $0x1a38] sm:$0xff]
    %v865 = vld [vmem:[%s1 + $0x1a40] sm:$0xff]
    %v866 = vld [vmem:[%s1 + $0x1a48] sm:$0xff]
    %v867 = vld [vmem:[%s1 + $0x1a50] sm:$0xff]
    %v868 = vld [vmem:[%s1 + $0x1a58] sm:$0xff]
    %v869 = vld [vmem:[%s1 + $0x1a60] sm:$0xff]
    %v870 = vld [vmem:[%s1 + $0x1a68] sm:$0xff]
    %v871 = vld [vmem:[%s1 + $0x1a70] sm:$0xff]
    %v872 = vld [vmem:[%s1 + $0x1a78] sm:$0xff]
    %v873 = vld [vmem:[%s1 + $0x1a80] sm:$0xff]
    %v874 = vld [vmem:[%s1 + $0x1a88] sm:$0xff]
    %v875 = vld [vmem:[%s1 + $0x1a90] sm:$0xff]
    %v876 = vld [vmem:[%s1 + $0x1a98] sm:$0xff]
    %v877 = vld [vmem:[%s1 + $0x1aa0] sm:$0xff]
    %v878 = vld [vmem:[%s1 + $0x1aa8] sm:$0xff]
    %v879 = vld [vmem:[%s1 + $0x1ab0] sm:$0xff]
    %v880 = vld [vmem:[%s1 + $0x1ab8] sm:$0xff]
    %v881 = vld [vmem:[%s1 + $0x1ac0] sm:$0xff]
    %v882 = vld [vmem:[%s1 + $0x1ac8] sm:$0xff]
    %v883 = vld [vmem:[%s1 + $0x1ad0] sm:$0xff]
    %v884 = vld [vmem:[%s1 + $0x1ad8] sm:$0xff]
    %v885 = vld [vmem:[%s1 + $0x1ae0] sm:$0xff]
    %v886 = vld [vmem:[%s1 + $0x1ae8] sm:$0xff]
    %v887 = vld [vmem:[%s1 + $0x1af0] sm:$0xff]
    %v888 = vld [vmem:[%s1 + $0x1af8] sm:$0xff]
    %v889 = vld [vmem:[%s1 + $0x1b00] sm:$0xff]
    %v890 = vld [vmem:[%s1 + $0x1b08] sm:$0xff]
    %v891 = vld [vmem:[%s1 + $0x1b10] sm:$0xff]
    %v892 = vld [vmem:[%s1 + $0x1b18] sm:$0xff]
    %v893 = vld [vmem:[%s1 + $0x1b20] sm:$0xff]
    %v894 = vld [vmem:[%s1 + $0x1b28] sm:$0xff]
    %v895 = vld [vmem:[%s1 + $0x1b30] sm:$0xff]
    %v896 = vld [vmem:[%s1 + $0x1b38] sm:$0xff]
    %v897 = vld [vmem:[%s1 + $0x1b40] sm:$0xff]
    %v898 = vld [vmem:[%s1 + $0x1b48] sm:$0xff]
    %v899 = vld [vmem:[%s1 + $0x1b50] sm:$0xff]
    %v900 = vld [vmem:[%s1 + $0x1b58] sm:$0xff]
    %v901 = vld [vmem:[%s1 + $0x1b60] sm:$0xff]
    %v902 = vld [vmem:[%s1 + $0x1b68] sm:$0xff]
    %v903 = vld [vmem:[%s1 + $0x1b70] sm:$0xff]
    %v904 = vld [vmem:[%s1 + $0x1b78] sm:$0xff]
    %v905 = vld [vmem:[%s1 + $0x1b80] sm:$0xff]
    %v906 = vld [vmem:[%s1 + $0x1b88] sm:$0xff]
    %v907 = vld [vmem:[%s1 + $0x1b90] sm:$0xff]
    %v908 = vld [vmem:[%s1 + $0x1b98] sm:$0xff]
    %v909 = vld [vmem:[%s1 + $0x1ba0] sm:$0xff]
    %v910 = vld [vmem:[%s1 + $0x1ba8] sm:$0xff]
    %v911 = vld [vmem:[%s1 + $0x1bb0] sm:$0xff]
    %v912 = vld [vmem:[%s1 + $0x1bb8] sm:$0xff]
    %v913 = vld [vmem:[%s1 + $0x1bc0] sm:$0xff]
    %v914 = vld [vmem:[%s1 + $0x1bc8] sm:$0xff]
    %v915 = vld [vmem:[%s1 + $0x1bd0] sm:$0xff]
    %v916 = vld [vmem:[%s1 + $0x1bd8] sm:$0xff]
    %v917 = vld [vmem:[%s1 + $0x1be0] sm:$0xff]
    %v918 = vld [vmem:[%s1 + $0x1be8] sm:$0xff]
    %v919 = vld [vmem:[%s1 + $0x1bf0] sm:$0xff]
    %v920 = vld [vmem:[%s1 + $0x1bf8] sm:$0xff]
    %v921 = vld [vmem:[%s1 + $0x1c00] sm:$0xff]
    %v922 = vld [vmem:[%s1 + $0x1c08] sm:$0xff]
    %v923 = vld [vmem:[%s1 + $0x1c10] sm:$0xff]
    %v924 = vld [vmem:[%s1 + $0x1c18] sm:$0xff]
    %v925 = vld [vmem:[%s1 + $0x1c20] sm:$0xff]
    %v926 = vld [vmem:[%s1 + $0x1c28] sm:$0xff]
    %v927 = vld [vmem:[%s1 + $0x1c30] sm:$0xff]
    %v928 = vld [vmem:[%s1 + $0x1c38] sm:$0xff]
    %v929 = vld [vmem:[%s1 + $0x1c40] sm:$0xff]
    %v930 = vld [vmem:[%s1 + $0x1c48] sm:$0xff]
    %v931 = vld [vmem:[%s1 + $0x1c50] sm:$0xff]
    %v932 = vld [vmem:[%s1 + $0x1c58] sm:$0xff]
    %v933 = vld [vmem:[%s1 + $0x1c60] sm:$0xff]
    %v934 = vld [vmem:[%s1 + $0x1c68] sm:$0xff]
    %v935 = vld [vmem:[%s1 + $0x1c70] sm:$0xff]
    %v936 = vld [vmem:[%s1 + $0x1c78] sm:$0xff]
    %v937 = vld [vmem:[%s1 + $0x1c80] sm:$0xff]
    %v938 = vld [vmem:[%s1 + $0x1c88] sm:$0xff]
    %v939 = vld [vmem:[%s1 + $0x1c90] sm:$0xff]
    %v940 = vld [vmem:[%s1 + $0x1c98] sm:$0xff]
    %v941 = vld [vmem:[%s1 + $0x1ca0] sm:$0xff]
    %v942 = vld [vmem:[%s1 + $0x1ca8] sm:$0xff]
    %v943 = vld [vmem:[%s1 + $0x1cb0] sm:$0xff]
    %v944 = vld [vmem:[%s1 + $0x1cb8] sm:$0xff]
    %v945 = vld [vmem:[%s1 + $0x1cc0] sm:$0xff]
    %v946 = vld [vmem:[%s1 + $0x1cc8] sm:$0xff]
    %v947 = vld [vmem:[%s1 + $0x1cd0] sm:$0xff]
    %v948 = vld [vmem:[%s1 + $0x1cd8] sm:$0xff]
    %v949 = vld [vmem:[%s1 + $0x1ce0] sm:$0xff]
    %v950 = vld [vmem:[%s1 + $0x1ce8] sm:$0xff]
    %v951 = vld [vmem:[%s1 + $0x1cf0] sm:$0xff]
    %v952 = vld [vmem:[%s1 + $0x1cf8] sm:$0xff]
    %v953 = vld [vmem:[%s1 + $0x1d00] sm:$0xff]
    %v954 = vld [vmem:[%s1 + $0x1d08] sm:$0xff]
    %v955 = vld [vmem:[%s1 + $0x1d10] sm:$0xff]
    %v956 = vld [vmem:[%s1 + $0x1d18] sm:$0xff]
    %v957 = vld [vmem:[%s1 + $0x1d20] sm:$0xff]
    %v958 = vld [vmem:[%s1 + $0x1d28] sm:$0xff]
    %v959 = vld [vmem:[%s1 + $0x1d30] sm:$0xff]
    %v960 = vld [vmem:[%s1 + $0x1d38] sm:$0xff]
    %v961 = vld [vmem:[%s1 + $0x1d40] sm:$0xff]
    %v962 = vld [vmem:[%s1 + $0x1d48] sm:$0xff]
    %v963 = vld [vmem:[%s1 + $0x1d50] sm:$0xff]
    %v964 = vld [vmem:[%s1 + $0x1d58] sm:$0xff]
    %v965 = vld [vmem:[%s1 + $0x1d60] sm:$0xff]
    %v966 = vld [vmem:[%s1 + $0x1d68] sm:$0xff]
    %v967 = vld [vmem:[%s1 + $0x1d70] sm:$0xff]
    %v968 = vld [vmem:[%s1 + $0x1d78] sm:$0xff]
    %v969 = vld [vmem:[%s1 + $0x1d80] sm:$0xff]
    %v970 = vld [vmem:[%s1 + $0x1d88] sm:$0xff]
    %v971 = vld [vmem:[%s1 + $0x1d90] sm:$0xff]
    %v972 = vld [vmem:[%s1 + $0x1d98] sm:$0xff]
    %v973 = vld [vmem:[%s1 + $0x1da0] sm:$0xff]
    %v974 = vld [vmem:[%s1 + $0x1da8] sm:$0xff]
    %v975 = vld [vmem:[%s1 + $0x1db0] sm:$0xff]
    %v976 = vld [vmem:[%s1 + $0x1db8] sm:$0xff]
    %v977 = vld [vmem:[%s1 + $0x1dc0] sm:$0xff]
    %v978 = vld [vmem:[%s1 + $0x1dc8] sm:$0xff]
    %v979 = vld [vmem:[%s1 + $0x1dd0] sm:$0xff]
    %v980 = vld [vmem:[%s1 + $0x1dd8] sm:$0xff]
    %v981 = vld [vmem:[%s1 + $0x1de0] sm:$0xff]
    %v982 = vld [vmem:[%s1 + $0x1de8] sm:$0xff]
    %v983 = vld [vmem:[%s1 + $0x1df0] sm:$0xff]
    %v984 = vld [vmem:[%s1 + $0x1df8] sm:$0xff]
    %v985 = vld [vmem:[%s1 + $0x1e00] sm:$0xff]
    %v986 = vld [vmem:[%s1 + $0x1e08] sm:$0xff]
    %v987 = vld [vmem:[%s1 + $0x1e10] sm:$0xff]
    %v988 = vld [vmem:[%s1 + $0x1e18] sm:$0xff]
    %v989 = vld [vmem:[%s1 + $0x1e20] sm:$0xff]
    %v990 = vld [vmem:[%s1 + $0x1e28] sm:$0xff]
    %v991 = vld [vmem:[%s1 + $0x1e30] sm:$0xff]
    %v992 = vld [vmem:[%s1 + $0x1e38] sm:$0xff]
    %v993 = vld [vmem:[%s1 + $0x1e40] sm:$0xff]
    %v994 = vld [vmem:[%s1 + $0x1e48] sm:$0xff]
    %v995 = vld [vmem:[%s1 + $0x1e50] sm:$0xff]
    %v996 = vld [vmem:[%s1 + $0x1e58] sm:$0xff]
    %v997 = vld [vmem:[%s1 + $0x1e60] sm:$0xff]
    %v998 = vld [vmem:[%s1 + $0x1e68] sm:$0xff]
    %v999 = vld [vmem:[%s1 + $0x1e70] sm:$0xff]
    %v1000 = vld [vmem:[%s1 + $0x1e78] sm:$0xff]
    %v1001 = vld [vmem:[%s1 + $0x1e80] sm:$0xff]
    %v1002 = vld [vmem:[%s1 + $0x1e88] sm:$0xff]
    %v1003 = vld [vmem:[%s1 + $0x1e90] sm:$0xff]
    %v1004 = vld [vmem:[%s1 + $0x1e98] sm:$0xff]
    %v1005 = vld [vmem:[%s1 + $0x1ea0] sm:$0xff]
    %v1006 = vld [vmem:[%s1 + $0x1ea8] sm:$0xff]
    %v1007 = vld [vmem:[%s1 + $0x1eb0] sm:$0xff]
    %v1008 = vld [vmem:[%s1 + $0x1eb8] sm:$0xff]
    %v1009 = vld [vmem:[%s1 + $0x1ec0] sm:$0xff]
    %v1010 = vld [vmem:[%s1 + $0x1ec8] sm:$0xff]
    %v1011 = vld [vmem:[%s1 + $0x1ed0] sm:$0xff]
    %v1012 = vld [vmem:[%s1 + $0x1ed8] sm:$0xff]
    %v1013 = vld [vmem:[%s1 + $0x1ee0] sm:$0xff]
    %v1014 = vld [vmem:[%s1 + $0x1ee8] sm:$0xff]
    %v1015 = vld [vmem:[%s1 + $0x1ef0] sm:$0xff]
    %v1016 = vld [vmem:[%s1 + $0x1ef8] sm:$0xff]
    %v1017 = vld [vmem:[%s1 + $0x1f00] sm:$0xff]
    %v1018 = vld [vmem:[%s1 + $0x1f08] sm:$0xff]
    %v1019 = vld [vmem:[%s1 + $0x1f10] sm:$0xff]
    %v1020 = vld [vmem:[%s1 + $0x1f18] sm:$0xff]
    %v1021 = vld [vmem:[%s1 + $0x1f20] sm:$0xff]
    %v1022 = vld [vmem:[%s1 + $0x1f28] sm:$0xff]
    %v1023 = vld [vmem:[%s1 + $0x1f30] sm:$0xff]
    %v1024 = vld [vmem:[%s1 + $0x1f38] sm:$0xff]
    %v1025 = vld [vmem:[%s1 + $0x1f40] sm:$0xff]
    %v1026 = vld [vmem:[%s1 + $0x1f48] sm:$0xff]
    %v1027 = vld [vmem:[%s1 + $0x1f50] sm:$0xff]
    %v1028 = vld [vmem:[%s1 + $0x1f58] sm:$0xff]
    %v1029 = vld [vmem:[%s1 + $0x1f60] sm:$0xff]
    %v1030 = vld [vmem:[%s1 + $0x1f68] sm:$0xff]
    %v1031 = vld [vmem:[%s1 + $0x1f70] sm:$0xff]
    %v1032 = vld [vmem:[%s1 + $0x1f78] sm:$0xff]
    %v1033 = vld [vmem:[%s1 + $0x1f80] sm:$0xff]
    %v1034 = vld [vmem:[%s1 + $0x1f88] sm:$0xff]
    %v1035 = vld [vmem:[%s1 + $0x1f90] sm:$0xff]
    %v1036 = vld [vmem:[%s1 + $0x1f98] sm:$0xff]
    %v1037 = vld [vmem:[%s1 + $0x1fa0] sm:$0xff]
    %v1038 = vld [vmem:[%s1 + $0x1fa8] sm:$0xff]
    %v1039 = vld [vmem:[%s1 + $0x1fb0] sm:$0xff]
    %v1040 = vld [vmem:[%s1 + $0x1fb8] sm:$0xff]
    %v1041 = vld [vmem:[%s1 + $0x1fc0] sm:$0xff]
    %v1042 = vld [vmem:[%s1 + $0x1fc8] sm:$0xff]
    %v1043 = vld [vmem:[%s1 + $0x1fd0] sm:$0xff]
    %v1044 = vld [vmem:[%s1 + $0x1fd8] sm:$0xff]
    %v1045 = vld [vmem:[%s1 + $0x1fe0] sm:$0xff]
    %v1046 = vld [vmem:[%s1 + $0x1fe8] sm:$0xff]
    %v1047 = vld [vmem:[%s1 + $0x1ff0] sm:$0xff]
    %v1048 = vld [vmem:[%s1 + $0x1ff8] sm:$0xff]
    %v1049 = vld [vmem:[%s1 + $0x2000] sm:$0xff]
    %v1050 = vld [vmem:[%s1 + $0x2008] sm:$0xff]
    %v1051 = vld [vmem:[%s1 + $0x2010] sm:$0xff]
    %v1052 = vld [vmem:[%s1 + $0x2018] sm:$0xff]
    %v1053 = vld [vmem:[%s1 + $0x2020] sm:$0xff]
    %v1054 = vld [vmem:[%s1 + $0x2028] sm:$0xff]
    %v1055 = vld [vmem:[%s1 + $0x2030] sm:$0xff]
    %v1056 = vld [vmem:[%s1 + $0x2038] sm:$0xff]
    %v1057 = vld [vmem:[%s1 + $0x2040] sm:$0xff]
    %v1058 = vld [vmem:[%s1 + $0x2048] sm:$0xff]
    %v1059 = vld [vmem:[%s1 + $0x2050] sm:$0xff]
    %v1060 = vld [vmem:[%s1 + $0x2058] sm:$0xff]
    %v1061 = vld [vmem:[%s1 + $0x2060] sm:$0xff]
    %v1062 = vld [vmem:[%s1 + $0x2068] sm:$0xff]
    %v1063 = vld [vmem:[%s1 + $0x2070] sm:$0xff]
    %v1064 = vld [vmem:[%s1 + $0x2078] sm:$0xff]
    %v1065 = vld [vmem:[%s1 + $0x2080] sm:$0xff]
    %v1066 = vld [vmem:[%s1 + $0x2088] sm:$0xff]
    %v1067 = vld [vmem:[%s1 + $0x2090] sm:$0xff]
    %v1068 = vld [vmem:[%s1 + $0x2098] sm:$0xff]
    %v1069 = vld [vmem:[%s1 + $0x20a0] sm:$0xff]
    %v1070 = vld [vmem:[%s1 + $0x20a8] sm:$0xff]
    %v1071 = vld [vmem:[%s1 + $0x20b0] sm:$0xff]
    %v1072 = vld [vmem:[%s1 + $0x20b8] sm:$0xff]
    %v1073 = vld [vmem:[%s1 + $0x20c0] sm:$0xff]
    %v1074 = vld [vmem:[%s1 + $0x20c8] sm:$0xff]
    %v1075 = vld [vmem:[%s1 + $0x20d0] sm:$0xff]
    %v1076 = vld [vmem:[%s1 + $0x20d8] sm:$0xff]
    %v1077 = vld [vmem:[%s1 + $0x20e0] sm:$0xff]
    %v1078 = vld [vmem:[%s1 + $0x20e8] sm:$0xff]
    %v1079 = vld [vmem:[%s1 + $0x20f0] sm:$0xff]
    %v1080 = vld [vmem:[%s1 + $0x20f8] sm:$0xff]
    %v1081 = vld [vmem:[%s1 + $0x2100] sm:$0xff]
    %v1082 = vld [vmem:[%s1 + $0x2108] sm:$0xff]
    %v1083 = vld [vmem:[%s1 + $0x2110] sm:$0xff]
    %v1084 = vld [vmem:[%s1 + $0x2118] sm:$0xff]
    %v1085 = vld [vmem:[%s1 + $0x2120] sm:$0xff]
    %v1086 = vld [vmem:[%s1 + $0x2128] sm:$0xff]
    %v1087 = vld [vmem:[%s1 + $0x2130] sm:$0xff]
    %v1088 = vld [vmem:[%s1 + $0x2138] sm:$0xff]
    %v1089 = vld [vmem:[%s1 + $0x2140] sm:$0xff]
    %v1090 = vld [vmem:[%s1 + $0x2148] sm:$0xff]
    %v1091 = vld [vmem:[%s1 + $0x2150] sm:$0xff]
    %v1092 = vld [vmem:[%s1 + $0x2158] sm:$0xff]
    %v1093 = vld [vmem:[%s1 + $0x2160] sm:$0xff]
    %v1094 = vld [vmem:[%s1 + $0x2168] sm:$0xff]
    %v1095 = vld [vmem:[%s1 + $0x2170] sm:$0xff]
    %v1096 = vld [vmem:[%s1 + $0x2178] sm:$0xff]
    %v1097 = vld [vmem:[%s1 + $0x2180] sm:$0xff]
    %v1098 = vld [vmem:[%s1 + $0x2188] sm:$0xff]
    %v1099 = vld [vmem:[%s1 + $0x2190] sm:$0xff]
    %v1100 = vld [vmem:[%s1 + $0x2198] sm:$0xff]
    %v1101 = vld [vmem:[%s1 + $0x21a0] sm:$0xff]
    %v1102 = vld [vmem:[%s1 + $0x21a8] sm:$0xff]
    %v1103 = vld [vmem:[%s1 + $0x21b0] sm:$0xff]
    %v1104 = vld [vmem:[%s1 + $0x21b8] sm:$0xff]
    %v1105 = vld [vmem:[%s1 + $0x21c0] sm:$0xff]
    %v1106 = vld [vmem:[%s1 + $0x21c8] sm:$0xff]
    %v1107 = vld [vmem:[%s1 + $0x21d0] sm:$0xff]
    %v1108 = vld [vmem:[%s1 + $0x21d8] sm:$0xff]
    %v1109 = vld [vmem:[%s1 + $0x21e0] sm:$0xff]
    %v1110 = vld [vmem:[%s1 + $0x21e8] sm:$0xff]
    %v1111 = vld [vmem:[%s1 + $0x21f0] sm:$0xff]
    %v1112 = vld [vmem:[%s1 + $0x21f8] sm:$0xff]
    %v1113 = vld [vmem:[%s1 + $0x2200] sm:$0xff]
    %v1114 = vld [vmem:[%s1 + $0x2208] sm:$0xff]
    %v1115 = vld [vmem:[%s1 + $0x2210] sm:$0xff]
    %v1116 = vld [vmem:[%s1 + $0x2218] sm:$0xff]
    %v1117 = vld [vmem:[%s1 + $0x2220] sm:$0xff]
    %v1118 = vld [vmem:[%s1 + $0x2228] sm:$0xff]
    %v1119 = vld [vmem:[%s1 + $0x2230] sm:$0xff]
    %v1120 = vld [vmem:[%s1 + $0x2238] sm:$0xff]
    %v1121 = vld [vmem:[%s1 + $0x2240] sm:$0xff]
    %v1122 = vld [vmem:[%s1 + $0x2248] sm:$0xff]
    %v1123 = vld [vmem:[%s1 + $0x2250] sm:$0xff]
    %v1124 = vld [vmem:[%s1 + $0x2258] sm:$0xff]
    %v1125 = vld [vmem:[%s1 + $0x2260] sm:$0xff]
    %v1126 = vld [vmem:[%s1 + $0x2268] sm:$0xff]
    %v1127 = vld [vmem:[%s1 + $0x2270] sm:$0xff]
    %v1128 = vld [vmem:[%s1 + $0x2278] sm:$0xff]
    %v1129 = vld [vmem:[%s1 + $0x2280] sm:$0xff]
    %v1130 = vld [vmem:[%s1 + $0x2288] sm:$0xff]
    %v1131 = vld [vmem:[%s1 + $0x2290] sm:$0xff]
    %v1132 = vld [vmem:[%s1 + $0x2298] sm:$0xff]
    %v1133 = vld [vmem:[%s1 + $0x22a0] sm:$0xff]
    %v1134 = vld [vmem:[%s1 + $0x22a8] sm:$0xff]
    %v1135 = vld [vmem:[%s1 + $0x22b0] sm:$0xff]
    %v1136 = vld [vmem:[%s1 + $0x22b8] sm:$0xff]
    %v1137 = vld [vmem:[%s1 + $0x22c0] sm:$0xff]
    %v1138 = vld [vmem:[%s1 + $0x22c8] sm:$0xff]
    %v1139 = vld [vmem:[%s1 + $0x22d0] sm:$0xff]
    %v1140 = vld [vmem:[%s1 + $0x22d8] sm:$0xff]
    %v1141 = vld [vmem:[%s1 + $0x22e0] sm:$0xff]
    %v1142 = vld [vmem:[%s1 + $0x22e8] sm:$0xff]
    %v1143 = vld [vmem:[%s1 + $0x22f0] sm:$0xff]
    %v1144 = vld [vmem:[%s1 + $0x22f8] sm:$0xff]
    %v1145 = vld [vmem:[%s1 + $0x2300] sm:$0xff]
    %v1146 = vld [vmem:[%s1 + $0x2308] sm:$0xff]
    %v1147 = vld [vmem:[%s1 + $0x2310] sm:$0xff]
    %v1148 = vld [vmem:[%s1 + $0x2318] sm:$0xff]
    %v1149 = vld [vmem:[%s1 + $0x2320] sm:$0xff]
    %v1150 = vld [vmem:[%s1 + $0x2328] sm:$0xff]
    %v1151 = vld [vmem:[%s1 + $0x2330] sm:$0xff]
    %v1152 = vld [vmem:[%s1 + $0x2338] sm:$0xff]
    %v1153 = vld [vmem:[%s1 + $0x2340] sm:$0xff]
    %v1154 = vld [vmem:[%s1 + $0x2348] sm:$0xff]
    %v1155 = vld [vmem:[%s1 + $0x2350] sm:$0xff]
    %v1156 = vld [vmem:[%s1 + $0x2358] sm:$0xff]
    %v1157 = vld [vmem:[%s1 + $0x2360] sm:$0xff]
    %v1158 = vld [vmem:[%s1 + $0x2368] sm:$0xff]
    %v1159 = vld [vmem:[%s1 + $0x2370] sm:$0xff]
    %v1160 = vld [vmem:[%s1 + $0x2378] sm:$0xff]
    %v1161 = vld [vmem:[%s1 + $0x2380] sm:$0xff]
    %v1162 = vld [vmem:[%s1 + $0x2388] sm:$0xff]
    %v1163 = vld [vmem:[%s1 + $0x2390] sm:$0xff]
    %v1164 = vld [vmem:[%s1 + $0x2398] sm:$0xff]
    %v1165 = vld [vmem:[%s1 + $0x23a0] sm:$0xff]
    %v1166 = vld [vmem:[%s1 + $0x23a8] sm:$0xff]
    %v1167 = vld [vmem:[%s1 + $0x23b0] sm:$0xff]
    %v1168 = vld [vmem:[%s1 + $0x23b8] sm:$0xff]
    %v1169 = vld [vmem:[%s1 + $0x23c0] sm:$0xff]
    %v1170 = vld [vmem:[%s1 + $0x23c8] sm:$0xff]
    %v1171 = vld [vmem:[%s1 + $0x23d0] sm:$0xff]
    %v1172 = vld [vmem:[%s1 + $0x23d8] sm:$0xff]
    %v1173 = vld [vmem:[%s1 + $0x23e0] sm:$0xff]
    %v1174 = vld [vmem:[%s1 + $0x23e8] sm:$0xff]
    %v1175 = vld [vmem:[%s1 + $0x23f0] sm:$0xff]
    %v1176 = vld [vmem:[%s1 + $0x23f8] sm:$0xff]
    %v1177 = vld [vmem:[%s1 + $0x2400] sm:$0xff]
    %v1178 = vld [vmem:[%s1 + $0x2408] sm:$0xff]
    %v1179 = vld [vmem:[%s1 + $0x2410] sm:$0xff]
    %v1180 = vld [vmem:[%s1 + $0x2418] sm:$0xff]
    %v1181 = vld [vmem:[%s1 + $0x2420] sm:$0xff]
    %v1182 = vld [vmem:[%s1 + $0x2428] sm:$0xff]
    %v1183 = vld [vmem:[%s1 + $0x2430] sm:$0xff]
    %v1184 = vld [vmem:[%s1 + $0x2438] sm:$0xff]
    %v1185 = vld [vmem:[%s1 + $0x2440] sm:$0xff]
    %v1186 = vld [vmem:[%s1 + $0x2448] sm:$0xff]
    %v1187 = vld [vmem:[%s1 + $0x2450] sm:$0xff]
    %v1188 = vld [vmem:[%s1 + $0x2458] sm:$0xff]
    %v1189 = vld [vmem:[%s1 + $0x2460] sm:$0xff]
    %v1190 = vld [vmem:[%s1 + $0x2468] sm:$0xff]
    %v1191 = vld [vmem:[%s1 + $0x2470] sm:$0xff]
    %v1192 = vld [vmem:[%s1 + $0x2478] sm:$0xff]
    %v1193 = vld [vmem:[%s1 + $0x2480] sm:$0xff]
    %v1194 = vld [vmem:[%s1 + $0x2488] sm:$0xff]
    %v1195 = vld [vmem:[%s1 + $0x2490] sm:$0xff]
    %v1196 = vld [vmem:[%s1 + $0x2498] sm:$0xff]
    %v1197 = vld [vmem:[%s1 + $0x24a0] sm:$0xff]
    %v1198 = vld [vmem:[%s1 + $0x24a8] sm:$0xff]
    %v1199 = vld [vmem:[%s1 + $0x24b0] sm:$0xff]
    %v1200 = vld [vmem:[%s1 + $0x24b8] sm:$0xff]
    %v1201 = vld [vmem:[%s1 + $0x24c0] sm:$0xff]
    %v1202 = vld [vmem:[%s1 + $0x24c8] sm:$0xff]
    %v1203 = vld [vmem:[%s1 + $0x24d0] sm:$0xff]
    %v1204 = vld [vmem:[%s1 + $0x24d8] sm:$0xff]
    %v1205 = vld [vmem:[%s1 + $0x24e0] sm:$0xff]
    %v1206 = vld [vmem:[%s1 + $0x24e8] sm:$0xff]
    %v1207 = vld [vmem:[%s1 + $0x24f0] sm:$0xff]
    %v1208 = vld [vmem:[%s1 + $0x24f8] sm:$0xff]
    %v1209 = vld [vmem:[%s1 + $0x2500] sm:$0xff]
    %v1210 = vld [vmem:[%s1 + $0x2508] sm:$0xff]
    %v1211 = vld [vmem:[%s1 + $0x2510] sm:$0xff]
    %v1212 = vld [vmem:[%s1 + $0x2518] sm:$0xff]
    %v1213 = vld [vmem:[%s1 + $0x2520] sm:$0xff]
    %v1214 = vld [vmem:[%s1 + $0x2528] sm:$0xff]
    %v1215 = vld [vmem:[%s1 + $0x2530] sm:$0xff]
    %v1216 = vld [vmem:[%s1 + $0x2538] sm:$0xff]
    %v1217 = vld [vmem:[%s1 + $0x2540] sm:$0xff]
    %v1218 = vld [vmem:[%s1 + $0x2548] sm:$0xff]
    %v1219 = vld [vmem:[%s1 + $0x2550] sm:$0xff]
    %v1220 = vld [vmem:[%s1 + $0x2558] sm:$0xff]
    %v1221 = vld [vmem:[%s1 + $0x2560] sm:$0xff]
    %v1222 = vld [vmem:[%s1 + $0x2568] sm:$0xff]
    %v1223 = vld [vmem:[%s1 + $0x2570] sm:$0xff]
    %v1224 = vld [vmem:[%s1 + $0x2578] sm:$0xff]
    %v1225 = vld [vmem:[%s1 + $0x2580] sm:$0xff]
    %v1226 = vld [vmem:[%s1 + $0x2588] sm:$0xff]
    %v1227 = vld [vmem:[%s1 + $0x2590] sm:$0xff]
    %v1228 = vld [vmem:[%s1 + $0x2598] sm:$0xff]
    %v1229 = vld [vmem:[%s1 + $0x25a0] sm:$0xff]
    %v1230 = vld [vmem:[%s1 + $0x25a8] sm:$0xff]
    %v1231 = vld [vmem:[%s1 + $0x25b0] sm:$0xff]
    %v1232 = vld [vmem:[%s1 + $0x25b8] sm:$0xff]
    %v1233 = vld [vmem:[%s1 + $0x25c0] sm:$0xff]
    %v1234 = vld [vmem:[%s1 + $0x25c8] sm:$0xff]
    %v1235 = vld [vmem:[%s1 + $0x25d0] sm:$0xff]
    %v1236 = vld [vmem:[%s1 + $0x25d8] sm:$0xff]
    %v1237 = vld [vmem:[%s1 + $0x25e0] sm:$0xff]
    %v1238 = vld [vmem:[%s1 + $0x25e8] sm:$0xff]
    %v1239 = vld [vmem:[%s1 + $0x25f0] sm:$0xff]
    %v1240 = vld [vmem:[%s1 + $0x25f8] sm:$0xff]
    %v1241 = vld [vmem:[%s1 + $0x2600] sm:$0xff]
    %v1242 = vld [vmem:[%s1 + $0x2608] sm:$0xff]
    %v1243 = vld [vmem:[%s1 + $0x2610] sm:$0xff]
    %v1244 = vld [vmem:[%s1 + $0x2618] sm:$0xff]
    %v1245 = vld [vmem:[%s1 + $0x2620] sm:$0xff]
    %v1246 = vld [vmem:[%s1 + $0x2628] sm:$0xff]
    %v1247 = vld [vmem:[%s1 + $0x2630] sm:$0xff]
    %v1248 = vld [vmem:[%s1 + $0x2638] sm:$0xff]
    %v1249 = vld [vmem:[%s1 + $0x2640] sm:$0xff]
    %v1250 = vld [vmem:[%s1 + $0x2648] sm:$0xff]
    %v1251 = vld [vmem:[%s1 + $0x2650] sm:$0xff]
    %v1252 = vld [vmem:[%s1 + $0x2658] sm:$0xff]
    %v1253 = vld [vmem:[%s1 + $0x2660] sm:$0xff]
    %v1254 = vld [vmem:[%s1 + $0x2668] sm:$0xff]
    %v1255 = vld [vmem:[%s1 + $0x2670] sm:$0xff]
    %v1256 = vld [vmem:[%s1 + $0x2678] sm:$0xff]
    %v1257 = vld [vmem:[%s1 + $0x2680] sm:$0xff]
    %v1258 = vld [vmem:[%s1 + $0x2688] sm:$0xff]
    %v1259 = vld [vmem:[%s1 + $0x2690] sm:$0xff]
    %v1260 = vld [vmem:[%s1 + $0x2698] sm:$0xff]
    %v1261 = vld [vmem:[%s1 + $0x26a0] sm:$0xff]
    %v1262 = vld [vmem:[%s1 + $0x26a8] sm:$0xff]
    %v1263 = vld [vmem:[%s1 + $0x26b0] sm:$0xff]
    %v1264 = vld [vmem:[%s1 + $0x26b8] sm:$0xff]
    %v1265 = vld [vmem:[%s1 + $0x26c0] sm:$0xff]
    %v1266 = vld [vmem:[%s1 + $0x26c8] sm:$0xff]
    %v1267 = vld [vmem:[%s1 + $0x26d0] sm:$0xff]
    %v1268 = vld [vmem:[%s1 + $0x26d8] sm:$0xff]
    %v1269 = vld [vmem:[%s1 + $0x26e0] sm:$0xff]
    %v1270 = vld [vmem:[%s1 + $0x26e8] sm:$0xff]
    %v1271 = vld [vmem:[%s1 + $0x26f0] sm:$0xff]
    %v1272 = vld [vmem:[%s1 + $0x26f8] sm:$0xff]
    %v1273 = vld [vmem:[%s1 + $0x2700] sm:$0xff]
    %v1274 = vld [vmem:[%s1 + $0x2708] sm:$0xff]
    %v1275 = vld [vmem:[%s1 + $0x2710] sm:$0xff]
    %v1276 = vld [vmem:[%s1 + $0x2718] sm:$0xff]
    %v1277 = vld [vmem:[%s1 + $0x2720] sm:$0xff]
    %v1278 = vld [vmem:[%s1 + $0x2728] sm:$0xff]
    %v1279 = vld [vmem:[%s1 + $0x2730] sm:$0xff]
    %v1280 = vld [vmem:[%s1 + $0x2738] sm:$0xff]
    %v1281 = vld [vmem:[%s1 + $0x2740] sm:$0xff]
    %v1282 = vld [vmem:[%s1 + $0x2748] sm:$0xff]
    %v1283 = vld [vmem:[%s1 + $0x2750] sm:$0xff]
    %v1284 = vld [vmem:[%s1 + $0x2758] sm:$0xff]
    %v1285 = vld [vmem:[%s1 + $0x2760] sm:$0xff]
    %v1286 = vld [vmem:[%s1 + $0x2768] sm:$0xff]
    %v1287 = vld [vmem:[%s1 + $0x2770] sm:$0xff]
    %v1288 = vld [vmem:[%s1 + $0x2778] sm:$0xff]
    %v1289 = vld [vmem:[%s1 + $0x2780] sm:$0xff]
    %v1290 = vld [vmem:[%s1 + $0x2788] sm:$0xff]
    %v1291 = vld [vmem:[%s1 + $0x2790] sm:$0xff]
    %v1292 = vld [vmem:[%s1 + $0x2798] sm:$0xff]
    %v1293 = vld [vmem:[%s1 + $0x27a0] sm:$0xff]
    %v1294 = vld [vmem:[%s1 + $0x27a8] sm:$0xff]
    %v1295 = vld [vmem:[%s1 + $0x27b0] sm:$0xff]
    %v1296 = vld [vmem:[%s1 + $0x27b8] sm:$0xff]
    %v1297 = vld [vmem:[%s1 + $0x27c0] sm:$0xff]
    %v1298 = vld [vmem:[%s1 + $0x27c8] sm:$0xff]
    %v1299 = vld [vmem:[%s1 + $0x27d0] sm:$0xff]
    %v1300 = vld [vmem:[%s1 + $0x27d8] sm:$0xff]
    %v1301 = vld [vmem:[%s1 + $0x27e0] sm:$0xff]
    %v1302 = vld [vmem:[%s1 + $0x27e8] sm:$0xff]
    %v1303 = vld [vmem:[%s1 + $0x27f0] sm:$0xff]
    %v1304 = vld [vmem:[%s1 + $0x27f8] sm:$0xff]
    %v1305 = vld [vmem:[%s1 + $0x2800] sm:$0xff]
    %v1306 = vld [vmem:[%s1 + $0x2808] sm:$0xff]
    %v1307 = vld [vmem:[%s1 + $0x2810] sm:$0xff]
    %v1308 = vld [vmem:[%s1 + $0x2818] sm:$0xff]
    %v1309 = vld [vmem:[%s1 + $0x2820] sm:$0xff]
    %v1310 = vld [vmem:[%s1 + $0x2828] sm:$0xff]
    %v1311 = vld [vmem:[%s1 + $0x2830] sm:$0xff]
    %v1312 = vld [vmem:[%s1 + $0x2838] sm:$0xff]
    %v1313 = vld [vmem:[%s1 + $0x2840] sm:$0xff]
    %v1314 = vld [vmem:[%s1 + $0x2848] sm:$0xff]
    %v1315 = vld [vmem:[%s1 + $0x2850] sm:$0xff]
    %v1316 = vld [vmem:[%s1 + $0x2858] sm:$0xff]
    %v1317 = vld [vmem:[%s1 + $0x2860] sm:$0xff]
    %v1318 = vld [vmem:[%s1 + $0x2868] sm:$0xff]
    %v1319 = vld [vmem:[%s1 + $0x2870] sm:$0xff]
    %v1320 = vld [vmem:[%s1 + $0x2878] sm:$0xff]
    %v1321 = vld [vmem:[%s1 + $0x2880] sm:$0xff]
    %v1322 = vld [vmem:[%s1 + $0x2888] sm:$0xff]
    %v1323 = vld [vmem:[%s1 + $0x2890] sm:$0xff]
    %v1324 = vld [vmem:[%s1 + $0x2898] sm:$0xff]
    %v1325 = vld [vmem:[%s1 + $0x28a0] sm:$0xff]
    %v1326 = vld [vmem:[%s1 + $0x28a8] sm:$0xff]
    %v1327 = vld [vmem:[%s1 + $0x28b0] sm:$0xff]
    %v1328 = vld [vmem:[%s1 + $0x28b8] sm:$0xff]
    %v1329 = vld [vmem:[%s1 + $0x28c0] sm:$0xff]
    %v1330 = vld [vmem:[%s1 + $0x28c8] sm:$0xff]
    %v1331 = vld [vmem:[%s1 + $0x28d0] sm:$0xff]
    %v1332 = vld [vmem:[%s1 + $0x28d8] sm:$0xff]
    %v1333 = vld [vmem:[%s1 + $0x28e0] sm:$0xff]
    %v1334 = vld [vmem:[%s1 + $0x28e8] sm:$0xff]
    %v1335 = vld [vmem:[%s1 + $0x28f0] sm:$0xff]
    %v1336 = vld [vmem:[%s1 + $0x28f8] sm:$0xff]
    %v1337 = vld [vmem:[%s1 + $0x2900] sm:$0xff]
    %v1338 = vld [vmem:[%s1 + $0x2908] sm:$0xff]
    %v1339 = vld [vmem:[%s1 + $0x2910] sm:$0xff]
    %v1340 = vld [vmem:[%s1 + $0x2918] sm:$0xff]
    %v1341 = vld [vmem:[%s1 + $0x2920] sm:$0xff]
    %v1342 = vld [vmem:[%s1 + $0x2928] sm:$0xff]
    %v1343 = vld [vmem:[%s1 + $0x2930] sm:$0xff]
    %v1344 = vld [vmem:[%s1 + $0x2938] sm:$0xff]
    %v1345 = vld [vmem:[%s1 + $0x2940] sm:$0xff]
    %v1346 = vld [vmem:[%s1 + $0x2948] sm:$0xff]
    %v1347 = vld [vmem:[%s1 + $0x2950] sm:$0xff]
    %v1348 = vld [vmem:[%s1 + $0x2958] sm:$0xff]
    %v1349 = vld [vmem:[%s1 + $0x2960] sm:$0xff]
    %v1350 = vld [vmem:[%s1 + $0x2968] sm:$0xff]
    %v1351 = vld [vmem:[%s1 + $0x2970] sm:$0xff]
    %v1352 = vld [vmem:[%s1 + $0x2978] sm:$0xff]
    %v1353 = vld [vmem:[%s1 + $0x2980] sm:$0xff]
    %v1354 = vld [vmem:[%s1 + $0x2988] sm:$0xff]
    %v1355 = vld [vmem:[%s1 + $0x2990] sm:$0xff]
    %v1356 = vld [vmem:[%s1 + $0x2998] sm:$0xff]
    %v1357 = vld [vmem:[%s1 + $0x29a0] sm:$0xff]
    %v1358 = vld [vmem:[%s1 + $0x29a8] sm:$0xff]
    %v1359 = vld [vmem:[%s1 + $0x29b0] sm:$0xff]
    %v1360 = vld [vmem:[%s1 + $0x29b8] sm:$0xff]
    %v1361 = vld [vmem:[%s1 + $0x29c0] sm:$0xff]
    %v1362 = vld [vmem:[%s1 + $0x29c8] sm:$0xff]
    %v1363 = vld [vmem:[%s1 + $0x29d0] sm:$0xff]
    %v1364 = vld [vmem:[%s1 + $0x29d8] sm:$0xff]
    %v1365 = vld [vmem:[%s1 + $0x29e0] sm:$0xff]
    %v1366 = vld [vmem:[%s1 + $0x29e8] sm:$0xff]
    %v1367 = vld [vmem:[%s1 + $0x29f0] sm:$0xff]
    %v1368 = vld [vmem:[%s1 + $0x29f8] sm:$0xff]
    %v1369 = vld [vmem:[%s1 + $0x2a00] sm:$0xff]
    %v1370 = vld [vmem:[%s1 + $0x2a08] sm:$0xff]
    %v1371 = vld [vmem:[%s1 + $0x2a10] sm:$0xff]
    %v1372 = vld [vmem:[%s1 + $0x2a18] sm:$0xff]
    %v1373 = vld [vmem:[%s1 + $0x2a20] sm:$0xff]
    %v1374 = vld [vmem:[%s1 + $0x2a28] sm:$0xff]
    %v1375 = vld [vmem:[%s1 + $0x2a30] sm:$0xff]
    %v1376 = vld [vmem:[%s1 + $0x2a38] sm:$0xff]
    %v1377 = vld [vmem:[%s1 + $0x2a40] sm:$0xff]
    %v1378 = vld [vmem:[%s1 + $0x2a48] sm:$0xff]
    %v1379 = vld [vmem:[%s1 + $0x2a50] sm:$0xff]
    %v1380 = vld [vmem:[%s1 + $0x2a58] sm:$0xff]
    %v1381 = vld [vmem:[%s1 + $0x2a60] sm:$0xff]
    %v1382 = vld [vmem:[%s1 + $0x2a68] sm:$0xff]
    %v1383 = vld [vmem:[%s1 + $0x2a70] sm:$0xff]
    %v1384 = vld [vmem:[%s1 + $0x2a78] sm:$0xff]
    %v1385 = vld [vmem:[%s1 + $0x2a80] sm:$0xff]
    %v1386 = vld [vmem:[%s1 + $0x2a88] sm:$0xff]
    %v1387 = vld [vmem:[%s1 + $0x2a90] sm:$0xff]
    %v1388 = vld [vmem:[%s1 + $0x2a98] sm:$0xff]
    %v1389 = vld [vmem:[%s1 + $0x2aa0] sm:$0xff]
    %v1390 = vld [vmem:[%s1 + $0x2aa8] sm:$0xff]
    %v1391 = vld [vmem:[%s1 + $0x2ab0] sm:$0xff]
    %v1392 = vld [vmem:[%s1 + $0x2ab8] sm:$0xff]
    %v1393 = vld [vmem:[%s1 + $0x2ac0] sm:$0xff]
    %v1394 = vld [vmem:[%s1 + $0x2ac8] sm:$0xff]
    %v1395 = vld [vmem:[%s1 + $0x2ad0] sm:$0xff]
    %v1396 = vld [vmem:[%s1 + $0x2ad8] sm:$0xff]
    %v1397 = vld [vmem:[%s1 + $0x2ae0] sm:$0xff]
    %v1398 = vld [vmem:[%s1 + $0x2ae8] sm:$0xff]
    %v1399 = vld [vmem:[%s1 + $0x2af0] sm:$0xff]
    %v1400 = vld [vmem:[%s1 + $0x2af8] sm:$0xff]
    %v1401 = vld [vmem:[%s1 + $0x2b00] sm:$0xff]
    %v1402 = vld [vmem:[%s1 + $0x2b08] sm:$0xff]
    %v1403 = vld [vmem:[%s1 + $0x2b10] sm:$0xff]
    %v1404 = vld [vmem:[%s1 + $0x2b18] sm:$0xff]
    %v1405 = vld [vmem:[%s1 + $0x2b20] sm:$0xff]
    %v1406 = vld [vmem:[%s1 + $0x2b28] sm:$0xff]
    %v1407 = vld [vmem:[%s1 + $0x2b30] sm:$0xff]
    %v1408 = vld [vmem:[%s1 + $0x2b38] sm:$0xff]
    %v1409 = vld [vmem:[%s1 + $0x2b40] sm:$0xff]
    %v1410 = vld [vmem:[%s1 + $0x2b48] sm:$0xff]
    %v1411 = vld [vmem:[%s1 + $0x2b50] sm:$0xff]
    %v1412 = vld [vmem:[%s1 + $0x2b58] sm:$0xff]
    %v1413 = vld [vmem:[%s1 + $0x2b60] sm:$0xff]
    %v1414 = vld [vmem:[%s1 + $0x2b68] sm:$0xff]
    %v1415 = vld [vmem:[%s1 + $0x2b70] sm:$0xff]
    %v1416 = vld [vmem:[%s1 + $0x2b78] sm:$0xff]
    %v1417 = vld [vmem:[%s1 + $0x2b80] sm:$0xff]
    %v1418 = vld [vmem:[%s1 + $0x2b88] sm:$0xff]
    %v1419 = vld [vmem:[%s1 + $0x2b90] sm:$0xff]
    %v1420 = vld [vmem:[%s1 + $0x2b98] sm:$0xff]
    %v1421 = vld [vmem:[%s1 + $0x2ba0] sm:$0xff]
    %v1422 = vld [vmem:[%s1 + $0x2ba8] sm:$0xff]
    %v1423 = vld [vmem:[%s1 + $0x2bb0] sm:$0xff]
    %v1424 = vld [vmem:[%s1 + $0x2bb8] sm:$0xff]
    %v1425 = vld [vmem:[%s1 + $0x2bc0] sm:$0xff]
    %v1426 = vld [vmem:[%s1 + $0x2bc8] sm:$0xff]
    %v1427 = vld [vmem:[%s1 + $0x2bd0] sm:$0xff]
    %v1428 = vld [vmem:[%s1 + $0x2bd8] sm:$0xff]
    %v1429 = vld [vmem:[%s1 + $0x2be0] sm:$0xff]
    %v1430 = vld [vmem:[%s1 + $0x2be8] sm:$0xff]
    %v1431 = vld [vmem:[%s1 + $0x2bf0] sm:$0xff]
    %v1432 = vld [vmem:[%s1 + $0x2bf8] sm:$0xff]
    %v1433 = vld [vmem:[%s1 + $0x2c00] sm:$0xff]
    %v1434 = vld [vmem:[%s1 + $0x2c08] sm:$0xff]
    %v1435 = vld [vmem:[%s1 + $0x2c10] sm:$0xff]
    %v1436 = vld [vmem:[%s1 + $0x2c18] sm:$0xff]
    %v1437 = vld [vmem:[%s1 + $0x2c20] sm:$0xff]
    %v1438 = vld [vmem:[%s1 + $0x2c28] sm:$0xff]
    %v1439 = vld [vmem:[%s1 + $0x2c30] sm:$0xff]
    %v1440 = vld [vmem:[%s1 + $0x2c38] sm:$0xff]
    %v1441 = vld [vmem:[%s1 + $0x2c40] sm:$0xff]
    %v1442 = vld [vmem:[%s1 + $0x2c48] sm:$0xff]
    %v1443 = vld [vmem:[%s1 + $0x2c50] sm:$0xff]
    %v1444 = vld [vmem:[%s1 + $0x2c58] sm:$0xff]
    %v1445 = vld [vmem:[%s1 + $0x2c60] sm:$0xff]
    %v1446 = vld [vmem:[%s1 + $0x2c68] sm:$0xff]
    %v1447 = vld [vmem:[%s1 + $0x2c70] sm:$0xff]
    %v1448 = vld [vmem:[%s1 + $0x2c78] sm:$0xff]
    %v1449 = vld [vmem:[%s1 + $0x2c80] sm:$0xff]
    %v1450 = vld [vmem:[%s1 + $0x2c88] sm:$0xff]
    %v1451 = vld [vmem:[%s1 + $0x2c90] sm:$0xff]
    %v1452 = vld [vmem:[%s1 + $0x2c98] sm:$0xff]
    %v1453 = vld [vmem:[%s1 + $0x2ca0] sm:$0xff]
    %v1454 = vld [vmem:[%s1 + $0x2ca8] sm:$0xff]
    %v1455 = vld [vmem:[%s1 + $0x2cb0] sm:$0xff]
    %v1456 = vld [vmem:[%s1 + $0x2cb8] sm:$0xff]
    %v1457 = vld [vmem:[%s1 + $0x2cc0] sm:$0xff]
    %v1458 = vld [vmem:[%s1 + $0x2cc8] sm:$0xff]
    %v1459 = vld [vmem:[%s1 + $0x2cd0] sm:$0xff]
    %v1460 = vld [vmem:[%s1 + $0x2cd8] sm:$0xff]
    %v1461 = vld [vmem:[%s1 + $0x2ce0] sm:$0xff]
    %v1462 = vld [vmem:[%s1 + $0x2ce8] sm:$0xff]
    %v1463 = vld [vmem:[%s1 + $0x2cf0] sm:$0xff]
    %v1464 = vld [vmem:[%s1 + $0x2cf8] sm:$0xff]
    %v1465 = vld [vmem:[%s1 + $0x2d00] sm:$0xff]
    %v1466 = vld [vmem:[%s1 + $0x2d08] sm:$0xff]
    %v1467 = vld [vmem:[%s1 + $0x2d10] sm:$0xff]
    %v1468 = vld [vmem:[%s1 + $0x2d18] sm:$0xff]
    %v1469 = vld [vmem:[%s1 + $0x2d20] sm:$0xff]
    %v1470 = vld [vmem:[%s1 + $0x2d28] sm:$0xff]
    %v1471 = vld [vmem:[%s1 + $0x2d30] sm:$0xff]
    %v1472 = vld [vmem:[%s1 + $0x2d38] sm:$0xff]
    %v1473 = vld [vmem:[%s1 + $0x2d40] sm:$0xff]
    %v1474 = vld [vmem:[%s1 + $0x2d48] sm:$0xff]
    %v1475 = vld [vmem:[%s1 + $0x2d50] sm:$0xff]
    %v1476 = vld [vmem:[%s1 + $0x2d58] sm:$0xff]
    %v1477 = vld [vmem:[%s1 + $0x2d60] sm:$0xff]
    %v1478 = vld [vmem:[%s1 + $0x2d68] sm:$0xff]
    %v1479 = vld [vmem:[%s1 + $0x2d70] sm:$0xff]
    %v1480 = vld [vmem:[%s1 + $0x2d78] sm:$0xff]
    %v1481 = vld [vmem:[%s1 + $0x2d80] sm:$0xff]
    %v1482 = vld [vmem:[%s1 + $0x2d88] sm:$0xff]
    %v1483 = vld [vmem:[%s1 + $0x2d90] sm:$0xff]
    %v1484 = vld [vmem:[%s1 + $0x2d98] sm:$0xff]
    %v1485 = vld [vmem:[%s1 + $0x2da0] sm:$0xff]
    %v1486 = vld [vmem:[%s1 + $0x2da8] sm:$0xff]
    %v1487 = vld [vmem:[%s1 + $0x2db0] sm:$0xff]
    %v1488 = vld [vmem:[%s1 + $0x2db8] sm:$0xff]
    %v1489 = vld [vmem:[%s1 + $0x2dc0] sm:$0xff]
    %v1490 = vld [vmem:[%s1 + $0x2dc8] sm:$0xff]
    %v1491 = vld [vmem:[%s1 + $0x2dd0] sm:$0xff]
    %v1492 = vld [vmem:[%s1 + $0x2dd8] sm:$0xff]
    %v1493 = vld [vmem:[%s1 + $0x2de0] sm:$0xff]
    %v1494 = vld [vmem:[%s1 + $0x2de8] sm:$0xff]
    %v1495 = vld [vmem:[%s1 + $0x2df0] sm:$0xff]
    %v1496 = vld [vmem:[%s1 + $0x2df8] sm:$0xff]
    %v1497 = vld [vmem:[%s1 + $0x2e00] sm:$0xff]
    %v1498 = vld [vmem:[%s1 + $0x2e08] sm:$0xff]
    %v1499 = vld [vmem:[%s1 + $0x2e10] sm:$0xff]
    %v1500 = vld [vmem:[%s1 + $0x2e18] sm:$0xff]
    %v1501 = vld [vmem:[%s1 + $0x2e20] sm:$0xff]
    %v1502 = vld [vmem:[%s1 + $0x2e28] sm:$0xff]
    %v1503 = vld [vmem:[%s1 + $0x2e30] sm:$0xff]
    %v1504 = vld [vmem:[%s1 + $0x2e38] sm:$0xff]
    %v1505 = vld [vmem:[%s1 + $0x2e40] sm:$0xff]
    %v1506 = vld [vmem:[%s1 + $0x2e48] sm:$0xff]
    %v1507 = vld [vmem:[%s1 + $0x2e50] sm:$0xff]
    %v1508 = vld [vmem:[%s1 + $0x2e58] sm:$0xff]
    %v1509 = vld [vmem:[%s1 + $0x2e60] sm:$0xff]
    %v1510 = vld [vmem:[%s1 + $0x2e68] sm:$0xff]
    %v1511 = vld [vmem:[%s1 + $0x2e70] sm:$0xff]
    %v1512 = vld [vmem:[%s1 + $0x2e78] sm:$0xff]
    %v1513 = vld [vmem:[%s1 + $0x2e80] sm:$0xff]
    %v1514 = vld [vmem:[%s1 + $0x2e88] sm:$0xff]
    %v1515 = vld [vmem:[%s1 + $0x2e90] sm:$0xff]
    %v1516 = vld [vmem:[%s1 + $0x2e98] sm:$0xff]
    %v1517 = vld [vmem:[%s1 + $0x2ea0] sm:$0xff]
    %v1518 = vld [vmem:[%s1 + $0x2ea8] sm:$0xff]
    %v1519 = vld [vmem:[%s1 + $0x2eb0] sm:$0xff]
    %v1520 = vld [vmem:[%s1 + $0x2eb8] sm:$0xff]
    %v1521 = vld [vmem:[%s1 + $0x2ec0] sm:$0xff]
    %v1522 = vld [vmem:[%s1 + $0x2ec8] sm:$0xff]
    %v1523 = vld [vmem:[%s1 + $0x2ed0] sm:$0xff]
    %v1524 = vld [vmem:[%s1 + $0x2ed8] sm:$0xff]
    %v1525 = vld [vmem:[%s1 + $0x2ee0] sm:$0xff]
    %v1526 = vld [vmem:[%s1 + $0x2ee8] sm:$0xff]
    %v1527 = vld [vmem:[%s1 + $0x2ef0] sm:$0xff]
    %v1528 = vld [vmem:[%s1 + $0x2ef8] sm:$0xff]
    %v1529 = vld [vmem:[%s1 + $0x2f00] sm:$0xff]
    %v1530 = vld [vmem:[%s1 + $0x2f08] sm:$0xff]
    %v1531 = vld [vmem:[%s1 + $0x2f10] sm:$0xff]
    %v1532 = vld [vmem:[%s1 + $0x2f18] sm:$0xff]
    %v1533 = vld [vmem:[%s1 + $0x2f20] sm:$0xff]
    %v1534 = vld [vmem:[%s1 + $0x2f28] sm:$0xff]
    %v1535 = vld [vmem:[%s1 + $0x2f30] sm:$0xff]
    %v1536 = vld [vmem:[%s1 + $0x2f38] sm:$0xff]
    %v1537 = vld [vmem:[%s1 + $0x2f40] sm:$0xff]
    %v1538 = vld [vmem:[%s1 + $0x2f48] sm:$0xff]
    %v1539 = vld [vmem:[%s1 + $0x2f50] sm:$0xff]
    %v1540 = vld [vmem:[%s1 + $0x2f58] sm:$0xff]
    %v1541 = vld [vmem:[%s1 + $0x2f60] sm:$0xff]
    %v1542 = vld [vmem:[%s1 + $0x2f68] sm:$0xff]
    %v1543 = vld [vmem:[%s1 + $0x2f70] sm:$0xff]
    %v1544 = vld [vmem:[%s1 + $0x2f78] sm:$0xff]
    %v1545 = vld [vmem:[%s1 + $0x2f80] sm:$0xff]
    %v1546 = vld [vmem:[%s1 + $0x2f88] sm:$0xff]
    %v1547 = vld [vmem:[%s1 + $0x2f90] sm:$0xff]
    %v1548 = vld [vmem:[%s1 + $0x2f98] sm:$0xff]
    %v1549 = vld [vmem:[%s1 + $0x2fa0] sm:$0xff]
    %v1550 = vld [vmem:[%s1 + $0x2fa8] sm:$0xff]
    %v1551 = vld [vmem:[%s1 + $0x2fb0] sm:$0xff]
    %v1552 = vld [vmem:[%s1 + $0x2fb8] sm:$0xff]
    %v1553 = vld [vmem:[%s1 + $0x2fc0] sm:$0xff]
    %v1554 = vld [vmem:[%s1 + $0x2fc8] sm:$0xff]
    %v1555 = vld [vmem:[%s1 + $0x2fd0] sm:$0xff]
    %v1556 = vld [vmem:[%s1 + $0x2fd8] sm:$0xff]
    %v1557 = vld [vmem:[%s1 + $0x2fe0] sm:$0xff]
    %v1558 = vld [vmem:[%s1 + $0x2fe8] sm:$0xff]
    %v1559 = vld [vmem:[%s1 + $0x2ff0] sm:$0xff]
    %v1560 = vld [vmem:[%s1 + $0x2ff8] sm:$0xff]
    %v1561 = vld [vmem:[%s1 + $0x3000] sm:$0xff]
    %v1562 = vld [vmem:[%s1 + $0x3008] sm:$0xff]
    %v1563 = vld [vmem:[%s1 + $0x3010] sm:$0xff]
    %v1564 = vld [vmem:[%s1 + $0x3018] sm:$0xff]
    %v1565 = vld [vmem:[%s1 + $0x3020] sm:$0xff]
    %v1566 = vld [vmem:[%s1 + $0x3028] sm:$0xff]
    %v1567 = vld [vmem:[%s1 + $0x3030] sm:$0xff]
    %v1568 = vld [vmem:[%s1 + $0x3038] sm:$0xff]
    %v1569 = vld [vmem:[%s1 + $0x3040] sm:$0xff]
    %v1570 = vld [vmem:[%s1 + $0x3048] sm:$0xff]
    %v1571 = vld [vmem:[%s1 + $0x3050] sm:$0xff]
    %v1572 = vld [vmem:[%s1 + $0x3058] sm:$0xff]
    %v1573 = vld [vmem:[%s1 + $0x3060] sm:$0xff]
    %v1574 = vld [vmem:[%s1 + $0x3068] sm:$0xff]
    %v1575 = vld [vmem:[%s1 + $0x3070] sm:$0xff]
    %v1576 = vld [vmem:[%s1 + $0x3078] sm:$0xff]
    %v1577 = vld [vmem:[%s1 + $0x3080] sm:$0xff]
    %v1578 = vld [vmem:[%s1 + $0x3088] sm:$0xff]
    %v1579 = vld [vmem:[%s1 + $0x3090] sm:$0xff]
    %v1580 = vld [vmem:[%s1 + $0x3098] sm:$0xff]
    %v1581 = vld [vmem:[%s1 + $0x30a0] sm:$0xff]
    %v1582 = vld [vmem:[%s1 + $0x30a8] sm:$0xff]
    %v1583 = vld [vmem:[%s1 + $0x30b0] sm:$0xff]
    %v1584 = vld [vmem:[%s1 + $0x30b8] sm:$0xff]
    %v1585 = vld [vmem:[%s1 + $0x30c0] sm:$0xff]
    %v1586 = vld [vmem:[%s1 + $0x30c8] sm:$0xff]
    %v1587 = vld [vmem:[%s1 + $0x30d0] sm:$0xff]
    %v1588 = vld [vmem:[%s1 + $0x30d8] sm:$0xff]
    %v1589 = vld [vmem:[%s1 + $0x30e0] sm:$0xff]
    %v1590 = vld [vmem:[%s1 + $0x30e8] sm:$0xff]
    %v1591 = vld [vmem:[%s1 + $0x30f0] sm:$0xff]
    %v1592 = vld [vmem:[%s1 + $0x30f8] sm:$0xff]
    %v1593 = vld [vmem:[%s1 + $0x3100] sm:$0xff]
    %v1594 = vld [vmem:[%s1 + $0x3108] sm:$0xff]
    %v1595 = vld [vmem:[%s1 + $0x3110] sm:$0xff]
    %v1596 = vld [vmem:[%s1 + $0x3118] sm:$0xff]
    %v1597 = vld [vmem:[%s1 + $0x3120] sm:$0xff]
    %v1598 = vld [vmem:[%s1 + $0x3128] sm:$0xff]
    %v1599 = vld [vmem:[%s1 + $0x3130] sm:$0xff]
    %v1600 = vld [vmem:[%s1 + $0x3138] sm:$0xff]
    %v1601 = vld [vmem:[%s1 + $0x3140] sm:$0xff]
    %v1602 = vld [vmem:[%s1 + $0x3148] sm:$0xff]
    %v1603 = vld [vmem:[%s1 + $0x3150] sm:$0xff]
    %v1604 = vld [vmem:[%s1 + $0x3158] sm:$0xff]
    %v1605 = vld [vmem:[%s1 + $0x3160] sm:$0xff]
    %v1606 = vld [vmem:[%s1 + $0x3168] sm:$0xff]
    %v1607 = vld [vmem:[%s1 + $0x3170] sm:$0xff]
    %v1608 = vld [vmem:[%s1 + $0x3178] sm:$0xff]
    %v1609 = vld [vmem:[%s1 + $0x3180] sm:$0xff]
    %v1610 = vld [vmem:[%s1 + $0x3188] sm:$0xff]
    %v1611 = vld [vmem:[%s1 + $0x3190] sm:$0xff]
    %v1612 = vld [vmem:[%s1 + $0x3198] sm:$0xff]
    %v1613 = vld [vmem:[%s1 + $0x31a0] sm:$0xff]
    %v1614 = vld [vmem:[%s1 + $0x31a8] sm:$0xff]
    %v1615 = vld [vmem:[%s1 + $0x31b0] sm:$0xff]
    %v1616 = vld [vmem:[%s1 + $0x31b8] sm:$0xff]
    %v1617 = vld [vmem:[%s1 + $0x31c0] sm:$0xff]
    %v1618 = vld [vmem:[%s1 + $0x31c8] sm:$0xff]
    %v1619 = vld [vmem:[%s1 + $0x31d0] sm:$0xff]
    %v1620 = vld [vmem:[%s1 + $0x31d8] sm:$0xff]
    %v1621 = vld [vmem:[%s1 + $0x31e0] sm:$0xff]
    %v1622 = vld [vmem:[%s1 + $0x31e8] sm:$0xff]
    %v1623 = vld [vmem:[%s1 + $0x31f0] sm:$0xff]
    %v1624 = vld [vmem:[%s1 + $0x31f8] sm:$0xff]
    %v1625 = vld [vmem:[%s1 + $0x3200] sm:$0xff]
    %v1626 = vld [vmem:[%s1 + $0x3208] sm:$0xff]
    %v1627 = vld [vmem:[%s1 + $0x3210] sm:$0xff]
    %v1628 = vld [vmem:[%s1 + $0x3218] sm:$0xff]
    %v1629 = vld [vmem:[%s1 + $0x3220] sm:$0xff]
    %v1630 = vld [vmem:[%s1 + $0x3228] sm:$0xff]
    %v1631 = vld [vmem:[%s1 + $0x3230] sm:$0xff]
    %v1632 = vld [vmem:[%s1 + $0x3238] sm:$0xff]
    %v1633 = vld [vmem:[%s1 + $0x3240] sm:$0xff]
    %v1634 = vld [vmem:[%s1 + $0x3248] sm:$0xff]
    %v1635 = vld [vmem:[%s1 + $0x3250] sm:$0xff]
    %v1636 = vld [vmem:[%s1 + $0x3258] sm:$0xff]
    %v1637 = vld [vmem:[%s1 + $0x3260] sm:$0xff]
    %v1638 = vld [vmem:[%s1 + $0x3268] sm:$0xff]
    %v1639 = vld [vmem:[%s1 + $0x3270] sm:$0xff]
    %v1640 = vld [vmem:[%s1 + $0x3278] sm:$0xff]
    %v1641 = vld [vmem:[%s1 + $0x3280] sm:$0xff]
    %v1642 = vld [vmem:[%s1 + $0x3288] sm:$0xff]
    %v1643 = vld [vmem:[%s1 + $0x3290] sm:$0xff]
    %v1644 = vld [vmem:[%s1 + $0x3298] sm:$0xff]
    %v1645 = vld [vmem:[%s1 + $0x32a0] sm:$0xff]
    %v1646 = vld [vmem:[%s1 + $0x32a8] sm:$0xff]
    %v1647 = vld [vmem:[%s1 + $0x32b0] sm:$0xff]
    %v1648 = vld [vmem:[%s1 + $0x32b8] sm:$0xff]
    %v1649 = vld [vmem:[%s1 + $0x32c0] sm:$0xff]
    %v1650 = vld [vmem:[%s1 + $0x32c8] sm:$0xff]
    %v1651 = vld [vmem:[%s1 + $0x32d0] sm:$0xff]
    %v1652 = vld [vmem:[%s1 + $0x32d8] sm:$0xff]
    %v1653 = vld [vmem:[%s1 + $0x32e0] sm:$0xff]
    %v1654 = vld [vmem:[%s1 + $0x32e8] sm:$0xff]
    %v1655 = vld [vmem:[%s1 + $0x32f0] sm:$0xff]
    %v1656 = vld [vmem:[%s1 + $0x32f8] sm:$0xff]
    %v1657 = vld [vmem:[%s1 + $0x3300] sm:$0xff]
    %v1658 = vld [vmem:[%s1 + $0x3308] sm:$0xff]
    %v1659 = vld [vmem:[%s1 + $0x3310] sm:$0xff]
    %v1660 = vld [vmem:[%s1 + $0x3318] sm:$0xff]
    %v1661 = vld [vmem:[%s1 + $0x3320] sm:$0xff]
    %v1662 = vld [vmem:[%s1 + $0x3328] sm:$0xff]
    %v1663 = vld [vmem:[%s1 + $0x3330] sm:$0xff]
    %v1664 = vld [vmem:[%s1 + $0x3338] sm:$0xff]
    %v1665 = vld [vmem:[%s1 + $0x3340] sm:$0xff]
    %v1666 = vld [vmem:[%s1 + $0x3348] sm:$0xff]
    %v1667 = vld [vmem:[%s1 + $0x3350] sm:$0xff]
    %v1668 = vld [vmem:[%s1 + $0x3358] sm:$0xff]
    %v1669 = vld [vmem:[%s1 + $0x3360] sm:$0xff]
    %v1670 = vld [vmem:[%s1 + $0x3368] sm:$0xff]
    %v1671 = vld [vmem:[%s1 + $0x3370] sm:$0xff]
    %v1672 = vld [vmem:[%s1 + $0x3378] sm:$0xff]
    %v1673 = vld [vmem:[%s1 + $0x3380] sm:$0xff]
    %v1674 = vld [vmem:[%s1 + $0x3388] sm:$0xff]
    %v1675 = vld [vmem:[%s1 + $0x3390] sm:$0xff]
    %v1676 = vld [vmem:[%s1 + $0x3398] sm:$0xff]
    %v1677 = vld [vmem:[%s1 + $0x33a0] sm:$0xff]
    %v1678 = vld [vmem:[%s1 + $0x33a8] sm:$0xff]
    %v1679 = vld [vmem:[%s1 + $0x33b0] sm:$0xff]
    %v1680 = vld [vmem:[%s1 + $0x33b8] sm:$0xff]
    %v1681 = vld [vmem:[%s1 + $0x33c0] sm:$0xff]
    %v1682 = vld [vmem:[%s1 + $0x33c8] sm:$0xff]
    %v1683 = vld [vmem:[%s1 + $0x33d0] sm:$0xff]
    %v1684 = vld [vmem:[%s1 + $0x33d8] sm:$0xff]
    %v1685 = vld [vmem:[%s1 + $0x33e0] sm:$0xff]
    %v1686 = vld [vmem:[%s1 + $0x33e8] sm:$0xff]
    %v1687 = vld [vmem:[%s1 + $0x33f0] sm:$0xff]
    %v1688 = vld [vmem:[%s1 + $0x33f8] sm:$0xff]
    %v1689 = vld [vmem:[%s1 + $0x3400] sm:$0xff]
    %v1690 = vld [vmem:[%s1 + $0x3408] sm:$0xff]
    %v1691 = vld [vmem:[%s1 + $0x3410] sm:$0xff]
    %v1692 = vld [vmem:[%s1 + $0x3418] sm:$0xff]
    %v1693 = vld [vmem:[%s1 + $0x3420] sm:$0xff]
    %v1694 = vld [vmem:[%s1 + $0x3428] sm:$0xff]
    %v1695 = vld [vmem:[%s1 + $0x3430] sm:$0xff]
    %v1696 = vld [vmem:[%s1 + $0x3438] sm:$0xff]
    %v1697 = vld [vmem:[%s1 + $0x3440] sm:$0xff]
    %v1698 = vld [vmem:[%s1 + $0x3448] sm:$0xff]
    %v1699 = vld [vmem:[%s1 + $0x3450] sm:$0xff]
    %v1700 = vld [vmem:[%s1 + $0x3458] sm:$0xff]
    %v1701 = vld [vmem:[%s1 + $0x3460] sm:$0xff]
    %v1702 = vld [vmem:[%s1 + $0x3468] sm:$0xff]
    %v1703 = vld [vmem:[%s1 + $0x3470] sm:$0xff]
    %v1704 = vld [vmem:[%s1 + $0x3478] sm:$0xff]
    %v1705 = vld [vmem:[%s1 + $0x3480] sm:$0xff]
    %v1706 = vld [vmem:[%s1 + $0x3488] sm:$0xff]
    %v1707 = vld [vmem:[%s1 + $0x3490] sm:$0xff]
    %v1708 = vld [vmem:[%s1 + $0x3498] sm:$0xff]
    %v1709 = vld [vmem:[%s1 + $0x34a0] sm:$0xff]
    %v1710 = vld [vmem:[%s1 + $0x34a8] sm:$0xff]
    %v1711 = vld [vmem:[%s1 + $0x34b0] sm:$0xff]
    %v1712 = vld [vmem:[%s1 + $0x34b8] sm:$0xff]
    %v1713 = vld [vmem:[%s1 + $0x34c0] sm:$0xff]
    %v1714 = vld [vmem:[%s1 + $0x34c8] sm:$0xff]
    %v1715 = vld [vmem:[%s1 + $0x34d0] sm:$0xff]
    %v1716 = vld [vmem:[%s1 + $0x34d8] sm:$0xff]
    %v1717 = vld [vmem:[%s1 + $0x34e0] sm:$0xff]
    %v1718 = vld [vmem:[%s1 + $0x34e8] sm:$0xff]
    %v1719 = vld [vmem:[%s1 + $0x34f0] sm:$0xff]
    %v1720 = vld [vmem:[%s1 + $0x34f8] sm:$0xff]
    %v1721 = vld [vmem:[%s1 + $0x3500] sm:$0xff]
    %v1722 = vld [vmem:[%s1 + $0x3508] sm:$0xff]
    %v1723 = vld [vmem:[%s1 + $0x3510] sm:$0xff]
    %v1724 = vld [vmem:[%s1 + $0x3518] sm:$0xff]
    %v1725 = vld [vmem:[%s1 + $0x3520] sm:$0xff]
    %v1726 = vld [vmem:[%s1 + $0x3528] sm:$0xff]
    %v1727 = vld [vmem:[%s1 + $0x3530] sm:$0xff]
    %v1728 = vld [vmem:[%s1 + $0x3538] sm:$0xff]
    %v1729 = vld [vmem:[%s1 + $0x3540] sm:$0xff]
    %v1730 = vld [vmem:[%s1 + $0x3548] sm:$0xff]
    %v1731 = vld [vmem:[%s1 + $0x3550] sm:$0xff]
    %v1732 = vld [vmem:[%s1 + $0x3558] sm:$0xff]
    %v1733 = vld [vmem:[%s1 + $0x3560] sm:$0xff]
    %v1734 = vld [vmem:[%s1 + $0x3568] sm:$0xff]
    %v1735 = vld [vmem:[%s1 + $0x3570] sm:$0xff]
    %v1736 = vld [vmem:[%s1 + $0x3578] sm:$0xff]
    %v1737 = vld [vmem:[%s1 + $0x3580] sm:$0xff]
    %v1738 = vld [vmem:[%s1 + $0x3588] sm:$0xff]
    %v1739 = vld [vmem:[%s1 + $0x3590] sm:$0xff]
    %v1740 = vld [vmem:[%s1 + $0x3598] sm:$0xff]
    %v1741 = vld [vmem:[%s1 + $0x35a0] sm:$0xff]
    %v1742 = vld [vmem:[%s1 + $0x35a8] sm:$0xff]
    %v1743 = vld [vmem:[%s1 + $0x35b0] sm:$0xff]
    %v1744 = vld [vmem:[%s1 + $0x35b8] sm:$0xff]
    %v1745 = vld [vmem:[%s1 + $0x35c0] sm:$0xff]
    %v1746 = vld [vmem:[%s1 + $0x35c8] sm:$0xff]
    %v1747 = vld [vmem:[%s1 + $0x35d0] sm:$0xff]
    %v1748 = vld [vmem:[%s1 + $0x35d8] sm:$0xff]
    %v1749 = vld [vmem:[%s1 + $0x35e0] sm:$0xff]
    %v1750 = vld [vmem:[%s1 + $0x35e8] sm:$0xff]
    %v1751 = vld [vmem:[%s1 + $0x35f0] sm:$0xff]
    %v1752 = vld [vmem:[%s1 + $0x35f8] sm:$0xff]
    %vm1753 = vcmask 523264
    %v1755 = vsel %vm1753, %v19, 0
    %v1758 = vsel %vm1753, %v24, 0
    %1760 = vmatprep.subr.mxu0 %v26
    %1761 = vmatpush1.msra.mxu0 %v25
    %1762 = vmatprep.subr.mxu0 %v50
    %1763 = vmatpush1.msra.mxu0 %v49
    %1764 = vmatprep.subr.mxu0 %v74
    %1765 = vmatpush1.msra.mxu0 %v73
    %1766 = vmatprep.subr.mxu0 %v98
    %1767 = vmatpush1.msra.mxu0 %v97
    %1768 = vmatprep.subr.mxu0 %v122
    %1769 = vmatpush1.msra.mxu0 %v121
    %1770 = vmatprep.subr.mxu0 %v146
    %1771 = vmatpush1.msra.mxu0 %v145
    %1772 = vmatprep.subr.mxu0 %v170
    %1773 = vmatpush1.msra.mxu0 %v169
    %1774 = vmatprep.subr.mxu0 %v194
    %1775 = vmatpush1.msra.mxu0 %v193
    %1776 = vmatprep.subr.mxu0 %v218
    %1777 = vmatpush1.msra.mxu0 %v217
    %1778 = vmatprep.subr.mxu0 %v242
    %1779 = vmatpush1.msra.mxu0 %v241
    %1780 = vmatprep.subr.mxu0 %v266
    %1781 = vmatpush1.msra.mxu0 %v265
    %1782 = vmatprep.subr.mxu0 %v290
    %1783 = vmatpush1.msra.mxu0 %v289
    %1784 = vmatprep.subr.mxu0 %v314
    %1785 = vmatpush1.msra.mxu0 %v313
    %1786 = vmatprep.subr.mxu0 %v338
    %1787 = vmatpush1.msra.mxu0 %v337
    %1788 = vmatprep.subr.mxu0 %v362
    %1789 = vmatpush1.msra.mxu0 %v361
    %1790 = vmatprep.subr.mxu0 %v386
    %1791 = vmatpush1.msra.mxu0 %v385
    %1792 = vmatprep.subr.mxu0 %v410
    %1793 = vmatpush1.msra.mxu0 %v409
    %1794 = vmatprep.subr.mxu0 %v434
    %1795 = vmatpush1.msra.mxu0 %v433
    %1796 = vmatprep.subr.mxu0 %v458
    %1797 = vmatpush1.msra.mxu0 %v457
    %1798 = vmatprep.subr.mxu0 %v482
    %1799 = vmatpush1.msra.mxu0 %v481
    %1800 = vmatprep.subr.mxu0 %v506
    %1801 = vmatpush1.msra.mxu0 %v505
    %1802 = vmatprep.subr.mxu0 %v530
    %1803 = vmatpush1.msra.mxu0 %v529
    %1804 = vmatprep.subr.mxu0 %v554
    %1805 = vmatpush1.msra.mxu0 %v553
    %1806 = vmatprep.subr.mxu0 %v578
    %1807 = vmatpush1.msra.mxu0 %v577
    %1808 = vmatprep.subr.mxu0 %v602
    %1809 = vmatpush1.msra.mxu0 %v601
    %1810 = vmatprep.subr.mxu0 %v626
    %1811 = vmatpush1.msra.mxu0 %v625
    %1812 = vmatprep.subr.mxu0 %v650
    %1813 = vmatpush1.msra.mxu0 %v649
    %1814 = vmatprep.subr.mxu0 %v674
    %1815 = vmatpush1.msra.mxu0 %v673
    %1816 = vmatprep.subr.mxu0 %v698
    %1817 = vmatpush1.msra.mxu0 %v697
    %1818 = vmatprep.subr.mxu0 %v722
    %1819 = vmatpush1.msra.mxu0 %v721
    %1820 = vmatprep.subr.mxu0 %v746
    %1821 = vmatpush1.msra.mxu0 %v745
    %1822 = vmatprep.subr.mxu0 %v770
    %1823 = vmatpush1.msra.mxu0 %v769
    %1824 = vmatprep.mubr.f32.mxu0 %v16
    %1825 = vmatmul.mubr.f32.gmra.mrb[0].mxu0 %v15
    %v1826 = vpop.f32.mrb[0].mxu0
    %v1827 = vadd.f32 0.0, %v1826
    %v1828 = vpop.f32.mrb[0].mxu0
    %v1829 = vadd.f32 0.0, %v1828
    %1830 = vmatprep.mubr.f32.mxu0 %v21
    %1831 = vmatmul.mubr.f32.gmra.mrb[0].mxu0 %v20
    %v1832 = vpop.f32.mrb[0].mxu0
    %v1833 = vadd.f32 0.0, %v1832
    %v1834 = vpop.f32.mrb[0].mxu0
    %v1835 = vadd.f32 0.0, %v1834
    %1836 = vdwg.mxu0
    %1837 = vmatprep.subr.mxu0 %v794
    %1838 = vmatpush1.msra.mxu0 %v793
    %1839 = vmatprep.subr.mxu0 %v818
    %1840 = vmatpush1.msra.mxu0 %v817
    %1841 = vmatprep.subr.mxu0 %v842
    %1842 = vmatpush1.msra.mxu0 %v841
    %1843 = vmatprep.subr.mxu0 %v866
    %1844 = vmatpush1.msra.mxu0 %v865
    %1845 = vmatprep.subr.mxu0 %v890
    %1846 = vmatpush1.msra.mxu0 %v889
    %1847 = vmatprep.subr.mxu0 %v914
    %1848 = vmatpush1.msra.mxu0 %v913
    %1849 = vmatprep.subr.mxu0 %v938
    %1850 = vmatpush1.msra.mxu0 %v937
    %1851 = vmatprep.subr.mxu0 %v962
    %1852 = vmatpush1.msra.mxu0 %v961
    %1853 = vmatprep.subr.mxu0 %v986
    %1854 = vmatpush1.msra.mxu0 %v985
    %1855 = vmatprep.subr.mxu0 %v1010
    %1856 = vmatpush1.msra.mxu0 %v1009
    %1857 = vmatprep.subr.mxu0 %v1034
    %1858 = vmatpush1.msra.mxu0 %v1033
    %1859 = vmatprep.subr.mxu0 %v1058
    %1860 = vmatpush1.msra.mxu0 %v1057
    %1861 = vmatprep.subr.mxu0 %v1082
    %1862 = vmatpush1.msra.mxu0 %v1081
    %1863 = vmatprep.subr.mxu0 %v1106
    %1864 = vmatpush1.msra.mxu0 %v1105
    %1865 = vmatprep.subr.mxu0 %v1130
    %1866 = vmatpush1.msra.mxu0 %v1129
    %1867 = vmatprep.subr.mxu0 %v1154
    %1868 = vmatpush1.msra.mxu0 %v1153
    %1869 = vmatprep.subr.mxu0 %v1178
    %1870 = vmatpush1.msra.mxu0 %v1177
    %1871 = vmatprep.subr.mxu0 %v1202
    %1872 = vmatpush1.msra.mxu0 %v1201
    %1873 = vmatprep.subr.mxu0 %v1226
    %1874 = vmatpush1.msra.mxu0 %v1225
    %1875 = vmatprep.subr.mxu0 %v1250
    %1876 = vmatpush1.msra.mxu0 %v1249
    %1877 = vmatprep.subr.mxu0 %v1274
    %1878 = vmatpush1.msra.mxu0 %v1273
    %1879 = vmatprep.subr.mxu0 %v1298
    %1880 = vmatpush1.msra.mxu0 %v1297
    %1881 = vmatprep.subr.mxu0 %v1322
    %1882 = vmatpush1.msra.mxu0 %v1321
    %1883 = vmatprep.subr.mxu0 %v1346
    %1884 = vmatpush1.msra.mxu0 %v1345
    %1885 = vmatprep.subr.mxu0 %v1370
    %1886 = vmatpush1.msra.mxu0 %v1369
    %1887 = vmatprep.subr.mxu0 %v1394
    %1888 = vmatpush1.msra.mxu0 %v1393
    %1889 = vmatprep.subr.mxu0 %v1418
    %1890 = vmatpush1.msra.mxu0 %v1417
    %1891 = vmatprep.subr.mxu0 %v1442
    %1892 = vmatpush1.msra.mxu0 %v1441
    %1893 = vmatprep.subr.mxu0 %v1466
    %1894 = vmatpush1.msra.mxu0 %v1465
    %1895 = vmatprep.subr.mxu0 %v1490
    %1896 = vmatpush1.msra.mxu0 %v1489
    %1897 = vmatprep.subr.mxu0 %v1514
    %1898 = vmatpush1.msra.mxu0 %v1513
    %1899 = vmatprep.subr.mxu0 %v1538
    %1900 = vmatpush1.msra.mxu0 %v1537
    %1901 = vmatprep.mubr.f32.mxu0 %v18
    %1902 = vmatmul.mubr.f32.gmra.mrb[0].mxu0 %v17
    %v1903 = vpop.f32.mrb[0].mxu0
    %v1904 = vadd.f32 %v1827, %v1903
    %v1905 = vpop.f32.mrb[0].mxu0
    %v1906 = vadd.f32 %v1829, %v1905
    %1907 = vmatprep.mubr.f32.mxu0 %v23
    %1908 = vmatmul.mubr.f32.gmra.mrb[0].mxu0 %v22
    %v1909 = vpop.f32.mrb[0].mxu0
    %v1910 = vadd.f32 %v1833, %v1909
    %v1911 = vpop.f32.mrb[0].mxu0
    %v1912 = vadd.f32 %v1835, %v1911
    %1913 = vdwg.mxu0
    %1914 = vmatprep.subr.mxu0 %v1562
    %1915 = vmatpush1.msra.mxu0 %v1561
    %1916 = vmatprep.subr.mxu0 %v1586
    %1917 = vmatpush1.msra.mxu0 %v1585
    %1918 = vmatprep.subr.mxu0 %v1610
    %1919 = vmatpush1.msra.mxu0 %v1609
    %1920 = vmatprep.subr.mxu0 %v1634
    %1921 = vmatpush1.msra.mxu0 %v1633
    %1922 = vmatprep.subr.mxu0 %v1658
    %1923 = vmatpush1.msra.mxu0 %v1657
    %1924 = vmatprep.subr.mxu0 %v1682
    %1925 = vmatpush1.msra.mxu0 %v1681
    %1926 = vmatprep.subr.mxu0 %v1706
    %1927 = vmatpush1.msra.mxu0 %v1705
    %1928 = vmatprep.subr.mxu0 %v1730
    %1929 = vmatpush1.msra.mxu0 %v1729
    %1930 = vmatprep.subr.mxu0 0.0
    %1931 = vmatpush1.msra.mxu0 0.0
    %1932 = vmatprep.subr.mxu0 0.0
    %1933 = vmatpush1.msra.mxu0 0.0
    %1934 = vmatprep.subr.mxu0 0.0
    %1935 = vmatpush1.msra.mxu0 0.0
    %1936 = vmatprep.subr.mxu0 0.0
    %1937 = vmatpush1.msra.mxu0 0.0
    %1938 = vmatprep.subr.mxu0 0.0
    %1939 = vmatpush1.msra.mxu0 0.0
    %1940 = vmatprep.subr.mxu0 0.0
    %1941 = vmatpush1.msra.mxu0 0.0
    %1942 = vmatprep.subr.mxu0 0.0
    %1943 = vmatpush1.msra.mxu0 0.0
    %1944 = vmatprep.subr.mxu0 0.0
    %1945 = vmatpush1.msra.mxu0 0.0
    %1946 = vmatprep.subr.mxu0 0.0
    %1947 = vmatpush1.msra.mxu0 0.0
    %1948 = vmatprep.subr.mxu0 0.0
    %1949 = vmatpush1.msra.mxu0 0.0
    %1950 = vmatprep.subr.mxu0 0.0
    %1951 = vmatpush1.msra.mxu0 0.0
    %1952 = vmatprep.subr.mxu0 0.0
    %1953 = vmatpush1.msra.mxu0 0.0
    %1954 = vmatprep.subr.mxu0 0.0
    %1955 = vmatpush1.msra.mxu0 0.0
    %1956 = vmatprep.subr.mxu0 0.0
    %1957 = vmatpush1.msra.mxu0 0.0
    %1958 = vmatprep.subr.mxu0 0.0
    %1959 = vmatpush1.msra.mxu0 0.0
    %1960 = vmatprep.subr.mxu0 0.0
    %1961 = vmatpush1.msra.mxu0 0.0
    %1962 = vmatprep.subr.mxu0 0.0
    %1963 = vmatpush1.msra.mxu0 0.0
    %1964 = vmatprep.subr.mxu0 0.0
    %1965 = vmatpush1.msra.mxu0 0.0
    %1966 = vmatprep.subr.mxu0 0.0
    %1967 = vmatpush1.msra.mxu0 0.0
    %1968 = vmatprep.subr.mxu0 0.0
    %1969 = vmatpush1.msra.mxu0 0.0
    %1970 = vmatprep.subr.mxu0 0.0
    %1971 = vmatpush1.msra.mxu0 0.0
    %1972 = vmatprep.subr.mxu0 0.0
    %1973 = vmatpush1.msra.mxu0 0.0
    %1974 = vmatprep.subr.mxu0 0.0
    %1975 = vmatpush1.msra.mxu0 0.0
    %1976 = vmatprep.subr.mxu0 0.0
    %1977 = vmatpush1.msra.mxu0 0.0
    %1978 = vmatprep.mubr.f32.mxu0 0.0
    %1979 = vmatmul.mubr.f32.gmra.mrb[0].mxu0 %v1755
    %v1980 = vpop.f32.mrb[0].mxu0
    %v1981 = vadd.f32 %v1904, %v1980
    %v1982 = vpop.f32.mrb[0].mxu0
    %v1983 = vadd.f32 %v1906, %v1982
    %1984 = vmatprep.mubr.f32.mxu0 0.0
    %1985 = vmatmul.mubr.f32.gmra.mrb[0].mxu0 %v1758
    %v1986 = vpop.f32.mrb[0].mxu0
    %v1987 = vadd.f32 %v1910, %v1986
    %v1988 = vpop.f32.mrb[0].mxu0
    %v1989 = vadd.f32 %v1912, %v1988
    %1990 = vdwg.mxu0
    %1991 = vmatprep.subr.mxu0 %v28
    %1992 = vmatpush1.msra.mxu0 %v27
    %1993 = vmatprep.subr.mxu0 %v52
    %1994 = vmatpush1.msra.mxu0 %v51
    %1995 = vmatprep.subr.mxu0 %v76
    %1996 = vmatpush1.msra.mxu0 %v75
    %1997 = vmatprep.subr.mxu0 %v100
    %1998 = vmatpush1.msra.mxu0 %v99
    %1999 = vmatprep.subr.mxu0 %v124
    %2000 = vmatpush1.msra.mxu0 %v123
    %2001 = vmatprep.subr.mxu0 %v148
    %2002 = vmatpush1.msra.mxu0 %v147
    %2003 = vmatprep.subr.mxu0 %v172
    %2004 = vmatpush1.msra.mxu0 %v171
    %2005 = vmatprep.subr.mxu0 %v196
    %2006 = vmatpush1.msra.mxu0 %v195
    %2007 = vmatprep.subr.mxu0 %v220
    %2008 = vmatpush1.msra.mxu0 %v219
    %2009 = vmatprep.subr.mxu0 %v244
    %2010 = vmatpush1.msra.mxu0 %v243
    %2011 = vmatprep.subr.mxu0 %v268
    %2012 = vmatpush1.msra.mxu0 %v267
    %2013 = vmatprep.subr.mxu0 %v292
    %2014 = vmatpush1.msra.mxu0 %v291
    %2015 = vmatprep.subr.mxu0 %v316
    %2016 = vmatpush1.msra.mxu0 %v315
    %2017 = vmatprep.subr.mxu0 %v340
    %2018 = vmatpush1.msra.mxu0 %v339
    %2019 = vmatprep.subr.mxu0 %v364
    %2020 = vmatpush1.msra.mxu0 %v363
    %2021 = vmatprep.subr.mxu0 %v388
    %2022 = vmatpush1.msra.mxu0 %v387
    %2023 = vmatprep.subr.mxu0 %v412
    %2024 = vmatpush1.msra.mxu0 %v411
    %2025 = vmatprep.subr.mxu0 %v436
    %2026 = vmatpush1.msra.mxu0 %v435
    %2027 = vmatprep.subr.mxu0 %v460
    %2028 = vmatpush1.msra.mxu0 %v459
    %2029 = vmatprep.subr.mxu0 %v484
    %2030 = vmatpush1.msra.mxu0 %v483
    %2031 = vmatprep.subr.mxu0 %v508
    %2032 = vmatpush1.msra.mxu0 %v507
    %2033 = vmatprep.subr.mxu0 %v532
    %2034 = vmatpush1.msra.mxu0 %v531
    %2035 = vmatprep.subr.mxu0 %v556
    %2036 = vmatpush1.msra.mxu0 %v555
    %2037 = vmatprep.subr.mxu0 %v580
    %2038 = vmatpush1.msra.mxu0 %v579
    %2039 = vmatprep.subr.mxu0 %v604
    %2040 = vmatpush1.msra.mxu0 %v603
    %2041 = vmatprep.subr.mxu0 %v628
    %2042 = vmatpush1.msra.mxu0 %v627
    %2043 = vmatprep.subr.mxu0 %v652
    %2044 = vmatpush1.msra.mxu0 %v651
    %2045 = vmatprep.subr.mxu0 %v676
    %2046 = vmatpush1.msra.mxu0 %v675
    %2047 = vmatprep.subr.mxu0 %v700
    %2048 = vmatpush1.msra.mxu0 %v699
    %2049 = vmatprep.subr.mxu0 %v724
    %2050 = vmatpush1.msra.mxu0 %v723
    %2051 = vmatprep.subr.mxu0 %v748
    %2052 = vmatpush1.msra.mxu0 %v747
    %2053 = vmatprep.subr.mxu0 %v772
    %2054 = vmatpush1.msra.mxu0 %v771
    %2055 = vmatprep.mubr.f32.mxu0 %v16
    %2056 = vmatmul.mubr.f32.gmra.mrb[0].mxu0 %v15
    %v2057 = vpop.f32.mrb[0].mxu0
    %v2058 = vadd.f32 0.0, %v2057
    %v2059 = vpop.f32.mrb[0].mxu0
    %v2060 = vadd.f32 0.0, %v2059
    %2061 = vmatprep.mubr.f32.mxu0 %v21
    %2062 = vmatmul.mubr.f32.gmra.mrb[0].mxu0 %v20
    %v2063 = vpop.f32.mrb[0].mxu0
    %v2064 = vadd.f32 0.0, %v2063
    %v2065 = vpop.f32.mrb[0].mxu0
    %v2066 = vadd.f32 0.0, %v2065
    %2067 = vdwg.mxu0
    %2068 = vmatprep.subr.mxu0 %v796
    %2069 = vmatpush1.msra.mxu0 %v795
    %2070 = vmatprep.subr.mxu0 %v820
    %2071 = vmatpush1.msra.mxu0 %v819
    %2072 = vmatprep.subr.mxu0 %v844
    %2073 = vmatpush1.msra.mxu0 %v843
    %2074 = vmatprep.subr.mxu0 %v868
    %2075 = vmatpush1.msra.mxu0 %v867
    %2076 = vmatprep.subr.mxu0 %v892
    %2077 = vmatpush1.msra.mxu0 %v891
    %2078 = vmatprep.subr.mxu0 %v916
    %2079 = vmatpush1.msra.mxu0 %v915
    %2080 = vmatprep.subr.mxu0 %v940
    %2081 = vmatpush1.msra.mxu0 %v939
    %2082 = vmatprep.subr.mxu0 %v964
    %2083 = vmatpush1.msra.mxu0 %v963
    %2084 = vmatprep.subr.mxu0 %v988
    %2085 = vmatpush1.msra.mxu0 %v987
    %2086 = vmatprep.subr.mxu0 %v1012
    %2087 = vmatpush1.msra.mxu0 %v1011
    %2088 = vmatprep.subr.mxu0 %v1036
    %2089 = vmatpush1.msra.mxu0 %v1035
    %2090 = vmatprep.subr.mxu0 %v1060
    %2091 = vmatpush1.msra.mxu0 %v1059
    %2092 = vmatprep.subr.mxu0 %v1084
    %2093 = vmatpush1.msra.mxu0 %v1083
    %2094 = vmatprep.subr.mxu0 %v1108
    %2095 = vmatpush1.msra.mxu0 %v1107
    %2096 = vmatprep.subr.mxu0 %v1132
    %2097 = vmatpush1.msra.mxu0 %v1131
    %2098 = vmatprep.subr.mxu0 %v1156
    %2099 = vmatpush1.msra.mxu0 %v1155
    %2100 = vmatprep.subr.mxu0 %v1180
    %2101 = vmatpush1.msra.mxu0 %v1179
    %2102 = vmatprep.subr.mxu0 %v1204
    %2103 = vmatpush1.msra.mxu0 %v1203
    %2104 = vmatprep.subr.mxu0 %v1228
    %2105 = vmatpush1.msra.mxu0 %v1227
    %2106 = vmatprep.subr.mxu0 %v1252
    %2107 = vmatpush1.msra.mxu0 %v1251
    %2108 = vmatprep.subr.mxu0 %v1276
    %2109 = vmatpush1.msra.mxu0 %v1275
    %2110 = vmatprep.subr.mxu0 %v1300
    %2111 = vmatpush1.msra.mxu0 %v1299
    %2112 = vmatprep.subr.mxu0 %v1324
    %2113 = vmatpush1.msra.mxu0 %v1323
    %2114 = vmatprep.subr.mxu0 %v1348
    %2115 = vmatpush1.msra.mxu0 %v1347
    %2116 = vmatprep.subr.mxu0 %v1372
    %2117 = vmatpush1.msra.mxu0 %v1371
    %2118 = vmatprep.subr.mxu0 %v1396
    %2119 = vmatpush1.msra.mxu0 %v1395
    %2120 = vmatprep.subr.mxu0 %v1420
    %2121 = vmatpush1.msra.mxu0 %v1419
    %2122 = vmatprep.subr.mxu0 %v1444
    %2123 = vmatpush1.msra.mxu0 %v1443
    %2124 = vmatprep.subr.mxu0 %v1468
    %2125 = vmatpush1.msra.mxu0 %v1467
    %2126 = vmatprep.subr.mxu0 %v1492
    %2127 = vmatpush1.msra.mxu0 %v1491
    %2128 = vmatprep.subr.mxu0 %v1516
    %2129 = vmatpush1.msra.mxu0 %v1515
    %2130 = vmatprep.subr.mxu0 %v1540
    %2131 = vmatpush1.msra.mxu0 %v1539
    %2132 = vmatprep.mubr.f32.mxu0 %v18
    %2133 = vmatmul.mubr.f32.gmra.mrb[0].mxu0 %v17
    %v2134 = vpop.f32.mrb[0].mxu0
    %v2135 = vadd.f32 %v2058, %v2134
    %v2136 = vpop.f32.mrb[0].mxu0
    %v2137 = vadd.f32 %v2060, %v2136
    %2138 = vmatprep.mubr.f32.mxu0 %v23
    %2139 = vmatmul.mubr.f32.gmra.mrb[0].mxu0 %v22
    %v2140 = vpop.f32.mrb[0].mxu0
    %v2141 = vadd.f32 %v2064, %v2140
    %v2142 = vpop.f32.mrb[0].mxu0
    %v2143 = vadd.f32 %v2066, %v2142
    %2144 = vdwg.mxu0
    %2145 = vmatprep.subr.mxu0 %v1564
    %2146 = vmatpush1.msra.mxu0 %v1563
    %2147 = vmatprep.subr.mxu0 %v1588
    %2148 = vmatpush1.msra.mxu0 %v1587
    %2149 = vmatprep.subr.mxu0 %v1612
    %2150 = vmatpush1.msra.mxu0 %v1611
    %2151 = vmatprep.subr.mxu0 %v1636
    %2152 = vmatpush1.msra.mxu0 %v1635
    %2153 = vmatprep.subr.mxu0 %v1660
    %2154 = vmatpush1.msra.mxu0 %v1659
    %2155 = vmatprep.subr.mxu0 %v1684
    %2156 = vmatpush1.msra.mxu0 %v1683
    %2157 = vmatprep.subr.mxu0 %v1708
    %2158 = vmatpush1.msra.mxu0 %v1707
    %2159 = vmatprep.subr.mxu0 %v1732
    %2160 = vmatpush1.msra.mxu0 %v1731
    %2161 = vmatprep.subr.mxu0 0.0
    %2162 = vmatpush1.msra.mxu0 0.0
    %2163 = vmatprep.subr.mxu0 0.0
    %2164 = vmatpush1.msra.mxu0 0.0
    %2165 = vmatprep.subr.mxu0 0.0
    %2166 = vmatpush1.msra.mxu0 0.0
    %2167 = vmatprep.subr.mxu0 0.0
    %2168 = vmatpush1.msra.mxu0 0.0
    %2169 = vmatprep.subr.mxu0 0.0
    %2170 = vmatpush1.msra.mxu0 0.0
    %2171 = vmatprep.subr.mxu0 0.0
    %2172 = vmatpush1.msra.mxu0 0.0
    %2173 = vmatprep.subr.mxu0 0.0
    %2174 = vmatpush1.msra.mxu0 0.0
    %2175 = vmatprep.subr.mxu0 0.0
    %2176 = vmatpush1.msra.mxu0 0.0
    %2177 = vmatprep.subr.mxu0 0.0
    %2178 = vmatpush1.msra.mxu0 0.0
    %2179 = vmatprep.subr.mxu0 0.0
    %2180 = vmatpush1.msra.mxu0 0.0
    %2181 = vmatprep.subr.mxu0 0.0
    %2182 = vmatpush1.msra.mxu0 0.0
    %2183 = vmatprep.subr.mxu0 0.0
    %2184 = vmatpush1.msra.mxu0 0.0
    %2185 = vmatprep.subr.mxu0 0.0
    %2186 = vmatpush1.msra.mxu0 0.0
    %2187 = vmatprep.subr.mxu0 0.0
    %2188 = vmatpush1.msra.mxu0 0.0
    %2189 = vmatprep.subr.mxu0 0.0
    %2190 = vmatpush1.msra.mxu0 0.0
    %2191 = vmatprep.subr.mxu0 0.0
    %2192 = vmatpush1.msra.mxu0 0.0
    %2193 = vmatprep.subr.mxu0 0.0
    %2194 = vmatpush1.msra.mxu0 0.0
    %2195 = vmatprep.subr.mxu0 0.0
    %2196 = vmatpush1.msra.mxu0 0.0
    %2197 = vmatprep.subr.mxu0 0.0
    %2198 = vmatpush1.msra.mxu0 0.0
    %2199 = vmatprep.subr.mxu0 0.0
    %2200 = vmatpush1.msra.mxu0 0.0
    %2201 = vmatprep.subr.mxu0 0.0
    %2202 = vmatpush1.msra.mxu0 0.0
    %2203 = vmatprep.subr.mxu0 0.0
    %2204 = vmatpush1.msra.mxu0 0.0
    %2205 = vmatprep.subr.mxu0 0.0
    %2206 = vmatpush1.msra.mxu0 0.0
    %2207 = vmatprep.subr.mxu0 0.0
    %2208 = vmatpush1.msra.mxu0 0.0
    %2209 = vmatprep.mubr.f32.mxu0 0.0
    %2210 = vmatmul.mubr.f32.gmra.mrb[0].mxu0 %v1755
    %v2211 = vpop.f32.mrb[0].mxu0
    %v2212 = vadd.f32 %v2135, %v2211
    %v2213 = vpop.f32.mrb[0].mxu0
    %v2214 = vadd.f32 %v2137, %v2213
    %2215 = vmatprep.mubr.f32.mxu0 0.0
    %2216 = vmatmul.mubr.f32.gmra.mrb[0].mxu0 %v1758
    %v2217 = vpop.f32.mrb[0].mxu0
    %v2218 = vadd.f32 %v2141, %v2217
    %v2219 = vpop.f32.mrb[0].mxu0
    %v2220 = vadd.f32 %v2143, %v2219
    %2221 = vdwg.mxu0
    %2222 = vmatprep.subr.mxu0 %v30
    %2223 = vmatpush1.msra.mxu0 %v29
    %2224 = vmatprep.subr.mxu0 %v54
    %2225 = vmatpush1.msra.mxu0 %v53
    %2226 = vmatprep.subr.mxu0 %v78
    %2227 = vmatpush1.msra.mxu0 %v77
    %2228 = vmatprep.subr.mxu0 %v102
    %2229 = vmatpush1.msra.mxu0 %v101
    %2230 = vmatprep.subr.mxu0 %v126
    %2231 = vmatpush1.msra.mxu0 %v125
    %2232 = vmatprep.subr.mxu0 %v150
    %2233 = vmatpush1.msra.mxu0 %v149
    %2234 = vmatprep.subr.mxu0 %v174
    %2235 = vmatpush1.msra.mxu0 %v173
    %2236 = vmatprep.subr.mxu0 %v198
    %2237 = vmatpush1.msra.mxu0 %v197
    %2238 = vmatprep.subr.mxu0 %v222
    %2239 = vmatpush1.msra.mxu0 %v221
    %2240 = vmatprep.subr.mxu0 %v246
    %2241 = vmatpush1.msra.mxu0 %v245
    %2242 = vmatprep.subr.mxu0 %v270
    %2243 = vmatpush1.msra.mxu0 %v269
    %2244 = vmatprep.subr.mxu0 %v294
    %2245 = vmatpush1.msra.mxu0 %v293
    %2246 = vmatprep.subr.mxu0 %v318
    %2247 = vmatpush1.msra.mxu0 %v317
    %2248 = vmatprep.subr.mxu0 %v342
    %2249 = vmatpush1.msra.mxu0 %v341
    %2250 = vmatprep.subr.mxu0 %v366
    %2251 = vmatpush1.msra.mxu0 %v365
    %2252 = vmatprep.subr.mxu0 %v390
    %2253 = vmatpush1.msra.mxu0 %v389
    %2254 = vmatprep.subr.mxu0 %v414
    %2255 = vmatpush1.msra.mxu0 %v413
    %2256 = vmatprep.subr.mxu0 %v438
    %2257 = vmatpush1.msra.mxu0 %v437
    %2258 = vmatprep.subr.mxu0 %v462
    %2259 = vmatpush1.msra.mxu0 %v461
    %2260 = vmatprep.subr.mxu0 %v486
    %2261 = vmatpush1.msra.mxu0 %v485
    %2262 = vmatprep.subr.mxu0 %v510
    %2263 = vmatpush1.msra.mxu0 %v509
    %2264 = vmatprep.subr.mxu0 %v534
    %2265 = vmatpush1.msra.mxu0 %v533
    %2266 = vmatprep.subr.mxu0 %v558
    %2267 = vmatpush1.msra.mxu0 %v557
    %2268 = vmatprep.subr.mxu0 %v582
    %2269 = vmatpush1.msra.mxu0 %v581
    %2270 = vmatprep.subr.mxu0 %v606
    %2271 = vmatpush1.msra.mxu0 %v605
    %2272 = vmatprep.subr.mxu0 %v630
    %2273 = vmatpush1.msra.mxu0 %v629
    %2274 = vmatprep.subr.mxu0 %v654
    %2275 = vmatpush1.msra.mxu0 %v653
    %2276 = vmatprep.subr.mxu0 %v678
    %2277 = vmatpush1.msra.mxu0 %v677
    %2278 = vmatprep.subr.mxu0 %v702
    %2279 = vmatpush1.msra.mxu0 %v701
    %2280 = vmatprep.subr.mxu0 %v726
    %2281 = vmatpush1.msra.mxu0 %v725
    %2282 = vmatprep.subr.mxu0 %v750
    %2283 = vmatpush1.msra.mxu0 %v749
    %2284 = vmatprep.subr.mxu0 %v774
    %2285 = vmatpush1.msra.mxu0 %v773
    %2286 = vmatprep.mubr.f32.mxu0 %v16
    %2287 = vmatmul.mubr.f32.gmra.mrb[0].mxu0 %v15
    %v2288 = vpop.f32.mrb[0].mxu0
    %v2289 = vadd.f32 0.0, %v2288
    %v2290 = vpop.f32.mrb[0].mxu0
    %v2291 = vadd.f32 0.0, %v2290
    %2292 = vmatprep.mubr.f32.mxu0 %v21
    %2293 = vmatmul.mubr.f32.gmra.mrb[0].mxu0 %v20
    %v2294 = vpop.f32.mrb[0].mxu0
    %v2295 = vadd.f32 0.0, %v2294
    %v2296 = vpop.f32.mrb[0].mxu0
    %v2297 = vadd.f32 0.0, %v2296
    %2298 = vdwg.mxu0
    %2299 = vmatprep.subr.mxu0 %v798
    %2300 = vmatpush1.msra.mxu0 %v797
    %2301 = vmatprep.subr.mxu0 %v822
    %2302 = vmatpush1.msra.mxu0 %v821
    %2303 = vmatprep.subr.mxu0 %v846
    %2304 = vmatpush1.msra.mxu0 %v845
    %2305 = vmatprep.subr.mxu0 %v870
    %2306 = vmatpush1.msra.mxu0 %v869
    %2307 = vmatprep.subr.mxu0 %v894
    %2308 = vmatpush1.msra.mxu0 %v893
    %2309 = vmatprep.subr.mxu0 %v918
    %2310 = vmatpush1.msra.mxu0 %v917
    %2311 = vmatprep.subr.mxu0 %v942
    %2312 = vmatpush1.msra.mxu0 %v941
    %2313 = vmatprep.subr.mxu0 %v966
    %2314 = vmatpush1.msra.mxu0 %v965
    %2315 = vmatprep.subr.mxu0 %v990
    %2316 = vmatpush1.msra.mxu0 %v989
    %2317 = vmatprep.subr.mxu0 %v1014
    %2318 = vmatpush1.msra.mxu0 %v1013
    %2319 = vmatprep.subr.mxu0 %v1038
    %2320 = vmatpush1.msra.mxu0 %v1037
    %2321 = vmatprep.subr.mxu0 %v1062
    %2322 = vmatpush1.msra.mxu0 %v1061
    %2323 = vmatprep.subr.mxu0 %v1086
    %2324 = vmatpush1.msra.mxu0 %v1085
    %2325 = vmatprep.subr.mxu0 %v1110
    %2326 = vmatpush1.msra.mxu0 %v1109
    %2327 = vmatprep.subr.mxu0 %v1134
    %2328 = vmatpush1.msra.mxu0 %v1133
    %2329 = vmatprep.subr.mxu0 %v1158
    %2330 = vmatpush1.msra.mxu0 %v1157
    %2331 = vmatprep.subr.mxu0 %v1182
    %2332 = vmatpush1.msra.mxu0 %v1181
    %2333 = vmatprep.subr.mxu0 %v1206
    %2334 = vmatpush1.msra.mxu0 %v1205
    %2335 = vmatprep.subr.mxu0 %v1230
    %2336 = vmatpush1.msra.mxu0 %v1229
    %2337 = vmatprep.subr.mxu0 %v1254
    %2338 = vmatpush1.msra.mxu0 %v1253
    %2339 = vmatprep.subr.mxu0 %v1278
    %2340 = vmatpush1.msra.mxu0 %v1277
    %2341 = vmatprep.subr.mxu0 %v1302
    %2342 = vmatpush1.msra.mxu0 %v1301
    %2343 = vmatprep.subr.mxu0 %v1326
    %2344 = vmatpush1.msra.mxu0 %v1325
    %2345 = vmatprep.subr.mxu0 %v1350
    %2346 = vmatpush1.msra.mxu0 %v1349
    %2347 = vmatprep.subr.mxu0 %v1374
    %2348 = vmatpush1.msra.mxu0 %v1373
    %2349 = vmatprep.subr.mxu0 %v1398
    %2350 = vmatpush1.msra.mxu0 %v1397
    %2351 = vmatprep.subr.mxu0 %v1422
    %2352 = vmatpush1.msra.mxu0 %v1421
    %2353 = vmatprep.subr.mxu0 %v1446
    %2354 = vmatpush1.msra.mxu0 %v1445
    %2355 = vmatprep.subr.mxu0 %v1470
    %2356 = vmatpush1.msra.mxu0 %v1469
    %2357 = vmatprep.subr.mxu0 %v1494
    %2358 = vmatpush1.msra.mxu0 %v1493
    %2359 = vmatprep.subr.mxu0 %v1518
    %2360 = vmatpush1.msra.mxu0 %v1517
    %2361 = vmatprep.subr.mxu0 %v1542
    %2362 = vmatpush1.msra.mxu0 %v1541
    %2363 = vmatprep.mubr.f32.mxu0 %v18
    %2364 = vmatmul.mubr.f32.gmra.mrb[0].mxu0 %v17
    %v2365 = vpop.f32.mrb[0].mxu0
    %v2366 = vadd.f32 %v2289, %v2365
    %v2367 = vpop.f32.mrb[0].mxu0
    %v2368 = vadd.f32 %v2291, %v2367
    %2369 = vmatprep.mubr.f32.mxu0 %v23
    %2370 = vmatmul.mubr.f32.gmra.mrb[0].mxu0 %v22
    %v2371 = vpop.f32.mrb[0].mxu0
    %v2372 = vadd.f32 %v2295, %v2371
    %v2373 = vpop.f32.mrb[0].mxu0
    %v2374 = vadd.f32 %v2297, %v2373
    %2375 = vdwg.mxu0
    %2376 = vmatprep.subr.mxu0 %v1566
    %2377 = vmatpush1.msra.mxu0 %v1565
    %2378 = vmatprep.subr.mxu0 %v1590
    %2379 = vmatpush1.msra.mxu0 %v1589
    %2380 = vmatprep.subr.mxu0 %v1614
    %2381 = vmatpush1.msra.mxu0 %v1613
    %2382 = vmatprep.subr.mxu0 %v1638
    %2383 = vmatpush1.msra.mxu0 %v1637
    %2384 = vmatprep.subr.mxu0 %v1662
    %2385 = vmatpush1.msra.mxu0 %v1661
    %2386 = vmatprep.subr.mxu0 %v1686
    %2387 = vmatpush1.msra.mxu0 %v1685
    %2388 = vmatprep.subr.mxu0 %v1710
    %2389 = vmatpush1.msra.mxu0 %v1709
    %2390 = vmatprep.subr.mxu0 %v1734
    %2391 = vmatpush1.msra.mxu0 %v1733
    %2392 = vmatprep.subr.mxu0 0.0
    %2393 = vmatpush1.msra.mxu0 0.0
    %2394 = vmatprep.subr.mxu0 0.0
    %2395 = vmatpush1.msra.mxu0 0.0
    %2396 = vmatprep.subr.mxu0 0.0
    %2397 = vmatpush1.msra.mxu0 0.0
    %2398 = vmatprep.subr.mxu0 0.0
    %2399 = vmatpush1.msra.mxu0 0.0
    %2400 = vmatprep.subr.mxu0 0.0
    %2401 = vmatpush1.msra.mxu0 0.0
    %2402 = vmatprep.subr.mxu0 0.0
    %2403 = vmatpush1.msra.mxu0 0.0
    %2404 = vmatprep.subr.mxu0 0.0
    %2405 = vmatpush1.msra.mxu0 0.0
    %2406 = vmatprep.subr.mxu0 0.0
    %2407 = vmatpush1.msra.mxu0 0.0
    %2408 = vmatprep.subr.mxu0 0.0
    %2409 = vmatpush1.msra.mxu0 0.0
    %2410 = vmatprep.subr.mxu0 0.0
    %2411 = vmatpush1.msra.mxu0 0.0
    %2412 = vmatprep.subr.mxu0 0.0
    %2413 = vmatpush1.msra.mxu0 0.0
    %2414 = vmatprep.subr.mxu0 0.0
    %2415 = vmatpush1.msra.mxu0 0.0
    %2416 = vmatprep.subr.mxu0 0.0
    %2417 = vmatpush1.msra.mxu0 0.0
    %2418 = vmatprep.subr.mxu0 0.0
    %2419 = vmatpush1.msra.mxu0 0.0
    %2420 = vmatprep.subr.mxu0 0.0
    %2421 = vmatpush1.msra.mxu0 0.0
    %2422 = vmatprep.subr.mxu0 0.0
    %2423 = vmatpush1.msra.mxu0 0.0
    %2424 = vmatprep.subr.mxu0 0.0
    %2425 = vmatpush1.msra.mxu0 0.0
    %2426 = vmatprep.subr.mxu0 0.0
    %2427 = vmatpush1.msra.mxu0 0.0
    %2428 = vmatprep.subr.mxu0 0.0
    %2429 = vmatpush1.msra.mxu0 0.0
    %2430 = vmatprep.subr.mxu0 0.0
    %2431 = vmatpush1.msra.mxu0 0.0
    %2432 = vmatprep.subr.mxu0 0.0
    %2433 = vmatpush1.msra.mxu0 0.0
    %2434 = vmatprep.subr.mxu0 0.0
    %2435 = vmatpush1.msra.mxu0 0.0
    %2436 = vmatprep.subr.mxu0 0.0
    %2437 = vmatpush1.msra.mxu0 0.0
    %2438 = vmatprep.subr.mxu0 0.0
    %2439 = vmatpush1.msra.mxu0 0.0
    %2440 = vmatprep.mubr.f32.mxu0 0.0
    %2441 = vmatmul.mubr.f32.gmra.mrb[0].mxu0 %v1755
    %v2442 = vpop.f32.mrb[0].mxu0
    %v2443 = vadd.f32 %v2366, %v2442
    %v2444 = vpop.f32.mrb[0].mxu0
    %v2445 = vadd.f32 %v2368, %v2444
    %2446 = vmatprep.mubr.f32.mxu0 0.0
    %2447 = vmatmul.mubr.f32.gmra.mrb[0].mxu0 %v1758
    %v2448 = vpop.f32.mrb[0].mxu0
    %v2449 = vadd.f32 %v2372, %v2448
    %v2450 = vpop.f32.mrb[0].mxu0
    %v2451 = vadd.f32 %v2374, %v2450
    %2452 = vdwg.mxu0
    %2453 = vmatprep.subr.mxu0 %v32
    %2454 = vmatpush1.msra.mxu0 %v31
    %2455 = vmatprep.subr.mxu0 %v56
    %2456 = vmatpush1.msra.mxu0 %v55
    %2457 = vmatprep.subr.mxu0 %v80
    %2458 = vmatpush1.msra.mxu0 %v79
    %2459 = vmatprep.subr.mxu0 %v104
    %2460 = vmatpush1.msra.mxu0 %v103
    %2461 = vmatprep.subr.mxu0 %v128
    %2462 = vmatpush1.msra.mxu0 %v127
    %2463 = vmatprep.subr.mxu0 %v152
    %2464 = vmatpush1.msra.mxu0 %v151
    %2465 = vmatprep.subr.mxu0 %v176
    %2466 = vmatpush1.msra.mxu0 %v175
    %2467 = vmatprep.subr.mxu0 %v200
    %2468 = vmatpush1.msra.mxu0 %v199
    %2469 = vmatprep.subr.mxu0 %v224
    %2470 = vmatpush1.msra.mxu0 %v223
    %2471 = vmatprep.subr.mxu0 %v248
    %2472 = vmatpush1.msra.mxu0 %v247
    %2473 = vmatprep.subr.mxu0 %v272
    %2474 = vmatpush1.msra.mxu0 %v271
    %2475 = vmatprep.subr.mxu0 %v296
    %2476 = vmatpush1.msra.mxu0 %v295
    %2477 = vmatprep.subr.mxu0 %v320
    %2478 = vmatpush1.msra.mxu0 %v319
    %2479 = vmatprep.subr.mxu0 %v344
    %2480 = vmatpush1.msra.mxu0 %v343
    %2481 = vmatprep.subr.mxu0 %v368
    %2482 = vmatpush1.msra.mxu0 %v367
    %2483 = vmatprep.subr.mxu0 %v392
    %2484 = vmatpush1.msra.mxu0 %v391
    %2485 = vmatprep.subr.mxu0 %v416
    %2486 = vmatpush1.msra.mxu0 %v415
    %2487 = vmatprep.subr.mxu0 %v440
    %2488 = vmatpush1.msra.mxu0 %v439
    %2489 = vmatprep.subr.mxu0 %v464
    %2490 = vmatpush1.msra.mxu0 %v463
    %2491 = vmatprep.subr.mxu0 %v488
    %2492 = vmatpush1.msra.mxu0 %v487
    %2493 = vmatprep.subr.mxu0 %v512
    %2494 = vmatpush1.msra.mxu0 %v511
    %2495 = vmatprep.subr.mxu0 %v536
    %2496 = vmatpush1.msra.mxu0 %v535
    %2497 = vmatprep.subr.mxu0 %v560
    %2498 = vmatpush1.msra.mxu0 %v559
    %2499 = vmatprep.subr.mxu0 %v584
    %2500 = vmatpush1.msra.mxu0 %v583
    %2501 = vmatprep.subr.mxu0 %v608
    %2502 = vmatpush1.msra.mxu0 %v607
    %2503 = vmatprep.subr.mxu0 %v632
    %2504 = vmatpush1.msra.mxu0 %v631
    %2505 = vmatprep.subr.mxu0 %v656
    %2506 = vmatpush1.msra.mxu0 %v655
    %2507 = vmatprep.subr.mxu0 %v680
    %2508 = vmatpush1.msra.mxu0 %v679
    %2509 = vmatprep.subr.mxu0 %v704
    %2510 = vmatpush1.msra.mxu0 %v703
    %2511 = vmatprep.subr.mxu0 %v728
    %2512 = vmatpush1.msra.mxu0 %v727
    %2513 = vmatprep.subr.mxu0 %v752
    %2514 = vmatpush1.msra.mxu0 %v751
    %2515 = vmatprep.subr.mxu0 %v776
    %2516 = vmatpush1.msra.mxu0 %v775
    %2517 = vmatprep.mubr.f32.mxu0 %v16
    %2518 = vmatmul.mubr.f32.gmra.mrb[0].mxu0 %v15
    %v2519 = vpop.f32.mrb[0].mxu0
    %v2520 = vadd.f32 0.0, %v2519
    %v2521 = vpop.f32.mrb[0].mxu0
    %v2522 = vadd.f32 0.0, %v2521
    %2523 = vmatprep.mubr.f32.mxu0 %v21
    %2524 = vmatmul.mubr.f32.gmra.mrb[0].mxu0 %v20
    %v2525 = vpop.f32.mrb[0].mxu0
    %v2526 = vadd.f32 0.0, %v2525
    %v2527 = vpop.f32.mrb[0].mxu0
    %v2528 = vadd.f32 0.0, %v2527
    %2529 = vdwg.mxu0
    %2530 = vmatprep.subr.mxu0 %v800
    %2531 = vmatpush1.msra.mxu0 %v799
    %2532 = vmatprep.subr.mxu0 %v824
    %2533 = vmatpush1.msra.mxu0 %v823
    %2534 = vmatprep.subr.mxu0 %v848
    %2535 = vmatpush1.msra.mxu0 %v847
    %2536 = vmatprep.subr.mxu0 %v872
    %2537 = vmatpush1.msra.mxu0 %v871
    %2538 = vmatprep.subr.mxu0 %v896
    %2539 = vmatpush1.msra.mxu0 %v895
    %2540 = vmatprep.subr.mxu0 %v920
    %2541 = vmatpush1.msra.mxu0 %v919
    %2542 = vmatprep.subr.mxu0 %v944
    %2543 = vmatpush1.msra.mxu0 %v943
    %2544 = vmatprep.subr.mxu0 %v968
    %2545 = vmatpush1.msra.mxu0 %v967
    %2546 = vmatprep.subr.mxu0 %v992
    %2547 = vmatpush1.msra.mxu0 %v991
    %2548 = vmatprep.subr.mxu0 %v1016
    %2549 = vmatpush1.msra.mxu0 %v1015
    %2550 = vmatprep.subr.mxu0 %v1040
    %2551 = vmatpush1.msra.mxu0 %v1039
    %2552 = vmatprep.subr.mxu0 %v1064
    %2553 = vmatpush1.msra.mxu0 %v1063
    %2554 = vmatprep.subr.mxu0 %v1088
    %2555 = vmatpush1.msra.mxu0 %v1087
    %2556 = vmatprep.subr.mxu0 %v1112
    %2557 = vmatpush1.msra.mxu0 %v1111
    %2558 = vmatprep.subr.mxu0 %v1136
    %2559 = vmatpush1.msra.mxu0 %v1135
    %2560 = vmatprep.subr.mxu0 %v1160
    %2561 = vmatpush1.msra.mxu0 %v1159
    %2562 = vmatprep.subr.mxu0 %v1184
    %2563 = vmatpush1.msra.mxu0 %v1183
    %2564 = vmatprep.subr.mxu0 %v1208
    %2565 = vmatpush1.msra.mxu0 %v1207
    %2566 = vmatprep.subr.mxu0 %v1232
    %2567 = vmatpush1.msra.mxu0 %v1231
    %2568 = vmatprep.subr.mxu0 %v1256
    %2569 = vmatpush1.msra.mxu0 %v1255
    %2570 = vmatprep.subr.mxu0 %v1280
    %2571 = vmatpush1.msra.mxu0 %v1279
    %2572 = vmatprep.subr.mxu0 %v1304
    %2573 = vmatpush1.msra.mxu0 %v1303
    %2574 = vmatprep.subr.mxu0 %v1328
    %2575 = vmatpush1.msra.mxu0 %v1327
    %2576 = vmatprep.subr.mxu0 %v1352
    %2577 = vmatpush1.msra.mxu0 %v1351
    %2578 = vmatprep.subr.mxu0 %v1376
    %2579 = vmatpush1.msra.mxu0 %v1375
    %2580 = vmatprep.subr.mxu0 %v1400
    %2581 = vmatpush1.msra.mxu0 %v1399
    %2582 = vmatprep.subr.mxu0 %v1424
    %2583 = vmatpush1.msra.mxu0 %v1423
    %2584 = vmatprep.subr.mxu0 %v1448
    %2585 = vmatpush1.msra.mxu0 %v1447
    %2586 = vmatprep.subr.mxu0 %v1472
    %2587 = vmatpush1.msra.mxu0 %v1471
    %2588 = vmatprep.subr.mxu0 %v1496
    %2589 = vmatpush1.msra.mxu0 %v1495
    %2590 = vmatprep.subr.mxu0 %v1520
    %2591 = vmatpush1.msra.mxu0 %v1519
    %2592 = vmatprep.subr.mxu0 %v1544
    %2593 = vmatpush1.msra.mxu0 %v1543
    %2594 = vmatprep.mubr.f32.mxu0 %v18
    %2595 = vmatmul.mubr.f32.gmra.mrb[0].mxu0 %v17
    %v2596 = vpop.f32.mrb[0].mxu0
    %v2597 = vadd.f32 %v2520, %v2596
    %v2598 = vpop.f32.mrb[0].mxu0
    %v2599 = vadd.f32 %v2522, %v2598
    %2600 = vmatprep.mubr.f32.mxu0 %v23
    %2601 = vmatmul.mubr.f32.gmra.mrb[0].mxu0 %v22
    %v2602 = vpop.f32.mrb[0].mxu0
    %v2603 = vadd.f32 %v2526, %v2602
    %v2604 = vpop.f32.mrb[0].mxu0
    %v2605 = vadd.f32 %v2528, %v2604
    %2606 = vdwg.mxu0
    %2607 = vmatprep.subr.mxu0 %v1568
    %2608 = vmatpush1.msra.mxu0 %v1567
    %2609 = vmatprep.subr.mxu0 %v1592
    %2610 = vmatpush1.msra.mxu0 %v1591
    %2611 = vmatprep.subr.mxu0 %v1616
    %2612 = vmatpush1.msra.mxu0 %v1615
    %2613 = vmatprep.subr.mxu0 %v1640
    %2614 = vmatpush1.msra.mxu0 %v1639
    %2615 = vmatprep.subr.mxu0 %v1664
    %2616 = vmatpush1.msra.mxu0 %v1663
    %2617 = vmatprep.subr.mxu0 %v1688
    %2618 = vmatpush1.msra.mxu0 %v1687
    %2619 = vmatprep.subr.mxu0 %v1712
    %2620 = vmatpush1.msra.mxu0 %v1711
    %2621 = vmatprep.subr.mxu0 %v1736
    %2622 = vmatpush1.msra.mxu0 %v1735
    %2623 = vmatprep.subr.mxu0 0.0
    %2624 = vmatpush1.msra.mxu0 0.0
    %2625 = vmatprep.subr.mxu0 0.0
    %2626 = vmatpush1.msra.mxu0 0.0
    %2627 = vmatprep.subr.mxu0 0.0
    %2628 = vmatpush1.msra.mxu0 0.0
    %2629 = vmatprep.subr.mxu0 0.0
    %2630 = vmatpush1.msra.mxu0 0.0
    %2631 = vmatprep.subr.mxu0 0.0
    %2632 = vmatpush1.msra.mxu0 0.0
    %2633 = vmatprep.subr.mxu0 0.0
    %2634 = vmatpush1.msra.mxu0 0.0
    %2635 = vmatprep.subr.mxu0 0.0
    %2636 = vmatpush1.msra.mxu0 0.0
    %2637 = vmatprep.subr.mxu0 0.0
    %2638 = vmatpush1.msra.mxu0 0.0
    %2639 = vmatprep.subr.mxu0 0.0
    %2640 = vmatpush1.msra.mxu0 0.0
    %2641 = vmatprep.subr.mxu0 0.0
    %2642 = vmatpush1.msra.mxu0 0.0
    %2643 = vmatprep.subr.mxu0 0.0
    %2644 = vmatpush1.msra.mxu0 0.0
    %2645 = vmatprep.subr.mxu0 0.0
    %2646 = vmatpush1.msra.mxu0 0.0
    %2647 = vmatprep.subr.mxu0 0.0
    %2648 = vmatpush1.msra.mxu0 0.0
    %2649 = vmatprep.subr.mxu0 0.0
    %2650 = vmatpush1.msra.mxu0 0.0
    %2651 = vmatprep.subr.mxu0 0.0
    %2652 = vmatpush1.msra.mxu0 0.0
    %2653 = vmatprep.subr.mxu0 0.0
    %2654 = vmatpush1.msra.mxu0 0.0
    %2655 = vmatprep.subr.mxu0 0.0
    %2656 = vmatpush1.msra.mxu0 0.0
    %2657 = vmatprep.subr.mxu0 0.0
    %2658 = vmatpush1.msra.mxu0 0.0
    %2659 = vmatprep.subr.mxu0 0.0
    %2660 = vmatpush1.msra.mxu0 0.0
    %2661 = vmatprep.subr.mxu0 0.0
    %2662 = vmatpush1.msra.mxu0 0.0
    %2663 = vmatprep.subr.mxu0 0.0
    %2664 = vmatpush1.msra.mxu0 0.0
    %2665 = vmatprep.subr.mxu0 0.0
    %2666 = vmatpush1.msra.mxu0 0.0
    %2667 = vmatprep.subr.mxu0 0.0
    %2668 = vmatpush1.msra.mxu0 0.0
    %2669 = vmatprep.subr.mxu0 0.0
    %2670 = vmatpush1.msra.mxu0 0.0
    %2671 = vmatprep.mubr.f32.mxu0 0.0
    %2672 = vmatmul.mubr.f32.gmra.mrb[0].mxu0 %v1755
    %v2673 = vpop.f32.mrb[0].mxu0
    %v2674 = vadd.f32 %v2597, %v2673
    %v2675 = vpop.f32.mrb[0].mxu0
    %v2676 = vadd.f32 %v2599, %v2675
    %2677 = vmatprep.mubr.f32.mxu0 0.0
    %2678 = vmatmul.mubr.f32.gmra.mrb[0].mxu0 %v1758
    %v2679 = vpop.f32.mrb[0].mxu0
    %v2680 = vadd.f32 %v2603, %v2679
    %v2681 = vpop.f32.mrb[0].mxu0
    %v2682 = vadd.f32 %v2605, %v2681
    %2683 = vdwg.mxu0
    %2684 = vmatprep.subr.mxu0 %v34
    %2685 = vmatpush1.msra.mxu0 %v33
    %2686 = vmatprep.subr.mxu0 %v58
    %2687 = vmatpush1.msra.mxu0 %v57
    %2688 = vmatprep.subr.mxu0 %v82
    %2689 = vmatpush1.msra.mxu0 %v81
    %2690 = vmatprep.subr.mxu0 %v106
    %2691 = vmatpush1.msra.mxu0 %v105
    %2692 = vmatprep.subr.mxu0 %v130
    %2693 = vmatpush1.msra.mxu0 %v129
    %2694 = vmatprep.subr.mxu0 %v154
    %2695 = vmatpush1.msra.mxu0 %v153
    %2696 = vmatprep.subr.mxu0 %v178
    %2697 = vmatpush1.msra.mxu0 %v177
    %2698 = vmatprep.subr.mxu0 %v202
    %2699 = vmatpush1.msra.mxu0 %v201
    %2700 = vmatprep.subr.mxu0 %v226
    %2701 = vmatpush1.msra.mxu0 %v225
    %2702 = vmatprep.subr.mxu0 %v250
    %2703 = vmatpush1.msra.mxu0 %v249
    %2704 = vmatprep.subr.mxu0 %v274
    %2705 = vmatpush1.msra.mxu0 %v273
    %2706 = vmatprep.subr.mxu0 %v298
    %2707 = vmatpush1.msra.mxu0 %v297
    %2708 = vmatprep.subr.mxu0 %v322
    %2709 = vmatpush1.msra.mxu0 %v321
    %2710 = vmatprep.subr.mxu0 %v346
    %2711 = vmatpush1.msra.mxu0 %v345
    %2712 = vmatprep.subr.mxu0 %v370
    %2713 = vmatpush1.msra.mxu0 %v369
    %2714 = vmatprep.subr.mxu0 %v394
    %2715 = vmatpush1.msra.mxu0 %v393
    %2716 = vmatprep.subr.mxu0 %v418
    %2717 = vmatpush1.msra.mxu0 %v417
    %2718 = vmatprep.subr.mxu0 %v442
    %2719 = vmatpush1.msra.mxu0 %v441
    %2720 = vmatprep.subr.mxu0 %v466
    %2721 = vmatpush1.msra.mxu0 %v465
    %2722 = vmatprep.subr.mxu0 %v490
    %2723 = vmatpush1.msra.mxu0 %v489
    %2724 = vmatprep.subr.mxu0 %v514
    %2725 = vmatpush1.msra.mxu0 %v513
    %2726 = vmatprep.subr.mxu0 %v538
    %2727 = vmatpush1.msra.mxu0 %v537
    %2728 = vmatprep.subr.mxu0 %v562
    %2729 = vmatpush1.msra.mxu0 %v561
    %2730 = vmatprep.subr.mxu0 %v586
    %2731 = vmatpush1.msra.mxu0 %v585
    %2732 = vmatprep.subr.mxu0 %v610
    %2733 = vmatpush1.msra.mxu0 %v609
    %2734 = vmatprep.subr.mxu0 %v634
    %2735 = vmatpush1.msra.mxu0 %v633
    %2736 = vmatprep.subr.mxu0 %v658
    %2737 = vmatpush1.msra.mxu0 %v657
    %2738 = vmatprep.subr.mxu0 %v682
    %2739 = vmatpush1.msra.mxu0 %v681
    %2740 = vmatprep.subr.mxu0 %v706
    %2741 = vmatpush1.msra.mxu0 %v705
    %2742 = vmatprep.subr.mxu0 %v730
    %2743 = vmatpush1.msra.mxu0 %v729
    %2744 = vmatprep.subr.mxu0 %v754
    %2745 = vmatpush1.msra.mxu0 %v753
    %2746 = vmatprep.subr.mxu0 %v778
    %2747 = vmatpush1.msra.mxu0 %v777
    %2748 = vmatprep.mubr.f32.mxu0 %v16
    %2749 = vmatmul.mubr.f32.gmra.mrb[0].mxu0 %v15
    %v2750 = vpop.f32.mrb[0].mxu0
    %v2751 = vadd.f32 0.0, %v2750
    %v2752 = vpop.f32.mrb[0].mxu0
    %v2753 = vadd.f32 0.0, %v2752
    %2754 = vmatprep.mubr.f32.mxu0 %v21
    %2755 = vmatmul.mubr.f32.gmra.mrb[0].mxu0 %v20
    %v2756 = vpop.f32.mrb[0].mxu0
    %v2757 = vadd.f32 0.0, %v2756
    %v2758 = vpop.f32.mrb[0].mxu0
    %v2759 = vadd.f32 0.0, %v2758
    %2760 = vdwg.mxu0
    %2761 = vmatprep.subr.mxu0 %v802
    %2762 = vmatpush1.msra.mxu0 %v801
    %2763 = vmatprep.subr.mxu0 %v826
    %2764 = vmatpush1.msra.mxu0 %v825
    %2765 = vmatprep.subr.mxu0 %v850
    %2766 = vmatpush1.msra.mxu0 %v849
    %2767 = vmatprep.subr.mxu0 %v874
    %2768 = vmatpush1.msra.mxu0 %v873
    %2769 = vmatprep.subr.mxu0 %v898
    %2770 = vmatpush1.msra.mxu0 %v897
    %2771 = vmatprep.subr.mxu0 %v922
    %2772 = vmatpush1.msra.mxu0 %v921
    %2773 = vmatprep.subr.mxu0 %v946
    %2774 = vmatpush1.msra.mxu0 %v945
    %2775 = vmatprep.subr.mxu0 %v970
    %2776 = vmatpush1.msra.mxu0 %v969
    %2777 = vmatprep.subr.mxu0 %v994
    %2778 = vmatpush1.msra.mxu0 %v993
    %2779 = vmatprep.subr.mxu0 %v1018
    %2780 = vmatpush1.msra.mxu0 %v1017
    %2781 = vmatprep.subr.mxu0 %v1042
    %2782 = vmatpush1.msra.mxu0 %v1041
    %2783 = vmatprep.subr.mxu0 %v1066
    %2784 = vmatpush1.msra.mxu0 %v1065
    %2785 = vmatprep.subr.mxu0 %v1090
    %2786 = vmatpush1.msra.mxu0 %v1089
    %2787 = vmatprep.subr.mxu0 %v1114
    %2788 = vmatpush1.msra.mxu0 %v1113
    %2789 = vmatprep.subr.mxu0 %v1138
    %2790 = vmatpush1.msra.mxu0 %v1137
    %2791 = vmatprep.subr.mxu0 %v1162
    %2792 = vmatpush1.msra.mxu0 %v1161
    %2793 = vmatprep.subr.mxu0 %v1186
    %2794 = vmatpush1.msra.mxu0 %v1185
    %2795 = vmatprep.subr.mxu0 %v1210
    %2796 = vmatpush1.msra.mxu0 %v1209
    %2797 = vmatprep.subr.mxu0 %v1234
    %2798 = vmatpush1.msra.mxu0 %v1233
    %2799 = vmatprep.subr.mxu0 %v1258
    %2800 = vmatpush1.msra.mxu0 %v1257
    %2801 = vmatprep.subr.mxu0 %v1282
    %2802 = vmatpush1.msra.mxu0 %v1281
    %2803 = vmatprep.subr.mxu0 %v1306
    %2804 = vmatpush1.msra.mxu0 %v1305
    %2805 = vmatprep.subr.mxu0 %v1330
    %2806 = vmatpush1.msra.mxu0 %v1329
    %2807 = vmatprep.subr.mxu0 %v1354
    %2808 = vmatpush1.msra.mxu0 %v1353
    %2809 = vmatprep.subr.mxu0 %v1378
    %2810 = vmatpush1.msra.mxu0 %v1377
    %2811 = vmatprep.subr.mxu0 %v1402
    %2812 = vmatpush1.msra.mxu0 %v1401
    %2813 = vmatprep.subr.mxu0 %v1426
    %2814 = vmatpush1.msra.mxu0 %v1425
    %2815 = vmatprep.subr.mxu0 %v1450
    %2816 = vmatpush1.msra.mxu0 %v1449
    %2817 = vmatprep.subr.mxu0 %v1474
    %2818 = vmatpush1.msra.mxu0 %v1473
    %2819 = vmatprep.subr.mxu0 %v1498
    %2820 = vmatpush1.msra.mxu0 %v1497
    %2821 = vmatprep.subr.mxu0 %v1522
    %2822 = vmatpush1.msra.mxu0 %v1521
    %2823 = vmatprep.subr.mxu0 %v1546
    %2824 = vmatpush1.msra.mxu0 %v1545
    %2825 = vmatprep.mubr.f32.mxu0 %v18
    %2826 = vmatmul.mubr.f32.gmra.mrb[0].mxu0 %v17
    %v2827 = vpop.f32.mrb[0].mxu0
    %v2828 = vadd.f32 %v2751, %v2827
    %v2829 = vpop.f32.mrb[0].mxu0
    %v2830 = vadd.f32 %v2753, %v2829
    %2831 = vmatprep.mubr.f32.mxu0 %v23
    %2832 = vmatmul.mubr.f32.gmra.mrb[0].mxu0 %v22
    %v2833 = vpop.f32.mrb[0].mxu0
    %v2834 = vadd.f32 %v2757, %v2833
    %v2835 = vpop.f32.mrb[0].mxu0
    %v2836 = vadd.f32 %v2759, %v2835
    %2837 = vdwg.mxu0
    %2838 = vmatprep.subr.mxu0 %v1570
    %2839 = vmatpush1.msra.mxu0 %v1569
    %2840 = vmatprep.subr.mxu0 %v1594
    %2841 = vmatpush1.msra.mxu0 %v1593
    %2842 = vmatprep.subr.mxu0 %v1618
    %2843 = vmatpush1.msra.mxu0 %v1617
    %2844 = vmatprep.subr.mxu0 %v1642
    %2845 = vmatpush1.msra.mxu0 %v1641
    %2846 = vmatprep.subr.mxu0 %v1666
    %2847 = vmatpush1.msra.mxu0 %v1665
    %2848 = vmatprep.subr.mxu0 %v1690
    %2849 = vmatpush1.msra.mxu0 %v1689
    %2850 = vmatprep.subr.mxu0 %v1714
    %2851 = vmatpush1.msra.mxu0 %v1713
    %2852 = vmatprep.subr.mxu0 %v1738
    %2853 = vmatpush1.msra.mxu0 %v1737
    %2854 = vmatprep.subr.mxu0 0.0
    %2855 = vmatpush1.msra.mxu0 0.0
    %2856 = vmatprep.subr.mxu0 0.0
    %2857 = vmatpush1.msra.mxu0 0.0
    %2858 = vmatprep.subr.mxu0 0.0
    %2859 = vmatpush1.msra.mxu0 0.0
    %2860 = vmatprep.subr.mxu0 0.0
    %2861 = vmatpush1.msra.mxu0 0.0
    %2862 = vmatprep.subr.mxu0 0.0
    %2863 = vmatpush1.msra.mxu0 0.0
    %2864 = vmatprep.subr.mxu0 0.0
    %2865 = vmatpush1.msra.mxu0 0.0
    %2866 = vmatprep.subr.mxu0 0.0
    %2867 = vmatpush1.msra.mxu0 0.0
    %2868 = vmatprep.subr.mxu0 0.0
    %2869 = vmatpush1.msra.mxu0 0.0
    %2870 = vmatprep.subr.mxu0 0.0
    %2871 = vmatpush1.msra.mxu0 0.0
    %2872 = vmatprep.subr.mxu0 0.0
    %2873 = vmatpush1.msra.mxu0 0.0
    %2874 = vmatprep.subr.mxu0 0.0
    %2875 = vmatpush1.msra.mxu0 0.0
    %2876 = vmatprep.subr.mxu0 0.0
    %2877 = vmatpush1.msra.mxu0 0.0
    %2878 = vmatprep.subr.mxu0 0.0
    %2879 = vmatpush1.msra.mxu0 0.0
    %2880 = vmatprep.subr.mxu0 0.0
    %2881 = vmatpush1.msra.mxu0 0.0
    %2882 = vmatprep.subr.mxu0 0.0
    %2883 = vmatpush1.msra.mxu0 0.0
    %2884 = vmatprep.subr.mxu0 0.0
    %2885 = vmatpush1.msra.mxu0 0.0
    %2886 = vmatprep.subr.mxu0 0.0
    %2887 = vmatpush1.msra.mxu0 0.0
    %2888 = vmatprep.subr.mxu0 0.0
    %2889 = vmatpush1.msra.mxu0 0.0
    %2890 = vmatprep.subr.mxu0 0.0
    %2891 = vmatpush1.msra.mxu0 0.0
    %2892 = vmatprep.subr.mxu0 0.0
    %2893 = vmatpush1.msra.mxu0 0.0
    %2894 = vmatprep.subr.mxu0 0.0
    %2895 = vmatpush1.msra.mxu0 0.0
    %2896 = vmatprep.subr.mxu0 0.0
    %2897 = vmatpush1.msra.mxu0 0.0
    %2898 = vmatprep.subr.mxu0 0.0
    %2899 = vmatpush1.msra.mxu0 0.0
    %2900 = vmatprep.subr.mxu0 0.0
    %2901 = vmatpush1.msra.mxu0 0.0
    %2902 = vmatprep.mubr.f32.mxu0 0.0
    %2903 = vmatmul.mubr.f32.gmra.mrb[0].mxu0 %v1755
    %v2904 = vpop.f32.mrb[0].mxu0
    %v2905 = vadd.f32 %v2828, %v2904
    %v2906 = vpop.f32.mrb[0].mxu0
    %v2907 = vadd.f32 %v2830, %v2906
    %2908 = vmatprep.mubr.f32.mxu0 0.0
    %2909 = vmatmul.mubr.f32.gmra.mrb[0].mxu0 %v1758
    %v2910 = vpop.f32.mrb[0].mxu0
    %v2911 = vadd.f32 %v2834, %v2910
    %v2912 = vpop.f32.mrb[0].mxu0
    %v2913 = vadd.f32 %v2836, %v2912
    %2914 = vdwg.mxu0
    %2915 = vmatprep.subr.mxu0 %v36
    %2916 = vmatpush1.msra.mxu0 %v35
    %2917 = vmatprep.subr.mxu0 %v60
    %2918 = vmatpush1.msra.mxu0 %v59
    %2919 = vmatprep.subr.mxu0 %v84
    %2920 = vmatpush1.msra.mxu0 %v83
    %2921 = vmatprep.subr.mxu0 %v108
    %2922 = vmatpush1.msra.mxu0 %v107
    %2923 = vmatprep.subr.mxu0 %v132
    %2924 = vmatpush1.msra.mxu0 %v131
    %2925 = vmatprep.subr.mxu0 %v156
    %2926 = vmatpush1.msra.mxu0 %v155
    %2927 = vmatprep.subr.mxu0 %v180
    %2928 = vmatpush1.msra.mxu0 %v179
    %2929 = vmatprep.subr.mxu0 %v204
    %2930 = vmatpush1.msra.mxu0 %v203
    %2931 = vmatprep.subr.mxu0 %v228
    %2932 = vmatpush1.msra.mxu0 %v227
    %2933 = vmatprep.subr.mxu0 %v252
    %2934 = vmatpush1.msra.mxu0 %v251
    %2935 = vmatprep.subr.mxu0 %v276
    %2936 = vmatpush1.msra.mxu0 %v275
    %2937 = vmatprep.subr.mxu0 %v300
    %2938 = vmatpush1.msra.mxu0 %v299
    %2939 = vmatprep.subr.mxu0 %v324
    %2940 = vmatpush1.msra.mxu0 %v323
    %2941 = vmatprep.subr.mxu0 %v348
    %2942 = vmatpush1.msra.mxu0 %v347
    %2943 = vmatprep.subr.mxu0 %v372
    %2944 = vmatpush1.msra.mxu0 %v371
    %2945 = vmatprep.subr.mxu0 %v396
    %2946 = vmatpush1.msra.mxu0 %v395
    %2947 = vmatprep.subr.mxu0 %v420
    %2948 = vmatpush1.msra.mxu0 %v419
    %2949 = vmatprep.subr.mxu0 %v444
    %2950 = vmatpush1.msra.mxu0 %v443
    %2951 = vmatprep.subr.mxu0 %v468
    %2952 = vmatpush1.msra.mxu0 %v467
    %2953 = vmatprep.subr.mxu0 %v492
    %2954 = vmatpush1.msra.mxu0 %v491
    %2955 = vmatprep.subr.mxu0 %v516
    %2956 = vmatpush1.msra.mxu0 %v515
    %2957 = vmatprep.subr.mxu0 %v540
    %2958 = vmatpush1.msra.mxu0 %v539
    %2959 = vmatprep.subr.mxu0 %v564
    %2960 = vmatpush1.msra.mxu0 %v563
    %2961 = vmatprep.subr.mxu0 %v588
    %2962 = vmatpush1.msra.mxu0 %v587
    %2963 = vmatprep.subr.mxu0 %v612
    %2964 = vmatpush1.msra.mxu0 %v611
    %2965 = vmatprep.subr.mxu0 %v636
    %2966 = vmatpush1.msra.mxu0 %v635
    %2967 = vmatprep.subr.mxu0 %v660
    %2968 = vmatpush1.msra.mxu0 %v659
    %2969 = vmatprep.subr.mxu0 %v684
    %2970 = vmatpush1.msra.mxu0 %v683
    %2971 = vmatprep.subr.mxu0 %v708
    %2972 = vmatpush1.msra.mxu0 %v707
    %2973 = vmatprep.subr.mxu0 %v732
    %2974 = vmatpush1.msra.mxu0 %v731
    %2975 = vmatprep.subr.mxu0 %v756
    %2976 = vmatpush1.msra.mxu0 %v755
    %2977 = vmatprep.subr.mxu0 %v780
    %2978 = vmatpush1.msra.mxu0 %v779
    %2979 = vmatprep.mubr.f32.mxu0 %v16
    %2980 = vmatmul.mubr.f32.gmra.mrb[0].mxu0 %v15
    %v2981 = vpop.f32.mrb[0].mxu0
    %v2982 = vadd.f32 0.0, %v2981
    %v2983 = vpop.f32.mrb[0].mxu0
    %v2984 = vadd.f32 0.0, %v2983
    %2985 = vmatprep.mubr.f32.mxu0 %v21
    %2986 = vmatmul.mubr.f32.gmra.mrb[0].mxu0 %v20
    %v2987 = vpop.f32.mrb[0].mxu0
    %v2988 = vadd.f32 0.0, %v2987
    %v2989 = vpop.f32.mrb[0].mxu0
    %v2990 = vadd.f32 0.0, %v2989
    %2991 = vdwg.mxu0
    %2992 = vmatprep.subr.mxu0 %v804
    %2993 = vmatpush1.msra.mxu0 %v803
    %2994 = vmatprep.subr.mxu0 %v828
    %2995 = vmatpush1.msra.mxu0 %v827
    %2996 = vmatprep.subr.mxu0 %v852
    %2997 = vmatpush1.msra.mxu0 %v851
    %2998 = vmatprep.subr.mxu0 %v876
    %2999 = vmatpush1.msra.mxu0 %v875
    %3000 = vmatprep.subr.mxu0 %v900
    %3001 = vmatpush1.msra.mxu0 %v899
    %3002 = vmatprep.subr.mxu0 %v924
    %3003 = vmatpush1.msra.mxu0 %v923
    %3004 = vmatprep.subr.mxu0 %v948
    %3005 = vmatpush1.msra.mxu0 %v947
    %3006 = vmatprep.subr.mxu0 %v972
    %3007 = vmatpush1.msra.mxu0 %v971
    %3008 = vmatprep.subr.mxu0 %v996
    %3009 = vmatpush1.msra.mxu0 %v995
    %3010 = vmatprep.subr.mxu0 %v1020
    %3011 = vmatpush1.msra.mxu0 %v1019
    %3012 = vmatprep.subr.mxu0 %v1044
    %3013 = vmatpush1.msra.mxu0 %v1043
    %3014 = vmatprep.subr.mxu0 %v1068
    %3015 = vmatpush1.msra.mxu0 %v1067
    %3016 = vmatprep.subr.mxu0 %v1092
    %3017 = vmatpush1.msra.mxu0 %v1091
    %3018 = vmatprep.subr.mxu0 %v1116
    %3019 = vmatpush1.msra.mxu0 %v1115
    %3020 = vmatprep.subr.mxu0 %v1140
    %3021 = vmatpush1.msra.mxu0 %v1139
    %3022 = vmatprep.subr.mxu0 %v1164
    %3023 = vmatpush1.msra.mxu0 %v1163
    %3024 = vmatprep.subr.mxu0 %v1188
    %3025 = vmatpush1.msra.mxu0 %v1187
    %3026 = vmatprep.subr.mxu0 %v1212
    %3027 = vmatpush1.msra.mxu0 %v1211
    %3028 = vmatprep.subr.mxu0 %v1236
    %3029 = vmatpush1.msra.mxu0 %v1235
    %3030 = vmatprep.subr.mxu0 %v1260
    %3031 = vmatpush1.msra.mxu0 %v1259
    %3032 = vmatprep.subr.mxu0 %v1284
    %3033 = vmatpush1.msra.mxu0 %v1283
    %3034 = vmatprep.subr.mxu0 %v1308
    %3035 = vmatpush1.msra.mxu0 %v1307
    %3036 = vmatprep.subr.mxu0 %v1332
    %3037 = vmatpush1.msra.mxu0 %v1331
    %3038 = vmatprep.subr.mxu0 %v1356
    %3039 = vmatpush1.msra.mxu0 %v1355
    %3040 = vmatprep.subr.mxu0 %v1380
    %3041 = vmatpush1.msra.mxu0 %v1379
    %3042 = vmatprep.subr.mxu0 %v1404
    %3043 = vmatpush1.msra.mxu0 %v1403
    %3044 = vmatprep.subr.mxu0 %v1428
    %3045 = vmatpush1.msra.mxu0 %v1427
    %3046 = vmatprep.subr.mxu0 %v1452
    %3047 = vmatpush1.msra.mxu0 %v1451
    %3048 = vmatprep.subr.mxu0 %v1476
    %3049 = vmatpush1.msra.mxu0 %v1475
    %3050 = vmatprep.subr.mxu0 %v1500
    %3051 = vmatpush1.msra.mxu0 %v1499
    %3052 = vmatprep.subr.mxu0 %v1524
    %3053 = vmatpush1.msra.mxu0 %v1523
    %3054 = vmatprep.subr.mxu0 %v1548
    %3055 = vmatpush1.msra.mxu0 %v1547
    %3056 = vmatprep.mubr.f32.mxu0 %v18
    %3057 = vmatmul.mubr.f32.gmra.mrb[0].mxu0 %v17
    %v3058 = vpop.f32.mrb[0].mxu0
    %v3059 = vadd.f32 %v2982, %v3058
    %v3060 = vpop.f32.mrb[0].mxu0
    %v3061 = vadd.f32 %v2984, %v3060
    %3062 = vmatprep.mubr.f32.mxu0 %v23
    %3063 = vmatmul.mubr.f32.gmra.mrb[0].mxu0 %v22
    %v3064 = vpop.f32.mrb[0].mxu0
    %v3065 = vadd.f32 %v2988, %v3064
    %v3066 = vpop.f32.mrb[0].mxu0
    %v3067 = vadd.f32 %v2990, %v3066
    %3068 = vdwg.mxu0
    %3069 = vmatprep.subr.mxu0 %v1572
    %3070 = vmatpush1.msra.mxu0 %v1571
    %3071 = vmatprep.subr.mxu0 %v1596
    %3072 = vmatpush1.msra.mxu0 %v1595
    %3073 = vmatprep.subr.mxu0 %v1620
    %3074 = vmatpush1.msra.mxu0 %v1619
    %3075 = vmatprep.subr.mxu0 %v1644
    %3076 = vmatpush1.msra.mxu0 %v1643
    %3077 = vmatprep.subr.mxu0 %v1668
    %3078 = vmatpush1.msra.mxu0 %v1667
    %3079 = vmatprep.subr.mxu0 %v1692
    %3080 = vmatpush1.msra.mxu0 %v1691
    %3081 = vmatprep.subr.mxu0 %v1716
    %3082 = vmatpush1.msra.mxu0 %v1715
    %3083 = vmatprep.subr.mxu0 %v1740
    %3084 = vmatpush1.msra.mxu0 %v1739
    %3085 = vmatprep.subr.mxu0 0.0
    %3086 = vmatpush1.msra.mxu0 0.0
    %3087 = vmatprep.subr.mxu0 0.0
    %3088 = vmatpush1.msra.mxu0 0.0
    %3089 = vmatprep.subr.mxu0 0.0
    %3090 = vmatpush1.msra.mxu0 0.0
    %3091 = vmatprep.subr.mxu0 0.0
    %3092 = vmatpush1.msra.mxu0 0.0
    %3093 = vmatprep.subr.mxu0 0.0
    %3094 = vmatpush1.msra.mxu0 0.0
    %3095 = vmatprep.subr.mxu0 0.0
    %3096 = vmatpush1.msra.mxu0 0.0
    %3097 = vmatprep.subr.mxu0 0.0
    %3098 = vmatpush1.msra.mxu0 0.0
    %3099 = vmatprep.subr.mxu0 0.0
    %3100 = vmatpush1.msra.mxu0 0.0
    %3101 = vmatprep.subr.mxu0 0.0
    %3102 = vmatpush1.msra.mxu0 0.0
    %3103 = vmatprep.subr.mxu0 0.0
    %3104 = vmatpush1.msra.mxu0 0.0
    %3105 = vmatprep.subr.mxu0 0.0
    %3106 = vmatpush1.msra.mxu0 0.0
    %3107 = vmatprep.subr.mxu0 0.0
    %3108 = vmatpush1.msra.mxu0 0.0
    %3109 = vmatprep.subr.mxu0 0.0
    %3110 = vmatpush1.msra.mxu0 0.0
    %3111 = vmatprep.subr.mxu0 0.0
    %3112 = vmatpush1.msra.mxu0 0.0
    %3113 = vmatprep.subr.mxu0 0.0
    %3114 = vmatpush1.msra.mxu0 0.0
    %3115 = vmatprep.subr.mxu0 0.0
    %3116 = vmatpush1.msra.mxu0 0.0
    %3117 = vmatprep.subr.mxu0 0.0
    %3118 = vmatpush1.msra.mxu0 0.0
    %3119 = vmatprep.subr.mxu0 0.0
    %3120 = vmatpush1.msra.mxu0 0.0
    %3121 = vmatprep.subr.mxu0 0.0
    %3122 = vmatpush1.msra.mxu0 0.0
    %3123 = vmatprep.subr.mxu0 0.0
    %3124 = vmatpush1.msra.mxu0 0.0
    %3125 = vmatprep.subr.mxu0 0.0
    %3126 = vmatpush1.msra.mxu0 0.0
    %3127 = vmatprep.subr.mxu0 0.0
    %3128 = vmatpush1.msra.mxu0 0.0
    %3129 = vmatprep.subr.mxu0 0.0
    %3130 = vmatpush1.msra.mxu0 0.0
    %3131 = vmatprep.subr.mxu0 0.0
    %3132 = vmatpush1.msra.mxu0 0.0
    %3133 = vmatprep.mubr.f32.mxu0 0.0
    %3134 = vmatmul.mubr.f32.gmra.mrb[0].mxu0 %v1755
    %v3135 = vpop.f32.mrb[0].mxu0
    %v3136 = vadd.f32 %v3059, %v3135
    %v3137 = vpop.f32.mrb[0].mxu0
    %v3138 = vadd.f32 %v3061, %v3137
    %3139 = vmatprep.mubr.f32.mxu0 0.0
    %3140 = vmatmul.mubr.f32.gmra.mrb[0].mxu0 %v1758
    %v3141 = vpop.f32.mrb[0].mxu0
    %v3142 = vadd.f32 %v3065, %v3141
    %v3143 = vpop.f32.mrb[0].mxu0
    %v3144 = vadd.f32 %v3067, %v3143
    %3145 = vdwg.mxu0
    %3146 = vmatprep.subr.mxu0 %v38
    %3147 = vmatpush1.msra.mxu0 %v37
    %3148 = vmatprep.subr.mxu0 %v62
    %3149 = vmatpush1.msra.mxu0 %v61
    %3150 = vmatprep.subr.mxu0 %v86
    %3151 = vmatpush1.msra.mxu0 %v85
    %3152 = vmatprep.subr.mxu0 %v110
    %3153 = vmatpush1.msra.mxu0 %v109
    %3154 = vmatprep.subr.mxu0 %v134
    %3155 = vmatpush1.msra.mxu0 %v133
    %3156 = vmatprep.subr.mxu0 %v158
    %3157 = vmatpush1.msra.mxu0 %v157
    %3158 = vmatprep.subr.mxu0 %v182
    %3159 = vmatpush1.msra.mxu0 %v181
    %3160 = vmatprep.subr.mxu0 %v206
    %3161 = vmatpush1.msra.mxu0 %v205
    %3162 = vmatprep.subr.mxu0 %v230
    %3163 = vmatpush1.msra.mxu0 %v229
    %3164 = vmatprep.subr.mxu0 %v254
    %3165 = vmatpush1.msra.mxu0 %v253
    %3166 = vmatprep.subr.mxu0 %v278
    %3167 = vmatpush1.msra.mxu0 %v277
    %3168 = vmatprep.subr.mxu0 %v302
    %3169 = vmatpush1.msra.mxu0 %v301
    %3170 = vmatprep.subr.mxu0 %v326
    %3171 = vmatpush1.msra.mxu0 %v325
    %3172 = vmatprep.subr.mxu0 %v350
    %3173 = vmatpush1.msra.mxu0 %v349
    %3174 = vmatprep.subr.mxu0 %v374
    %3175 = vmatpush1.msra.mxu0 %v373
    %3176 = vmatprep.subr.mxu0 %v398
    %3177 = vmatpush1.msra.mxu0 %v397
    %3178 = vmatprep.subr.mxu0 %v422
    %3179 = vmatpush1.msra.mxu0 %v421
    %3180 = vmatprep.subr.mxu0 %v446
    %3181 = vmatpush1.msra.mxu0 %v445
    %3182 = vmatprep.subr.mxu0 %v470
    %3183 = vmatpush1.msra.mxu0 %v469
    %3184 = vmatprep.subr.mxu0 %v494
    %3185 = vmatpush1.msra.mxu0 %v493
    %3186 = vmatprep.subr.mxu0 %v518
    %3187 = vmatpush1.msra.mxu0 %v517
    %3188 = vmatprep.subr.mxu0 %v542
    %3189 = vmatpush1.msra.mxu0 %v541
    %3190 = vmatprep.subr.mxu0 %v566
    %3191 = vmatpush1.msra.mxu0 %v565
    %3192 = vmatprep.subr.mxu0 %v590
    %3193 = vmatpush1.msra.mxu0 %v589
    %3194 = vmatprep.subr.mxu0 %v614
    %3195 = vmatpush1.msra.mxu0 %v613
    %3196 = vmatprep.subr.mxu0 %v638
    %3197 = vmatpush1.msra.mxu0 %v637
    %3198 = vmatprep.subr.mxu0 %v662
    %3199 = vmatpush1.msra.mxu0 %v661
    %3200 = vmatprep.subr.mxu0 %v686
    %3201 = vmatpush1.msra.mxu0 %v685
    %3202 = vmatprep.subr.mxu0 %v710
    %3203 = vmatpush1.msra.mxu0 %v709
    %3204 = vmatprep.subr.mxu0 %v734
    %3205 = vmatpush1.msra.mxu0 %v733
    %3206 = vmatprep.subr.mxu0 %v758
    %3207 = vmatpush1.msra.mxu0 %v757
    %3208 = vmatprep.subr.mxu0 %v782
    %3209 = vmatpush1.msra.mxu0 %v781
    %3210 = vmatprep.mubr.f32.mxu0 %v16
    %3211 = vmatmul.mubr.f32.gmra.mrb[0].mxu0 %v15
    %v3212 = vpop.f32.mrb[0].mxu0
    %v3213 = vadd.f32 0.0, %v3212
    %v3214 = vpop.f32.mrb[0].mxu0
    %v3215 = vadd.f32 0.0, %v3214
    %3216 = vmatprep.mubr.f32.mxu0 %v21
    %3217 = vmatmul.mubr.f32.gmra.mrb[0].mxu0 %v20
    %v3218 = vpop.f32.mrb[0].mxu0
    %v3219 = vadd.f32 0.0, %v3218
    %v3220 = vpop.f32.mrb[0].mxu0
    %v3221 = vadd.f32 0.0, %v3220
    %3222 = vdwg.mxu0
    %3223 = vmatprep.subr.mxu0 %v806
    %3224 = vmatpush1.msra.mxu0 %v805
    %3225 = vmatprep.subr.mxu0 %v830
    %3226 = vmatpush1.msra.mxu0 %v829
    %3227 = vmatprep.subr.mxu0 %v854
    %3228 = vmatpush1.msra.mxu0 %v853
    %3229 = vmatprep.subr.mxu0 %v878
    %3230 = vmatpush1.msra.mxu0 %v877
    %3231 = vmatprep.subr.mxu0 %v902
    %3232 = vmatpush1.msra.mxu0 %v901
    %3233 = vmatprep.subr.mxu0 %v926
    %3234 = vmatpush1.msra.mxu0 %v925
    %3235 = vmatprep.subr.mxu0 %v950
    %3236 = vmatpush1.msra.mxu0 %v949
    %3237 = vmatprep.subr.mxu0 %v974
    %3238 = vmatpush1.msra.mxu0 %v973
    %3239 = vmatprep.subr.mxu0 %v998
    %3240 = vmatpush1.msra.mxu0 %v997
    %3241 = vmatprep.subr.mxu0 %v1022
    %3242 = vmatpush1.msra.mxu0 %v1021
    %3243 = vmatprep.subr.mxu0 %v1046
    %3244 = vmatpush1.msra.mxu0 %v1045
    %3245 = vmatprep.subr.mxu0 %v1070
    %3246 = vmatpush1.msra.mxu0 %v1069
    %3247 = vmatprep.subr.mxu0 %v1094
    %3248 = vmatpush1.msra.mxu0 %v1093
    %3249 = vmatprep.subr.mxu0 %v1118
    %3250 = vmatpush1.msra.mxu0 %v1117
    %3251 = vmatprep.subr.mxu0 %v1142
    %3252 = vmatpush1.msra.mxu0 %v1141
    %3253 = vmatprep.subr.mxu0 %v1166
    %3254 = vmatpush1.msra.mxu0 %v1165
    %3255 = vmatprep.subr.mxu0 %v1190
    %3256 = vmatpush1.msra.mxu0 %v1189
    %3257 = vmatprep.subr.mxu0 %v1214
    %3258 = vmatpush1.msra.mxu0 %v1213
    %3259 = vmatprep.subr.mxu0 %v1238
    %3260 = vmatpush1.msra.mxu0 %v1237
    %3261 = vmatprep.subr.mxu0 %v1262
    %3262 = vmatpush1.msra.mxu0 %v1261
    %3263 = vmatprep.subr.mxu0 %v1286
    %3264 = vmatpush1.msra.mxu0 %v1285
    %3265 = vmatprep.subr.mxu0 %v1310
    %3266 = vmatpush1.msra.mxu0 %v1309
    %3267 = vmatprep.subr.mxu0 %v1334
    %3268 = vmatpush1.msra.mxu0 %v1333
    %3269 = vmatprep.subr.mxu0 %v1358
    %3270 = vmatpush1.msra.mxu0 %v1357
    %3271 = vmatprep.subr.mxu0 %v1382
    %3272 = vmatpush1.msra.mxu0 %v1381
    %3273 = vmatprep.subr.mxu0 %v1406
    %3274 = vmatpush1.msra.mxu0 %v1405
    %3275 = vmatprep.subr.mxu0 %v1430
    %3276 = vmatpush1.msra.mxu0 %v1429
    %3277 = vmatprep.subr.mxu0 %v1454
    %3278 = vmatpush1.msra.mxu0 %v1453
    %3279 = vmatprep.subr.mxu0 %v1478
    %3280 = vmatpush1.msra.mxu0 %v1477
    %3281 = vmatprep.subr.mxu0 %v1502
    %3282 = vmatpush1.msra.mxu0 %v1501
    %3283 = vmatprep.subr.mxu0 %v1526
    %3284 = vmatpush1.msra.mxu0 %v1525
    %3285 = vmatprep.subr.mxu0 %v1550
    %3286 = vmatpush1.msra.mxu0 %v1549
    %3287 = vmatprep.mubr.f32.mxu0 %v18
    %3288 = vmatmul.mubr.f32.gmra.mrb[0].mxu0 %v17
    %v3289 = vpop.f32.mrb[0].mxu0
    %v3290 = vadd.f32 %v3213, %v3289
    %v3291 = vpop.f32.mrb[0].mxu0
    %v3292 = vadd.f32 %v3215, %v3291
    %3293 = vmatprep.mubr.f32.mxu0 %v23
    %3294 = vmatmul.mubr.f32.gmra.mrb[0].mxu0 %v22
    %v3295 = vpop.f32.mrb[0].mxu0
    %v3296 = vadd.f32 %v3219, %v3295
    %v3297 = vpop.f32.mrb[0].mxu0
    %v3298 = vadd.f32 %v3221, %v3297
    %3299 = vdwg.mxu0
    %3300 = vmatprep.subr.mxu0 %v1574
    %3301 = vmatpush1.msra.mxu0 %v1573
    %3302 = vmatprep.subr.mxu0 %v1598
    %3303 = vmatpush1.msra.mxu0 %v1597
    %3304 = vmatprep.subr.mxu0 %v1622
    %3305 = vmatpush1.msra.mxu0 %v1621
    %3306 = vmatprep.subr.mxu0 %v1646
    %3307 = vmatpush1.msra.mxu0 %v1645
    %3308 = vmatprep.subr.mxu0 %v1670
    %3309 = vmatpush1.msra.mxu0 %v1669
    %3310 = vmatprep.subr.mxu0 %v1694
    %3311 = vmatpush1.msra.mxu0 %v1693
    %3312 = vmatprep.subr.mxu0 %v1718
    %3313 = vmatpush1.msra.mxu0 %v1717
    %3314 = vmatprep.subr.mxu0 %v1742
    %3315 = vmatpush1.msra.mxu0 %v1741
    %3316 = vmatprep.subr.mxu0 0.0
    %3317 = vmatpush1.msra.mxu0 0.0
    %3318 = vmatprep.subr.mxu0 0.0
    %3319 = vmatpush1.msra.mxu0 0.0
    %3320 = vmatprep.subr.mxu0 0.0
    %3321 = vmatpush1.msra.mxu0 0.0
    %3322 = vmatprep.subr.mxu0 0.0
    %3323 = vmatpush1.msra.mxu0 0.0
    %3324 = vmatprep.subr.mxu0 0.0
    %3325 = vmatpush1.msra.mxu0 0.0
    %3326 = vmatprep.subr.mxu0 0.0
    %3327 = vmatpush1.msra.mxu0 0.0
    %3328 = vmatprep.subr.mxu0 0.0
    %3329 = vmatpush1.msra.mxu0 0.0
    %3330 = vmatprep.subr.mxu0 0.0
    %3331 = vmatpush1.msra.mxu0 0.0
    %3332 = vmatprep.subr.mxu0 0.0
    %3333 = vmatpush1.msra.mxu0 0.0
    %3334 = vmatprep.subr.mxu0 0.0
    %3335 = vmatpush1.msra.mxu0 0.0
    %3336 = vmatprep.subr.mxu0 0.0
    %3337 = vmatpush1.msra.mxu0 0.0
    %3338 = vmatprep.subr.mxu0 0.0
    %3339 = vmatpush1.msra.mxu0 0.0
    %3340 = vmatprep.subr.mxu0 0.0
    %3341 = vmatpush1.msra.mxu0 0.0
    %3342 = vmatprep.subr.mxu0 0.0
    %3343 = vmatpush1.msra.mxu0 0.0
    %3344 = vmatprep.subr.mxu0 0.0
    %3345 = vmatpush1.msra.mxu0 0.0
    %3346 = vmatprep.subr.mxu0 0.0
    %3347 = vmatpush1.msra.mxu0 0.0
    %3348 = vmatprep.subr.mxu0 0.0
    %3349 = vmatpush1.msra.mxu0 0.0
    %3350 = vmatprep.subr.mxu0 0.0
    %3351 = vmatpush1.msra.mxu0 0.0
    %3352 = vmatprep.subr.mxu0 0.0
    %3353 = vmatpush1.msra.mxu0 0.0
    %3354 = vmatprep.subr.mxu0 0.0
    %3355 = vmatpush1.msra.mxu0 0.0
    %3356 = vmatprep.subr.mxu0 0.0
    %3357 = vmatpush1.msra.mxu0 0.0
    %3358 = vmatprep.subr.mxu0 0.0
    %3359 = vmatpush1.msra.mxu0 0.0
    %3360 = vmatprep.subr.mxu0 0.0
    %3361 = vmatpush1.msra.mxu0 0.0
    %3362 = vmatprep.subr.mxu0 0.0
    %3363 = vmatpush1.msra.mxu0 0.0
    %3364 = vmatprep.mubr.f32.mxu0 0.0
    %3365 = vmatmul.mubr.f32.gmra.mrb[0].mxu0 %v1755
    %v3366 = vpop.f32.mrb[0].mxu0
    %v3367 = vadd.f32 %v3290, %v3366
    %v3368 = vpop.f32.mrb[0].mxu0
    %v3369 = vadd.f32 %v3292, %v3368
    %3370 = vmatprep.mubr.f32.mxu0 0.0
    %3371 = vmatmul.mubr.f32.gmra.mrb[0].mxu0 %v1758
    %v3372 = vpop.f32.mrb[0].mxu0
    %v3373 = vadd.f32 %v3296, %v3372
    %v3374 = vpop.f32.mrb[0].mxu0
    %v3375 = vadd.f32 %v3298, %v3374
    %3376 = vdwg.mxu0
    %3377 = vmatprep.subr.mxu0 %v40
    %3378 = vmatpush1.msra.mxu0 %v39
    %3379 = vmatprep.subr.mxu0 %v64
    %3380 = vmatpush1.msra.mxu0 %v63
    %3381 = vmatprep.subr.mxu0 %v88
    %3382 = vmatpush1.msra.mxu0 %v87
    %3383 = vmatprep.subr.mxu0 %v112
    %3384 = vmatpush1.msra.mxu0 %v111
    %3385 = vmatprep.subr.mxu0 %v136
    %3386 = vmatpush1.msra.mxu0 %v135
    %3387 = vmatprep.subr.mxu0 %v160
    %3388 = vmatpush1.msra.mxu0 %v159
    %3389 = vmatprep.subr.mxu0 %v184
    %3390 = vmatpush1.msra.mxu0 %v183
    %3391 = vmatprep.subr.mxu0 %v208
    %3392 = vmatpush1.msra.mxu0 %v207
    %3393 = vmatprep.subr.mxu0 %v232
    %3394 = vmatpush1.msra.mxu0 %v231
    %3395 = vmatprep.subr.mxu0 %v256
    %3396 = vmatpush1.msra.mxu0 %v255
    %3397 = vmatprep.subr.mxu0 %v280
    %3398 = vmatpush1.msra.mxu0 %v279
    %3399 = vmatprep.subr.mxu0 %v304
    %3400 = vmatpush1.msra.mxu0 %v303
    %3401 = vmatprep.subr.mxu0 %v328
    %3402 = vmatpush1.msra.mxu0 %v327
    %3403 = vmatprep.subr.mxu0 %v352
    %3404 = vmatpush1.msra.mxu0 %v351
    %3405 = vmatprep.subr.mxu0 %v376
    %3406 = vmatpush1.msra.mxu0 %v375
    %3407 = vmatprep.subr.mxu0 %v400
    %3408 = vmatpush1.msra.mxu0 %v399
    %3409 = vmatprep.subr.mxu0 %v424
    %3410 = vmatpush1.msra.mxu0 %v423
    %3411 = vmatprep.subr.mxu0 %v448
    %3412 = vmatpush1.msra.mxu0 %v447
    %3413 = vmatprep.subr.mxu0 %v472
    %3414 = vmatpush1.msra.mxu0 %v471
    %3415 = vmatprep.subr.mxu0 %v496
    %3416 = vmatpush1.msra.mxu0 %v495
    %3417 = vmatprep.subr.mxu0 %v520
    %3418 = vmatpush1.msra.mxu0 %v519
    %3419 = vmatprep.subr.mxu0 %v544
    %3420 = vmatpush1.msra.mxu0 %v543
    %3421 = vmatprep.subr.mxu0 %v568
    %3422 = vmatpush1.msra.mxu0 %v567
    %3423 = vmatprep.subr.mxu0 %v592
    %3424 = vmatpush1.msra.mxu0 %v591
    %3425 = vmatprep.subr.mxu0 %v616
    %3426 = vmatpush1.msra.mxu0 %v615
    %3427 = vmatprep.subr.mxu0 %v640
    %3428 = vmatpush1.msra.mxu0 %v639
    %3429 = vmatprep.subr.mxu0 %v664
    %3430 = vmatpush1.msra.mxu0 %v663
    %3431 = vmatprep.subr.mxu0 %v688
    %3432 = vmatpush1.msra.mxu0 %v687
    %3433 = vmatprep.subr.mxu0 %v712
    %3434 = vmatpush1.msra.mxu0 %v711
    %3435 = vmatprep.subr.mxu0 %v736
    %3436 = vmatpush1.msra.mxu0 %v735
    %3437 = vmatprep.subr.mxu0 %v760
    %3438 = vmatpush1.msra.mxu0 %v759
    %3439 = vmatprep.subr.mxu0 %v784
    %3440 = vmatpush1.msra.mxu0 %v783
    %3441 = vmatprep.mubr.f32.mxu0 %v16
    %3442 = vmatmul.mubr.f32.gmra.mrb[0].mxu0 %v15
    %v3443 = vpop.f32.mrb[0].mxu0
    %v3444 = vadd.f32 0.0, %v3443
    %v3445 = vpop.f32.mrb[0].mxu0
    %v3446 = vadd.f32 0.0, %v3445
    %3447 = vmatprep.mubr.f32.mxu0 %v21
    %3448 = vmatmul.mubr.f32.gmra.mrb[0].mxu0 %v20
    %v3449 = vpop.f32.mrb[0].mxu0
    %v3450 = vadd.f32 0.0, %v3449
    %v3451 = vpop.f32.mrb[0].mxu0
    %v3452 = vadd.f32 0.0, %v3451
    %3453 = vdwg.mxu0
    %3454 = vmatprep.subr.mxu0 %v808
    %3455 = vmatpush1.msra.mxu0 %v807
    %3456 = vmatprep.subr.mxu0 %v832
    %3457 = vmatpush1.msra.mxu0 %v831
    %3458 = vmatprep.subr.mxu0 %v856
    %3459 = vmatpush1.msra.mxu0 %v855
    %3460 = vmatprep.subr.mxu0 %v880
    %3461 = vmatpush1.msra.mxu0 %v879
    %3462 = vmatprep.subr.mxu0 %v904
    %3463 = vmatpush1.msra.mxu0 %v903
    %3464 = vmatprep.subr.mxu0 %v928
    %3465 = vmatpush1.msra.mxu0 %v927
    %3466 = vmatprep.subr.mxu0 %v952
    %3467 = vmatpush1.msra.mxu0 %v951
    %3468 = vmatprep.subr.mxu0 %v976
    %3469 = vmatpush1.msra.mxu0 %v975
    %3470 = vmatprep.subr.mxu0 %v1000
    %3471 = vmatpush1.msra.mxu0 %v999
    %3472 = vmatprep.subr.mxu0 %v1024
    %3473 = vmatpush1.msra.mxu0 %v1023
    %3474 = vmatprep.subr.mxu0 %v1048
    %3475 = vmatpush1.msra.mxu0 %v1047
    %3476 = vmatprep.subr.mxu0 %v1072
    %3477 = vmatpush1.msra.mxu0 %v1071
    %3478 = vmatprep.subr.mxu0 %v1096
    %3479 = vmatpush1.msra.mxu0 %v1095
    %3480 = vmatprep.subr.mxu0 %v1120
    %3481 = vmatpush1.msra.mxu0 %v1119
    %3482 = vmatprep.subr.mxu0 %v1144
    %3483 = vmatpush1.msra.mxu0 %v1143
    %3484 = vmatprep.subr.mxu0 %v1168
    %3485 = vmatpush1.msra.mxu0 %v1167
    %3486 = vmatprep.subr.mxu0 %v1192
    %3487 = vmatpush1.msra.mxu0 %v1191
    %3488 = vmatprep.subr.mxu0 %v1216
    %3489 = vmatpush1.msra.mxu0 %v1215
    %3490 = vmatprep.subr.mxu0 %v1240
    %3491 = vmatpush1.msra.mxu0 %v1239
    %3492 = vmatprep.subr.mxu0 %v1264
    %3493 = vmatpush1.msra.mxu0 %v1263
    %3494 = vmatprep.subr.mxu0 %v1288
    %3495 = vmatpush1.msra.mxu0 %v1287
    %3496 = vmatprep.subr.mxu0 %v1312
    %3497 = vmatpush1.msra.mxu0 %v1311
    %3498 = vmatprep.subr.mxu0 %v1336
    %3499 = vmatpush1.msra.mxu0 %v1335
    %3500 = vmatprep.subr.mxu0 %v1360
    %3501 = vmatpush1.msra.mxu0 %v1359
    %3502 = vmatprep.subr.mxu0 %v1384
    %3503 = vmatpush1.msra.mxu0 %v1383
    %3504 = vmatprep.subr.mxu0 %v1408
    %3505 = vmatpush1.msra.mxu0 %v1407
    %3506 = vmatprep.subr.mxu0 %v1432
    %3507 = vmatpush1.msra.mxu0 %v1431
    %3508 = vmatprep.subr.mxu0 %v1456
    %3509 = vmatpush1.msra.mxu0 %v1455
    %3510 = vmatprep.subr.mxu0 %v1480
    %3511 = vmatpush1.msra.mxu0 %v1479
    %3512 = vmatprep.subr.mxu0 %v1504
    %3513 = vmatpush1.msra.mxu0 %v1503
    %3514 = vmatprep.subr.mxu0 %v1528
    %3515 = vmatpush1.msra.mxu0 %v1527
    %3516 = vmatprep.subr.mxu0 %v1552
    %3517 = vmatpush1.msra.mxu0 %v1551
    %3518 = vmatprep.mubr.f32.mxu0 %v18
    %3519 = vmatmul.mubr.f32.gmra.mrb[0].mxu0 %v17
    %v3520 = vpop.f32.mrb[0].mxu0
    %v3521 = vadd.f32 %v3444, %v3520
    %v3522 = vpop.f32.mrb[0].mxu0
    %v3523 = vadd.f32 %v3446, %v3522
    %3524 = vmatprep.mubr.f32.mxu0 %v23
    %3525 = vmatmul.mubr.f32.gmra.mrb[0].mxu0 %v22
    %v3526 = vpop.f32.mrb[0].mxu0
    %v3527 = vadd.f32 %v3450, %v3526
    %v3528 = vpop.f32.mrb[0].mxu0
    %v3529 = vadd.f32 %v3452, %v3528
    %3530 = vdwg.mxu0
    %3531 = vmatprep.subr.mxu0 %v1576
    %3532 = vmatpush1.msra.mxu0 %v1575
    %3533 = vmatprep.subr.mxu0 %v1600
    %3534 = vmatpush1.msra.mxu0 %v1599
    %3535 = vmatprep.subr.mxu0 %v1624
    %3536 = vmatpush1.msra.mxu0 %v1623
    %3537 = vmatprep.subr.mxu0 %v1648
    %3538 = vmatpush1.msra.mxu0 %v1647
    %3539 = vmatprep.subr.mxu0 %v1672
    %3540 = vmatpush1.msra.mxu0 %v1671
    %3541 = vmatprep.subr.mxu0 %v1696
    %3542 = vmatpush1.msra.mxu0 %v1695
    %3543 = vmatprep.subr.mxu0 %v1720
    %3544 = vmatpush1.msra.mxu0 %v1719
    %3545 = vmatprep.subr.mxu0 %v1744
    %3546 = vmatpush1.msra.mxu0 %v1743
    %3547 = vmatprep.subr.mxu0 0.0
    %3548 = vmatpush1.msra.mxu0 0.0
    %3549 = vmatprep.subr.mxu0 0.0
    %3550 = vmatpush1.msra.mxu0 0.0
    %3551 = vmatprep.subr.mxu0 0.0
    %3552 = vmatpush1.msra.mxu0 0.0
    %3553 = vmatprep.subr.mxu0 0.0
    %3554 = vmatpush1.msra.mxu0 0.0
    %3555 = vmatprep.subr.mxu0 0.0
    %3556 = vmatpush1.msra.mxu0 0.0
    %3557 = vmatprep.subr.mxu0 0.0
    %3558 = vmatpush1.msra.mxu0 0.0
    %3559 = vmatprep.subr.mxu0 0.0
    %3560 = vmatpush1.msra.mxu0 0.0
    %3561 = vmatprep.subr.mxu0 0.0
    %3562 = vmatpush1.msra.mxu0 0.0
    %3563 = vmatprep.subr.mxu0 0.0
    %3564 = vmatpush1.msra.mxu0 0.0
    %3565 = vmatprep.subr.mxu0 0.0
    %3566 = vmatpush1.msra.mxu0 0.0
    %3567 = vmatprep.subr.mxu0 0.0
    %3568 = vmatpush1.msra.mxu0 0.0
    %3569 = vmatprep.subr.mxu0 0.0
    %3570 = vmatpush1.msra.mxu0 0.0
    %3571 = vmatprep.subr.mxu0 0.0
    %3572 = vmatpush1.msra.mxu0 0.0
    %3573 = vmatprep.subr.mxu0 0.0
    %3574 = vmatpush1.msra.mxu0 0.0
    %3575 = vmatprep.subr.mxu0 0.0
    %3576 = vmatpush1.msra.mxu0 0.0
    %3577 = vmatprep.subr.mxu0 0.0
    %3578 = vmatpush1.msra.mxu0 0.0
    %3579 = vmatprep.subr.mxu0 0.0
    %3580 = vmatpush1.msra.mxu0 0.0
    %3581 = vmatprep.subr.mxu0 0.0
    %3582 = vmatpush1.msra.mxu0 0.0
    %3583 = vmatprep.subr.mxu0 0.0
    %3584 = vmatpush1.msra.mxu0 0.0
    %3585 = vmatprep.subr.mxu0 0.0
    %3586 = vmatpush1.msra.mxu0 0.0
    %3587 = vmatprep.subr.mxu0 0.0
    %3588 = vmatpush1.msra.mxu0 0.0
    %3589 = vmatprep.subr.mxu0 0.0
    %3590 = vmatpush1.msra.mxu0 0.0
    %3591 = vmatprep.subr.mxu0 0.0
    %3592 = vmatpush1.msra.mxu0 0.0
    %3593 = vmatprep.subr.mxu0 0.0
    %3594 = vmatpush1.msra.mxu0 0.0
    %3595 = vmatprep.mubr.f32.mxu0 0.0
    %3596 = vmatmul.mubr.f32.gmra.mrb[0].mxu0 %v1755
    %v3597 = vpop.f32.mrb[0].mxu0
    %v3598 = vadd.f32 %v3521, %v3597
    %v3599 = vpop.f32.mrb[0].mxu0
    %v3600 = vadd.f32 %v3523, %v3599
    %3601 = vmatprep.mubr.f32.mxu0 0.0
    %3602 = vmatmul.mubr.f32.gmra.mrb[0].mxu0 %v1758
    %v3603 = vpop.f32.mrb[0].mxu0
    %v3604 = vadd.f32 %v3527, %v3603
    %v3605 = vpop.f32.mrb[0].mxu0
    %v3606 = vadd.f32 %v3529, %v3605
    %3607 = vdwg.mxu0
    %3608 = vmatprep.subr.mxu0 %v42
    %3609 = vmatpush1.msra.mxu0 %v41
    %3610 = vmatprep.subr.mxu0 %v66
    %3611 = vmatpush1.msra.mxu0 %v65
    %3612 = vmatprep.subr.mxu0 %v90
    %3613 = vmatpush1.msra.mxu0 %v89
    %3614 = vmatprep.subr.mxu0 %v114
    %3615 = vmatpush1.msra.mxu0 %v113
    %3616 = vmatprep.subr.mxu0 %v138
    %3617 = vmatpush1.msra.mxu0 %v137
    %3618 = vmatprep.subr.mxu0 %v162
    %3619 = vmatpush1.msra.mxu0 %v161
    %3620 = vmatprep.subr.mxu0 %v186
    %3621 = vmatpush1.msra.mxu0 %v185
    %3622 = vmatprep.subr.mxu0 %v210
    %3623 = vmatpush1.msra.mxu0 %v209
    %3624 = vmatprep.subr.mxu0 %v234
    %3625 = vmatpush1.msra.mxu0 %v233
    %3626 = vmatprep.subr.mxu0 %v258
    %3627 = vmatpush1.msra.mxu0 %v257
    %3628 = vmatprep.subr.mxu0 %v282
    %3629 = vmatpush1.msra.mxu0 %v281
    %3630 = vmatprep.subr.mxu0 %v306
    %3631 = vmatpush1.msra.mxu0 %v305
    %3632 = vmatprep.subr.mxu0 %v330
    %3633 = vmatpush1.msra.mxu0 %v329
    %3634 = vmatprep.subr.mxu0 %v354
    %3635 = vmatpush1.msra.mxu0 %v353
    %3636 = vmatprep.subr.mxu0 %v378
    %3637 = vmatpush1.msra.mxu0 %v377
    %3638 = vmatprep.subr.mxu0 %v402
    %3639 = vmatpush1.msra.mxu0 %v401
    %3640 = vmatprep.subr.mxu0 %v426
    %3641 = vmatpush1.msra.mxu0 %v425
    %3642 = vmatprep.subr.mxu0 %v450
    %3643 = vmatpush1.msra.mxu0 %v449
    %3644 = vmatprep.subr.mxu0 %v474
    %3645 = vmatpush1.msra.mxu0 %v473
    %3646 = vmatprep.subr.mxu0 %v498
    %3647 = vmatpush1.msra.mxu0 %v497
    %3648 = vmatprep.subr.mxu0 %v522
    %3649 = vmatpush1.msra.mxu0 %v521
    %3650 = vmatprep.subr.mxu0 %v546
    %3651 = vmatpush1.msra.mxu0 %v545
    %3652 = vmatprep.subr.mxu0 %v570
    %3653 = vmatpush1.msra.mxu0 %v569
    %3654 = vmatprep.subr.mxu0 %v594
    %3655 = vmatpush1.msra.mxu0 %v593
    %3656 = vmatprep.subr.mxu0 %v618
    %3657 = vmatpush1.msra.mxu0 %v617
    %3658 = vmatprep.subr.mxu0 %v642
    %3659 = vmatpush1.msra.mxu0 %v641
    %3660 = vmatprep.subr.mxu0 %v666
    %3661 = vmatpush1.msra.mxu0 %v665
    %3662 = vmatprep.subr.mxu0 %v690
    %3663 = vmatpush1.msra.mxu0 %v689
    %3664 = vmatprep.subr.mxu0 %v714
    %3665 = vmatpush1.msra.mxu0 %v713
    %3666 = vmatprep.subr.mxu0 %v738
    %3667 = vmatpush1.msra.mxu0 %v737
    %3668 = vmatprep.subr.mxu0 %v762
    %3669 = vmatpush1.msra.mxu0 %v761
    %3670 = vmatprep.subr.mxu0 %v786
    %3671 = vmatpush1.msra.mxu0 %v785
    %3672 = vmatprep.mubr.f32.mxu0 %v16
    %3673 = vmatmul.mubr.f32.gmra.mrb[0].mxu0 %v15
    %v3674 = vpop.f32.mrb[0].mxu0
    %v3675 = vadd.f32 0.0, %v3674
    %v3676 = vpop.f32.mrb[0].mxu0
    %v3677 = vadd.f32 0.0, %v3676
    %3678 = vmatprep.mubr.f32.mxu0 %v21
    %3679 = vmatmul.mubr.f32.gmra.mrb[0].mxu0 %v20
    %v3680 = vpop.f32.mrb[0].mxu0
    %v3681 = vadd.f32 0.0, %v3680
    %v3682 = vpop.f32.mrb[0].mxu0
    %v3683 = vadd.f32 0.0, %v3682
    %3684 = vdwg.mxu0
    %3685 = vmatprep.subr.mxu0 %v810
    %3686 = vmatpush1.msra.mxu0 %v809
    %3687 = vmatprep.subr.mxu0 %v834
    %3688 = vmatpush1.msra.mxu0 %v833
    %3689 = vmatprep.subr.mxu0 %v858
    %3690 = vmatpush1.msra.mxu0 %v857
    %3691 = vmatprep.subr.mxu0 %v882
    %3692 = vmatpush1.msra.mxu0 %v881
    %3693 = vmatprep.subr.mxu0 %v906
    %3694 = vmatpush1.msra.mxu0 %v905
    %3695 = vmatprep.subr.mxu0 %v930
    %3696 = vmatpush1.msra.mxu0 %v929
    %3697 = vmatprep.subr.mxu0 %v954
    %3698 = vmatpush1.msra.mxu0 %v953
    %3699 = vmatprep.subr.mxu0 %v978
    %3700 = vmatpush1.msra.mxu0 %v977
    %3701 = vmatprep.subr.mxu0 %v1002
    %3702 = vmatpush1.msra.mxu0 %v1001
    %3703 = vmatprep.subr.mxu0 %v1026
    %3704 = vmatpush1.msra.mxu0 %v1025
    %3705 = vmatprep.subr.mxu0 %v1050
    %3706 = vmatpush1.msra.mxu0 %v1049
    %3707 = vmatprep.subr.mxu0 %v1074
    %3708 = vmatpush1.msra.mxu0 %v1073
    %3709 = vmatprep.subr.mxu0 %v1098
    %3710 = vmatpush1.msra.mxu0 %v1097
    %3711 = vmatprep.subr.mxu0 %v1122
    %3712 = vmatpush1.msra.mxu0 %v1121
    %3713 = vmatprep.subr.mxu0 %v1146
    %3714 = vmatpush1.msra.mxu0 %v1145
    %3715 = vmatprep.subr.mxu0 %v1170
    %3716 = vmatpush1.msra.mxu0 %v1169
    %3717 = vmatprep.subr.mxu0 %v1194
    %3718 = vmatpush1.msra.mxu0 %v1193
    %3719 = vmatprep.subr.mxu0 %v1218
    %3720 = vmatpush1.msra.mxu0 %v1217
    %3721 = vmatprep.subr.mxu0 %v1242
    %3722 = vmatpush1.msra.mxu0 %v1241
    %3723 = vmatprep.subr.mxu0 %v1266
    %3724 = vmatpush1.msra.mxu0 %v1265
    %3725 = vmatprep.subr.mxu0 %v1290
    %3726 = vmatpush1.msra.mxu0 %v1289
    %3727 = vmatprep.subr.mxu0 %v1314
    %3728 = vmatpush1.msra.mxu0 %v1313
    %3729 = vmatprep.subr.mxu0 %v1338
    %3730 = vmatpush1.msra.mxu0 %v1337
    %3731 = vmatprep.subr.mxu0 %v1362
    %3732 = vmatpush1.msra.mxu0 %v1361
    %3733 = vmatprep.subr.mxu0 %v1386
    %3734 = vmatpush1.msra.mxu0 %v1385
    %3735 = vmatprep.subr.mxu0 %v1410
    %3736 = vmatpush1.msra.mxu0 %v1409
    %3737 = vmatprep.subr.mxu0 %v1434
    %3738 = vmatpush1.msra.mxu0 %v1433
    %3739 = vmatprep.subr.mxu0 %v1458
    %3740 = vmatpush1.msra.mxu0 %v1457
    %3741 = vmatprep.subr.mxu0 %v1482
    %3742 = vmatpush1.msra.mxu0 %v1481
    %3743 = vmatprep.subr.mxu0 %v1506
    %3744 = vmatpush1.msra.mxu0 %v1505
    %3745 = vmatprep.subr.mxu0 %v1530
    %3746 = vmatpush1.msra.mxu0 %v1529
    %3747 = vmatprep.subr.mxu0 %v1554
    %3748 = vmatpush1.msra.mxu0 %v1553
    %3749 = vmatprep.mubr.f32.mxu0 %v18
    %3750 = vmatmul.mubr.f32.gmra.mrb[0].mxu0 %v17
    %v3751 = vpop.f32.mrb[0].mxu0
    %v3752 = vadd.f32 %v3675, %v3751
    %v3753 = vpop.f32.mrb[0].mxu0
    %v3754 = vadd.f32 %v3677, %v3753
    %3755 = vmatprep.mubr.f32.mxu0 %v23
    %3756 = vmatmul.mubr.f32.gmra.mrb[0].mxu0 %v22
    %v3757 = vpop.f32.mrb[0].mxu0
    %v3758 = vadd.f32 %v3681, %v3757
    %v3759 = vpop.f32.mrb[0].mxu0
    %v3760 = vadd.f32 %v3683, %v3759
    %3761 = vdwg.mxu0
    %3762 = vmatprep.subr.mxu0 %v1578
    %3763 = vmatpush1.msra.mxu0 %v1577
    %3764 = vmatprep.subr.mxu0 %v1602
    %3765 = vmatpush1.msra.mxu0 %v1601
    %3766 = vmatprep.subr.mxu0 %v1626
    %3767 = vmatpush1.msra.mxu0 %v1625
    %3768 = vmatprep.subr.mxu0 %v1650
    %3769 = vmatpush1.msra.mxu0 %v1649
    %3770 = vmatprep.subr.mxu0 %v1674
    %3771 = vmatpush1.msra.mxu0 %v1673
    %3772 = vmatprep.subr.mxu0 %v1698
    %3773 = vmatpush1.msra.mxu0 %v1697
    %3774 = vmatprep.subr.mxu0 %v1722
    %3775 = vmatpush1.msra.mxu0 %v1721
    %3776 = vmatprep.subr.mxu0 %v1746
    %3777 = vmatpush1.msra.mxu0 %v1745
    %3778 = vmatprep.subr.mxu0 0.0
    %3779 = vmatpush1.msra.mxu0 0.0
    %3780 = vmatprep.subr.mxu0 0.0
    %3781 = vmatpush1.msra.mxu0 0.0
    %3782 = vmatprep.subr.mxu0 0.0
    %3783 = vmatpush1.msra.mxu0 0.0
    %3784 = vmatprep.subr.mxu0 0.0
    %3785 = vmatpush1.msra.mxu0 0.0
    %3786 = vmatprep.subr.mxu0 0.0
    %3787 = vmatpush1.msra.mxu0 0.0
    %3788 = vmatprep.subr.mxu0 0.0
    %3789 = vmatpush1.msra.mxu0 0.0
    %3790 = vmatprep.subr.mxu0 0.0
    %3791 = vmatpush1.msra.mxu0 0.0
    %3792 = vmatprep.subr.mxu0 0.0
    %3793 = vmatpush1.msra.mxu0 0.0
    %3794 = vmatprep.subr.mxu0 0.0
    %3795 = vmatpush1.msra.mxu0 0.0
    %3796 = vmatprep.subr.mxu0 0.0
    %3797 = vmatpush1.msra.mxu0 0.0
    %3798 = vmatprep.subr.mxu0 0.0
    %3799 = vmatpush1.msra.mxu0 0.0
    %3800 = vmatprep.subr.mxu0 0.0
    %3801 = vmatpush1.msra.mxu0 0.0
    %3802 = vmatprep.subr.mxu0 0.0
    %3803 = vmatpush1.msra.mxu0 0.0
    %3804 = vmatprep.subr.mxu0 0.0
    %3805 = vmatpush1.msra.mxu0 0.0
    %3806 = vmatprep.subr.mxu0 0.0
    %3807 = vmatpush1.msra.mxu0 0.0
    %3808 = vmatprep.subr.mxu0 0.0
    %3809 = vmatpush1.msra.mxu0 0.0
    %3810 = vmatprep.subr.mxu0 0.0
    %3811 = vmatpush1.msra.mxu0 0.0
    %3812 = vmatprep.subr.mxu0 0.0
    %3813 = vmatpush1.msra.mxu0 0.0
    %3814 = vmatprep.subr.mxu0 0.0
    %3815 = vmatpush1.msra.mxu0 0.0
    %3816 = vmatprep.subr.mxu0 0.0
    %3817 = vmatpush1.msra.mxu0 0.0
    %3818 = vmatprep.subr.mxu0 0.0
    %3819 = vmatpush1.msra.mxu0 0.0
    %3820 = vmatprep.subr.mxu0 0.0
    %3821 = vmatpush1.msra.mxu0 0.0
    %3822 = vmatprep.subr.mxu0 0.0
    %3823 = vmatpush1.msra.mxu0 0.0
    %3824 = vmatprep.subr.mxu0 0.0
    %3825 = vmatpush1.msra.mxu0 0.0
    %3826 = vmatprep.mubr.f32.mxu0 0.0
    %3827 = vmatmul.mubr.f32.gmra.mrb[0].mxu0 %v1755
    %v3828 = vpop.f32.mrb[0].mxu0
    %v3829 = vadd.f32 %v3752, %v3828
    %v3830 = vpop.f32.mrb[0].mxu0
    %v3831 = vadd.f32 %v3754, %v3830
    %3832 = vmatprep.mubr.f32.mxu0 0.0
    %3833 = vmatmul.mubr.f32.gmra.mrb[0].mxu0 %v1758
    %v3834 = vpop.f32.mrb[0].mxu0
    %v3835 = vadd.f32 %v3758, %v3834
    %v3836 = vpop.f32.mrb[0].mxu0
    %v3837 = vadd.f32 %v3760, %v3836
    %3838 = vdwg.mxu0
    %3839 = vmatprep.subr.mxu0 %v44
    %3840 = vmatpush1.msra.mxu0 %v43
    %3841 = vmatprep.subr.mxu0 %v68
    %3842 = vmatpush1.msra.mxu0 %v67
    %3843 = vmatprep.subr.mxu0 %v92
    %3844 = vmatpush1.msra.mxu0 %v91
    %3845 = vmatprep.subr.mxu0 %v116
    %3846 = vmatpush1.msra.mxu0 %v115
    %3847 = vmatprep.subr.mxu0 %v140
    %3848 = vmatpush1.msra.mxu0 %v139
    %3849 = vmatprep.subr.mxu0 %v164
    %3850 = vmatpush1.msra.mxu0 %v163
    %3851 = vmatprep.subr.mxu0 %v188
    %3852 = vmatpush1.msra.mxu0 %v187
    %3853 = vmatprep.subr.mxu0 %v212
    %3854 = vmatpush1.msra.mxu0 %v211
    %3855 = vmatprep.subr.mxu0 %v236
    %3856 = vmatpush1.msra.mxu0 %v235
    %3857 = vmatprep.subr.mxu0 %v260
    %3858 = vmatpush1.msra.mxu0 %v259
    %3859 = vmatprep.subr.mxu0 %v284
    %3860 = vmatpush1.msra.mxu0 %v283
    %3861 = vmatprep.subr.mxu0 %v308
    %3862 = vmatpush1.msra.mxu0 %v307
    %3863 = vmatprep.subr.mxu0 %v332
    %3864 = vmatpush1.msra.mxu0 %v331
    %3865 = vmatprep.subr.mxu0 %v356
    %3866 = vmatpush1.msra.mxu0 %v355
    %3867 = vmatprep.subr.mxu0 %v380
    %3868 = vmatpush1.msra.mxu0 %v379
    %3869 = vmatprep.subr.mxu0 %v404
    %3870 = vmatpush1.msra.mxu0 %v403
    %3871 = vmatprep.subr.mxu0 %v428
    %3872 = vmatpush1.msra.mxu0 %v427
    %3873 = vmatprep.subr.mxu0 %v452
    %3874 = vmatpush1.msra.mxu0 %v451
    %3875 = vmatprep.subr.mxu0 %v476
    %3876 = vmatpush1.msra.mxu0 %v475
    %3877 = vmatprep.subr.mxu0 %v500
    %3878 = vmatpush1.msra.mxu0 %v499
    %3879 = vmatprep.subr.mxu0 %v524
    %3880 = vmatpush1.msra.mxu0 %v523
    %3881 = vmatprep.subr.mxu0 %v548
    %3882 = vmatpush1.msra.mxu0 %v547
    %3883 = vmatprep.subr.mxu0 %v572
    %3884 = vmatpush1.msra.mxu0 %v571
    %3885 = vmatprep.subr.mxu0 %v596
    %3886 = vmatpush1.msra.mxu0 %v595
    %3887 = vmatprep.subr.mxu0 %v620
    %3888 = vmatpush1.msra.mxu0 %v619
    %3889 = vmatprep.subr.mxu0 %v644
    %3890 = vmatpush1.msra.mxu0 %v643
    %3891 = vmatprep.subr.mxu0 %v668
    %3892 = vmatpush1.msra.mxu0 %v667
    %3893 = vmatprep.subr.mxu0 %v692
    %3894 = vmatpush1.msra.mxu0 %v691
    %3895 = vmatprep.subr.mxu0 %v716
    %3896 = vmatpush1.msra.mxu0 %v715
    %3897 = vmatprep.subr.mxu0 %v740
    %3898 = vmatpush1.msra.mxu0 %v739
    %3899 = vmatprep.subr.mxu0 %v764
    %3900 = vmatpush1.msra.mxu0 %v763
    %3901 = vmatprep.subr.mxu0 %v788
    %3902 = vmatpush1.msra.mxu0 %v787
    %3903 = vmatprep.mubr.f32.mxu0 %v16
    %3904 = vmatmul.mubr.f32.gmra.mrb[0].mxu0 %v15
    %v3905 = vpop.f32.mrb[0].mxu0
    %v3906 = vadd.f32 0.0, %v3905
    %v3907 = vpop.f32.mrb[0].mxu0
    %v3908 = vadd.f32 0.0, %v3907
    %3909 = vmatprep.mubr.f32.mxu0 %v21
    %3910 = vmatmul.mubr.f32.gmra.mrb[0].mxu0 %v20
    %v3911 = vpop.f32.mrb[0].mxu0
    %v3912 = vadd.f32 0.0, %v3911
    %v3913 = vpop.f32.mrb[0].mxu0
    %v3914 = vadd.f32 0.0, %v3913
    %3915 = vdwg.mxu0
    %3916 = vmatprep.subr.mxu0 %v812
    %3917 = vmatpush1.msra.mxu0 %v811
    %3918 = vmatprep.subr.mxu0 %v836
    %3919 = vmatpush1.msra.mxu0 %v835
    %3920 = vmatprep.subr.mxu0 %v860
    %3921 = vmatpush1.msra.mxu0 %v859
    %3922 = vmatprep.subr.mxu0 %v884
    %3923 = vmatpush1.msra.mxu0 %v883
    %3924 = vmatprep.subr.mxu0 %v908
    %3925 = vmatpush1.msra.mxu0 %v907
    %3926 = vmatprep.subr.mxu0 %v932
    %3927 = vmatpush1.msra.mxu0 %v931
    %3928 = vmatprep.subr.mxu0 %v956
    %3929 = vmatpush1.msra.mxu0 %v955
    %3930 = vmatprep.subr.mxu0 %v980
    %3931 = vmatpush1.msra.mxu0 %v979
    %3932 = vmatprep.subr.mxu0 %v1004
    %3933 = vmatpush1.msra.mxu0 %v1003
    %3934 = vmatprep.subr.mxu0 %v1028
    %3935 = vmatpush1.msra.mxu0 %v1027
    %3936 = vmatprep.subr.mxu0 %v1052
    %3937 = vmatpush1.msra.mxu0 %v1051
    %3938 = vmatprep.subr.mxu0 %v1076
    %3939 = vmatpush1.msra.mxu0 %v1075
    %3940 = vmatprep.subr.mxu0 %v1100
    %3941 = vmatpush1.msra.mxu0 %v1099
    %3942 = vmatprep.subr.mxu0 %v1124
    %3943 = vmatpush1.msra.mxu0 %v1123
    %3944 = vmatprep.subr.mxu0 %v1148
    %3945 = vmatpush1.msra.mxu0 %v1147
    %3946 = vmatprep.subr.mxu0 %v1172
    %3947 = vmatpush1.msra.mxu0 %v1171
    %3948 = vmatprep.subr.mxu0 %v1196
    %3949 = vmatpush1.msra.mxu0 %v1195
    %3950 = vmatprep.subr.mxu0 %v1220
    %3951 = vmatpush1.msra.mxu0 %v1219
    %3952 = vmatprep.subr.mxu0 %v1244
    %3953 = vmatpush1.msra.mxu0 %v1243
    %3954 = vmatprep.subr.mxu0 %v1268
    %3955 = vmatpush1.msra.mxu0 %v1267
    %3956 = vmatprep.subr.mxu0 %v1292
    %3957 = vmatpush1.msra.mxu0 %v1291
    %3958 = vmatprep.subr.mxu0 %v1316
    %3959 = vmatpush1.msra.mxu0 %v1315
    %3960 = vmatprep.subr.mxu0 %v1340
    %3961 = vmatpush1.msra.mxu0 %v1339
    %3962 = vmatprep.subr.mxu0 %v1364
    %3963 = vmatpush1.msra.mxu0 %v1363
    %3964 = vmatprep.subr.mxu0 %v1388
    %3965 = vmatpush1.msra.mxu0 %v1387
    %3966 = vmatprep.subr.mxu0 %v1412
    %3967 = vmatpush1.msra.mxu0 %v1411
    %3968 = vmatprep.subr.mxu0 %v1436
    %3969 = vmatpush1.msra.mxu0 %v1435
    %3970 = vmatprep.subr.mxu0 %v1460
    %3971 = vmatpush1.msra.mxu0 %v1459
    %3972 = vmatprep.subr.mxu0 %v1484
    %3973 = vmatpush1.msra.mxu0 %v1483
    %3974 = vmatprep.subr.mxu0 %v1508
    %3975 = vmatpush1.msra.mxu0 %v1507
    %3976 = vmatprep.subr.mxu0 %v1532
    %3977 = vmatpush1.msra.mxu0 %v1531
    %3978 = vmatprep.subr.mxu0 %v1556
    %3979 = vmatpush1.msra.mxu0 %v1555
    %3980 = vmatprep.mubr.f32.mxu0 %v18
    %3981 = vmatmul.mubr.f32.gmra.mrb[0].mxu0 %v17
    %v3982 = vpop.f32.mrb[0].mxu0
    %v3983 = vadd.f32 %v3906, %v3982
    %v3984 = vpop.f32.mrb[0].mxu0
    %v3985 = vadd.f32 %v3908, %v3984
    %3986 = vmatprep.mubr.f32.mxu0 %v23
    %3987 = vmatmul.mubr.f32.gmra.mrb[0].mxu0 %v22
    %v3988 = vpop.f32.mrb[0].mxu0
    %v3989 = vadd.f32 %v3912, %v3988
    %v3990 = vpop.f32.mrb[0].mxu0
    %v3991 = vadd.f32 %v3914, %v3990
    %3992 = vdwg.mxu0
    %3993 = vmatprep.subr.mxu0 %v1580
    %3994 = vmatpush1.msra.mxu0 %v1579
    %3995 = vmatprep.subr.mxu0 %v1604
    %3996 = vmatpush1.msra.mxu0 %v1603
    %3997 = vmatprep.subr.mxu0 %v1628
    %3998 = vmatpush1.msra.mxu0 %v1627
    %3999 = vmatprep.subr.mxu0 %v1652
    %4000 = vmatpush1.msra.mxu0 %v1651
    %4001 = vmatprep.subr.mxu0 %v1676
    %4002 = vmatpush1.msra.mxu0 %v1675
    %4003 = vmatprep.subr.mxu0 %v1700
    %4004 = vmatpush1.msra.mxu0 %v1699
    %4005 = vmatprep.subr.mxu0 %v1724
    %4006 = vmatpush1.msra.mxu0 %v1723
    %4007 = vmatprep.subr.mxu0 %v1748
    %4008 = vmatpush1.msra.mxu0 %v1747
    %4009 = vmatprep.subr.mxu0 0.0
    %4010 = vmatpush1.msra.mxu0 0.0
    %4011 = vmatprep.subr.mxu0 0.0
    %4012 = vmatpush1.msra.mxu0 0.0
    %4013 = vmatprep.subr.mxu0 0.0
    %4014 = vmatpush1.msra.mxu0 0.0
    %4015 = vmatprep.subr.mxu0 0.0
    %4016 = vmatpush1.msra.mxu0 0.0
    %4017 = vmatprep.subr.mxu0 0.0
    %4018 = vmatpush1.msra.mxu0 0.0
    %4019 = vmatprep.subr.mxu0 0.0
    %4020 = vmatpush1.msra.mxu0 0.0
    %4021 = vmatprep.subr.mxu0 0.0
    %4022 = vmatpush1.msra.mxu0 0.0
    %4023 = vmatprep.subr.mxu0 0.0
    %4024 = vmatpush1.msra.mxu0 0.0
    %4025 = vmatprep.subr.mxu0 0.0
    %4026 = vmatpush1.msra.mxu0 0.0
    %4027 = vmatprep.subr.mxu0 0.0
    %4028 = vmatpush1.msra.mxu0 0.0
    %4029 = vmatprep.subr.mxu0 0.0
    %4030 = vmatpush1.msra.mxu0 0.0
    %4031 = vmatprep.subr.mxu0 0.0
    %4032 = vmatpush1.msra.mxu0 0.0
    %4033 = vmatprep.subr.mxu0 0.0
    %4034 = vmatpush1.msra.mxu0 0.0
    %4035 = vmatprep.subr.mxu0 0.0
    %4036 = vmatpush1.msra.mxu0 0.0
    %4037 = vmatprep.subr.mxu0 0.0
    %4038 = vmatpush1.msra.mxu0 0.0
    %4039 = vmatprep.subr.mxu0 0.0
    %4040 = vmatpush1.msra.mxu0 0.0
    %4041 = vmatprep.subr.mxu0 0.0
    %4042 = vmatpush1.msra.mxu0 0.0
    %4043 = vmatprep.subr.mxu0 0.0
    %4044 = vmatpush1.msra.mxu0 0.0
    %4045 = vmatprep.subr.mxu0 0.0
    %4046 = vmatpush1.msra.mxu0 0.0
    %4047 = vmatprep.subr.mxu0 0.0
    %4048 = vmatpush1.msra.mxu0 0.0
    %4049 = vmatprep.subr.mxu0 0.0
    %4050 = vmatpush1.msra.mxu0 0.0
    %4051 = vmatprep.subr.mxu0 0.0
    %4052 = vmatpush1.msra.mxu0 0.0
    %4053 = vmatprep.subr.mxu0 0.0
    %4054 = vmatpush1.msra.mxu0 0.0
    %4055 = vmatprep.subr.mxu0 0.0
    %4056 = vmatpush1.msra.mxu0 0.0
    %4057 = vmatprep.mubr.f32.mxu0 0.0
    %4058 = vmatmul.mubr.f32.gmra.mrb[0].mxu0 %v1755
    %v4059 = vpop.f32.mrb[0].mxu0
    %v4060 = vadd.f32 %v3983, %v4059
    %v4061 = vpop.f32.mrb[0].mxu0
    %v4062 = vadd.f32 %v3985, %v4061
    %4063 = vmatprep.mubr.f32.mxu0 0.0
    %4064 = vmatmul.mubr.f32.gmra.mrb[0].mxu0 %v1758
    %v4065 = vpop.f32.mrb[0].mxu0
    %v4066 = vadd.f32 %v3989, %v4065
    %v4067 = vpop.f32.mrb[0].mxu0
    %v4068 = vadd.f32 %v3991, %v4067
    %4069 = vdwg.mxu0
    %4070 = vmatprep.subr.mxu0 %v46
    %4071 = vmatpush1.msra.mxu0 %v45
    %4072 = vmatprep.subr.mxu0 %v70
    %4073 = vmatpush1.msra.mxu0 %v69
    %4074 = vmatprep.subr.mxu0 %v94
    %4075 = vmatpush1.msra.mxu0 %v93
    %4076 = vmatprep.subr.mxu0 %v118
    %4077 = vmatpush1.msra.mxu0 %v117
    %4078 = vmatprep.subr.mxu0 %v142
    %4079 = vmatpush1.msra.mxu0 %v141
    %4080 = vmatprep.subr.mxu0 %v166
    %4081 = vmatpush1.msra.mxu0 %v165
    %4082 = vmatprep.subr.mxu0 %v190
    %4083 = vmatpush1.msra.mxu0 %v189
    %4084 = vmatprep.subr.mxu0 %v214
    %4085 = vmatpush1.msra.mxu0 %v213
    %4086 = vmatprep.subr.mxu0 %v238
    %4087 = vmatpush1.msra.mxu0 %v237
    %4088 = vmatprep.subr.mxu0 %v262
    %4089 = vmatpush1.msra.mxu0 %v261
    %4090 = vmatprep.subr.mxu0 %v286
    %4091 = vmatpush1.msra.mxu0 %v285
    %4092 = vmatprep.subr.mxu0 %v310
    %4093 = vmatpush1.msra.mxu0 %v309
    %4094 = vmatprep.subr.mxu0 %v334
    %4095 = vmatpush1.msra.mxu0 %v333
    %4096 = vmatprep.subr.mxu0 %v358
    %4097 = vmatpush1.msra.mxu0 %v357
    %4098 = vmatprep.subr.mxu0 %v382
    %4099 = vmatpush1.msra.mxu0 %v381
    %4100 = vmatprep.subr.mxu0 %v406
    %4101 = vmatpush1.msra.mxu0 %v405
    %4102 = vmatprep.subr.mxu0 %v430
    %4103 = vmatpush1.msra.mxu0 %v429
    %4104 = vmatprep.subr.mxu0 %v454
    %4105 = vmatpush1.msra.mxu0 %v453
    %4106 = vmatprep.subr.mxu0 %v478
    %4107 = vmatpush1.msra.mxu0 %v477
    %4108 = vmatprep.subr.mxu0 %v502
    %4109 = vmatpush1.msra.mxu0 %v501
    %4110 = vmatprep.subr.mxu0 %v526
    %4111 = vmatpush1.msra.mxu0 %v525
    %4112 = vmatprep.subr.mxu0 %v550
    %4113 = vmatpush1.msra.mxu0 %v549
    %4114 = vmatprep.subr.mxu0 %v574
    %4115 = vmatpush1.msra.mxu0 %v573
    %4116 = vmatprep.subr.mxu0 %v598
    %4117 = vmatpush1.msra.mxu0 %v597
    %4118 = vmatprep.subr.mxu0 %v622
    %4119 = vmatpush1.msra.mxu0 %v621
    %4120 = vmatprep.subr.mxu0 %v646
    %4121 = vmatpush1.msra.mxu0 %v645
    %4122 = vmatprep.subr.mxu0 %v670
    %4123 = vmatpush1.msra.mxu0 %v669
    %4124 = vmatprep.subr.mxu0 %v694
    %4125 = vmatpush1.msra.mxu0 %v693
    %4126 = vmatprep.subr.mxu0 %v718
    %4127 = vmatpush1.msra.mxu0 %v717
    %4128 = vmatprep.subr.mxu0 %v742
    %4129 = vmatpush1.msra.mxu0 %v741
    %4130 = vmatprep.subr.mxu0 %v766
    %4131 = vmatpush1.msra.mxu0 %v765
    %4132 = vmatprep.subr.mxu0 %v790
    %4133 = vmatpush1.msra.mxu0 %v789
    %4134 = vmatprep.mubr.f32.mxu0 %v16
    %4135 = vmatmul.mubr.f32.gmra.mrb[0].mxu0 %v15
    %v4136 = vpop.f32.mrb[0].mxu0
    %v4137 = vadd.f32 0.0, %v4136
    %v4138 = vpop.f32.mrb[0].mxu0
    %v4139 = vadd.f32 0.0, %v4138
    %4140 = vmatprep.mubr.f32.mxu0 %v21
    %4141 = vmatmul.mubr.f32.gmra.mrb[0].mxu0 %v20
    %v4142 = vpop.f32.mrb[0].mxu0
    %v4143 = vadd.f32 0.0, %v4142
    %v4144 = vpop.f32.mrb[0].mxu0
    %v4145 = vadd.f32 0.0, %v4144
    %4146 = vdwg.mxu0
    %4147 = vmatprep.subr.mxu0 %v814
    %4148 = vmatpush1.msra.mxu0 %v813
    %4149 = vmatprep.subr.mxu0 %v838
    %4150 = vmatpush1.msra.mxu0 %v837
    %4151 = vmatprep.subr.mxu0 %v862
    %4152 = vmatpush1.msra.mxu0 %v861
    %4153 = vmatprep.subr.mxu0 %v886
    %4154 = vmatpush1.msra.mxu0 %v885
    %4155 = vmatprep.subr.mxu0 %v910
    %4156 = vmatpush1.msra.mxu0 %v909
    %4157 = vmatprep.subr.mxu0 %v934
    %4158 = vmatpush1.msra.mxu0 %v933
    %4159 = vmatprep.subr.mxu0 %v958
    %4160 = vmatpush1.msra.mxu0 %v957
    %4161 = vmatprep.subr.mxu0 %v982
    %4162 = vmatpush1.msra.mxu0 %v981
    %4163 = vmatprep.subr.mxu0 %v1006
    %4164 = vmatpush1.msra.mxu0 %v1005
    %4165 = vmatprep.subr.mxu0 %v1030
    %4166 = vmatpush1.msra.mxu0 %v1029
    %4167 = vmatprep.subr.mxu0 %v1054
    %4168 = vmatpush1.msra.mxu0 %v1053
    %4169 = vmatprep.subr.mxu0 %v1078
    %4170 = vmatpush1.msra.mxu0 %v1077
    %4171 = vmatprep.subr.mxu0 %v1102
    %4172 = vmatpush1.msra.mxu0 %v1101
    %4173 = vmatprep.subr.mxu0 %v1126
    %4174 = vmatpush1.msra.mxu0 %v1125
    %4175 = vmatprep.subr.mxu0 %v1150
    %4176 = vmatpush1.msra.mxu0 %v1149
    %4177 = vmatprep.subr.mxu0 %v1174
    %4178 = vmatpush1.msra.mxu0 %v1173
    %4179 = vmatprep.subr.mxu0 %v1198
    %4180 = vmatpush1.msra.mxu0 %v1197
    %4181 = vmatprep.subr.mxu0 %v1222
    %4182 = vmatpush1.msra.mxu0 %v1221
    %4183 = vmatprep.subr.mxu0 %v1246
    %4184 = vmatpush1.msra.mxu0 %v1245
    %4185 = vmatprep.subr.mxu0 %v1270
    %4186 = vmatpush1.msra.mxu0 %v1269
    %4187 = vmatprep.subr.mxu0 %v1294
    %4188 = vmatpush1.msra.mxu0 %v1293
    %4189 = vmatprep.subr.mxu0 %v1318
    %4190 = vmatpush1.msra.mxu0 %v1317
    %4191 = vmatprep.subr.mxu0 %v1342
    %4192 = vmatpush1.msra.mxu0 %v1341
    %4193 = vmatprep.subr.mxu0 %v1366
    %4194 = vmatpush1.msra.mxu0 %v1365
    %4195 = vmatprep.subr.mxu0 %v1390
    %4196 = vmatpush1.msra.mxu0 %v1389
    %4197 = vmatprep.subr.mxu0 %v1414
    %4198 = vmatpush1.msra.mxu0 %v1413
    %4199 = vmatprep.subr.mxu0 %v1438
    %4200 = vmatpush1.msra.mxu0 %v1437
    %4201 = vmatprep.subr.mxu0 %v1462
    %4202 = vmatpush1.msra.mxu0 %v1461
    %4203 = vmatprep.subr.mxu0 %v1486
    %4204 = vmatpush1.msra.mxu0 %v1485
    %4205 = vmatprep.subr.mxu0 %v1510
    %4206 = vmatpush1.msra.mxu0 %v1509
    %4207 = vmatprep.subr.mxu0 %v1534
    %4208 = vmatpush1.msra.mxu0 %v1533
    %4209 = vmatprep.subr.mxu0 %v1558
    %4210 = vmatpush1.msra.mxu0 %v1557
    %4211 = vmatprep.mubr.f32.mxu0 %v18
    %4212 = vmatmul.mubr.f32.gmra.mrb[0].mxu0 %v17
    %v4213 = vpop.f32.mrb[0].mxu0
    %v4214 = vadd.f32 %v4137, %v4213
    %v4215 = vpop.f32.mrb[0].mxu0
    %v4216 = vadd.f32 %v4139, %v4215
    %4217 = vmatprep.mubr.f32.mxu0 %v23
    %4218 = vmatmul.mubr.f32.gmra.mrb[0].mxu0 %v22
    %v4219 = vpop.f32.mrb[0].mxu0
    %v4220 = vadd.f32 %v4143, %v4219
    %v4221 = vpop.f32.mrb[0].mxu0
    %v4222 = vadd.f32 %v4145, %v4221
    %4223 = vdwg.mxu0
    %4224 = vmatprep.subr.mxu0 %v1582
    %4225 = vmatpush1.msra.mxu0 %v1581
    %4226 = vmatprep.subr.mxu0 %v1606
    %4227 = vmatpush1.msra.mxu0 %v1605
    %4228 = vmatprep.subr.mxu0 %v1630
    %4229 = vmatpush1.msra.mxu0 %v1629
    %4230 = vmatprep.subr.mxu0 %v1654
    %4231 = vmatpush1.msra.mxu0 %v1653
    %4232 = vmatprep.subr.mxu0 %v1678
    %4233 = vmatpush1.msra.mxu0 %v1677
    %4234 = vmatprep.subr.mxu0 %v1702
    %4235 = vmatpush1.msra.mxu0 %v1701
    %4236 = vmatprep.subr.mxu0 %v1726
    %4237 = vmatpush1.msra.mxu0 %v1725
    %4238 = vmatprep.subr.mxu0 %v1750
    %4239 = vmatpush1.msra.mxu0 %v1749
    %4240 = vmatprep.subr.mxu0 0.0
    %4241 = vmatpush1.msra.mxu0 0.0
    %4242 = vmatprep.subr.mxu0 0.0
    %4243 = vmatpush1.msra.mxu0 0.0
    %4244 = vmatprep.subr.mxu0 0.0
    %4245 = vmatpush1.msra.mxu0 0.0
    %4246 = vmatprep.subr.mxu0 0.0
    %4247 = vmatpush1.msra.mxu0 0.0
    %4248 = vmatprep.subr.mxu0 0.0
    %4249 = vmatpush1.msra.mxu0 0.0
    %4250 = vmatprep.subr.mxu0 0.0
    %4251 = vmatpush1.msra.mxu0 0.0
    %4252 = vmatprep.subr.mxu0 0.0
    %4253 = vmatpush1.msra.mxu0 0.0
    %4254 = vmatprep.subr.mxu0 0.0
    %4255 = vmatpush1.msra.mxu0 0.0
    %4256 = vmatprep.subr.mxu0 0.0
    %4257 = vmatpush1.msra.mxu0 0.0
    %4258 = vmatprep.subr.mxu0 0.0
    %4259 = vmatpush1.msra.mxu0 0.0
    %4260 = vmatprep.subr.mxu0 0.0
    %4261 = vmatpush1.msra.mxu0 0.0
    %4262 = vmatprep.subr.mxu0 0.0
    %4263 = vmatpush1.msra.mxu0 0.0
    %4264 = vmatprep.subr.mxu0 0.0
    %4265 = vmatpush1.msra.mxu0 0.0
    %4266 = vmatprep.subr.mxu0 0.0
    %4267 = vmatpush1.msra.mxu0 0.0
    %4268 = vmatprep.subr.mxu0 0.0
    %4269 = vmatpush1.msra.mxu0 0.0
    %4270 = vmatprep.subr.mxu0 0.0
    %4271 = vmatpush1.msra.mxu0 0.0
    %4272 = vmatprep.subr.mxu0 0.0
    %4273 = vmatpush1.msra.mxu0 0.0
    %4274 = vmatprep.subr.mxu0 0.0
    %4275 = vmatpush1.msra.mxu0 0.0
    %4276 = vmatprep.subr.mxu0 0.0
    %4277 = vmatpush1.msra.mxu0 0.0
    %4278 = vmatprep.subr.mxu0 0.0
    %4279 = vmatpush1.msra.mxu0 0.0
    %4280 = vmatprep.subr.mxu0 0.0
    %4281 = vmatpush1.msra.mxu0 0.0
    %4282 = vmatprep.subr.mxu0 0.0
    %4283 = vmatpush1.msra.mxu0 0.0
    %4284 = vmatprep.subr.mxu0 0.0
    %4285 = vmatpush1.msra.mxu0 0.0
    %4286 = vmatprep.subr.mxu0 0.0
    %4287 = vmatpush1.msra.mxu0 0.0
    %4288 = vmatprep.mubr.f32.mxu0 0.0
    %4289 = vmatmul.mubr.f32.gmra.mrb[0].mxu0 %v1755
    %v4290 = vpop.f32.mrb[0].mxu0
    %v4291 = vadd.f32 %v4214, %v4290
    %v4292 = vpop.f32.mrb[0].mxu0
    %v4293 = vadd.f32 %v4216, %v4292
    %4294 = vmatprep.mubr.f32.mxu0 0.0
    %4295 = vmatmul.mubr.f32.gmra.mrb[0].mxu0 %v1758
    %v4296 = vpop.f32.mrb[0].mxu0
    %v4297 = vadd.f32 %v4220, %v4296
    %v4298 = vpop.f32.mrb[0].mxu0
    %v4299 = vadd.f32 %v4222, %v4298
    %4300 = vdwg.mxu0
    %4301 = vmatprep.subr.mxu0 %v48
    %4302 = vmatpush1.msra.mxu0 %v47
    %4303 = vmatprep.subr.mxu0 %v72
    %4304 = vmatpush1.msra.mxu0 %v71
    %4305 = vmatprep.subr.mxu0 %v96
    %4306 = vmatpush1.msra.mxu0 %v95
    %4307 = vmatprep.subr.mxu0 %v120
    %4308 = vmatpush1.msra.mxu0 %v119
    %4309 = vmatprep.subr.mxu0 %v144
    %4310 = vmatpush1.msra.mxu0 %v143
    %4311 = vmatprep.subr.mxu0 %v168
    %4312 = vmatpush1.msra.mxu0 %v167
    %4313 = vmatprep.subr.mxu0 %v192
    %4314 = vmatpush1.msra.mxu0 %v191
    %4315 = vmatprep.subr.mxu0 %v216
    %4316 = vmatpush1.msra.mxu0 %v215
    %4317 = vmatprep.subr.mxu0 %v240
    %4318 = vmatpush1.msra.mxu0 %v239
    %4319 = vmatprep.subr.mxu0 %v264
    %4320 = vmatpush1.msra.mxu0 %v263
    %4321 = vmatprep.subr.mxu0 %v288
    %4322 = vmatpush1.msra.mxu0 %v287
    %4323 = vmatprep.subr.mxu0 %v312
    %4324 = vmatpush1.msra.mxu0 %v311
    %4325 = vmatprep.subr.mxu0 %v336
    %4326 = vmatpush1.msra.mxu0 %v335
    %4327 = vmatprep.subr.mxu0 %v360
    %4328 = vmatpush1.msra.mxu0 %v359
    %4329 = vmatprep.subr.mxu0 %v384
    %4330 = vmatpush1.msra.mxu0 %v383
    %4331 = vmatprep.subr.mxu0 %v408
    %4332 = vmatpush1.msra.mxu0 %v407
    %4333 = vmatprep.subr.mxu0 %v432
    %4334 = vmatpush1.msra.mxu0 %v431
    %4335 = vmatprep.subr.mxu0 %v456
    %4336 = vmatpush1.msra.mxu0 %v455
    %4337 = vmatprep.subr.mxu0 %v480
    %4338 = vmatpush1.msra.mxu0 %v479
    %4339 = vmatprep.subr.mxu0 %v504
    %4340 = vmatpush1.msra.mxu0 %v503
    %4341 = vmatprep.subr.mxu0 %v528
    %4342 = vmatpush1.msra.mxu0 %v527
    %4343 = vmatprep.subr.mxu0 %v552
    %4344 = vmatpush1.msra.mxu0 %v551
    %4345 = vmatprep.subr.mxu0 %v576
    %4346 = vmatpush1.msra.mxu0 %v575
    %4347 = vmatprep.subr.mxu0 %v600
    %4348 = vmatpush1.msra.mxu0 %v599
    %4349 = vmatprep.subr.mxu0 %v624
    %4350 = vmatpush1.msra.mxu0 %v623
    %4351 = vmatprep.subr.mxu0 %v648
    %4352 = vmatpush1.msra.mxu0 %v647
    %4353 = vmatprep.subr.mxu0 %v672
    %4354 = vmatpush1.msra.mxu0 %v671
    %4355 = vmatprep.subr.mxu0 %v696
    %4356 = vmatpush1.msra.mxu0 %v695
    %4357 = vmatprep.subr.mxu0 %v720
    %4358 = vmatpush1.msra.mxu0 %v719
    %4359 = vmatprep.subr.mxu0 %v744
    %4360 = vmatpush1.msra.mxu0 %v743
    %4361 = vmatprep.subr.mxu0 %v768
    %4362 = vmatpush1.msra.mxu0 %v767
    %4363 = vmatprep.subr.mxu0 %v792
    %4364 = vmatpush1.msra.mxu0 %v791
    %4365 = vmatprep.mubr.f32.mxu0 %v16
    %4366 = vmatmul.mubr.f32.gmra.mrb[0].mxu0 %v15
    %v4367 = vpop.f32.mrb[0].mxu0
    %v4368 = vadd.f32 0.0, %v4367
    %v4369 = vpop.f32.mrb[0].mxu0
    %v4370 = vadd.f32 0.0, %v4369
    %4371 = vmatprep.mubr.f32.mxu0 %v21
    %4372 = vmatmul.mubr.f32.gmra.mrb[0].mxu0 %v20
    %v4373 = vpop.f32.mrb[0].mxu0
    %v4374 = vadd.f32 0.0, %v4373
    %v4375 = vpop.f32.mrb[0].mxu0
    %v4376 = vadd.f32 0.0, %v4375
    %4377 = vdwg.mxu0
    %4378 = vmatprep.subr.mxu0 %v816
    %4379 = vmatpush1.msra.mxu0 %v815
    %4380 = vmatprep.subr.mxu0 %v840
    %4381 = vmatpush1.msra.mxu0 %v839
    %4382 = vmatprep.subr.mxu0 %v864
    %4383 = vmatpush1.msra.mxu0 %v863
    %4384 = vmatprep.subr.mxu0 %v888
    %4385 = vmatpush1.msra.mxu0 %v887
    %4386 = vmatprep.subr.mxu0 %v912
    %4387 = vmatpush1.msra.mxu0 %v911
    %4388 = vmatprep.subr.mxu0 %v936
    %4389 = vmatpush1.msra.mxu0 %v935
    %4390 = vmatprep.subr.mxu0 %v960
    %4391 = vmatpush1.msra.mxu0 %v959
    %4392 = vmatprep.subr.mxu0 %v984
    %4393 = vmatpush1.msra.mxu0 %v983
    %4394 = vmatprep.subr.mxu0 %v1008
    %4395 = vmatpush1.msra.mxu0 %v1007
    %4396 = vmatprep.subr.mxu0 %v1032
    %4397 = vmatpush1.msra.mxu0 %v1031
    %4398 = vmatprep.subr.mxu0 %v1056
    %4399 = vmatpush1.msra.mxu0 %v1055
    %4400 = vmatprep.subr.mxu0 %v1080
    %4401 = vmatpush1.msra.mxu0 %v1079
    %4402 = vmatprep.subr.mxu0 %v1104
    %4403 = vmatpush1.msra.mxu0 %v1103
    %4404 = vmatprep.subr.mxu0 %v1128
    %4405 = vmatpush1.msra.mxu0 %v1127
    %4406 = vmatprep.subr.mxu0 %v1152
    %4407 = vmatpush1.msra.mxu0 %v1151
    %4408 = vmatprep.subr.mxu0 %v1176
    %4409 = vmatpush1.msra.mxu0 %v1175
    %4410 = vmatprep.subr.mxu0 %v1200
    %4411 = vmatpush1.msra.mxu0 %v1199
    %4412 = vmatprep.subr.mxu0 %v1224
    %4413 = vmatpush1.msra.mxu0 %v1223
    %4414 = vmatprep.subr.mxu0 %v1248
    %4415 = vmatpush1.msra.mxu0 %v1247
    %4416 = vmatprep.subr.mxu0 %v1272
    %4417 = vmatpush1.msra.mxu0 %v1271
    %4418 = vmatprep.subr.mxu0 %v1296
    %4419 = vmatpush1.msra.mxu0 %v1295
    %4420 = vmatprep.subr.mxu0 %v1320
    %4421 = vmatpush1.msra.mxu0 %v1319
    %4422 = vmatprep.subr.mxu0 %v1344
    %4423 = vmatpush1.msra.mxu0 %v1343
    %4424 = vmatprep.subr.mxu0 %v1368
    %4425 = vmatpush1.msra.mxu0 %v1367
    %4426 = vmatprep.subr.mxu0 %v1392
    %4427 = vmatpush1.msra.mxu0 %v1391
    %4428 = vmatprep.subr.mxu0 %v1416
    %4429 = vmatpush1.msra.mxu0 %v1415
    %4430 = vmatprep.subr.mxu0 %v1440
    %4431 = vmatpush1.msra.mxu0 %v1439
    %4432 = vmatprep.subr.mxu0 %v1464
    %4433 = vmatpush1.msra.mxu0 %v1463
    %4434 = vmatprep.subr.mxu0 %v1488
    %4435 = vmatpush1.msra.mxu0 %v1487
    %4436 = vmatprep.subr.mxu0 %v1512
    %4437 = vmatpush1.msra.mxu0 %v1511
    %4438 = vmatprep.subr.mxu0 %v1536
    %4439 = vmatpush1.msra.mxu0 %v1535
    %4440 = vmatprep.subr.mxu0 %v1560
    %4441 = vmatpush1.msra.mxu0 %v1559
    %4442 = vmatprep.mubr.f32.mxu0 %v18
    %4443 = vmatmul.mubr.f32.gmra.mrb[0].mxu0 %v17
    %v4444 = vpop.f32.mrb[0].mxu0
    %v4445 = vadd.f32 %v4368, %v4444
    %v4446 = vpop.f32.mrb[0].mxu0
    %v4447 = vadd.f32 %v4370, %v4446
    %4448 = vmatprep.mubr.f32.mxu0 %v23
    %4449 = vmatmul.mubr.f32.gmra.mrb[0].mxu0 %v22
    %v4450 = vpop.f32.mrb[0].mxu0
    %v4451 = vadd.f32 %v4374, %v4450
    %v4452 = vpop.f32.mrb[0].mxu0
    %v4453 = vadd.f32 %v4376, %v4452
    %4454 = vdwg.mxu0
    %4455 = vmatprep.subr.mxu0 %v1584
    %4456 = vmatpush1.msra.mxu0 %v1583
    %4457 = vmatprep.subr.mxu0 %v1608
    %4458 = vmatpush1.msra.mxu0 %v1607
    %4459 = vmatprep.subr.mxu0 %v1632
    %4460 = vmatpush1.msra.mxu0 %v1631
    %4461 = vmatprep.subr.mxu0 %v1656
    %4462 = vmatpush1.msra.mxu0 %v1655
    %4463 = vmatprep.subr.mxu0 %v1680
    %4464 = vmatpush1.msra.mxu0 %v1679
    %4465 = vmatprep.subr.mxu0 %v1704
    %4466 = vmatpush1.msra.mxu0 %v1703
    %4467 = vmatprep.subr.mxu0 %v1728
    %4468 = vmatpush1.msra.mxu0 %v1727
    %4469 = vmatprep.subr.mxu0 %v1752
    %4470 = vmatpush1.msra.mxu0 %v1751
    %4471 = vmatprep.subr.mxu0 0.0
    %4472 = vmatpush1.msra.mxu0 0.0
    %4473 = vmatprep.subr.mxu0 0.0
    %4474 = vmatpush1.msra.mxu0 0.0
    %4475 = vmatprep.subr.mxu0 0.0
    %4476 = vmatpush1.msra.mxu0 0.0
    %4477 = vmatprep.subr.mxu0 0.0
    %4478 = vmatpush1.msra.mxu0 0.0
    %4479 = vmatprep.subr.mxu0 0.0
    %4480 = vmatpush1.msra.mxu0 0.0
    %4481 = vmatprep.subr.mxu0 0.0
    %4482 = vmatpush1.msra.mxu0 0.0
    %4483 = vmatprep.subr.mxu0 0.0
    %4484 = vmatpush1.msra.mxu0 0.0
    %4485 = vmatprep.subr.mxu0 0.0
    %4486 = vmatpush1.msra.mxu0 0.0
    %4487 = vmatprep.subr.mxu0 0.0
    %4488 = vmatpush1.msra.mxu0 0.0
    %4489 = vmatprep.subr.mxu0 0.0
    %4490 = vmatpush1.msra.mxu0 0.0
    %4491 = vmatprep.subr.mxu0 0.0
    %4492 = vmatpush1.msra.mxu0 0.0
    %4493 = vmatprep.subr.mxu0 0.0
    %4494 = vmatpush1.msra.mxu0 0.0
    %4495 = vmatprep.subr.mxu0 0.0
    %4496 = vmatpush1.msra.mxu0 0.0
    %4497 = vmatprep.subr.mxu0 0.0
    %4498 = vmatpush1.msra.mxu0 0.0
    %4499 = vmatprep.subr.mxu0 0.0
    %4500 = vmatpush1.msra.mxu0 0.0
    %4501 = vmatprep.subr.mxu0 0.0
    %4502 = vmatpush1.msra.mxu0 0.0
    %4503 = vmatprep.subr.mxu0 0.0
    %4504 = vmatpush1.msra.mxu0 0.0
    %4505 = vmatprep.subr.mxu0 0.0
    %4506 = vmatpush1.msra.mxu0 0.0
    %4507 = vmatprep.subr.mxu0 0.0
    %4508 = vmatpush1.msra.mxu0 0.0
    %4509 = vmatprep.subr.mxu0 0.0
    %4510 = vmatpush1.msra.mxu0 0.0
    %4511 = vmatprep.subr.mxu0 0.0
    %4512 = vmatpush1.msra.mxu0 0.0
    %4513 = vmatprep.subr.mxu0 0.0
    %4514 = vmatpush1.msra.mxu0 0.0
    %4515 = vmatprep.subr.mxu0 0.0
    %4516 = vmatpush1.msra.mxu0 0.0
    %4517 = vmatprep.subr.mxu0 0.0
    %4518 = vmatpush1.msra.mxu0 0.0
    %4519 = vmatprep.mubr.f32.mxu0 0.0
    %4520 = vmatmul.mubr.f32.gmra.mrb[0].mxu0 %v1755
    %v4521 = vpop.f32.mrb[0].mxu0
    %v4522 = vadd.f32 %v4445, %v4521
    %v4523 = vpop.f32.mrb[0].mxu0
    %v4524 = vadd.f32 %v4447, %v4523
    %4525 = vmatprep.mubr.f32.mxu0 0.0
    %4526 = vmatmul.mubr.f32.gmra.mrb[0].mxu0 %v1758
    %v4527 = vpop.f32.mrb[0].mxu0
    %v4528 = vadd.f32 %v4451, %v4527
    %v4529 = vpop.f32.mrb[0].mxu0
    %v4530 = vadd.f32 %v4453, %v4529
    %4531 = vdwg.mxu0
    %v4532 = vxor.u32 %v1981, 2147483648
    %v4533 = vxor.u32 %v1983, 2147483648
    %v4534 = vxor.u32 %v2212, 2147483648
    %v4535 = vxor.u32 %v2214, 2147483648
    %v4536 = vxor.u32 %v2443, 2147483648
    %v4537 = vxor.u32 %v2445, 2147483648
    %v4538 = vxor.u32 %v2674, 2147483648
    %v4539 = vxor.u32 %v2676, 2147483648
    %v4540 = vxor.u32 %v2905, 2147483648
    %v4541 = vxor.u32 %v2907, 2147483648
    %v4542 = vxor.u32 %v3136, 2147483648
    %v4543 = vxor.u32 %v3138, 2147483648
    %v4544 = vxor.u32 %v1987, 2147483648
    %v4545 = vxor.u32 %v1989, 2147483648
    %v4546 = vxor.u32 %v2218, 2147483648
    %v4547 = vxor.u32 %v2220, 2147483648
    %v4548 = vxor.u32 %v2449, 2147483648
    %v4549 = vxor.u32 %v2451, 2147483648
    %v4550 = vxor.u32 %v2680, 2147483648
    %v4551 = vxor.u32 %v2682, 2147483648
    %v4552 = vxor.u32 %v2911, 2147483648
    %v4553 = vxor.u32 %v2913, 2147483648
    %v4554 = vxor.u32 %v3142, 2147483648
    %v4555 = vxor.u32 %v3144, 2147483648
    %v4556 = vmul.f32 %v4532, 1.442695
    %v4557 = vpow.pop %v4556
    %v4558 = vmul.f32 %v4533, 1.442695
    %v4559 = vpow.pop %v4558
    %v4560 = vmul.f32 %v4534, 1.442695
    %v4561 = vpow.pop %v4560
    %v4562 = vmul.f32 %v4535, 1.442695
    %v4563 = vpow.pop %v4562
    %v4564 = vmul.f32 %v4536, 1.442695
    %v4565 = vpow.pop %v4564
    %v4566 = vmul.f32 %v4537, 1.442695
    %v4567 = vpow.pop %v4566
    %v4568 = vmul.f32 %v4538, 1.442695
    %v4569 = vpow.pop %v4568
    %v4570 = vmul.f32 %v4539, 1.442695
    %v4571 = vpow.pop %v4570
    %v4572 = vmul.f32 %v4540, 1.442695
    %v4573 = vpow.pop %v4572
    %v4574 = vmul.f32 %v4541, 1.442695
    %v4575 = vpow.pop %v4574
    %v4576 = vmul.f32 %v4542, 1.442695
    %v4577 = vpow.pop %v4576
    %v4578 = vmul.f32 %v4543, 1.442695
    %v4579 = vpow.pop %v4578
    %v4580 = vmul.f32 %v4544, 1.442695
    %v4581 = vpow.pop %v4580
    %v4582 = vmul.f32 %v4545, 1.442695
    %v4583 = vpow.pop %v4582
    %v4584 = vmul.f32 %v4546, 1.442695
    %v4585 = vpow.pop %v4584
    %v4586 = vmul.f32 %v4547, 1.442695
    %v4587 = vpow.pop %v4586
    %v4588 = vmul.f32 %v4548, 1.442695
    %v4589 = vpow.pop %v4588
    %v4590 = vmul.f32 %v4549, 1.442695
    %v4591 = vpow.pop %v4590
    %v4592 = vmul.f32 %v4550, 1.442695
    %v4593 = vpow.pop %v4592
    %v4594 = vmul.f32 %v4551, 1.442695
    %v4595 = vpow.pop %v4594
    %v4596 = vmul.f32 %v4552, 1.442695
    %v4597 = vpow.pop %v4596
    %v4598 = vmul.f32 %v4553, 1.442695
    %v4599 = vpow.pop %v4598
    %v4600 = vmul.f32 %v4554, 1.442695
    %v4601 = vpow.pop %v4600
    %v4602 = vmul.f32 %v4555, 1.442695
    %v4603 = vpow.pop %v4602
    %v4604 = vadd.f32 %v4557, 1.0
    %v4605 = vadd.f32 %v4559, 1.0
    %v4606 = vadd.f32 %v4561, 1.0
    %v4607 = vadd.f32 %v4563, 1.0
    %v4608 = vadd.f32 %v4565, 1.0
    %v4609 = vadd.f32 %v4567, 1.0
    %v4610 = vadd.f32 %v4569, 1.0
    %v4611 = vadd.f32 %v4571, 1.0
    %v4612 = vadd.f32 %v4573, 1.0
    %v4613 = vadd.f32 %v4575, 1.0
    %v4614 = vadd.f32 %v4577, 1.0
    %v4615 = vadd.f32 %v4579, 1.0
    %v4616 = vadd.f32 %v4581, 1.0
    %v4617 = vadd.f32 %v4583, 1.0
    %v4618 = vadd.f32 %v4585, 1.0
    %v4619 = vadd.f32 %v4587, 1.0
    %v4620 = vadd.f32 %v4589, 1.0
    %v4621 = vadd.f32 %v4591, 1.0
    %v4622 = vadd.f32 %v4593, 1.0
    %v4623 = vadd.f32 %v4595, 1.0
    %v4624 = vadd.f32 %v4597, 1.0
    %v4625 = vadd.f32 %v4599, 1.0
    %v4626 = vadd.f32 %v4601, 1.0
    %v4627 = vadd.f32 %v4603, 1.0
    %v4628 = vrcp.pop %v4604
    %v4629 = vmul.f32 1.0, %v4628
    %v4630 = vrcp.pop %v4605
    %v4631 = vmul.f32 1.0, %v4630
    %v4632 = vrcp.pop %v4606
    %v4633 = vmul.f32 1.0, %v4632
    %v4634 = vrcp.pop %v4607
    %v4635 = vmul.f32 1.0, %v4634
    %v4636 = vrcp.pop %v4608
    %v4637 = vmul.f32 1.0, %v4636
    %v4638 = vrcp.pop %v4609
    %v4639 = vmul.f32 1.0, %v4638
    %v4640 = vrcp.pop %v4610
    %v4641 = vmul.f32 1.0, %v4640
    %v4642 = vrcp.pop %v4611
    %v4643 = vmul.f32 1.0, %v4642
    %v4644 = vrcp.pop %v4612
    %v4645 = vmul.f32 1.0, %v4644
    %v4646 = vrcp.pop %v4613
    %v4647 = vmul.f32 1.0, %v4646
    %v4648 = vrcp.pop %v4614
    %v4649 = vmul.f32 1.0, %v4648
    %v4650 = vrcp.pop %v4615
    %v4651 = vmul.f32 1.0, %v4650
    %v4652 = vrcp.pop %v4616
    %v4653 = vmul.f32 1.0, %v4652
    %v4654 = vrcp.pop %v4617
    %v4655 = vmul.f32 1.0, %v4654
    %v4656 = vrcp.pop %v4618
    %v4657 = vmul.f32 1.0, %v4656
    %v4658 = vrcp.pop %v4619
    %v4659 = vmul.f32 1.0, %v4658
    %v4660 = vrcp.pop %v4620
    %v4661 = vmul.f32 1.0, %v4660
    %v4662 = vrcp.pop %v4621
    %v4663 = vmul.f32 1.0, %v4662
    %v4664 = vrcp.pop %v4622
    %v4665 = vmul.f32 1.0, %v4664
    %v4666 = vrcp.pop %v4623
    %v4667 = vmul.f32 1.0, %v4666
    %v4668 = vrcp.pop %v4624
    %v4669 = vmul.f32 1.0, %v4668
    %v4670 = vrcp.pop %v4625
    %v4671 = vmul.f32 1.0, %v4670
    %v4672 = vrcp.pop %v4626
    %v4673 = vmul.f32 1.0, %v4672
    %v4674 = vrcp.pop %v4627
    %v4675 = vmul.f32 1.0, %v4674
    %v4676 = vmul.f32 %v1981, %v4629
    %v4677 = vmul.f32 %v1983, %v4631
    %v4678 = vmul.f32 %v2212, %v4633
    %v4679 = vmul.f32 %v2214, %v4635
    %v4680 = vmul.f32 %v2443, %v4637
    %v4681 = vmul.f32 %v2445, %v4639
    %v4682 = vmul.f32 %v2674, %v4641
    %v4683 = vmul.f32 %v2676, %v4643
    %v4684 = vmul.f32 %v2905, %v4645
    %v4685 = vmul.f32 %v2907, %v4647
    %v4686 = vmul.f32 %v3136, %v4649
    %v4687 = vmul.f32 %v3138, %v4651
    %v4688 = vmul.f32 %v1987, %v4653
    %v4689 = vmul.f32 %v1989, %v4655
    %v4690 = vmul.f32 %v2218, %v4657
    %v4691 = vmul.f32 %v2220, %v4659
    %v4692 = vmul.f32 %v2449, %v4661
    %v4693 = vmul.f32 %v2451, %v4663
    %v4694 = vmul.f32 %v2680, %v4665
    %v4695 = vmul.f32 %v2682, %v4667
    %v4696 = vmul.f32 %v2911, %v4669
    %v4697 = vmul.f32 %v2913, %v4671
    %v4698 = vmul.f32 %v3142, %v4673
    %v4699 = vmul.f32 %v3144, %v4675
    %v4700 = vmul.f32 %v4676, %v3367
    %v4701 = vmul.f32 %v4677, %v3369
    %v4702 = vmul.f32 %v4678, %v3598
    %v4703 = vmul.f32 %v4679, %v3600
    %v4704 = vmul.f32 %v4680, %v3829
    %v4705 = vmul.f32 %v4681, %v3831
    %v4706 = vmul.f32 %v4682, %v4060
    %v4707 = vmul.f32 %v4683, %v4062
    %v4708 = vmul.f32 %v4684, %v4291
    %v4709 = vmul.f32 %v4685, %v4293
    %v4710 = vmul.f32 %v4686, %v4522
    %v4711 = vmul.f32 %v4687, %v4524
    %v4712 = vmul.f32 %v4688, %v3373
    %v4713 = vmul.f32 %v4689, %v3375
    %v4714 = vmul.f32 %v4690, %v3604
    %v4715 = vmul.f32 %v4691, %v3606
    %v4716 = vmul.f32 %v4692, %v3835
    %v4717 = vmul.f32 %v4693, %v3837
    %v4718 = vmul.f32 %v4694, %v4066
    %v4719 = vmul.f32 %v4695, %v4068
    %v4720 = vmul.f32 %v4696, %v4297
    %v4721 = vmul.f32 %v4697, %v4299
    %v4722 = vmul.f32 %v4698, %v4528
    %v4723 = vmul.f32 %v4699, %v4530
    %v4724 = vld [vmem:[%s2] sm:$0xff]
    %v4725 = vld [vmem:[%s2 + $0x8] sm:$0xff]
    %v4726 = vld [vmem:[%s2 + $0x10] sm:$0xff]
    %v4727 = vld [vmem:[%s2 + $0x18] sm:$0xff]
    %v4728 = vld [vmem:[%s2 + $0x20] sm:$0xff]
    %v4729 = vld [vmem:[%s2 + $0x28] sm:$0xff]
    %v4730 = vld [vmem:[%s2 + $0x30] sm:$0xff]
    %v4731 = vld [vmem:[%s2 + $0x38] sm:$0xff]
    %v4732 = vld [vmem:[%s2 + $0x40] sm:$0xff]
    %v4733 = vld [vmem:[%s2 + $0x48] sm:$0xff]
    %v4734 = vld [vmem:[%s2 + $0x50] sm:$0xff]
    %v4735 = vld [vmem:[%s2 + $0x58] sm:$0xff]
    %v4736 = vld [vmem:[%s2 + $0x60] sm:$0xff]
    %v4737 = vld [vmem:[%s2 + $0x68] sm:$0xff]
    %v4738 = vld [vmem:[%s2 + $0x70] sm:$0xff]
    %v4739 = vld [vmem:[%s2 + $0x78] sm:$0xff]
    %v4740 = vld [vmem:[%s2 + $0x80] sm:$0xff]
    %v4741 = vld [vmem:[%s2 + $0x88] sm:$0xff]
    %v4742 = vld [vmem:[%s2 + $0x90] sm:$0xff]
    %v4743 = vld [vmem:[%s2 + $0x98] sm:$0xff]
    %v4744 = vld [vmem:[%s2 + $0xa0] sm:$0xff]
    %v4745 = vld [vmem:[%s2 + $0xa8] sm:$0xff]
    %v4746 = vld [vmem:[%s2 + $0xb0] sm:$0xff]
    %v4747 = vld [vmem:[%s2 + $0xb8] sm:$0xff]
    %v4748 = vld [vmem:[%s2 + $0xc0] sm:$0xff]
    %v4749 = vld [vmem:[%s2 + $0xc8] sm:$0xff]
    %v4750 = vld [vmem:[%s2 + $0xd0] sm:$0xff]
    %v4751 = vld [vmem:[%s2 + $0xd8] sm:$0xff]
    %v4752 = vld [vmem:[%s2 + $0xe0] sm:$0xff]
    %v4753 = vld [vmem:[%s2 + $0xe8] sm:$0xff]
    %v4754 = vld [vmem:[%s2 + $0xf0] sm:$0xff]
    %v4755 = vld [vmem:[%s2 + $0xf8] sm:$0xff]
    %v4756 = vld [vmem:[%s2 + $0x100] sm:$0xff]
    %v4757 = vld [vmem:[%s2 + $0x108] sm:$0xff]
    %v4758 = vld [vmem:[%s2 + $0x110] sm:$0xff]
    %v4759 = vld [vmem:[%s2 + $0x118] sm:$0xff]
    %v4760 = vld [vmem:[%s2 + $0x120] sm:$0xff]
    %v4761 = vld [vmem:[%s2 + $0x128] sm:$0xff]
    %v4762 = vld [vmem:[%s2 + $0x130] sm:$0xff]
    %v4763 = vld [vmem:[%s2 + $0x138] sm:$0xff]
    %v4764 = vld [vmem:[%s2 + $0x140] sm:$0xff]
    %v4765 = vld [vmem:[%s2 + $0x148] sm:$0xff]
    %v4766 = vld [vmem:[%s2 + $0x150] sm:$0xff]
    %v4767 = vld [vmem:[%s2 + $0x158] sm:$0xff]
    %v4768 = vld [vmem:[%s2 + $0x160] sm:$0xff]
    %v4769 = vld [vmem:[%s2 + $0x168] sm:$0xff]
    %v4770 = vld [vmem:[%s2 + $0x170] sm:$0xff]
    %v4771 = vld [vmem:[%s2 + $0x178] sm:$0xff]
    %v4772 = vld [vmem:[%s2 + $0x180] sm:$0xff]
    %v4773 = vld [vmem:[%s2 + $0x188] sm:$0xff]
    %v4774 = vld [vmem:[%s2 + $0x190] sm:$0xff]
    %v4775 = vld [vmem:[%s2 + $0x198] sm:$0xff]
    %v4776 = vld [vmem:[%s2 + $0x1a0] sm:$0xff]
    %v4777 = vld [vmem:[%s2 + $0x1a8] sm:$0xff]
    %v4778 = vld [vmem:[%s2 + $0x1b0] sm:$0xff]
    %v4779 = vld [vmem:[%s2 + $0x1b8] sm:$0xff]
    %v4780 = vld [vmem:[%s2 + $0x1c0] sm:$0xff]
    %v4781 = vld [vmem:[%s2 + $0x1c8] sm:$0xff]
    %v4782 = vld [vmem:[%s2 + $0x1d0] sm:$0xff]
    %v4783 = vld [vmem:[%s2 + $0x1d8] sm:$0xff]
    %v4784 = vld [vmem:[%s2 + $0x1e0] sm:$0xff]
    %v4785 = vld [vmem:[%s2 + $0x1e8] sm:$0xff]
    %v4786 = vld [vmem:[%s2 + $0x1f0] sm:$0xff]
    %v4787 = vld [vmem:[%s2 + $0x1f8] sm:$0xff]
    %v4788 = vld [vmem:[%s2 + $0x200] sm:$0xff]
    %v4789 = vld [vmem:[%s2 + $0x208] sm:$0xff]
    %v4790 = vld [vmem:[%s2 + $0x210] sm:$0xff]
    %v4791 = vld [vmem:[%s2 + $0x218] sm:$0xff]
    %v4792 = vld [vmem:[%s2 + $0x220] sm:$0xff]
    %v4793 = vld [vmem:[%s2 + $0x228] sm:$0xff]
    %v4794 = vld [vmem:[%s2 + $0x230] sm:$0xff]
    %v4795 = vld [vmem:[%s2 + $0x238] sm:$0xff]
    %v4796 = vld [vmem:[%s2 + $0x240] sm:$0xff]
    %v4797 = vld [vmem:[%s2 + $0x248] sm:$0xff]
    %v4798 = vld [vmem:[%s2 + $0x250] sm:$0xff]
    %v4799 = vld [vmem:[%s2 + $0x258] sm:$0xff]
    %v4800 = vld [vmem:[%s2 + $0x260] sm:$0xff]
    %v4801 = vld [vmem:[%s2 + $0x268] sm:$0xff]
    %v4802 = vld [vmem:[%s2 + $0x270] sm:$0xff]
    %v4803 = vld [vmem:[%s2 + $0x278] sm:$0xff]
    %v4804 = vld [vmem:[%s2 + $0x280] sm:$0xff]
    %v4805 = vld [vmem:[%s2 + $0x288] sm:$0xff]
    %v4806 = vld [vmem:[%s2 + $0x290] sm:$0xff]
    %v4807 = vld [vmem:[%s2 + $0x298] sm:$0xff]
    %v4808 = vld [vmem:[%s2 + $0x2a0] sm:$0xff]
    %v4809 = vld [vmem:[%s2 + $0x2a8] sm:$0xff]
    %v4810 = vld [vmem:[%s2 + $0x2b0] sm:$0xff]
    %v4811 = vld [vmem:[%s2 + $0x2b8] sm:$0xff]
    %v4812 = vld [vmem:[%s2 + $0x2c0] sm:$0xff]
    %v4813 = vld [vmem:[%s2 + $0x2c8] sm:$0xff]
    %v4814 = vld [vmem:[%s2 + $0x2d0] sm:$0xff]
    %v4815 = vld [vmem:[%s2 + $0x2d8] sm:$0xff]
    %v4816 = vld [vmem:[%s2 + $0x2e0] sm:$0xff]
    %v4817 = vld [vmem:[%s2 + $0x2e8] sm:$0xff]
    %v4818 = vld [vmem:[%s2 + $0x2f0] sm:$0xff]
    %v4819 = vld [vmem:[%s2 + $0x2f8] sm:$0xff]
    %v4820 = vld [vmem:[%s2 + $0x300] sm:$0xff]
    %v4821 = vld [vmem:[%s2 + $0x308] sm:$0xff]
    %v4822 = vld [vmem:[%s2 + $0x310] sm:$0xff]
    %v4823 = vld [vmem:[%s2 + $0x318] sm:$0xff]
    %v4824 = vld [vmem:[%s2 + $0x320] sm:$0xff]
    %v4825 = vld [vmem:[%s2 + $0x328] sm:$0xff]
    %v4826 = vld [vmem:[%s2 + $0x330] sm:$0xff]
    %v4827 = vld [vmem:[%s2 + $0x338] sm:$0xff]
    %v4828 = vld [vmem:[%s2 + $0x340] sm:$0xff]
    %v4829 = vld [vmem:[%s2 + $0x348] sm:$0xff]
    %v4830 = vld [vmem:[%s2 + $0x350] sm:$0xff]
    %v4831 = vld [vmem:[%s2 + $0x358] sm:$0xff]
    %v4832 = vld [vmem:[%s2 + $0x360] sm:$0xff]
    %v4833 = vld [vmem:[%s2 + $0x368] sm:$0xff]
    %v4834 = vld [vmem:[%s2 + $0x370] sm:$0xff]
    %v4835 = vld [vmem:[%s2 + $0x378] sm:$0xff]
    %v4836 = vld [vmem:[%s2 + $0x380] sm:$0xff]
    %v4837 = vld [vmem:[%s2 + $0x388] sm:$0xff]
    %v4838 = vld [vmem:[%s2 + $0x390] sm:$0xff]
    %v4839 = vld [vmem:[%s2 + $0x398] sm:$0xff]
    %v4840 = vld [vmem:[%s2 + $0x3a0] sm:$0xff]
    %v4841 = vld [vmem:[%s2 + $0x3a8] sm:$0xff]
    %v4842 = vld [vmem:[%s2 + $0x3b0] sm:$0xff]
    %v4843 = vld [vmem:[%s2 + $0x3b8] sm:$0xff]
    %v4844 = vld [vmem:[%s2 + $0x3c0] sm:$0xff]
    %v4845 = vld [vmem:[%s2 + $0x3c8] sm:$0xff]
    %v4846 = vld [vmem:[%s2 + $0x3d0] sm:$0xff]
    %v4847 = vld [vmem:[%s2 + $0x3d8] sm:$0xff]
    %v4848 = vld [vmem:[%s2 + $0x3e0] sm:$0xff]
    %v4849 = vld [vmem:[%s2 + $0x3e8] sm:$0xff]
    %v4850 = vld [vmem:[%s2 + $0x3f0] sm:$0xff]
    %v4851 = vld [vmem:[%s2 + $0x3f8] sm:$0xff]
    %v4852 = vld [vmem:[%s2 + $0x400] sm:$0xff]
    %v4853 = vld [vmem:[%s2 + $0x408] sm:$0xff]
    %v4854 = vld [vmem:[%s2 + $0x410] sm:$0xff]
    %v4855 = vld [vmem:[%s2 + $0x418] sm:$0xff]
    %v4856 = vld [vmem:[%s2 + $0x420] sm:$0xff]
    %v4857 = vld [vmem:[%s2 + $0x428] sm:$0xff]
    %v4858 = vld [vmem:[%s2 + $0x430] sm:$0xff]
    %v4859 = vld [vmem:[%s2 + $0x438] sm:$0xff]
    %v4860 = vld [vmem:[%s2 + $0x440] sm:$0xff]
    %v4861 = vld [vmem:[%s2 + $0x448] sm:$0xff]
    %v4862 = vld [vmem:[%s2 + $0x450] sm:$0xff]
    %v4863 = vld [vmem:[%s2 + $0x458] sm:$0xff]
    %v4864 = vld [vmem:[%s2 + $0x460] sm:$0xff]
    %v4865 = vld [vmem:[%s2 + $0x468] sm:$0xff]
    %v4866 = vld [vmem:[%s2 + $0x470] sm:$0xff]
    %v4867 = vld [vmem:[%s2 + $0x478] sm:$0xff]
    %v4868 = vld [vmem:[%s2 + $0x480] sm:$0xff]
    %v4869 = vld [vmem:[%s2 + $0x488] sm:$0xff]
    %v4870 = vld [vmem:[%s2 + $0x490] sm:$0xff]
    %v4871 = vld [vmem:[%s2 + $0x498] sm:$0xff]
    %v4872 = vld [vmem:[%s2 + $0x4a0] sm:$0xff]
    %v4873 = vld [vmem:[%s2 + $0x4a8] sm:$0xff]
    %v4874 = vld [vmem:[%s2 + $0x4b0] sm:$0xff]
    %v4875 = vld [vmem:[%s2 + $0x4b8] sm:$0xff]
    %v4876 = vld [vmem:[%s2 + $0x4c0] sm:$0xff]
    %v4877 = vld [vmem:[%s2 + $0x4c8] sm:$0xff]
    %v4878 = vld [vmem:[%s2 + $0x4d0] sm:$0xff]
    %v4879 = vld [vmem:[%s2 + $0x4d8] sm:$0xff]
    %v4880 = vld [vmem:[%s2 + $0x4e0] sm:$0xff]
    %v4881 = vld [vmem:[%s2 + $0x4e8] sm:$0xff]
    %v4882 = vld [vmem:[%s2 + $0x4f0] sm:$0xff]
    %v4883 = vld [vmem:[%s2 + $0x4f8] sm:$0xff]
    %v4884 = vld [vmem:[%s2 + $0x500] sm:$0xff]
    %v4885 = vld [vmem:[%s2 + $0x508] sm:$0xff]
    %v4886 = vld [vmem:[%s2 + $0x510] sm:$0xff]
    %v4887 = vld [vmem:[%s2 + $0x518] sm:$0xff]
    %v4888 = vld [vmem:[%s2 + $0x520] sm:$0xff]
    %v4889 = vld [vmem:[%s2 + $0x528] sm:$0xff]
    %v4890 = vld [vmem:[%s2 + $0x530] sm:$0xff]
    %v4891 = vld [vmem:[%s2 + $0x538] sm:$0xff]
    %v4892 = vld [vmem:[%s2 + $0x540] sm:$0xff]
    %v4893 = vld [vmem:[%s2 + $0x548] sm:$0xff]
    %v4894 = vld [vmem:[%s2 + $0x550] sm:$0xff]
    %v4895 = vld [vmem:[%s2 + $0x558] sm:$0xff]
    %v4896 = vld [vmem:[%s2 + $0x560] sm:$0xff]
    %v4897 = vld [vmem:[%s2 + $0x568] sm:$0xff]
    %v4898 = vld [vmem:[%s2 + $0x570] sm:$0xff]
    %v4899 = vld [vmem:[%s2 + $0x578] sm:$0xff]
    %v4900 = vld [vmem:[%s2 + $0x580] sm:$0xff]
    %v4901 = vld [vmem:[%s2 + $0x588] sm:$0xff]
    %v4902 = vld [vmem:[%s2 + $0x590] sm:$0xff]
    %v4903 = vld [vmem:[%s2 + $0x598] sm:$0xff]
    %v4904 = vld [vmem:[%s2 + $0x5a0] sm:$0xff]
    %v4905 = vld [vmem:[%s2 + $0x5a8] sm:$0xff]
    %v4906 = vld [vmem:[%s2 + $0x5b0] sm:$0xff]
    %v4907 = vld [vmem:[%s2 + $0x5b8] sm:$0xff]
    %v4908 = vld [vmem:[%s2 + $0x5c0] sm:$0xff]
    %v4909 = vld [vmem:[%s2 + $0x5c8] sm:$0xff]
    %v4910 = vld [vmem:[%s2 + $0x5d0] sm:$0xff]
    %v4911 = vld [vmem:[%s2 + $0x5d8] sm:$0xff]
    %v4912 = vld [vmem:[%s2 + $0x5e0] sm:$0xff]
    %v4913 = vld [vmem:[%s2 + $0x5e8] sm:$0xff]
    %v4914 = vld [vmem:[%s2 + $0x5f0] sm:$0xff]
    %v4915 = vld [vmem:[%s2 + $0x5f8] sm:$0xff]
    %v4916 = vld [vmem:[%s2 + $0x600] sm:$0xff]
    %v4917 = vld [vmem:[%s2 + $0x608] sm:$0xff]
    %v4918 = vld [vmem:[%s2 + $0x610] sm:$0xff]
    %v4919 = vld [vmem:[%s2 + $0x618] sm:$0xff]
    %v4920 = vld [vmem:[%s2 + $0x620] sm:$0xff]
    %v4921 = vld [vmem:[%s2 + $0x628] sm:$0xff]
    %v4922 = vld [vmem:[%s2 + $0x630] sm:$0xff]
    %v4923 = vld [vmem:[%s2 + $0x638] sm:$0xff]
    %v4924 = vld [vmem:[%s2 + $0x640] sm:$0xff]
    %v4925 = vld [vmem:[%s2 + $0x648] sm:$0xff]
    %v4926 = vld [vmem:[%s2 + $0x650] sm:$0xff]
    %v4927 = vld [vmem:[%s2 + $0x658] sm:$0xff]
    %v4928 = vld [vmem:[%s2 + $0x660] sm:$0xff]
    %v4929 = vld [vmem:[%s2 + $0x668] sm:$0xff]
    %v4930 = vld [vmem:[%s2 + $0x670] sm:$0xff]
    %v4931 = vld [vmem:[%s2 + $0x678] sm:$0xff]
    %v4932 = vld [vmem:[%s2 + $0x680] sm:$0xff]
    %v4933 = vld [vmem:[%s2 + $0x688] sm:$0xff]
    %v4934 = vld [vmem:[%s2 + $0x690] sm:$0xff]
    %v4935 = vld [vmem:[%s2 + $0x698] sm:$0xff]
    %v4936 = vld [vmem:[%s2 + $0x6a0] sm:$0xff]
    %v4937 = vld [vmem:[%s2 + $0x6a8] sm:$0xff]
    %v4938 = vld [vmem:[%s2 + $0x6b0] sm:$0xff]
    %v4939 = vld [vmem:[%s2 + $0x6b8] sm:$0xff]
    %v4940 = vld [vmem:[%s2 + $0x6c0] sm:$0xff]
    %v4941 = vld [vmem:[%s2 + $0x6c8] sm:$0xff]
    %v4942 = vld [vmem:[%s2 + $0x6d0] sm:$0xff]
    %v4943 = vld [vmem:[%s2 + $0x6d8] sm:$0xff]
    %v4944 = vld [vmem:[%s2 + $0x6e0] sm:$0xff]
    %v4945 = vld [vmem:[%s2 + $0x6e8] sm:$0xff]
    %v4946 = vld [vmem:[%s2 + $0x6f0] sm:$0xff]
    %v4947 = vld [vmem:[%s2 + $0x6f8] sm:$0xff]
    %v4948 = vld [vmem:[%s2 + $0x700] sm:$0xff]
    %v4949 = vld [vmem:[%s2 + $0x708] sm:$0xff]
    %v4950 = vld [vmem:[%s2 + $0x710] sm:$0xff]
    %v4951 = vld [vmem:[%s2 + $0x718] sm:$0xff]
    %v4952 = vld [vmem:[%s2 + $0x720] sm:$0xff]
    %v4953 = vld [vmem:[%s2 + $0x728] sm:$0xff]
    %v4954 = vld [vmem:[%s2 + $0x730] sm:$0xff]
    %v4955 = vld [vmem:[%s2 + $0x738] sm:$0xff]
    %v4956 = vld [vmem:[%s2 + $0x740] sm:$0xff]
    %v4957 = vld [vmem:[%s2 + $0x748] sm:$0xff]
    %v4958 = vld [vmem:[%s2 + $0x750] sm:$0xff]
    %v4959 = vld [vmem:[%s2 + $0x758] sm:$0xff]
    %v4960 = vld [vmem:[%s2 + $0x760] sm:$0xff]
    %v4961 = vld [vmem:[%s2 + $0x768] sm:$0xff]
    %v4962 = vld [vmem:[%s2 + $0x770] sm:$0xff]
    %v4963 = vld [vmem:[%s2 + $0x778] sm:$0xff]
    %v4964 = vld [vmem:[%s2 + $0x780] sm:$0xff]
    %v4965 = vld [vmem:[%s2 + $0x788] sm:$0xff]
    %v4966 = vld [vmem:[%s2 + $0x790] sm:$0xff]
    %v4967 = vld [vmem:[%s2 + $0x798] sm:$0xff]
    %v4968 = vld [vmem:[%s2 + $0x7a0] sm:$0xff]
    %v4969 = vld [vmem:[%s2 + $0x7a8] sm:$0xff]
    %v4970 = vld [vmem:[%s2 + $0x7b0] sm:$0xff]
    %v4971 = vld [vmem:[%s2 + $0x7b8] sm:$0xff]
    %v4972 = vld [vmem:[%s2 + $0x7c0] sm:$0xff]
    %v4973 = vld [vmem:[%s2 + $0x7c8] sm:$0xff]
    %v4974 = vld [vmem:[%s2 + $0x7d0] sm:$0xff]
    %v4975 = vld [vmem:[%s2 + $0x7d8] sm:$0xff]
    %v4976 = vld [vmem:[%s2 + $0x7e0] sm:$0xff]
    %v4977 = vld [vmem:[%s2 + $0x7e8] sm:$0xff]
    %v4978 = vld [vmem:[%s2 + $0x7f0] sm:$0xff]
    %v4979 = vld [vmem:[%s2 + $0x7f8] sm:$0xff]
    %v4980 = vld [vmem:[%s2 + $0x800] sm:$0xff]
    %v4981 = vld [vmem:[%s2 + $0x808] sm:$0xff]
    %v4982 = vld [vmem:[%s2 + $0x810] sm:$0xff]
    %v4983 = vld [vmem:[%s2 + $0x818] sm:$0xff]
    %v4984 = vld [vmem:[%s2 + $0x820] sm:$0xff]
    %v4985 = vld [vmem:[%s2 + $0x828] sm:$0xff]
    %v4986 = vld [vmem:[%s2 + $0x830] sm:$0xff]
    %v4987 = vld [vmem:[%s2 + $0x838] sm:$0xff]
    %v4988 = vld [vmem:[%s2 + $0x840] sm:$0xff]
    %v4989 = vld [vmem:[%s2 + $0x848] sm:$0xff]
    %v4990 = vld [vmem:[%s2 + $0x850] sm:$0xff]
    %v4991 = vld [vmem:[%s2 + $0x858] sm:$0xff]
    %v4992 = vld [vmem:[%s2 + $0x860] sm:$0xff]
    %v4993 = vld [vmem:[%s2 + $0x868] sm:$0xff]
    %v4994 = vld [vmem:[%s2 + $0x870] sm:$0xff]
    %v4995 = vld [vmem:[%s2 + $0x878] sm:$0xff]
    %v4996 = vld [vmem:[%s2 + $0x880] sm:$0xff]
    %v4997 = vld [vmem:[%s2 + $0x888] sm:$0xff]
    %v4998 = vld [vmem:[%s2 + $0x890] sm:$0xff]
    %v4999 = vld [vmem:[%s2 + $0x898] sm:$0xff]
    %v5000 = vld [vmem:[%s2 + $0x8a0] sm:$0xff]
    %v5001 = vld [vmem:[%s2 + $0x8a8] sm:$0xff]
    %v5002 = vld [vmem:[%s2 + $0x8b0] sm:$0xff]
    %v5003 = vld [vmem:[%s2 + $0x8b8] sm:$0xff]
    %v5004 = vld [vmem:[%s2 + $0x8c0] sm:$0xff]
    %v5005 = vld [vmem:[%s2 + $0x8c8] sm:$0xff]
    %v5006 = vld [vmem:[%s2 + $0x8d0] sm:$0xff]
    %v5007 = vld [vmem:[%s2 + $0x8d8] sm:$0xff]
    %v5008 = vld [vmem:[%s2 + $0x8e0] sm:$0xff]
    %v5009 = vld [vmem:[%s2 + $0x8e8] sm:$0xff]
    %v5010 = vld [vmem:[%s2 + $0x8f0] sm:$0xff]
    %v5011 = vld [vmem:[%s2 + $0x8f8] sm:$0xff]
    %v5012 = vld [vmem:[%s2 + $0x900] sm:$0xff]
    %v5013 = vld [vmem:[%s2 + $0x908] sm:$0xff]
    %v5014 = vld [vmem:[%s2 + $0x910] sm:$0xff]
    %v5015 = vld [vmem:[%s2 + $0x918] sm:$0xff]
    %v5016 = vld [vmem:[%s2 + $0x920] sm:$0xff]
    %v5017 = vld [vmem:[%s2 + $0x928] sm:$0xff]
    %v5018 = vld [vmem:[%s2 + $0x930] sm:$0xff]
    %v5019 = vld [vmem:[%s2 + $0x938] sm:$0xff]
    %v5020 = vld [vmem:[%s2 + $0x940] sm:$0xff]
    %v5021 = vld [vmem:[%s2 + $0x948] sm:$0xff]
    %v5022 = vld [vmem:[%s2 + $0x950] sm:$0xff]
    %v5023 = vld [vmem:[%s2 + $0x958] sm:$0xff]
    %v5024 = vld [vmem:[%s2 + $0x960] sm:$0xff]
    %v5025 = vld [vmem:[%s2 + $0x968] sm:$0xff]
    %v5026 = vld [vmem:[%s2 + $0x970] sm:$0xff]
    %v5027 = vld [vmem:[%s2 + $0x978] sm:$0xff]
    %v5028 = vld [vmem:[%s2 + $0x980] sm:$0xff]
    %v5029 = vld [vmem:[%s2 + $0x988] sm:$0xff]
    %v5030 = vld [vmem:[%s2 + $0x990] sm:$0xff]
    %v5031 = vld [vmem:[%s2 + $0x998] sm:$0xff]
    %v5032 = vld [vmem:[%s2 + $0x9a0] sm:$0xff]
    %v5033 = vld [vmem:[%s2 + $0x9a8] sm:$0xff]
    %v5034 = vld [vmem:[%s2 + $0x9b0] sm:$0xff]
    %v5035 = vld [vmem:[%s2 + $0x9b8] sm:$0xff]
    %v5036 = vld [vmem:[%s2 + $0x9c0] sm:$0xff]
    %v5037 = vld [vmem:[%s2 + $0x9c8] sm:$0xff]
    %v5038 = vld [vmem:[%s2 + $0x9d0] sm:$0xff]
    %v5039 = vld [vmem:[%s2 + $0x9d8] sm:$0xff]
    %v5040 = vld [vmem:[%s2 + $0x9e0] sm:$0xff]
    %v5041 = vld [vmem:[%s2 + $0x9e8] sm:$0xff]
    %v5042 = vld [vmem:[%s2 + $0x9f0] sm:$0xff]
    %v5043 = vld [vmem:[%s2 + $0x9f8] sm:$0xff]
    %v5044 = vld [vmem:[%s2 + $0xa00] sm:$0xff]
    %v5045 = vld [vmem:[%s2 + $0xa08] sm:$0xff]
    %v5046 = vld [vmem:[%s2 + $0xa10] sm:$0xff]
    %v5047 = vld [vmem:[%s2 + $0xa18] sm:$0xff]
    %v5048 = vld [vmem:[%s2 + $0xa20] sm:$0xff]
    %v5049 = vld [vmem:[%s2 + $0xa28] sm:$0xff]
    %v5050 = vld [vmem:[%s2 + $0xa30] sm:$0xff]
    %v5051 = vld [vmem:[%s2 + $0xa38] sm:$0xff]
    %v5052 = vld [vmem:[%s2 + $0xa40] sm:$0xff]
    %v5053 = vld [vmem:[%s2 + $0xa48] sm:$0xff]
    %v5054 = vld [vmem:[%s2 + $0xa50] sm:$0xff]
    %v5055 = vld [vmem:[%s2 + $0xa58] sm:$0xff]
    %v5056 = vld [vmem:[%s2 + $0xa60] sm:$0xff]
    %v5057 = vld [vmem:[%s2 + $0xa68] sm:$0xff]
    %v5058 = vld [vmem:[%s2 + $0xa70] sm:$0xff]
    %v5059 = vld [vmem:[%s2 + $0xa78] sm:$0xff]
    %v5060 = vld [vmem:[%s2 + $0xa80] sm:$0xff]
    %v5061 = vld [vmem:[%s2 + $0xa88] sm:$0xff]
    %v5062 = vld [vmem:[%s2 + $0xa90] sm:$0xff]
    %v5063 = vld [vmem:[%s2 + $0xa98] sm:$0xff]
    %v5064 = vld [vmem:[%s2 + $0xaa0] sm:$0xff]
    %v5065 = vld [vmem:[%s2 + $0xaa8] sm:$0xff]
    %v5066 = vld [vmem:[%s2 + $0xab0] sm:$0xff]
    %v5067 = vld [vmem:[%s2 + $0xab8] sm:$0xff]
    %v5068 = vld [vmem:[%s2 + $0xac0] sm:$0xff]
    %v5069 = vld [vmem:[%s2 + $0xac8] sm:$0xff]
    %v5070 = vld [vmem:[%s2 + $0xad0] sm:$0xff]
    %v5071 = vld [vmem:[%s2 + $0xad8] sm:$0xff]
    %v5072 = vld [vmem:[%s2 + $0xae0] sm:$0xff]
    %v5073 = vld [vmem:[%s2 + $0xae8] sm:$0xff]
    %v5074 = vld [vmem:[%s2 + $0xaf0] sm:$0xff]
    %v5075 = vld [vmem:[%s2 + $0xaf8] sm:$0xff]
    %v5076 = vld [vmem:[%s2 + $0xb00] sm:$0xff]
    %v5077 = vld [vmem:[%s2 + $0xb08] sm:$0xff]
    %v5078 = vld [vmem:[%s2 + $0xb10] sm:$0xff]
    %v5079 = vld [vmem:[%s2 + $0xb18] sm:$0xff]
    %v5080 = vld [vmem:[%s2 + $0xb20] sm:$0xff]
    %v5081 = vld [vmem:[%s2 + $0xb28] sm:$0xff]
    %v5082 = vld [vmem:[%s2 + $0xb30] sm:$0xff]
    %v5083 = vld [vmem:[%s2 + $0xb38] sm:$0xff]
    %v5084 = vld [vmem:[%s2 + $0xb40] sm:$0xff]
    %v5085 = vld [vmem:[%s2 + $0xb48] sm:$0xff]
    %v5086 = vld [vmem:[%s2 + $0xb50] sm:$0xff]
    %v5087 = vld [vmem:[%s2 + $0xb58] sm:$0xff]
    %v5088 = vld [vmem:[%s2 + $0xb60] sm:$0xff]
    %v5089 = vld [vmem:[%s2 + $0xb68] sm:$0xff]
    %v5090 = vld [vmem:[%s2 + $0xb70] sm:$0xff]
    %v5091 = vld [vmem:[%s2 + $0xb78] sm:$0xff]
    %v5092 = vld [vmem:[%s2 + $0xb80] sm:$0xff]
    %v5093 = vld [vmem:[%s2 + $0xb88] sm:$0xff]
    %v5094 = vld [vmem:[%s2 + $0xb90] sm:$0xff]
    %v5095 = vld [vmem:[%s2 + $0xb98] sm:$0xff]
    %v5096 = vld [vmem:[%s2 + $0xba0] sm:$0xff]
    %v5097 = vld [vmem:[%s2 + $0xba8] sm:$0xff]
    %v5098 = vld [vmem:[%s2 + $0xbb0] sm:$0xff]
    %v5099 = vld [vmem:[%s2 + $0xbb8] sm:$0xff]
    %v5100 = vld [vmem:[%s2 + $0xbc0] sm:$0xff]
    %v5101 = vld [vmem:[%s2 + $0xbc8] sm:$0xff]
    %v5102 = vld [vmem:[%s2 + $0xbd0] sm:$0xff]
    %v5103 = vld [vmem:[%s2 + $0xbd8] sm:$0xff]
    %v5104 = vld [vmem:[%s2 + $0xbe0] sm:$0xff]
    %v5105 = vld [vmem:[%s2 + $0xbe8] sm:$0xff]
    %v5106 = vld [vmem:[%s2 + $0xbf0] sm:$0xff]
    %v5107 = vld [vmem:[%s2 + $0xbf8] sm:$0xff]
    %v5108 = vld [vmem:[%s2 + $0xc00] sm:$0xff]
    %v5109 = vld [vmem:[%s2 + $0xc08] sm:$0xff]
    %v5110 = vld [vmem:[%s2 + $0xc10] sm:$0xff]
    %v5111 = vld [vmem:[%s2 + $0xc18] sm:$0xff]
    %v5112 = vld [vmem:[%s2 + $0xc20] sm:$0xff]
    %v5113 = vld [vmem:[%s2 + $0xc28] sm:$0xff]
    %v5114 = vld [vmem:[%s2 + $0xc30] sm:$0xff]
    %v5115 = vld [vmem:[%s2 + $0xc38] sm:$0xff]
    %v5116 = vld [vmem:[%s2 + $0xc40] sm:$0xff]
    %v5117 = vld [vmem:[%s2 + $0xc48] sm:$0xff]
    %v5118 = vld [vmem:[%s2 + $0xc50] sm:$0xff]
    %v5119 = vld [vmem:[%s2 + $0xc58] sm:$0xff]
    %v5120 = vld [vmem:[%s2 + $0xc60] sm:$0xff]
    %v5121 = vld [vmem:[%s2 + $0xc68] sm:$0xff]
    %v5122 = vld [vmem:[%s2 + $0xc70] sm:$0xff]
    %v5123 = vld [vmem:[%s2 + $0xc78] sm:$0xff]
    %v5124 = vld [vmem:[%s2 + $0xc80] sm:$0xff]
    %v5125 = vld [vmem:[%s2 + $0xc88] sm:$0xff]
    %v5126 = vld [vmem:[%s2 + $0xc90] sm:$0xff]
    %v5127 = vld [vmem:[%s2 + $0xc98] sm:$0xff]
    %v5128 = vld [vmem:[%s2 + $0xca0] sm:$0xff]
    %v5129 = vld [vmem:[%s2 + $0xca8] sm:$0xff]
    %v5130 = vld [vmem:[%s2 + $0xcb0] sm:$0xff]
    %v5131 = vld [vmem:[%s2 + $0xcb8] sm:$0xff]
    %v5132 = vld [vmem:[%s2 + $0xcc0] sm:$0xff]
    %v5133 = vld [vmem:[%s2 + $0xcc8] sm:$0xff]
    %v5134 = vld [vmem:[%s2 + $0xcd0] sm:$0xff]
    %v5135 = vld [vmem:[%s2 + $0xcd8] sm:$0xff]
    %v5136 = vld [vmem:[%s2 + $0xce0] sm:$0xff]
    %v5137 = vld [vmem:[%s2 + $0xce8] sm:$0xff]
    %v5138 = vld [vmem:[%s2 + $0xcf0] sm:$0xff]
    %v5139 = vld [vmem:[%s2 + $0xcf8] sm:$0xff]
    %v5140 = vld [vmem:[%s2 + $0xd00] sm:$0xff]
    %v5141 = vld [vmem:[%s2 + $0xd08] sm:$0xff]
    %v5142 = vld [vmem:[%s2 + $0xd10] sm:$0xff]
    %v5143 = vld [vmem:[%s2 + $0xd18] sm:$0xff]
    %v5144 = vld [vmem:[%s2 + $0xd20] sm:$0xff]
    %v5145 = vld [vmem:[%s2 + $0xd28] sm:$0xff]
    %v5146 = vld [vmem:[%s2 + $0xd30] sm:$0xff]
    %v5147 = vld [vmem:[%s2 + $0xd38] sm:$0xff]
    %v5148 = vld [vmem:[%s2 + $0xd40] sm:$0xff]
    %v5149 = vld [vmem:[%s2 + $0xd48] sm:$0xff]
    %v5150 = vld [vmem:[%s2 + $0xd50] sm:$0xff]
    %v5151 = vld [vmem:[%s2 + $0xd58] sm:$0xff]
    %v5152 = vld [vmem:[%s2 + $0xd60] sm:$0xff]
    %v5153 = vld [vmem:[%s2 + $0xd68] sm:$0xff]
    %v5154 = vld [vmem:[%s2 + $0xd70] sm:$0xff]
    %v5155 = vld [vmem:[%s2 + $0xd78] sm:$0xff]
    %v5156 = vld [vmem:[%s2 + $0xd80] sm:$0xff]
    %v5157 = vld [vmem:[%s2 + $0xd88] sm:$0xff]
    %v5158 = vld [vmem:[%s2 + $0xd90] sm:$0xff]
    %v5159 = vld [vmem:[%s2 + $0xd98] sm:$0xff]
    %v5160 = vld [vmem:[%s2 + $0xda0] sm:$0xff]
    %v5161 = vld [vmem:[%s2 + $0xda8] sm:$0xff]
    %v5162 = vld [vmem:[%s2 + $0xdb0] sm:$0xff]
    %v5163 = vld [vmem:[%s2 + $0xdb8] sm:$0xff]
    %v5164 = vld [vmem:[%s2 + $0xdc0] sm:$0xff]
    %v5165 = vld [vmem:[%s2 + $0xdc8] sm:$0xff]
    %v5166 = vld [vmem:[%s2 + $0xdd0] sm:$0xff]
    %v5167 = vld [vmem:[%s2 + $0xdd8] sm:$0xff]
    %v5168 = vld [vmem:[%s2 + $0xde0] sm:$0xff]
    %v5169 = vld [vmem:[%s2 + $0xde8] sm:$0xff]
    %v5170 = vld [vmem:[%s2 + $0xdf0] sm:$0xff]
    %v5171 = vld [vmem:[%s2 + $0xdf8] sm:$0xff]
    %v5172 = vld [vmem:[%s2 + $0xe00] sm:$0xff]
    %v5173 = vld [vmem:[%s2 + $0xe08] sm:$0xff]
    %v5174 = vld [vmem:[%s2 + $0xe10] sm:$0xff]
    %v5175 = vld [vmem:[%s2 + $0xe18] sm:$0xff]
    %v5176 = vld [vmem:[%s2 + $0xe20] sm:$0xff]
    %v5177 = vld [vmem:[%s2 + $0xe28] sm:$0xff]
    %v5178 = vld [vmem:[%s2 + $0xe30] sm:$0xff]
    %v5179 = vld [vmem:[%s2 + $0xe38] sm:$0xff]
    %v5180 = vld [vmem:[%s2 + $0xe40] sm:$0xff]
    %v5181 = vld [vmem:[%s2 + $0xe48] sm:$0xff]
    %v5182 = vld [vmem:[%s2 + $0xe50] sm:$0xff]
    %v5183 = vld [vmem:[%s2 + $0xe58] sm:$0xff]
    %v5184 = vld [vmem:[%s2 + $0xe60] sm:$0xff]
    %v5185 = vld [vmem:[%s2 + $0xe68] sm:$0xff]
    %v5186 = vld [vmem:[%s2 + $0xe70] sm:$0xff]
    %v5187 = vld [vmem:[%s2 + $0xe78] sm:$0xff]
    %v5188 = vld [vmem:[%s2 + $0xe80] sm:$0xff]
    %v5189 = vld [vmem:[%s2 + $0xe88] sm:$0xff]
    %v5190 = vld [vmem:[%s2 + $0xe90] sm:$0xff]
    %v5191 = vld [vmem:[%s2 + $0xe98] sm:$0xff]
    %v5192 = vld [vmem:[%s2 + $0xea0] sm:$0xff]
    %v5193 = vld [vmem:[%s2 + $0xea8] sm:$0xff]
    %v5194 = vld [vmem:[%s2 + $0xeb0] sm:$0xff]
    %v5195 = vld [vmem:[%s2 + $0xeb8] sm:$0xff]
    %v5196 = vld [vmem:[%s2 + $0xec0] sm:$0xff]
    %v5197 = vld [vmem:[%s2 + $0xec8] sm:$0xff]
    %v5198 = vld [vmem:[%s2 + $0xed0] sm:$0xff]
    %v5199 = vld [vmem:[%s2 + $0xed8] sm:$0xff]
    %v5200 = vld [vmem:[%s2 + $0xee0] sm:$0xff]
    %v5201 = vld [vmem:[%s2 + $0xee8] sm:$0xff]
    %v5202 = vld [vmem:[%s2 + $0xef0] sm:$0xff]
    %v5203 = vld [vmem:[%s2 + $0xef8] sm:$0xff]
    %v5204 = vld [vmem:[%s2 + $0xf00] sm:$0xff]
    %v5205 = vld [vmem:[%s2 + $0xf08] sm:$0xff]
    %v5206 = vld [vmem:[%s2 + $0xf10] sm:$0xff]
    %v5207 = vld [vmem:[%s2 + $0xf18] sm:$0xff]
    %v5208 = vld [vmem:[%s2 + $0xf20] sm:$0xff]
    %v5209 = vld [vmem:[%s2 + $0xf28] sm:$0xff]
    %v5210 = vld [vmem:[%s2 + $0xf30] sm:$0xff]
    %v5211 = vld [vmem:[%s2 + $0xf38] sm:$0xff]
    %v5212 = vld [vmem:[%s2 + $0xf40] sm:$0xff]
    %v5213 = vld [vmem:[%s2 + $0xf48] sm:$0xff]
    %v5214 = vld [vmem:[%s2 + $0xf50] sm:$0xff]
    %v5215 = vld [vmem:[%s2 + $0xf58] sm:$0xff]
    %v5216 = vld [vmem:[%s2 + $0xf60] sm:$0xff]
    %v5217 = vld [vmem:[%s2 + $0xf68] sm:$0xff]
    %v5218 = vld [vmem:[%s2 + $0xf70] sm:$0xff]
    %v5219 = vld [vmem:[%s2 + $0xf78] sm:$0xff]
    %v5220 = vld [vmem:[%s2 + $0xf80] sm:$0xff]
    %v5221 = vld [vmem:[%s2 + $0xf88] sm:$0xff]
    %v5222 = vld [vmem:[%s2 + $0xf90] sm:$0xff]
    %v5223 = vld [vmem:[%s2 + $0xf98] sm:$0xff]
    %v5224 = vld [vmem:[%s2 + $0xfa0] sm:$0xff]
    %v5225 = vld [vmem:[%s2 + $0xfa8] sm:$0xff]
    %v5226 = vld [vmem:[%s2 + $0xfb0] sm:$0xff]
    %v5227 = vld [vmem:[%s2 + $0xfb8] sm:$0xff]
    %v5228 = vld [vmem:[%s2 + $0xfc0] sm:$0xff]
    %v5229 = vld [vmem:[%s2 + $0xfc8] sm:$0xff]
    %v5230 = vld [vmem:[%s2 + $0xfd0] sm:$0xff]
    %v5231 = vld [vmem:[%s2 + $0xfd8] sm:$0xff]
    %v5232 = vld [vmem:[%s2 + $0xfe0] sm:$0xff]
    %v5233 = vld [vmem:[%s2 + $0xfe8] sm:$0xff]
    %v5234 = vld [vmem:[%s2 + $0xff0] sm:$0xff]
    %v5235 = vld [vmem:[%s2 + $0xff8] sm:$0xff]
    %v5236 = vld [vmem:[%s2 + $0x1000] sm:$0xff]
    %v5237 = vld [vmem:[%s2 + $0x1008] sm:$0xff]
    %v5238 = vld [vmem:[%s2 + $0x1010] sm:$0xff]
    %v5239 = vld [vmem:[%s2 + $0x1018] sm:$0xff]
    %v5240 = vld [vmem:[%s2 + $0x1020] sm:$0xff]
    %v5241 = vld [vmem:[%s2 + $0x1028] sm:$0xff]
    %v5242 = vld [vmem:[%s2 + $0x1030] sm:$0xff]
    %v5243 = vld [vmem:[%s2 + $0x1038] sm:$0xff]
    %v5244 = vld [vmem:[%s2 + $0x1040] sm:$0xff]
    %v5245 = vld [vmem:[%s2 + $0x1048] sm:$0xff]
    %v5246 = vld [vmem:[%s2 + $0x1050] sm:$0xff]
    %v5247 = vld [vmem:[%s2 + $0x1058] sm:$0xff]
    %v5248 = vld [vmem:[%s2 + $0x1060] sm:$0xff]
    %v5249 = vld [vmem:[%s2 + $0x1068] sm:$0xff]
    %v5250 = vld [vmem:[%s2 + $0x1070] sm:$0xff]
    %v5251 = vld [vmem:[%s2 + $0x1078] sm:$0xff]
    %v5252 = vld [vmem:[%s2 + $0x1080] sm:$0xff]
    %v5253 = vld [vmem:[%s2 + $0x1088] sm:$0xff]
    %v5254 = vld [vmem:[%s2 + $0x1090] sm:$0xff]
    %v5255 = vld [vmem:[%s2 + $0x1098] sm:$0xff]
    %v5256 = vld [vmem:[%s2 + $0x10a0] sm:$0xff]
    %v5257 = vld [vmem:[%s2 + $0x10a8] sm:$0xff]
    %v5258 = vld [vmem:[%s2 + $0x10b0] sm:$0xff]
    %v5259 = vld [vmem:[%s2 + $0x10b8] sm:$0xff]
    %v5260 = vld [vmem:[%s2 + $0x10c0] sm:$0xff]
    %v5261 = vld [vmem:[%s2 + $0x10c8] sm:$0xff]
    %v5262 = vld [vmem:[%s2 + $0x10d0] sm:$0xff]
    %v5263 = vld [vmem:[%s2 + $0x10d8] sm:$0xff]
    %v5264 = vld [vmem:[%s2 + $0x10e0] sm:$0xff]
    %v5265 = vld [vmem:[%s2 + $0x10e8] sm:$0xff]
    %v5266 = vld [vmem:[%s2 + $0x10f0] sm:$0xff]
    %v5267 = vld [vmem:[%s2 + $0x10f8] sm:$0xff]
    %v5268 = vld [vmem:[%s2 + $0x1100] sm:$0xff]
    %v5269 = vld [vmem:[%s2 + $0x1108] sm:$0xff]
    %v5270 = vld [vmem:[%s2 + $0x1110] sm:$0xff]
    %v5271 = vld [vmem:[%s2 + $0x1118] sm:$0xff]
    %v5272 = vld [vmem:[%s2 + $0x1120] sm:$0xff]
    %v5273 = vld [vmem:[%s2 + $0x1128] sm:$0xff]
    %v5274 = vld [vmem:[%s2 + $0x1130] sm:$0xff]
    %v5275 = vld [vmem:[%s2 + $0x1138] sm:$0xff]
    %v5276 = vld [vmem:[%s2 + $0x1140] sm:$0xff]
    %v5277 = vld [vmem:[%s2 + $0x1148] sm:$0xff]
    %v5278 = vld [vmem:[%s2 + $0x1150] sm:$0xff]
    %v5279 = vld [vmem:[%s2 + $0x1158] sm:$0xff]
    %v5280 = vld [vmem:[%s2 + $0x1160] sm:$0xff]
    %v5281 = vld [vmem:[%s2 + $0x1168] sm:$0xff]
    %v5282 = vld [vmem:[%s2 + $0x1170] sm:$0xff]
    %v5283 = vld [vmem:[%s2 + $0x1178] sm:$0xff]
    %v5284 = vld [vmem:[%s2 + $0x1180] sm:$0xff]
    %v5285 = vld [vmem:[%s2 + $0x1188] sm:$0xff]
    %v5286 = vld [vmem:[%s2 + $0x1190] sm:$0xff]
    %v5287 = vld [vmem:[%s2 + $0x1198] sm:$0xff]
    %v5288 = vld [vmem:[%s2 + $0x11a0] sm:$0xff]
    %v5289 = vld [vmem:[%s2 + $0x11a8] sm:$0xff]
    %v5290 = vld [vmem:[%s2 + $0x11b0] sm:$0xff]
    %v5291 = vld [vmem:[%s2 + $0x11b8] sm:$0xff]
    %v5292 = vld [vmem:[%s2 + $0x11c0] sm:$0xff]
    %v5293 = vld [vmem:[%s2 + $0x11c8] sm:$0xff]
    %v5294 = vld [vmem:[%s2 + $0x11d0] sm:$0xff]
    %v5295 = vld [vmem:[%s2 + $0x11d8] sm:$0xff]
    %v5296 = vld [vmem:[%s2 + $0x11e0] sm:$0xff]
    %v5297 = vld [vmem:[%s2 + $0x11e8] sm:$0xff]
    %v5298 = vld [vmem:[%s2 + $0x11f0] sm:$0xff]
    %v5299 = vld [vmem:[%s2 + $0x11f8] sm:$0xff]
    %v5300 = vld [vmem:[%s2 + $0x1200] sm:$0xff]
    %v5301 = vld [vmem:[%s2 + $0x1208] sm:$0xff]
    %v5302 = vld [vmem:[%s2 + $0x1210] sm:$0xff]
    %v5303 = vld [vmem:[%s2 + $0x1218] sm:$0xff]
    %v5304 = vld [vmem:[%s2 + $0x1220] sm:$0xff]
    %v5305 = vld [vmem:[%s2 + $0x1228] sm:$0xff]
    %v5306 = vld [vmem:[%s2 + $0x1230] sm:$0xff]
    %v5307 = vld [vmem:[%s2 + $0x1238] sm:$0xff]
    %v5308 = vld [vmem:[%s2 + $0x1240] sm:$0xff]
    %v5309 = vld [vmem:[%s2 + $0x1248] sm:$0xff]
    %v5310 = vld [vmem:[%s2 + $0x1250] sm:$0xff]
    %v5311 = vld [vmem:[%s2 + $0x1258] sm:$0xff]
    %v5312 = vld [vmem:[%s2 + $0x1260] sm:$0xff]
    %v5313 = vld [vmem:[%s2 + $0x1268] sm:$0xff]
    %v5314 = vld [vmem:[%s2 + $0x1270] sm:$0xff]
    %v5315 = vld [vmem:[%s2 + $0x1278] sm:$0xff]
    %v5316 = vld [vmem:[%s2 + $0x1280] sm:$0xff]
    %v5317 = vld [vmem:[%s2 + $0x1288] sm:$0xff]
    %v5318 = vld [vmem:[%s2 + $0x1290] sm:$0xff]
    %v5319 = vld [vmem:[%s2 + $0x1298] sm:$0xff]
    %v5320 = vld [vmem:[%s2 + $0x12a0] sm:$0xff]
    %v5321 = vld [vmem:[%s2 + $0x12a8] sm:$0xff]
    %v5322 = vld [vmem:[%s2 + $0x12b0] sm:$0xff]
    %v5323 = vld [vmem:[%s2 + $0x12b8] sm:$0xff]
    %v5324 = vld [vmem:[%s2 + $0x12c0] sm:$0xff]
    %v5325 = vld [vmem:[%s2 + $0x12c8] sm:$0xff]
    %v5326 = vld [vmem:[%s2 + $0x12d0] sm:$0xff]
    %v5327 = vld [vmem:[%s2 + $0x12d8] sm:$0xff]
    %v5328 = vld [vmem:[%s2 + $0x12e0] sm:$0xff]
    %v5329 = vld [vmem:[%s2 + $0x12e8] sm:$0xff]
    %v5330 = vld [vmem:[%s2 + $0x12f0] sm:$0xff]
    %v5331 = vld [vmem:[%s2 + $0x12f8] sm:$0xff]
    %v5332 = vld [vmem:[%s2 + $0x1300] sm:$0xff]
    %v5333 = vld [vmem:[%s2 + $0x1308] sm:$0xff]
    %v5334 = vld [vmem:[%s2 + $0x1310] sm:$0xff]
    %v5335 = vld [vmem:[%s2 + $0x1318] sm:$0xff]
    %v5336 = vld [vmem:[%s2 + $0x1320] sm:$0xff]
    %v5337 = vld [vmem:[%s2 + $0x1328] sm:$0xff]
    %v5338 = vld [vmem:[%s2 + $0x1330] sm:$0xff]
    %v5339 = vld [vmem:[%s2 + $0x1338] sm:$0xff]
    %v5340 = vld [vmem:[%s2 + $0x1340] sm:$0xff]
    %v5341 = vld [vmem:[%s2 + $0x1348] sm:$0xff]
    %v5342 = vld [vmem:[%s2 + $0x1350] sm:$0xff]
    %v5343 = vld [vmem:[%s2 + $0x1358] sm:$0xff]
    %v5344 = vld [vmem:[%s2 + $0x1360] sm:$0xff]
    %v5345 = vld [vmem:[%s2 + $0x1368] sm:$0xff]
    %v5346 = vld [vmem:[%s2 + $0x1370] sm:$0xff]
    %v5347 = vld [vmem:[%s2 + $0x1378] sm:$0xff]
    %v5348 = vld [vmem:[%s2 + $0x1380] sm:$0xff]
    %v5349 = vld [vmem:[%s2 + $0x1388] sm:$0xff]
    %v5350 = vld [vmem:[%s2 + $0x1390] sm:$0xff]
    %v5351 = vld [vmem:[%s2 + $0x1398] sm:$0xff]
    %v5352 = vld [vmem:[%s2 + $0x13a0] sm:$0xff]
    %v5353 = vld [vmem:[%s2 + $0x13a8] sm:$0xff]
    %v5354 = vld [vmem:[%s2 + $0x13b0] sm:$0xff]
    %v5355 = vld [vmem:[%s2 + $0x13b8] sm:$0xff]
    %v5356 = vld [vmem:[%s2 + $0x13c0] sm:$0xff]
    %v5357 = vld [vmem:[%s2 + $0x13c8] sm:$0xff]
    %v5358 = vld [vmem:[%s2 + $0x13d0] sm:$0xff]
    %v5359 = vld [vmem:[%s2 + $0x13d8] sm:$0xff]
    %v5360 = vld [vmem:[%s2 + $0x13e0] sm:$0xff]
    %v5361 = vld [vmem:[%s2 + $0x13e8] sm:$0xff]
    %v5362 = vld [vmem:[%s2 + $0x13f0] sm:$0xff]
    %v5363 = vld [vmem:[%s2 + $0x13f8] sm:$0xff]
    %v5364 = vld [vmem:[%s2 + $0x1400] sm:$0xff]
    %v5365 = vld [vmem:[%s2 + $0x1408] sm:$0xff]
    %v5366 = vld [vmem:[%s2 + $0x1410] sm:$0xff]
    %v5367 = vld [vmem:[%s2 + $0x1418] sm:$0xff]
    %v5368 = vld [vmem:[%s2 + $0x1420] sm:$0xff]
    %v5369 = vld [vmem:[%s2 + $0x1428] sm:$0xff]
    %v5370 = vld [vmem:[%s2 + $0x1430] sm:$0xff]
    %v5371 = vld [vmem:[%s2 + $0x1438] sm:$0xff]
    %v5372 = vld [vmem:[%s2 + $0x1440] sm:$0xff]
    %v5373 = vld [vmem:[%s2 + $0x1448] sm:$0xff]
    %v5374 = vld [vmem:[%s2 + $0x1450] sm:$0xff]
    %v5375 = vld [vmem:[%s2 + $0x1458] sm:$0xff]
    %v5376 = vld [vmem:[%s2 + $0x1460] sm:$0xff]
    %v5377 = vld [vmem:[%s2 + $0x1468] sm:$0xff]
    %v5378 = vld [vmem:[%s2 + $0x1470] sm:$0xff]
    %v5379 = vld [vmem:[%s2 + $0x1478] sm:$0xff]
    %v5380 = vld [vmem:[%s2 + $0x1480] sm:$0xff]
    %v5381 = vld [vmem:[%s2 + $0x1488] sm:$0xff]
    %v5382 = vld [vmem:[%s2 + $0x1490] sm:$0xff]
    %v5383 = vld [vmem:[%s2 + $0x1498] sm:$0xff]
    %v5384 = vld [vmem:[%s2 + $0x14a0] sm:$0xff]
    %v5385 = vld [vmem:[%s2 + $0x14a8] sm:$0xff]
    %v5386 = vld [vmem:[%s2 + $0x14b0] sm:$0xff]
    %v5387 = vld [vmem:[%s2 + $0x14b8] sm:$0xff]
    %v5388 = vld [vmem:[%s2 + $0x14c0] sm:$0xff]
    %v5389 = vld [vmem:[%s2 + $0x14c8] sm:$0xff]
    %v5390 = vld [vmem:[%s2 + $0x14d0] sm:$0xff]
    %v5391 = vld [vmem:[%s2 + $0x14d8] sm:$0xff]
    %v5392 = vld [vmem:[%s2 + $0x14e0] sm:$0xff]
    %v5393 = vld [vmem:[%s2 + $0x14e8] sm:$0xff]
    %v5394 = vld [vmem:[%s2 + $0x14f0] sm:$0xff]
    %v5395 = vld [vmem:[%s2 + $0x14f8] sm:$0xff]
    %v5396 = vld [vmem:[%s2 + $0x1500] sm:$0xff]
    %v5397 = vld [vmem:[%s2 + $0x1508] sm:$0xff]
    %v5398 = vld [vmem:[%s2 + $0x1510] sm:$0xff]
    %v5399 = vld [vmem:[%s2 + $0x1518] sm:$0xff]
    %v5400 = vld [vmem:[%s2 + $0x1520] sm:$0xff]
    %v5401 = vld [vmem:[%s2 + $0x1528] sm:$0xff]
    %v5402 = vld [vmem:[%s2 + $0x1530] sm:$0xff]
    %v5403 = vld [vmem:[%s2 + $0x1538] sm:$0xff]
    %v5404 = vld [vmem:[%s2 + $0x1540] sm:$0xff]
    %v5405 = vld [vmem:[%s2 + $0x1548] sm:$0xff]
    %v5406 = vld [vmem:[%s2 + $0x1550] sm:$0xff]
    %v5407 = vld [vmem:[%s2 + $0x1558] sm:$0xff]
    %v5408 = vld [vmem:[%s2 + $0x1560] sm:$0xff]
    %v5409 = vld [vmem:[%s2 + $0x1568] sm:$0xff]
    %v5410 = vld [vmem:[%s2 + $0x1570] sm:$0xff]
    %v5411 = vld [vmem:[%s2 + $0x1578] sm:$0xff]
    %v5412 = vld [vmem:[%s2 + $0x1580] sm:$0xff]
    %v5413 = vld [vmem:[%s2 + $0x1588] sm:$0xff]
    %v5414 = vld [vmem:[%s2 + $0x1590] sm:$0xff]
    %v5415 = vld [vmem:[%s2 + $0x1598] sm:$0xff]
    %v5416 = vld [vmem:[%s2 + $0x15a0] sm:$0xff]
    %v5417 = vld [vmem:[%s2 + $0x15a8] sm:$0xff]
    %v5418 = vld [vmem:[%s2 + $0x15b0] sm:$0xff]
    %v5419 = vld [vmem:[%s2 + $0x15b8] sm:$0xff]
    %v5420 = vld [vmem:[%s2 + $0x15c0] sm:$0xff]
    %v5421 = vld [vmem:[%s2 + $0x15c8] sm:$0xff]
    %v5422 = vld [vmem:[%s2 + $0x15d0] sm:$0xff]
    %v5423 = vld [vmem:[%s2 + $0x15d8] sm:$0xff]
    %v5424 = vld [vmem:[%s2 + $0x15e0] sm:$0xff]
    %v5425 = vld [vmem:[%s2 + $0x15e8] sm:$0xff]
    %v5426 = vld [vmem:[%s2 + $0x15f0] sm:$0xff]
    %v5427 = vld [vmem:[%s2 + $0x15f8] sm:$0xff]
    %v5428 = vld [vmem:[%s2 + $0x1600] sm:$0xff]
    %v5429 = vld [vmem:[%s2 + $0x1608] sm:$0xff]
    %v5430 = vld [vmem:[%s2 + $0x1610] sm:$0xff]
    %v5431 = vld [vmem:[%s2 + $0x1618] sm:$0xff]
    %v5432 = vld [vmem:[%s2 + $0x1620] sm:$0xff]
    %v5433 = vld [vmem:[%s2 + $0x1628] sm:$0xff]
    %v5434 = vld [vmem:[%s2 + $0x1630] sm:$0xff]
    %v5435 = vld [vmem:[%s2 + $0x1638] sm:$0xff]
    %v5436 = vld [vmem:[%s2 + $0x1640] sm:$0xff]
    %v5437 = vld [vmem:[%s2 + $0x1648] sm:$0xff]
    %v5438 = vld [vmem:[%s2 + $0x1650] sm:$0xff]
    %v5439 = vld [vmem:[%s2 + $0x1658] sm:$0xff]
    %v5440 = vld [vmem:[%s2 + $0x1660] sm:$0xff]
    %v5441 = vld [vmem:[%s2 + $0x1668] sm:$0xff]
    %v5442 = vld [vmem:[%s2 + $0x1670] sm:$0xff]
    %v5443 = vld [vmem:[%s2 + $0x1678] sm:$0xff]
    %v5444 = vld [vmem:[%s2 + $0x1680] sm:$0xff]
    %v5445 = vld [vmem:[%s2 + $0x1688] sm:$0xff]
    %v5446 = vld [vmem:[%s2 + $0x1690] sm:$0xff]
    %v5447 = vld [vmem:[%s2 + $0x1698] sm:$0xff]
    %v5448 = vld [vmem:[%s2 + $0x16a0] sm:$0xff]
    %v5449 = vld [vmem:[%s2 + $0x16a8] sm:$0xff]
    %v5450 = vld [vmem:[%s2 + $0x16b0] sm:$0xff]
    %v5451 = vld [vmem:[%s2 + $0x16b8] sm:$0xff]
    %v5452 = vld [vmem:[%s2 + $0x16c0] sm:$0xff]
    %v5453 = vld [vmem:[%s2 + $0x16c8] sm:$0xff]
    %v5454 = vld [vmem:[%s2 + $0x16d0] sm:$0xff]
    %v5455 = vld [vmem:[%s2 + $0x16d8] sm:$0xff]
    %v5456 = vld [vmem:[%s2 + $0x16e0] sm:$0xff]
    %v5457 = vld [vmem:[%s2 + $0x16e8] sm:$0xff]
    %v5458 = vld [vmem:[%s2 + $0x16f0] sm:$0xff]
    %v5459 = vld [vmem:[%s2 + $0x16f8] sm:$0xff]
    %v5460 = vld [vmem:[%s2 + $0x1700] sm:$0xff]
    %v5461 = vld [vmem:[%s2 + $0x1708] sm:$0xff]
    %v5462 = vld [vmem:[%s2 + $0x1710] sm:$0xff]
    %v5463 = vld [vmem:[%s2 + $0x1718] sm:$0xff]
    %v5464 = vld [vmem:[%s2 + $0x1720] sm:$0xff]
    %v5465 = vld [vmem:[%s2 + $0x1728] sm:$0xff]
    %v5466 = vld [vmem:[%s2 + $0x1730] sm:$0xff]
    %v5467 = vld [vmem:[%s2 + $0x1738] sm:$0xff]
    %v5468 = vld [vmem:[%s2 + $0x1740] sm:$0xff]
    %v5469 = vld [vmem:[%s2 + $0x1748] sm:$0xff]
    %v5470 = vld [vmem:[%s2 + $0x1750] sm:$0xff]
    %v5471 = vld [vmem:[%s2 + $0x1758] sm:$0xff]
    %v5472 = vld [vmem:[%s2 + $0x1760] sm:$0xff]
    %v5473 = vld [vmem:[%s2 + $0x1768] sm:$0xff]
    %v5474 = vld [vmem:[%s2 + $0x1770] sm:$0xff]
    %v5475 = vld [vmem:[%s2 + $0x1778] sm:$0xff]
    %v5476 = vld [vmem:[%s2 + $0x1780] sm:$0xff]
    %v5477 = vld [vmem:[%s2 + $0x1788] sm:$0xff]
    %v5478 = vld [vmem:[%s2 + $0x1790] sm:$0xff]
    %v5479 = vld [vmem:[%s2 + $0x1798] sm:$0xff]
    %v5480 = vld [vmem:[%s2 + $0x17a0] sm:$0xff]
    %v5481 = vld [vmem:[%s2 + $0x17a8] sm:$0xff]
    %v5482 = vld [vmem:[%s2 + $0x17b0] sm:$0xff]
    %v5483 = vld [vmem:[%s2 + $0x17b8] sm:$0xff]
    %v5484 = vld [vmem:[%s2 + $0x17c0] sm:$0xff]
    %v5485 = vld [vmem:[%s2 + $0x17c8] sm:$0xff]
    %v5486 = vld [vmem:[%s2 + $0x17d0] sm:$0xff]
    %v5487 = vld [vmem:[%s2 + $0x17d8] sm:$0xff]
    %v5488 = vld [vmem:[%s2 + $0x17e0] sm:$0xff]
    %v5489 = vld [vmem:[%s2 + $0x17e8] sm:$0xff]
    %v5490 = vld [vmem:[%s2 + $0x17f0] sm:$0xff]
    %v5491 = vld [vmem:[%s2 + $0x17f8] sm:$0xff]
    %v5492 = vld [vmem:[%s2 + $0x1800] sm:$0xff]
    %v5493 = vld [vmem:[%s2 + $0x1808] sm:$0xff]
    %v5494 = vld [vmem:[%s2 + $0x1810] sm:$0xff]
    %v5495 = vld [vmem:[%s2 + $0x1818] sm:$0xff]
    %v5496 = vld [vmem:[%s2 + $0x1820] sm:$0xff]
    %v5497 = vld [vmem:[%s2 + $0x1828] sm:$0xff]
    %v5498 = vld [vmem:[%s2 + $0x1830] sm:$0xff]
    %v5499 = vld [vmem:[%s2 + $0x1838] sm:$0xff]
    %v5500 = vld [vmem:[%s2 + $0x1840] sm:$0xff]
    %v5501 = vld [vmem:[%s2 + $0x1848] sm:$0xff]
    %v5502 = vld [vmem:[%s2 + $0x1850] sm:$0xff]
    %v5503 = vld [vmem:[%s2 + $0x1858] sm:$0xff]
    %v5504 = vld [vmem:[%s2 + $0x1860] sm:$0xff]
    %v5505 = vld [vmem:[%s2 + $0x1868] sm:$0xff]
    %v5506 = vld [vmem:[%s2 + $0x1870] sm:$0xff]
    %v5507 = vld [vmem:[%s2 + $0x1878] sm:$0xff]
    %v5508 = vld [vmem:[%s2 + $0x1880] sm:$0xff]
    %v5509 = vld [vmem:[%s2 + $0x1888] sm:$0xff]
    %v5510 = vld [vmem:[%s2 + $0x1890] sm:$0xff]
    %v5511 = vld [vmem:[%s2 + $0x1898] sm:$0xff]
    %v5512 = vld [vmem:[%s2 + $0x18a0] sm:$0xff]
    %v5513 = vld [vmem:[%s2 + $0x18a8] sm:$0xff]
    %v5514 = vld [vmem:[%s2 + $0x18b0] sm:$0xff]
    %v5515 = vld [vmem:[%s2 + $0x18b8] sm:$0xff]
    %v5516 = vld [vmem:[%s2 + $0x18c0] sm:$0xff]
    %v5517 = vld [vmem:[%s2 + $0x18c8] sm:$0xff]
    %v5518 = vld [vmem:[%s2 + $0x18d0] sm:$0xff]
    %v5519 = vld [vmem:[%s2 + $0x18d8] sm:$0xff]
    %v5520 = vld [vmem:[%s2 + $0x18e0] sm:$0xff]
    %v5521 = vld [vmem:[%s2 + $0x18e8] sm:$0xff]
    %v5522 = vld [vmem:[%s2 + $0x18f0] sm:$0xff]
    %v5523 = vld [vmem:[%s2 + $0x18f8] sm:$0xff]
    %v5524 = vld [vmem:[%s2 + $0x1900] sm:$0xff]
    %v5525 = vld [vmem:[%s2 + $0x1908] sm:$0xff]
    %v5526 = vld [vmem:[%s2 + $0x1910] sm:$0xff]
    %v5527 = vld [vmem:[%s2 + $0x1918] sm:$0xff]
    %v5528 = vld [vmem:[%s2 + $0x1920] sm:$0xff]
    %v5529 = vld [vmem:[%s2 + $0x1928] sm:$0xff]
    %v5530 = vld [vmem:[%s2 + $0x1930] sm:$0xff]
    %v5531 = vld [vmem:[%s2 + $0x1938] sm:$0xff]
    %v5532 = vld [vmem:[%s2 + $0x1940] sm:$0xff]
    %v5533 = vld [vmem:[%s2 + $0x1948] sm:$0xff]
    %v5534 = vld [vmem:[%s2 + $0x1950] sm:$0xff]
    %v5535 = vld [vmem:[%s2 + $0x1958] sm:$0xff]
    %v5536 = vld [vmem:[%s2 + $0x1960] sm:$0xff]
    %v5537 = vld [vmem:[%s2 + $0x1968] sm:$0xff]
    %v5538 = vld [vmem:[%s2 + $0x1970] sm:$0xff]
    %v5539 = vld [vmem:[%s2 + $0x1978] sm:$0xff]
    %v5540 = vld [vmem:[%s2 + $0x1980] sm:$0xff]
    %v5541 = vld [vmem:[%s2 + $0x1988] sm:$0xff]
    %v5542 = vld [vmem:[%s2 + $0x1990] sm:$0xff]
    %v5543 = vld [vmem:[%s2 + $0x1998] sm:$0xff]
    %v5544 = vld [vmem:[%s2 + $0x19a0] sm:$0xff]
    %v5545 = vld [vmem:[%s2 + $0x19a8] sm:$0xff]
    %v5546 = vld [vmem:[%s2 + $0x19b0] sm:$0xff]
    %v5547 = vld [vmem:[%s2 + $0x19b8] sm:$0xff]
    %v5548 = vld [vmem:[%s2 + $0x19c0] sm:$0xff]
    %v5549 = vld [vmem:[%s2 + $0x19c8] sm:$0xff]
    %v5550 = vld [vmem:[%s2 + $0x19d0] sm:$0xff]
    %v5551 = vld [vmem:[%s2 + $0x19d8] sm:$0xff]
    %v5552 = vld [vmem:[%s2 + $0x19e0] sm:$0xff]
    %v5553 = vld [vmem:[%s2 + $0x19e8] sm:$0xff]
    %v5554 = vld [vmem:[%s2 + $0x19f0] sm:$0xff]
    %v5555 = vld [vmem:[%s2 + $0x19f8] sm:$0xff]
    %v5556 = vld [vmem:[%s2 + $0x1a00] sm:$0xff]
    %v5557 = vld [vmem:[%s2 + $0x1a08] sm:$0xff]
    %v5558 = vld [vmem:[%s2 + $0x1a10] sm:$0xff]
    %v5559 = vld [vmem:[%s2 + $0x1a18] sm:$0xff]
    %v5560 = vld [vmem:[%s2 + $0x1a20] sm:$0xff]
    %v5561 = vld [vmem:[%s2 + $0x1a28] sm:$0xff]
    %v5562 = vld [vmem:[%s2 + $0x1a30] sm:$0xff]
    %v5563 = vld [vmem:[%s2 + $0x1a38] sm:$0xff]
    %v5564 = vld [vmem:[%s2 + $0x1a40] sm:$0xff]
    %v5565 = vld [vmem:[%s2 + $0x1a48] sm:$0xff]
    %v5566 = vld [vmem:[%s2 + $0x1a50] sm:$0xff]
    %v5567 = vld [vmem:[%s2 + $0x1a58] sm:$0xff]
    %v5568 = vld [vmem:[%s2 + $0x1a60] sm:$0xff]
    %v5569 = vld [vmem:[%s2 + $0x1a68] sm:$0xff]
    %v5570 = vld [vmem:[%s2 + $0x1a70] sm:$0xff]
    %v5571 = vld [vmem:[%s2 + $0x1a78] sm:$0xff]
    %v5572 = vld [vmem:[%s2 + $0x1a80] sm:$0xff]
    %v5573 = vld [vmem:[%s2 + $0x1a88] sm:$0xff]
    %v5574 = vld [vmem:[%s2 + $0x1a90] sm:$0xff]
    %v5575 = vld [vmem:[%s2 + $0x1a98] sm:$0xff]
    %v5576 = vld [vmem:[%s2 + $0x1aa0] sm:$0xff]
    %v5577 = vld [vmem:[%s2 + $0x1aa8] sm:$0xff]
    %v5578 = vld [vmem:[%s2 + $0x1ab0] sm:$0xff]
    %v5579 = vld [vmem:[%s2 + $0x1ab8] sm:$0xff]
    %v5580 = vld [vmem:[%s2 + $0x1ac0] sm:$0xff]
    %v5581 = vld [vmem:[%s2 + $0x1ac8] sm:$0xff]
    %v5582 = vld [vmem:[%s2 + $0x1ad0] sm:$0xff]
    %v5583 = vld [vmem:[%s2 + $0x1ad8] sm:$0xff]
    %v5584 = vld [vmem:[%s2 + $0x1ae0] sm:$0xff]
    %v5585 = vld [vmem:[%s2 + $0x1ae8] sm:$0xff]
    %v5586 = vld [vmem:[%s2 + $0x1af0] sm:$0xff]
    %v5587 = vld [vmem:[%s2 + $0x1af8] sm:$0xff]
    %v5588 = vld [vmem:[%s2 + $0x1b00] sm:$0xff]
    %v5589 = vld [vmem:[%s2 + $0x1b08] sm:$0xff]
    %v5590 = vld [vmem:[%s2 + $0x1b10] sm:$0xff]
    %v5591 = vld [vmem:[%s2 + $0x1b18] sm:$0xff]
    %v5592 = vld [vmem:[%s2 + $0x1b20] sm:$0xff]
    %v5593 = vld [vmem:[%s2 + $0x1b28] sm:$0xff]
    %v5594 = vld [vmem:[%s2 + $0x1b30] sm:$0xff]
    %v5595 = vld [vmem:[%s2 + $0x1b38] sm:$0xff]
    %v5596 = vld [vmem:[%s2 + $0x1b40] sm:$0xff]
    %v5597 = vld [vmem:[%s2 + $0x1b48] sm:$0xff]
    %v5598 = vld [vmem:[%s2 + $0x1b50] sm:$0xff]
    %v5599 = vld [vmem:[%s2 + $0x1b58] sm:$0xff]
    %v5600 = vld [vmem:[%s2 + $0x1b60] sm:$0xff]
    %v5601 = vld [vmem:[%s2 + $0x1b68] sm:$0xff]
    %v5602 = vld [vmem:[%s2 + $0x1b70] sm:$0xff]
    %v5603 = vld [vmem:[%s2 + $0x1b78] sm:$0xff]
    %v5604 = vld [vmem:[%s2 + $0x1b80] sm:$0xff]
    %v5605 = vld [vmem:[%s2 + $0x1b88] sm:$0xff]
    %v5606 = vld [vmem:[%s2 + $0x1b90] sm:$0xff]
    %v5607 = vld [vmem:[%s2 + $0x1b98] sm:$0xff]
    %v5608 = vld [vmem:[%s2 + $0x1ba0] sm:$0xff]
    %v5609 = vld [vmem:[%s2 + $0x1ba8] sm:$0xff]
    %v5610 = vld [vmem:[%s2 + $0x1bb0] sm:$0xff]
    %v5611 = vld [vmem:[%s2 + $0x1bb8] sm:$0xff]
    %v5612 = vld [vmem:[%s2 + $0x1bc0] sm:$0xff]
    %v5613 = vld [vmem:[%s2 + $0x1bc8] sm:$0xff]
    %v5614 = vld [vmem:[%s2 + $0x1bd0] sm:$0xff]
    %v5615 = vld [vmem:[%s2 + $0x1bd8] sm:$0xff]
    %v5616 = vld [vmem:[%s2 + $0x1be0] sm:$0xff]
    %v5617 = vld [vmem:[%s2 + $0x1be8] sm:$0xff]
    %v5618 = vld [vmem:[%s2 + $0x1bf0] sm:$0xff]
    %v5619 = vld [vmem:[%s2 + $0x1bf8] sm:$0xff]
    %v5620 = vld [vmem:[%s2 + $0x1c00] sm:$0xff]
    %v5621 = vld [vmem:[%s2 + $0x1c08] sm:$0xff]
    %v5622 = vld [vmem:[%s2 + $0x1c10] sm:$0xff]
    %v5623 = vld [vmem:[%s2 + $0x1c18] sm:$0xff]
    %v5624 = vld [vmem:[%s2 + $0x1c20] sm:$0xff]
    %v5625 = vld [vmem:[%s2 + $0x1c28] sm:$0xff]
    %v5626 = vld [vmem:[%s2 + $0x1c30] sm:$0xff]
    %v5627 = vld [vmem:[%s2 + $0x1c38] sm:$0xff]
    %v5628 = vld [vmem:[%s2 + $0x1c40] sm:$0xff]
    %v5629 = vld [vmem:[%s2 + $0x1c48] sm:$0xff]
    %v5630 = vld [vmem:[%s2 + $0x1c50] sm:$0xff]
    %v5631 = vld [vmem:[%s2 + $0x1c58] sm:$0xff]
    %v5632 = vld [vmem:[%s2 + $0x1c60] sm:$0xff]
    %v5633 = vld [vmem:[%s2 + $0x1c68] sm:$0xff]
    %v5634 = vld [vmem:[%s2 + $0x1c70] sm:$0xff]
    %v5635 = vld [vmem:[%s2 + $0x1c78] sm:$0xff]
    %v5636 = vld [vmem:[%s2 + $0x1c80] sm:$0xff]
    %v5637 = vld [vmem:[%s2 + $0x1c88] sm:$0xff]
    %v5638 = vld [vmem:[%s2 + $0x1c90] sm:$0xff]
    %v5639 = vld [vmem:[%s2 + $0x1c98] sm:$0xff]
    %v5640 = vld [vmem:[%s2 + $0x1ca0] sm:$0xff]
    %v5641 = vld [vmem:[%s2 + $0x1ca8] sm:$0xff]
    %v5642 = vld [vmem:[%s2 + $0x1cb0] sm:$0xff]
    %v5643 = vld [vmem:[%s2 + $0x1cb8] sm:$0xff]
    %v5644 = vld [vmem:[%s2 + $0x1cc0] sm:$0xff]
    %v5645 = vld [vmem:[%s2 + $0x1cc8] sm:$0xff]
    %v5646 = vld [vmem:[%s2 + $0x1cd0] sm:$0xff]
    %v5647 = vld [vmem:[%s2 + $0x1cd8] sm:$0xff]
    %v5648 = vld [vmem:[%s2 + $0x1ce0] sm:$0xff]
    %v5649 = vld [vmem:[%s2 + $0x1ce8] sm:$0xff]
    %v5650 = vld [vmem:[%s2 + $0x1cf0] sm:$0xff]
    %v5651 = vld [vmem:[%s2 + $0x1cf8] sm:$0xff]
    %v5652 = vld [vmem:[%s2 + $0x1d00] sm:$0xff]
    %v5653 = vld [vmem:[%s2 + $0x1d08] sm:$0xff]
    %v5654 = vld [vmem:[%s2 + $0x1d10] sm:$0xff]
    %v5655 = vld [vmem:[%s2 + $0x1d18] sm:$0xff]
    %v5656 = vld [vmem:[%s2 + $0x1d20] sm:$0xff]
    %v5657 = vld [vmem:[%s2 + $0x1d28] sm:$0xff]
    %v5658 = vld [vmem:[%s2 + $0x1d30] sm:$0xff]
    %v5659 = vld [vmem:[%s2 + $0x1d38] sm:$0xff]
    %v5660 = vld [vmem:[%s2 + $0x1d40] sm:$0xff]
    %v5661 = vld [vmem:[%s2 + $0x1d48] sm:$0xff]
    %v5662 = vld [vmem:[%s2 + $0x1d50] sm:$0xff]
    %v5663 = vld [vmem:[%s2 + $0x1d58] sm:$0xff]
    %v5664 = vld [vmem:[%s2 + $0x1d60] sm:$0xff]
    %v5665 = vld [vmem:[%s2 + $0x1d68] sm:$0xff]
    %v5666 = vld [vmem:[%s2 + $0x1d70] sm:$0xff]
    %v5667 = vld [vmem:[%s2 + $0x1d78] sm:$0xff]
    %v5668 = vld [vmem:[%s2 + $0x1d80] sm:$0xff]
    %v5669 = vld [vmem:[%s2 + $0x1d88] sm:$0xff]
    %v5670 = vld [vmem:[%s2 + $0x1d90] sm:$0xff]
    %v5671 = vld [vmem:[%s2 + $0x1d98] sm:$0xff]
    %v5672 = vld [vmem:[%s2 + $0x1da0] sm:$0xff]
    %v5673 = vld [vmem:[%s2 + $0x1da8] sm:$0xff]
    %v5674 = vld [vmem:[%s2 + $0x1db0] sm:$0xff]
    %v5675 = vld [vmem:[%s2 + $0x1db8] sm:$0xff]
    %v5676 = vld [vmem:[%s2 + $0x1dc0] sm:$0xff]
    %v5677 = vld [vmem:[%s2 + $0x1dc8] sm:$0xff]
    %v5678 = vld [vmem:[%s2 + $0x1dd0] sm:$0xff]
    %v5679 = vld [vmem:[%s2 + $0x1dd8] sm:$0xff]
    %v5680 = vld [vmem:[%s2 + $0x1de0] sm:$0xff]
    %v5681 = vld [vmem:[%s2 + $0x1de8] sm:$0xff]
    %v5682 = vld [vmem:[%s2 + $0x1df0] sm:$0xff]
    %v5683 = vld [vmem:[%s2 + $0x1df8] sm:$0xff]
    %5684 = vmatprep.subr.mxu0 %v4725
    %5685 = vmatpush1.msra.mxu0 %v4724
    %5686 = vmatprep.subr.mxu0 %v4730
    %5687 = vmatpush1.msra.mxu0 %v4729
    %5688 = vmatprep.subr.mxu0 %v4735
    %5689 = vmatpush1.msra.mxu0 %v4734
    %5690 = vmatprep.subr.mxu0 %v4740
    %5691 = vmatpush1.msra.mxu0 %v4739
    %5692 = vmatprep.subr.mxu0 %v4745
    %5693 = vmatpush1.msra.mxu0 %v4744
    %5694 = vmatprep.subr.mxu0 %v4750
    %5695 = vmatpush1.msra.mxu0 %v4749
    %5696 = vmatprep.subr.mxu0 %v4755
    %5697 = vmatpush1.msra.mxu0 %v4754
    %5698 = vmatprep.subr.mxu0 %v4760
    %5699 = vmatpush1.msra.mxu0 %v4759
    %5700 = vmatprep.subr.mxu0 %v4765
    %5701 = vmatpush1.msra.mxu0 %v4764
    %5702 = vmatprep.subr.mxu0 %v4770
    %5703 = vmatpush1.msra.mxu0 %v4769
    %5704 = vmatprep.subr.mxu0 %v4775
    %5705 = vmatpush1.msra.mxu0 %v4774
    %5706 = vmatprep.subr.mxu0 %v4780
    %5707 = vmatpush1.msra.mxu0 %v4779
    %5708 = vmatprep.subr.mxu0 %v4785
    %5709 = vmatpush1.msra.mxu0 %v4784
    %5710 = vmatprep.subr.mxu0 %v4790
    %5711 = vmatpush1.msra.mxu0 %v4789
    %5712 = vmatprep.subr.mxu0 %v4795
    %5713 = vmatpush1.msra.mxu0 %v4794
    %5714 = vmatprep.subr.mxu0 %v4800
    %5715 = vmatpush1.msra.mxu0 %v4799
    %5716 = vmatprep.subr.mxu0 %v4805
    %5717 = vmatpush1.msra.mxu0 %v4804
    %5718 = vmatprep.subr.mxu0 %v4810
    %5719 = vmatpush1.msra.mxu0 %v4809
    %5720 = vmatprep.subr.mxu0 %v4815
    %5721 = vmatpush1.msra.mxu0 %v4814
    %5722 = vmatprep.subr.mxu0 %v4820
    %5723 = vmatpush1.msra.mxu0 %v4819
    %5724 = vmatprep.subr.mxu0 %v4825
    %5725 = vmatpush1.msra.mxu0 %v4824
    %5726 = vmatprep.subr.mxu0 %v4830
    %5727 = vmatpush1.msra.mxu0 %v4829
    %5728 = vmatprep.subr.mxu0 %v4835
    %5729 = vmatpush1.msra.mxu0 %v4834
    %5730 = vmatprep.subr.mxu0 %v4840
    %5731 = vmatpush1.msra.mxu0 %v4839
    %5732 = vmatprep.subr.mxu0 %v4845
    %5733 = vmatpush1.msra.mxu0 %v4844
    %5734 = vmatprep.subr.mxu0 %v4850
    %5735 = vmatpush1.msra.mxu0 %v4849
    %5736 = vmatprep.subr.mxu0 %v4855
    %5737 = vmatpush1.msra.mxu0 %v4854
    %5738 = vmatprep.subr.mxu0 %v4860
    %5739 = vmatpush1.msra.mxu0 %v4859
    %5740 = vmatprep.subr.mxu0 %v4865
    %5741 = vmatpush1.msra.mxu0 %v4864
    %5742 = vmatprep.subr.mxu0 %v4870
    %5743 = vmatpush1.msra.mxu0 %v4869
    %5744 = vmatprep.subr.mxu0 %v4875
    %5745 = vmatpush1.msra.mxu0 %v4874
    %5746 = vmatprep.subr.mxu0 %v4880
    %5747 = vmatpush1.msra.mxu0 %v4879
    %5748 = vmatprep.mubr.f32.mxu0 %v4701
    %5749 = vmatmul.mubr.f32.gmra.mrb[0].mxu0 %v4700
    %v5750 = vpop.f32.mrb[0].mxu0
    %v5751 = vadd.f32 0.0, %v5750
    %v5752 = vpop.f32.mrb[0].mxu0
    %v5753 = vadd.f32 0.0, %v5752
    %5754 = vmatprep.mubr.f32.mxu0 %v4713
    %5755 = vmatmul.mubr.f32.gmra.mrb[0].mxu0 %v4712
    %v5756 = vpop.f32.mrb[0].mxu0
    %v5757 = vadd.f32 0.0, %v5756
    %v5758 = vpop.f32.mrb[0].mxu0
    %v5759 = vadd.f32 0.0, %v5758
    %5760 = vdwg.mxu0
    %5761 = vmatprep.subr.mxu0 %v4885
    %5762 = vmatpush1.msra.mxu0 %v4884
    %5763 = vmatprep.subr.mxu0 %v4890
    %5764 = vmatpush1.msra.mxu0 %v4889
    %5765 = vmatprep.subr.mxu0 %v4895
    %5766 = vmatpush1.msra.mxu0 %v4894
    %5767 = vmatprep.subr.mxu0 %v4900
    %5768 = vmatpush1.msra.mxu0 %v4899
    %5769 = vmatprep.subr.mxu0 %v4905
    %5770 = vmatpush1.msra.mxu0 %v4904
    %5771 = vmatprep.subr.mxu0 %v4910
    %5772 = vmatpush1.msra.mxu0 %v4909
    %5773 = vmatprep.subr.mxu0 %v4915
    %5774 = vmatpush1.msra.mxu0 %v4914
    %5775 = vmatprep.subr.mxu0 %v4920
    %5776 = vmatpush1.msra.mxu0 %v4919
    %5777 = vmatprep.subr.mxu0 %v4925
    %5778 = vmatpush1.msra.mxu0 %v4924
    %5779 = vmatprep.subr.mxu0 %v4930
    %5780 = vmatpush1.msra.mxu0 %v4929
    %5781 = vmatprep.subr.mxu0 %v4935
    %5782 = vmatpush1.msra.mxu0 %v4934
    %5783 = vmatprep.subr.mxu0 %v4940
    %5784 = vmatpush1.msra.mxu0 %v4939
    %5785 = vmatprep.subr.mxu0 %v4945
    %5786 = vmatpush1.msra.mxu0 %v4944
    %5787 = vmatprep.subr.mxu0 %v4950
    %5788 = vmatpush1.msra.mxu0 %v4949
    %5789 = vmatprep.subr.mxu0 %v4955
    %5790 = vmatpush1.msra.mxu0 %v4954
    %5791 = vmatprep.subr.mxu0 %v4960
    %5792 = vmatpush1.msra.mxu0 %v4959
    %5793 = vmatprep.subr.mxu0 %v4965
    %5794 = vmatpush1.msra.mxu0 %v4964
    %5795 = vmatprep.subr.mxu0 %v4970
    %5796 = vmatpush1.msra.mxu0 %v4969
    %5797 = vmatprep.subr.mxu0 %v4975
    %5798 = vmatpush1.msra.mxu0 %v4974
    %5799 = vmatprep.subr.mxu0 %v4980
    %5800 = vmatpush1.msra.mxu0 %v4979
    %5801 = vmatprep.subr.mxu0 %v4985
    %5802 = vmatpush1.msra.mxu0 %v4984
    %5803 = vmatprep.subr.mxu0 %v4990
    %5804 = vmatpush1.msra.mxu0 %v4989
    %5805 = vmatprep.subr.mxu0 %v4995
    %5806 = vmatpush1.msra.mxu0 %v4994
    %5807 = vmatprep.subr.mxu0 %v5000
    %5808 = vmatpush1.msra.mxu0 %v4999
    %5809 = vmatprep.subr.mxu0 %v5005
    %5810 = vmatpush1.msra.mxu0 %v5004
    %5811 = vmatprep.subr.mxu0 %v5010
    %5812 = vmatpush1.msra.mxu0 %v5009
    %5813 = vmatprep.subr.mxu0 %v5015
    %5814 = vmatpush1.msra.mxu0 %v5014
    %5815 = vmatprep.subr.mxu0 %v5020
    %5816 = vmatpush1.msra.mxu0 %v5019
    %5817 = vmatprep.subr.mxu0 %v5025
    %5818 = vmatpush1.msra.mxu0 %v5024
    %5819 = vmatprep.subr.mxu0 %v5030
    %5820 = vmatpush1.msra.mxu0 %v5029
    %5821 = vmatprep.subr.mxu0 %v5035
    %5822 = vmatpush1.msra.mxu0 %v5034
    %5823 = vmatprep.subr.mxu0 %v5040
    %5824 = vmatpush1.msra.mxu0 %v5039
    %5825 = vmatprep.mubr.f32.mxu0 %v4703
    %5826 = vmatmul.mubr.f32.gmra.mrb[0].mxu0 %v4702
    %v5827 = vpop.f32.mrb[0].mxu0
    %v5828 = vadd.f32 %v5751, %v5827
    %v5829 = vpop.f32.mrb[0].mxu0
    %v5830 = vadd.f32 %v5753, %v5829
    %5831 = vmatprep.mubr.f32.mxu0 %v4715
    %5832 = vmatmul.mubr.f32.gmra.mrb[0].mxu0 %v4714
    %v5833 = vpop.f32.mrb[0].mxu0
    %v5834 = vadd.f32 %v5757, %v5833
    %v5835 = vpop.f32.mrb[0].mxu0
    %v5836 = vadd.f32 %v5759, %v5835
    %5837 = vdwg.mxu0
    %5838 = vmatprep.subr.mxu0 %v5045
    %5839 = vmatpush1.msra.mxu0 %v5044
    %5840 = vmatprep.subr.mxu0 %v5050
    %5841 = vmatpush1.msra.mxu0 %v5049
    %5842 = vmatprep.subr.mxu0 %v5055
    %5843 = vmatpush1.msra.mxu0 %v5054
    %5844 = vmatprep.subr.mxu0 %v5060
    %5845 = vmatpush1.msra.mxu0 %v5059
    %5846 = vmatprep.subr.mxu0 %v5065
    %5847 = vmatpush1.msra.mxu0 %v5064
    %5848 = vmatprep.subr.mxu0 %v5070
    %5849 = vmatpush1.msra.mxu0 %v5069
    %5850 = vmatprep.subr.mxu0 %v5075
    %5851 = vmatpush1.msra.mxu0 %v5074
    %5852 = vmatprep.subr.mxu0 %v5080
    %5853 = vmatpush1.msra.mxu0 %v5079
    %5854 = vmatprep.subr.mxu0 %v5085
    %5855 = vmatpush1.msra.mxu0 %v5084
    %5856 = vmatprep.subr.mxu0 %v5090
    %5857 = vmatpush1.msra.mxu0 %v5089
    %5858 = vmatprep.subr.mxu0 %v5095
    %5859 = vmatpush1.msra.mxu0 %v5094
    %5860 = vmatprep.subr.mxu0 %v5100
    %5861 = vmatpush1.msra.mxu0 %v5099
    %5862 = vmatprep.subr.mxu0 %v5105
    %5863 = vmatpush1.msra.mxu0 %v5104
    %5864 = vmatprep.subr.mxu0 %v5110
    %5865 = vmatpush1.msra.mxu0 %v5109
    %5866 = vmatprep.subr.mxu0 %v5115
    %5867 = vmatpush1.msra.mxu0 %v5114
    %5868 = vmatprep.subr.mxu0 %v5120
    %5869 = vmatpush1.msra.mxu0 %v5119
    %5870 = vmatprep.subr.mxu0 %v5125
    %5871 = vmatpush1.msra.mxu0 %v5124
    %5872 = vmatprep.subr.mxu0 %v5130
    %5873 = vmatpush1.msra.mxu0 %v5129
    %5874 = vmatprep.subr.mxu0 %v5135
    %5875 = vmatpush1.msra.mxu0 %v5134
    %5876 = vmatprep.subr.mxu0 %v5140
    %5877 = vmatpush1.msra.mxu0 %v5139
    %5878 = vmatprep.subr.mxu0 %v5145
    %5879 = vmatpush1.msra.mxu0 %v5144
    %5880 = vmatprep.subr.mxu0 %v5150
    %5881 = vmatpush1.msra.mxu0 %v5149
    %5882 = vmatprep.subr.mxu0 %v5155
    %5883 = vmatpush1.msra.mxu0 %v5154
    %5884 = vmatprep.subr.mxu0 %v5160
    %5885 = vmatpush1.msra.mxu0 %v5159
    %5886 = vmatprep.subr.mxu0 %v5165
    %5887 = vmatpush1.msra.mxu0 %v5164
    %5888 = vmatprep.subr.mxu0 %v5170
    %5889 = vmatpush1.msra.mxu0 %v5169
    %5890 = vmatprep.subr.mxu0 %v5175
    %5891 = vmatpush1.msra.mxu0 %v5174
    %5892 = vmatprep.subr.mxu0 %v5180
    %5893 = vmatpush1.msra.mxu0 %v5179
    %5894 = vmatprep.subr.mxu0 %v5185
    %5895 = vmatpush1.msra.mxu0 %v5184
    %5896 = vmatprep.subr.mxu0 %v5190
    %5897 = vmatpush1.msra.mxu0 %v5189
    %5898 = vmatprep.subr.mxu0 %v5195
    %5899 = vmatpush1.msra.mxu0 %v5194
    %5900 = vmatprep.subr.mxu0 %v5200
    %5901 = vmatpush1.msra.mxu0 %v5199
    %5902 = vmatprep.mubr.f32.mxu0 %v4705
    %5903 = vmatmul.mubr.f32.gmra.mrb[0].mxu0 %v4704
    %v5904 = vpop.f32.mrb[0].mxu0
    %v5905 = vadd.f32 %v5828, %v5904
    %v5906 = vpop.f32.mrb[0].mxu0
    %v5907 = vadd.f32 %v5830, %v5906
    %5908 = vmatprep.mubr.f32.mxu0 %v4717
    %5909 = vmatmul.mubr.f32.gmra.mrb[0].mxu0 %v4716
    %v5910 = vpop.f32.mrb[0].mxu0
    %v5911 = vadd.f32 %v5834, %v5910
    %v5912 = vpop.f32.mrb[0].mxu0
    %v5913 = vadd.f32 %v5836, %v5912
    %5914 = vdwg.mxu0
    %5915 = vmatprep.subr.mxu0 %v5205
    %5916 = vmatpush1.msra.mxu0 %v5204
    %5917 = vmatprep.subr.mxu0 %v5210
    %5918 = vmatpush1.msra.mxu0 %v5209
    %5919 = vmatprep.subr.mxu0 %v5215
    %5920 = vmatpush1.msra.mxu0 %v5214
    %5921 = vmatprep.subr.mxu0 %v5220
    %5922 = vmatpush1.msra.mxu0 %v5219
    %5923 = vmatprep.subr.mxu0 %v5225
    %5924 = vmatpush1.msra.mxu0 %v5224
    %5925 = vmatprep.subr.mxu0 %v5230
    %5926 = vmatpush1.msra.mxu0 %v5229
    %5927 = vmatprep.subr.mxu0 %v5235
    %5928 = vmatpush1.msra.mxu0 %v5234
    %5929 = vmatprep.subr.mxu0 %v5240
    %5930 = vmatpush1.msra.mxu0 %v5239
    %5931 = vmatprep.subr.mxu0 %v5245
    %5932 = vmatpush1.msra.mxu0 %v5244
    %5933 = vmatprep.subr.mxu0 %v5250
    %5934 = vmatpush1.msra.mxu0 %v5249
    %5935 = vmatprep.subr.mxu0 %v5255
    %5936 = vmatpush1.msra.mxu0 %v5254
    %5937 = vmatprep.subr.mxu0 %v5260
    %5938 = vmatpush1.msra.mxu0 %v5259
    %5939 = vmatprep.subr.mxu0 %v5265
    %5940 = vmatpush1.msra.mxu0 %v5264
    %5941 = vmatprep.subr.mxu0 %v5270
    %5942 = vmatpush1.msra.mxu0 %v5269
    %5943 = vmatprep.subr.mxu0 %v5275
    %5944 = vmatpush1.msra.mxu0 %v5274
    %5945 = vmatprep.subr.mxu0 %v5280
    %5946 = vmatpush1.msra.mxu0 %v5279
    %5947 = vmatprep.subr.mxu0 %v5285
    %5948 = vmatpush1.msra.mxu0 %v5284
    %5949 = vmatprep.subr.mxu0 %v5290
    %5950 = vmatpush1.msra.mxu0 %v5289
    %5951 = vmatprep.subr.mxu0 %v5295
    %5952 = vmatpush1.msra.mxu0 %v5294
    %5953 = vmatprep.subr.mxu0 %v5300
    %5954 = vmatpush1.msra.mxu0 %v5299
    %5955 = vmatprep.subr.mxu0 %v5305
    %5956 = vmatpush1.msra.mxu0 %v5304
    %5957 = vmatprep.subr.mxu0 %v5310
    %5958 = vmatpush1.msra.mxu0 %v5309
    %5959 = vmatprep.subr.mxu0 %v5315
    %5960 = vmatpush1.msra.mxu0 %v5314
    %5961 = vmatprep.subr.mxu0 %v5320
    %5962 = vmatpush1.msra.mxu0 %v5319
    %5963 = vmatprep.subr.mxu0 %v5325
    %5964 = vmatpush1.msra.mxu0 %v5324
    %5965 = vmatprep.subr.mxu0 %v5330
    %5966 = vmatpush1.msra.mxu0 %v5329
    %5967 = vmatprep.subr.mxu0 %v5335
    %5968 = vmatpush1.msra.mxu0 %v5334
    %5969 = vmatprep.subr.mxu0 %v5340
    %5970 = vmatpush1.msra.mxu0 %v5339
    %5971 = vmatprep.subr.mxu0 %v5345
    %5972 = vmatpush1.msra.mxu0 %v5344
    %5973 = vmatprep.subr.mxu0 %v5350
    %5974 = vmatpush1.msra.mxu0 %v5349
    %5975 = vmatprep.subr.mxu0 %v5355
    %5976 = vmatpush1.msra.mxu0 %v5354
    %5977 = vmatprep.subr.mxu0 %v5360
    %5978 = vmatpush1.msra.mxu0 %v5359
    %5979 = vmatprep.mubr.f32.mxu0 %v4707
    %5980 = vmatmul.mubr.f32.gmra.mrb[0].mxu0 %v4706
    %v5981 = vpop.f32.mrb[0].mxu0
    %v5982 = vadd.f32 %v5905, %v5981
    %v5983 = vpop.f32.mrb[0].mxu0
    %v5984 = vadd.f32 %v5907, %v5983
    %5985 = vmatprep.mubr.f32.mxu0 %v4719
    %5986 = vmatmul.mubr.f32.gmra.mrb[0].mxu0 %v4718
    %v5987 = vpop.f32.mrb[0].mxu0
    %v5988 = vadd.f32 %v5911, %v5987
    %v5989 = vpop.f32.mrb[0].mxu0
    %v5990 = vadd.f32 %v5913, %v5989
    %5991 = vdwg.mxu0
    %5992 = vmatprep.subr.mxu0 %v5365
    %5993 = vmatpush1.msra.mxu0 %v5364
    %5994 = vmatprep.subr.mxu0 %v5370
    %5995 = vmatpush1.msra.mxu0 %v5369
    %5996 = vmatprep.subr.mxu0 %v5375
    %5997 = vmatpush1.msra.mxu0 %v5374
    %5998 = vmatprep.subr.mxu0 %v5380
    %5999 = vmatpush1.msra.mxu0 %v5379
    %6000 = vmatprep.subr.mxu0 %v5385
    %6001 = vmatpush1.msra.mxu0 %v5384
    %6002 = vmatprep.subr.mxu0 %v5390
    %6003 = vmatpush1.msra.mxu0 %v5389
    %6004 = vmatprep.subr.mxu0 %v5395
    %6005 = vmatpush1.msra.mxu0 %v5394
    %6006 = vmatprep.subr.mxu0 %v5400
    %6007 = vmatpush1.msra.mxu0 %v5399
    %6008 = vmatprep.subr.mxu0 %v5405
    %6009 = vmatpush1.msra.mxu0 %v5404
    %6010 = vmatprep.subr.mxu0 %v5410
    %6011 = vmatpush1.msra.mxu0 %v5409
    %6012 = vmatprep.subr.mxu0 %v5415
    %6013 = vmatpush1.msra.mxu0 %v5414
    %6014 = vmatprep.subr.mxu0 %v5420
    %6015 = vmatpush1.msra.mxu0 %v5419
    %6016 = vmatprep.subr.mxu0 %v5425
    %6017 = vmatpush1.msra.mxu0 %v5424
    %6018 = vmatprep.subr.mxu0 %v5430
    %6019 = vmatpush1.msra.mxu0 %v5429
    %6020 = vmatprep.subr.mxu0 %v5435
    %6021 = vmatpush1.msra.mxu0 %v5434
    %6022 = vmatprep.subr.mxu0 %v5440
    %6023 = vmatpush1.msra.mxu0 %v5439
    %6024 = vmatprep.subr.mxu0 %v5445
    %6025 = vmatpush1.msra.mxu0 %v5444
    %6026 = vmatprep.subr.mxu0 %v5450
    %6027 = vmatpush1.msra.mxu0 %v5449
    %6028 = vmatprep.subr.mxu0 %v5455
    %6029 = vmatpush1.msra.mxu0 %v5454
    %6030 = vmatprep.subr.mxu0 %v5460
    %6031 = vmatpush1.msra.mxu0 %v5459
    %6032 = vmatprep.subr.mxu0 %v5465
    %6033 = vmatpush1.msra.mxu0 %v5464
    %6034 = vmatprep.subr.mxu0 %v5470
    %6035 = vmatpush1.msra.mxu0 %v5469
    %6036 = vmatprep.subr.mxu0 %v5475
    %6037 = vmatpush1.msra.mxu0 %v5474
    %6038 = vmatprep.subr.mxu0 %v5480
    %6039 = vmatpush1.msra.mxu0 %v5479
    %6040 = vmatprep.subr.mxu0 %v5485
    %6041 = vmatpush1.msra.mxu0 %v5484
    %6042 = vmatprep.subr.mxu0 %v5490
    %6043 = vmatpush1.msra.mxu0 %v5489
    %6044 = vmatprep.subr.mxu0 %v5495
    %6045 = vmatpush1.msra.mxu0 %v5494
    %6046 = vmatprep.subr.mxu0 %v5500
    %6047 = vmatpush1.msra.mxu0 %v5499
    %6048 = vmatprep.subr.mxu0 %v5505
    %6049 = vmatpush1.msra.mxu0 %v5504
    %6050 = vmatprep.subr.mxu0 %v5510
    %6051 = vmatpush1.msra.mxu0 %v5509
    %6052 = vmatprep.subr.mxu0 %v5515
    %6053 = vmatpush1.msra.mxu0 %v5514
    %6054 = vmatprep.subr.mxu0 %v5520
    %6055 = vmatpush1.msra.mxu0 %v5519
    %6056 = vmatprep.mubr.f32.mxu0 %v4709
    %6057 = vmatmul.mubr.f32.gmra.mrb[0].mxu0 %v4708
    %v6058 = vpop.f32.mrb[0].mxu0
    %v6059 = vadd.f32 %v5982, %v6058
    %v6060 = vpop.f32.mrb[0].mxu0
    %v6061 = vadd.f32 %v5984, %v6060
    %6062 = vmatprep.mubr.f32.mxu0 %v4721
    %6063 = vmatmul.mubr.f32.gmra.mrb[0].mxu0 %v4720
    %v6064 = vpop.f32.mrb[0].mxu0
    %v6065 = vadd.f32 %v5988, %v6064
    %v6066 = vpop.f32.mrb[0].mxu0
    %v6067 = vadd.f32 %v5990, %v6066
    %6068 = vdwg.mxu0
    %6069 = vmatprep.subr.mxu0 %v5525
    %6070 = vmatpush1.msra.mxu0 %v5524
    %6071 = vmatprep.subr.mxu0 %v5530
    %6072 = vmatpush1.msra.mxu0 %v5529
    %6073 = vmatprep.subr.mxu0 %v5535
    %6074 = vmatpush1.msra.mxu0 %v5534
    %6075 = vmatprep.subr.mxu0 %v5540
    %6076 = vmatpush1.msra.mxu0 %v5539
    %6077 = vmatprep.subr.mxu0 %v5545
    %6078 = vmatpush1.msra.mxu0 %v5544
    %6079 = vmatprep.subr.mxu0 %v5550
    %6080 = vmatpush1.msra.mxu0 %v5549
    %6081 = vmatprep.subr.mxu0 %v5555
    %6082 = vmatpush1.msra.mxu0 %v5554
    %6083 = vmatprep.subr.mxu0 %v5560
    %6084 = vmatpush1.msra.mxu0 %v5559
    %6085 = vmatprep.subr.mxu0 %v5565
    %6086 = vmatpush1.msra.mxu0 %v5564
    %6087 = vmatprep.subr.mxu0 %v5570
    %6088 = vmatpush1.msra.mxu0 %v5569
    %6089 = vmatprep.subr.mxu0 %v5575
    %6090 = vmatpush1.msra.mxu0 %v5574
    %6091 = vmatprep.subr.mxu0 %v5580
    %6092 = vmatpush1.msra.mxu0 %v5579
    %6093 = vmatprep.subr.mxu0 %v5585
    %6094 = vmatpush1.msra.mxu0 %v5584
    %6095 = vmatprep.subr.mxu0 %v5590
    %6096 = vmatpush1.msra.mxu0 %v5589
    %6097 = vmatprep.subr.mxu0 %v5595
    %6098 = vmatpush1.msra.mxu0 %v5594
    %6099 = vmatprep.subr.mxu0 %v5600
    %6100 = vmatpush1.msra.mxu0 %v5599
    %6101 = vmatprep.subr.mxu0 %v5605
    %6102 = vmatpush1.msra.mxu0 %v5604
    %6103 = vmatprep.subr.mxu0 %v5610
    %6104 = vmatpush1.msra.mxu0 %v5609
    %6105 = vmatprep.subr.mxu0 %v5615
    %6106 = vmatpush1.msra.mxu0 %v5614
    %6107 = vmatprep.subr.mxu0 %v5620
    %6108 = vmatpush1.msra.mxu0 %v5619
    %6109 = vmatprep.subr.mxu0 %v5625
    %6110 = vmatpush1.msra.mxu0 %v5624
    %6111 = vmatprep.subr.mxu0 %v5630
    %6112 = vmatpush1.msra.mxu0 %v5629
    %6113 = vmatprep.subr.mxu0 %v5635
    %6114 = vmatpush1.msra.mxu0 %v5634
    %6115 = vmatprep.subr.mxu0 %v5640
    %6116 = vmatpush1.msra.mxu0 %v5639
    %6117 = vmatprep.subr.mxu0 %v5645
    %6118 = vmatpush1.msra.mxu0 %v5644
    %6119 = vmatprep.subr.mxu0 %v5650
    %6120 = vmatpush1.msra.mxu0 %v5649
    %6121 = vmatprep.subr.mxu0 %v5655
    %6122 = vmatpush1.msra.mxu0 %v5654
    %6123 = vmatprep.subr.mxu0 %v5660
    %6124 = vmatpush1.msra.mxu0 %v5659
    %6125 = vmatprep.subr.mxu0 %v5665
    %6126 = vmatpush1.msra.mxu0 %v5664
    %6127 = vmatprep.subr.mxu0 %v5670
    %6128 = vmatpush1.msra.mxu0 %v5669
    %6129 = vmatprep.subr.mxu0 %v5675
    %6130 = vmatpush1.msra.mxu0 %v5674
    %6131 = vmatprep.subr.mxu0 %v5680
    %6132 = vmatpush1.msra.mxu0 %v5679
    %6133 = vmatprep.mubr.f32.mxu0 %v4711
    %6134 = vmatmul.mubr.f32.gmra.mrb[0].mxu0 %v4710
    %v6135 = vpop.f32.mrb[0].mxu0
    %v6136 = vadd.f32 %v6059, %v6135
    %v6137 = vpop.f32.mrb[0].mxu0
    %v6138 = vadd.f32 %v6061, %v6137
    %6139 = vmatprep.mubr.f32.mxu0 %v4723
    %6140 = vmatmul.mubr.f32.gmra.mrb[0].mxu0 %v4722
    %v6141 = vpop.f32.mrb[0].mxu0
    %v6142 = vadd.f32 %v6065, %v6141
    %v6143 = vpop.f32.mrb[0].mxu0
    %v6144 = vadd.f32 %v6067, %v6143
    %6145 = vdwg.mxu0
    %6146 = vmatprep.subr.mxu0 %v4727
    %6147 = vmatpush1.msra.mxu0 %v4726
    %6148 = vmatprep.subr.mxu0 %v4732
    %6149 = vmatpush1.msra.mxu0 %v4731
    %6150 = vmatprep.subr.mxu0 %v4737
    %6151 = vmatpush1.msra.mxu0 %v4736
    %6152 = vmatprep.subr.mxu0 %v4742
    %6153 = vmatpush1.msra.mxu0 %v4741
    %6154 = vmatprep.subr.mxu0 %v4747
    %6155 = vmatpush1.msra.mxu0 %v4746
    %6156 = vmatprep.subr.mxu0 %v4752
    %6157 = vmatpush1.msra.mxu0 %v4751
    %6158 = vmatprep.subr.mxu0 %v4757
    %6159 = vmatpush1.msra.mxu0 %v4756
    %6160 = vmatprep.subr.mxu0 %v4762
    %6161 = vmatpush1.msra.mxu0 %v4761
    %6162 = vmatprep.subr.mxu0 %v4767
    %6163 = vmatpush1.msra.mxu0 %v4766
    %6164 = vmatprep.subr.mxu0 %v4772
    %6165 = vmatpush1.msra.mxu0 %v4771
    %6166 = vmatprep.subr.mxu0 %v4777
    %6167 = vmatpush1.msra.mxu0 %v4776
    %6168 = vmatprep.subr.mxu0 %v4782
    %6169 = vmatpush1.msra.mxu0 %v4781
    %6170 = vmatprep.subr.mxu0 %v4787
    %6171 = vmatpush1.msra.mxu0 %v4786
    %6172 = vmatprep.subr.mxu0 %v4792
    %6173 = vmatpush1.msra.mxu0 %v4791
    %6174 = vmatprep.subr.mxu0 %v4797
    %6175 = vmatpush1.msra.mxu0 %v4796
    %6176 = vmatprep.subr.mxu0 %v4802
    %6177 = vmatpush1.msra.mxu0 %v4801
    %6178 = vmatprep.subr.mxu0 %v4807
    %6179 = vmatpush1.msra.mxu0 %v4806
    %6180 = vmatprep.subr.mxu0 %v4812
    %6181 = vmatpush1.msra.mxu0 %v4811
    %6182 = vmatprep.subr.mxu0 %v4817
    %6183 = vmatpush1.msra.mxu0 %v4816
    %6184 = vmatprep.subr.mxu0 %v4822
    %6185 = vmatpush1.msra.mxu0 %v4821
    %6186 = vmatprep.subr.mxu0 %v4827
    %6187 = vmatpush1.msra.mxu0 %v4826
    %6188 = vmatprep.subr.mxu0 %v4832
    %6189 = vmatpush1.msra.mxu0 %v4831
    %6190 = vmatprep.subr.mxu0 %v4837
    %6191 = vmatpush1.msra.mxu0 %v4836
    %6192 = vmatprep.subr.mxu0 %v4842
    %6193 = vmatpush1.msra.mxu0 %v4841
    %6194 = vmatprep.subr.mxu0 %v4847
    %6195 = vmatpush1.msra.mxu0 %v4846
    %6196 = vmatprep.subr.mxu0 %v4852
    %6197 = vmatpush1.msra.mxu0 %v4851
    %6198 = vmatprep.subr.mxu0 %v4857
    %6199 = vmatpush1.msra.mxu0 %v4856
    %6200 = vmatprep.subr.mxu0 %v4862
    %6201 = vmatpush1.msra.mxu0 %v4861
    %6202 = vmatprep.subr.mxu0 %v4867
    %6203 = vmatpush1.msra.mxu0 %v4866
    %6204 = vmatprep.subr.mxu0 %v4872
    %6205 = vmatpush1.msra.mxu0 %v4871
    %6206 = vmatprep.subr.mxu0 %v4877
    %6207 = vmatpush1.msra.mxu0 %v4876
    %6208 = vmatprep.subr.mxu0 %v4882
    %6209 = vmatpush1.msra.mxu0 %v4881
    %6210 = vmatprep.mubr.f32.mxu0 %v4701
    %6211 = vmatmul.mubr.f32.gmra.mrb[0].mxu0 %v4700
    %v6212 = vpop.f32.mrb[0].mxu0
    %v6213 = vadd.f32 0.0, %v6212
    %v6214 = vpop.f32.mrb[0].mxu0
    %v6215 = vadd.f32 0.0, %v6214
    %6216 = vmatprep.mubr.f32.mxu0 %v4713
    %6217 = vmatmul.mubr.f32.gmra.mrb[0].mxu0 %v4712
    %v6218 = vpop.f32.mrb[0].mxu0
    %v6219 = vadd.f32 0.0, %v6218
    %v6220 = vpop.f32.mrb[0].mxu0
    %v6221 = vadd.f32 0.0, %v6220
    %6222 = vdwg.mxu0
    %6223 = vmatprep.subr.mxu0 %v4887
    %6224 = vmatpush1.msra.mxu0 %v4886
    %6225 = vmatprep.subr.mxu0 %v4892
    %6226 = vmatpush1.msra.mxu0 %v4891
    %6227 = vmatprep.subr.mxu0 %v4897
    %6228 = vmatpush1.msra.mxu0 %v4896
    %6229 = vmatprep.subr.mxu0 %v4902
    %6230 = vmatpush1.msra.mxu0 %v4901
    %6231 = vmatprep.subr.mxu0 %v4907
    %6232 = vmatpush1.msra.mxu0 %v4906
    %6233 = vmatprep.subr.mxu0 %v4912
    %6234 = vmatpush1.msra.mxu0 %v4911
    %6235 = vmatprep.subr.mxu0 %v4917
    %6236 = vmatpush1.msra.mxu0 %v4916
    %6237 = vmatprep.subr.mxu0 %v4922
    %6238 = vmatpush1.msra.mxu0 %v4921
    %6239 = vmatprep.subr.mxu0 %v4927
    %6240 = vmatpush1.msra.mxu0 %v4926
    %6241 = vmatprep.subr.mxu0 %v4932
    %6242 = vmatpush1.msra.mxu0 %v4931
    %6243 = vmatprep.subr.mxu0 %v4937
    %6244 = vmatpush1.msra.mxu0 %v4936
    %6245 = vmatprep.subr.mxu0 %v4942
    %6246 = vmatpush1.msra.mxu0 %v4941
    %6247 = vmatprep.subr.mxu0 %v4947
    %6248 = vmatpush1.msra.mxu0 %v4946
    %6249 = vmatprep.subr.mxu0 %v4952
    %6250 = vmatpush1.msra.mxu0 %v4951
    %6251 = vmatprep.subr.mxu0 %v4957
    %6252 = vmatpush1.msra.mxu0 %v4956
    %6253 = vmatprep.subr.mxu0 %v4962
    %6254 = vmatpush1.msra.mxu0 %v4961
    %6255 = vmatprep.subr.mxu0 %v4967
    %6256 = vmatpush1.msra.mxu0 %v4966
    %6257 = vmatprep.subr.mxu0 %v4972
    %6258 = vmatpush1.msra.mxu0 %v4971
    %6259 = vmatprep.subr.mxu0 %v4977
    %6260 = vmatpush1.msra.mxu0 %v4976
    %6261 = vmatprep.subr.mxu0 %v4982
    %6262 = vmatpush1.msra.mxu0 %v4981
    %6263 = vmatprep.subr.mxu0 %v4987
    %6264 = vmatpush1.msra.mxu0 %v4986
    %6265 = vmatprep.subr.mxu0 %v4992
    %6266 = vmatpush1.msra.mxu0 %v4991
    %6267 = vmatprep.subr.mxu0 %v4997
    %6268 = vmatpush1.msra.mxu0 %v4996
    %6269 = vmatprep.subr.mxu0 %v5002
    %6270 = vmatpush1.msra.mxu0 %v5001
    %6271 = vmatprep.subr.mxu0 %v5007
    %6272 = vmatpush1.msra.mxu0 %v5006
    %6273 = vmatprep.subr.mxu0 %v5012
    %6274 = vmatpush1.msra.mxu0 %v5011
    %6275 = vmatprep.subr.mxu0 %v5017
    %6276 = vmatpush1.msra.mxu0 %v5016
    %6277 = vmatprep.subr.mxu0 %v5022
    %6278 = vmatpush1.msra.mxu0 %v5021
    %6279 = vmatprep.subr.mxu0 %v5027
    %6280 = vmatpush1.msra.mxu0 %v5026
    %6281 = vmatprep.subr.mxu0 %v5032
    %6282 = vmatpush1.msra.mxu0 %v5031
    %6283 = vmatprep.subr.mxu0 %v5037
    %6284 = vmatpush1.msra.mxu0 %v5036
    %6285 = vmatprep.subr.mxu0 %v5042
    %6286 = vmatpush1.msra.mxu0 %v5041
    %6287 = vmatprep.mubr.f32.mxu0 %v4703
    %6288 = vmatmul.mubr.f32.gmra.mrb[0].mxu0 %v4702
    %v6289 = vpop.f32.mrb[0].mxu0
    %v6290 = vadd.f32 %v6213, %v6289
    %v6291 = vpop.f32.mrb[0].mxu0
    %v6292 = vadd.f32 %v6215, %v6291
    %6293 = vmatprep.mubr.f32.mxu0 %v4715
    %6294 = vmatmul.mubr.f32.gmra.mrb[0].mxu0 %v4714
    %v6295 = vpop.f32.mrb[0].mxu0
    %v6296 = vadd.f32 %v6219, %v6295
    %v6297 = vpop.f32.mrb[0].mxu0
    %v6298 = vadd.f32 %v6221, %v6297
    %6299 = vdwg.mxu0
    %6300 = vmatprep.subr.mxu0 %v5047
    %6301 = vmatpush1.msra.mxu0 %v5046
    %6302 = vmatprep.subr.mxu0 %v5052
    %6303 = vmatpush1.msra.mxu0 %v5051
    %6304 = vmatprep.subr.mxu0 %v5057
    %6305 = vmatpush1.msra.mxu0 %v5056
    %6306 = vmatprep.subr.mxu0 %v5062
    %6307 = vmatpush1.msra.mxu0 %v5061
    %6308 = vmatprep.subr.mxu0 %v5067
    %6309 = vmatpush1.msra.mxu0 %v5066
    %6310 = vmatprep.subr.mxu0 %v5072
    %6311 = vmatpush1.msra.mxu0 %v5071
    %6312 = vmatprep.subr.mxu0 %v5077
    %6313 = vmatpush1.msra.mxu0 %v5076
    %6314 = vmatprep.subr.mxu0 %v5082
    %6315 = vmatpush1.msra.mxu0 %v5081
    %6316 = vmatprep.subr.mxu0 %v5087
    %6317 = vmatpush1.msra.mxu0 %v5086
    %6318 = vmatprep.subr.mxu0 %v5092
    %6319 = vmatpush1.msra.mxu0 %v5091
    %6320 = vmatprep.subr.mxu0 %v5097
    %6321 = vmatpush1.msra.mxu0 %v5096
    %6322 = vmatprep.subr.mxu0 %v5102
    %6323 = vmatpush1.msra.mxu0 %v5101
    %6324 = vmatprep.subr.mxu0 %v5107
    %6325 = vmatpush1.msra.mxu0 %v5106
    %6326 = vmatprep.subr.mxu0 %v5112
    %6327 = vmatpush1.msra.mxu0 %v5111
    %6328 = vmatprep.subr.mxu0 %v5117
    %6329 = vmatpush1.msra.mxu0 %v5116
    %6330 = vmatprep.subr.mxu0 %v5122
    %6331 = vmatpush1.msra.mxu0 %v5121
    %6332 = vmatprep.subr.mxu0 %v5127
    %6333 = vmatpush1.msra.mxu0 %v5126
    %6334 = vmatprep.subr.mxu0 %v5132
    %6335 = vmatpush1.msra.mxu0 %v5131
    %6336 = vmatprep.subr.mxu0 %v5137
    %6337 = vmatpush1.msra.mxu0 %v5136
    %6338 = vmatprep.subr.mxu0 %v5142
    %6339 = vmatpush1.msra.mxu0 %v5141
    %6340 = vmatprep.subr.mxu0 %v5147
    %6341 = vmatpush1.msra.mxu0 %v5146
    %6342 = vmatprep.subr.mxu0 %v5152
    %6343 = vmatpush1.msra.mxu0 %v5151
    %6344 = vmatprep.subr.mxu0 %v5157
    %6345 = vmatpush1.msra.mxu0 %v5156
    %6346 = vmatprep.subr.mxu0 %v5162
    %6347 = vmatpush1.msra.mxu0 %v5161
    %6348 = vmatprep.subr.mxu0 %v5167
    %6349 = vmatpush1.msra.mxu0 %v5166
    %6350 = vmatprep.subr.mxu0 %v5172
    %6351 = vmatpush1.msra.mxu0 %v5171
    %6352 = vmatprep.subr.mxu0 %v5177
    %6353 = vmatpush1.msra.mxu0 %v5176
    %6354 = vmatprep.subr.mxu0 %v5182
    %6355 = vmatpush1.msra.mxu0 %v5181
    %6356 = vmatprep.subr.mxu0 %v5187
    %6357 = vmatpush1.msra.mxu0 %v5186
    %6358 = vmatprep.subr.mxu0 %v5192
    %6359 = vmatpush1.msra.mxu0 %v5191
    %6360 = vmatprep.subr.mxu0 %v5197
    %6361 = vmatpush1.msra.mxu0 %v5196
    %6362 = vmatprep.subr.mxu0 %v5202
    %6363 = vmatpush1.msra.mxu0 %v5201
    %6364 = vmatprep.mubr.f32.mxu0 %v4705
    %6365 = vmatmul.mubr.f32.gmra.mrb[0].mxu0 %v4704
    %v6366 = vpop.f32.mrb[0].mxu0
    %v6367 = vadd.f32 %v6290, %v6366
    %v6368 = vpop.f32.mrb[0].mxu0
    %v6369 = vadd.f32 %v6292, %v6368
    %6370 = vmatprep.mubr.f32.mxu0 %v4717
    %6371 = vmatmul.mubr.f32.gmra.mrb[0].mxu0 %v4716
    %v6372 = vpop.f32.mrb[0].mxu0
    %v6373 = vadd.f32 %v6296, %v6372
    %v6374 = vpop.f32.mrb[0].mxu0
    %v6375 = vadd.f32 %v6298, %v6374
    %6376 = vdwg.mxu0
    %6377 = vmatprep.subr.mxu0 %v5207
    %6378 = vmatpush1.msra.mxu0 %v5206
    %6379 = vmatprep.subr.mxu0 %v5212
    %6380 = vmatpush1.msra.mxu0 %v5211
    %6381 = vmatprep.subr.mxu0 %v5217
    %6382 = vmatpush1.msra.mxu0 %v5216
    %6383 = vmatprep.subr.mxu0 %v5222
    %6384 = vmatpush1.msra.mxu0 %v5221
    %6385 = vmatprep.subr.mxu0 %v5227
    %6386 = vmatpush1.msra.mxu0 %v5226
    %6387 = vmatprep.subr.mxu0 %v5232
    %6388 = vmatpush1.msra.mxu0 %v5231
    %6389 = vmatprep.subr.mxu0 %v5237
    %6390 = vmatpush1.msra.mxu0 %v5236
    %6391 = vmatprep.subr.mxu0 %v5242
    %6392 = vmatpush1.msra.mxu0 %v5241
    %6393 = vmatprep.subr.mxu0 %v5247
    %6394 = vmatpush1.msra.mxu0 %v5246
    %6395 = vmatprep.subr.mxu0 %v5252
    %6396 = vmatpush1.msra.mxu0 %v5251
    %6397 = vmatprep.subr.mxu0 %v5257
    %6398 = vmatpush1.msra.mxu0 %v5256
    %6399 = vmatprep.subr.mxu0 %v5262
    %6400 = vmatpush1.msra.mxu0 %v5261
    %6401 = vmatprep.subr.mxu0 %v5267
    %6402 = vmatpush1.msra.mxu0 %v5266
    %6403 = vmatprep.subr.mxu0 %v5272
    %6404 = vmatpush1.msra.mxu0 %v5271
    %6405 = vmatprep.subr.mxu0 %v5277
    %6406 = vmatpush1.msra.mxu0 %v5276
    %6407 = vmatprep.subr.mxu0 %v5282
    %6408 = vmatpush1.msra.mxu0 %v5281
    %6409 = vmatprep.subr.mxu0 %v5287
    %6410 = vmatpush1.msra.mxu0 %v5286
    %6411 = vmatprep.subr.mxu0 %v5292
    %6412 = vmatpush1.msra.mxu0 %v5291
    %6413 = vmatprep.subr.mxu0 %v5297
    %6414 = vmatpush1.msra.mxu0 %v5296
    %6415 = vmatprep.subr.mxu0 %v5302
    %6416 = vmatpush1.msra.mxu0 %v5301
    %6417 = vmatprep.subr.mxu0 %v5307
    %6418 = vmatpush1.msra.mxu0 %v5306
    %6419 = vmatprep.subr.mxu0 %v5312
    %6420 = vmatpush1.msra.mxu0 %v5311
    %6421 = vmatprep.subr.mxu0 %v5317
    %6422 = vmatpush1.msra.mxu0 %v5316
    %6423 = vmatprep.subr.mxu0 %v5322
    %6424 = vmatpush1.msra.mxu0 %v5321
    %6425 = vmatprep.subr.mxu0 %v5327
    %6426 = vmatpush1.msra.mxu0 %v5326
    %6427 = vmatprep.subr.mxu0 %v5332
    %6428 = vmatpush1.msra.mxu0 %v5331
    %6429 = vmatprep.subr.mxu0 %v5337
    %6430 = vmatpush1.msra.mxu0 %v5336
    %6431 = vmatprep.subr.mxu0 %v5342
    %6432 = vmatpush1.msra.mxu0 %v5341
    %6433 = vmatprep.subr.mxu0 %v5347
    %6434 = vmatpush1.msra.mxu0 %v5346
    %6435 = vmatprep.subr.mxu0 %v5352
    %6436 = vmatpush1.msra.mxu0 %v5351
    %6437 = vmatprep.subr.mxu0 %v5357
    %6438 = vmatpush1.msra.mxu0 %v5356
    %6439 = vmatprep.subr.mxu0 %v5362
    %6440 = vmatpush1.msra.mxu0 %v5361
    %6441 = vmatprep.mubr.f32.mxu0 %v4707
    %6442 = vmatmul.mubr.f32.gmra.mrb[0].mxu0 %v4706
    %v6443 = vpop.f32.mrb[0].mxu0
    %v6444 = vadd.f32 %v6367, %v6443
    %v6445 = vpop.f32.mrb[0].mxu0
    %v6446 = vadd.f32 %v6369, %v6445
    %6447 = vmatprep.mubr.f32.mxu0 %v4719
    %6448 = vmatmul.mubr.f32.gmra.mrb[0].mxu0 %v4718
    %v6449 = vpop.f32.mrb[0].mxu0
    %v6450 = vadd.f32 %v6373, %v6449
    %v6451 = vpop.f32.mrb[0].mxu0
    %v6452 = vadd.f32 %v6375, %v6451
    %6453 = vdwg.mxu0
    %6454 = vmatprep.subr.mxu0 %v5367
    %6455 = vmatpush1.msra.mxu0 %v5366
    %6456 = vmatprep.subr.mxu0 %v5372
    %6457 = vmatpush1.msra.mxu0 %v5371
    %6458 = vmatprep.subr.mxu0 %v5377
    %6459 = vmatpush1.msra.mxu0 %v5376
    %6460 = vmatprep.subr.mxu0 %v5382
    %6461 = vmatpush1.msra.mxu0 %v5381
    %6462 = vmatprep.subr.mxu0 %v5387
    %6463 = vmatpush1.msra.mxu0 %v5386
    %6464 = vmatprep.subr.mxu0 %v5392
    %6465 = vmatpush1.msra.mxu0 %v5391
    %6466 = vmatprep.subr.mxu0 %v5397
    %6467 = vmatpush1.msra.mxu0 %v5396
    %6468 = vmatprep.subr.mxu0 %v5402
    %6469 = vmatpush1.msra.mxu0 %v5401
    %6470 = vmatprep.subr.mxu0 %v5407
    %6471 = vmatpush1.msra.mxu0 %v5406
    %6472 = vmatprep.subr.mxu0 %v5412
    %6473 = vmatpush1.msra.mxu0 %v5411
    %6474 = vmatprep.subr.mxu0 %v5417
    %6475 = vmatpush1.msra.mxu0 %v5416
    %6476 = vmatprep.subr.mxu0 %v5422
    %6477 = vmatpush1.msra.mxu0 %v5421
    %6478 = vmatprep.subr.mxu0 %v5427
    %6479 = vmatpush1.msra.mxu0 %v5426
    %6480 = vmatprep.subr.mxu0 %v5432
    %6481 = vmatpush1.msra.mxu0 %v5431
    %6482 = vmatprep.subr.mxu0 %v5437
    %6483 = vmatpush1.msra.mxu0 %v5436
    %6484 = vmatprep.subr.mxu0 %v5442
    %6485 = vmatpush1.msra.mxu0 %v5441
    %6486 = vmatprep.subr.mxu0 %v5447
    %6487 = vmatpush1.msra.mxu0 %v5446
    %6488 = vmatprep.subr.mxu0 %v5452
    %6489 = vmatpush1.msra.mxu0 %v5451
    %6490 = vmatprep.subr.mxu0 %v5457
    %6491 = vmatpush1.msra.mxu0 %v5456
    %6492 = vmatprep.subr.mxu0 %v5462
    %6493 = vmatpush1.msra.mxu0 %v5461
    %6494 = vmatprep.subr.mxu0 %v5467
    %6495 = vmatpush1.msra.mxu0 %v5466
    %6496 = vmatprep.subr.mxu0 %v5472
    %6497 = vmatpush1.msra.mxu0 %v5471
    %6498 = vmatprep.subr.mxu0 %v5477
    %6499 = vmatpush1.msra.mxu0 %v5476
    %6500 = vmatprep.subr.mxu0 %v5482
    %6501 = vmatpush1.msra.mxu0 %v5481
    %6502 = vmatprep.subr.mxu0 %v5487
    %6503 = vmatpush1.msra.mxu0 %v5486
    %6504 = vmatprep.subr.mxu0 %v5492
    %6505 = vmatpush1.msra.mxu0 %v5491
    %6506 = vmatprep.subr.mxu0 %v5497
    %6507 = vmatpush1.msra.mxu0 %v5496
    %6508 = vmatprep.subr.mxu0 %v5502
    %6509 = vmatpush1.msra.mxu0 %v5501
    %6510 = vmatprep.subr.mxu0 %v5507
    %6511 = vmatpush1.msra.mxu0 %v5506
    %6512 = vmatprep.subr.mxu0 %v5512
    %6513 = vmatpush1.msra.mxu0 %v5511
    %6514 = vmatprep.subr.mxu0 %v5517
    %6515 = vmatpush1.msra.mxu0 %v5516
    %6516 = vmatprep.subr.mxu0 %v5522
    %6517 = vmatpush1.msra.mxu0 %v5521
    %6518 = vmatprep.mubr.f32.mxu0 %v4709
    %6519 = vmatmul.mubr.f32.gmra.mrb[0].mxu0 %v4708
    %v6520 = vpop.f32.mrb[0].mxu0
    %v6521 = vadd.f32 %v6444, %v6520
    %v6522 = vpop.f32.mrb[0].mxu0
    %v6523 = vadd.f32 %v6446, %v6522
    %6524 = vmatprep.mubr.f32.mxu0 %v4721
    %6525 = vmatmul.mubr.f32.gmra.mrb[0].mxu0 %v4720
    %v6526 = vpop.f32.mrb[0].mxu0
    %v6527 = vadd.f32 %v6450, %v6526
    %v6528 = vpop.f32.mrb[0].mxu0
    %v6529 = vadd.f32 %v6452, %v6528
    %6530 = vdwg.mxu0
    %6531 = vmatprep.subr.mxu0 %v5527
    %6532 = vmatpush1.msra.mxu0 %v5526
    %6533 = vmatprep.subr.mxu0 %v5532
    %6534 = vmatpush1.msra.mxu0 %v5531
    %6535 = vmatprep.subr.mxu0 %v5537
    %6536 = vmatpush1.msra.mxu0 %v5536
    %6537 = vmatprep.subr.mxu0 %v5542
    %6538 = vmatpush1.msra.mxu0 %v5541
    %6539 = vmatprep.subr.mxu0 %v5547
    %6540 = vmatpush1.msra.mxu0 %v5546
    %6541 = vmatprep.subr.mxu0 %v5552
    %6542 = vmatpush1.msra.mxu0 %v5551
    %6543 = vmatprep.subr.mxu0 %v5557
    %6544 = vmatpush1.msra.mxu0 %v5556
    %6545 = vmatprep.subr.mxu0 %v5562
    %6546 = vmatpush1.msra.mxu0 %v5561
    %6547 = vmatprep.subr.mxu0 %v5567
    %6548 = vmatpush1.msra.mxu0 %v5566
    %6549 = vmatprep.subr.mxu0 %v5572
    %6550 = vmatpush1.msra.mxu0 %v5571
    %6551 = vmatprep.subr.mxu0 %v5577
    %6552 = vmatpush1.msra.mxu0 %v5576
    %6553 = vmatprep.subr.mxu0 %v5582
    %6554 = vmatpush1.msra.mxu0 %v5581
    %6555 = vmatprep.subr.mxu0 %v5587
    %6556 = vmatpush1.msra.mxu0 %v5586
    %6557 = vmatprep.subr.mxu0 %v5592
    %6558 = vmatpush1.msra.mxu0 %v5591
    %6559 = vmatprep.subr.mxu0 %v5597
    %6560 = vmatpush1.msra.mxu0 %v5596
    %6561 = vmatprep.subr.mxu0 %v5602
    %6562 = vmatpush1.msra.mxu0 %v5601
    %6563 = vmatprep.subr.mxu0 %v5607
    %6564 = vmatpush1.msra.mxu0 %v5606
    %6565 = vmatprep.subr.mxu0 %v5612
    %6566 = vmatpush1.msra.mxu0 %v5611
    %6567 = vmatprep.subr.mxu0 %v5617
    %6568 = vmatpush1.msra.mxu0 %v5616
    %6569 = vmatprep.subr.mxu0 %v5622
    %6570 = vmatpush1.msra.mxu0 %v5621
    %6571 = vmatprep.subr.mxu0 %v5627
    %6572 = vmatpush1.msra.mxu0 %v5626
    %6573 = vmatprep.subr.mxu0 %v5632
    %6574 = vmatpush1.msra.mxu0 %v5631
    %6575 = vmatprep.subr.mxu0 %v5637
    %6576 = vmatpush1.msra.mxu0 %v5636
    %6577 = vmatprep.subr.mxu0 %v5642
    %6578 = vmatpush1.msra.mxu0 %v5641
    %6579 = vmatprep.subr.mxu0 %v5647
    %6580 = vmatpush1.msra.mxu0 %v5646
    %6581 = vmatprep.subr.mxu0 %v5652
    %6582 = vmatpush1.msra.mxu0 %v5651
    %6583 = vmatprep.subr.mxu0 %v5657
    %6584 = vmatpush1.msra.mxu0 %v5656
    %6585 = vmatprep.subr.mxu0 %v5662
    %6586 = vmatpush1.msra.mxu0 %v5661
    %6587 = vmatprep.subr.mxu0 %v5667
    %6588 = vmatpush1.msra.mxu0 %v5666
    %6589 = vmatprep.subr.mxu0 %v5672
    %6590 = vmatpush1.msra.mxu0 %v5671
    %6591 = vmatprep.subr.mxu0 %v5677
    %6592 = vmatpush1.msra.mxu0 %v5676
    %6593 = vmatprep.subr.mxu0 %v5682
    %6594 = vmatpush1.msra.mxu0 %v5681
    %6595 = vmatprep.mubr.f32.mxu0 %v4711
    %6596 = vmatmul.mubr.f32.gmra.mrb[0].mxu0 %v4710
    %v6597 = vpop.f32.mrb[0].mxu0
    %v6598 = vadd.f32 %v6521, %v6597
    %v6599 = vpop.f32.mrb[0].mxu0
    %v6600 = vadd.f32 %v6523, %v6599
    %6601 = vmatprep.mubr.f32.mxu0 %v4723
    %6602 = vmatmul.mubr.f32.gmra.mrb[0].mxu0 %v4722
    %v6603 = vpop.f32.mrb[0].mxu0
    %v6604 = vadd.f32 %v6527, %v6603
    %v6605 = vpop.f32.mrb[0].mxu0
    %v6606 = vadd.f32 %v6529, %v6605
    %6607 = vdwg.mxu0
    %6608 = vmatprep.subr.mxu0 0.0
    %6609 = vmatpush1.msra.mxu0 %v4728
    %6610 = vmatprep.subr.mxu0 0.0
    %6611 = vmatpush1.msra.mxu0 %v4733
    %6612 = vmatprep.subr.mxu0 0.0
    %6613 = vmatpush1.msra.mxu0 %v4738
    %6614 = vmatprep.subr.mxu0 0.0
    %6615 = vmatpush1.msra.mxu0 %v4743
    %6616 = vmatprep.subr.mxu0 0.0
    %6617 = vmatpush1.msra.mxu0 %v4748
    %6618 = vmatprep.subr.mxu0 0.0
    %6619 = vmatpush1.msra.mxu0 %v4753
    %6620 = vmatprep.subr.mxu0 0.0
    %6621 = vmatpush1.msra.mxu0 %v4758
    %6622 = vmatprep.subr.mxu0 0.0
    %6623 = vmatpush1.msra.mxu0 %v4763
    %6624 = vmatprep.subr.mxu0 0.0
    %6625 = vmatpush1.msra.mxu0 %v4768
    %6626 = vmatprep.subr.mxu0 0.0
    %6627 = vmatpush1.msra.mxu0 %v4773
    %6628 = vmatprep.subr.mxu0 0.0
    %6629 = vmatpush1.msra.mxu0 %v4778
    %6630 = vmatprep.subr.mxu0 0.0
    %6631 = vmatpush1.msra.mxu0 %v4783
    %6632 = vmatprep.subr.mxu0 0.0
    %6633 = vmatpush1.msra.mxu0 %v4788
    %6634 = vmatprep.subr.mxu0 0.0
    %6635 = vmatpush1.msra.mxu0 %v4793
    %6636 = vmatprep.subr.mxu0 0.0
    %6637 = vmatpush1.msra.mxu0 %v4798
    %6638 = vmatprep.subr.mxu0 0.0
    %6639 = vmatpush1.msra.mxu0 %v4803
    %6640 = vmatprep.subr.mxu0 0.0
    %6641 = vmatpush1.msra.mxu0 %v4808
    %6642 = vmatprep.subr.mxu0 0.0
    %6643 = vmatpush1.msra.mxu0 %v4813
    %6644 = vmatprep.subr.mxu0 0.0
    %6645 = vmatpush1.msra.mxu0 %v4818
    %6646 = vmatprep.subr.mxu0 0.0
    %6647 = vmatpush1.msra.mxu0 %v4823
    %6648 = vmatprep.subr.mxu0 0.0
    %6649 = vmatpush1.msra.mxu0 %v4828
    %6650 = vmatprep.subr.mxu0 0.0
    %6651 = vmatpush1.msra.mxu0 %v4833
    %6652 = vmatprep.subr.mxu0 0.0
    %6653 = vmatpush1.msra.mxu0 %v4838
    %6654 = vmatprep.subr.mxu0 0.0
    %6655 = vmatpush1.msra.mxu0 %v4843
    %6656 = vmatprep.subr.mxu0 0.0
    %6657 = vmatpush1.msra.mxu0 %v4848
    %6658 = vmatprep.subr.mxu0 0.0
    %6659 = vmatpush1.msra.mxu0 %v4853
    %6660 = vmatprep.subr.mxu0 0.0
    %6661 = vmatpush1.msra.mxu0 %v4858
    %6662 = vmatprep.subr.mxu0 0.0
    %6663 = vmatpush1.msra.mxu0 %v4863
    %6664 = vmatprep.subr.mxu0 0.0
    %6665 = vmatpush1.msra.mxu0 %v4868
    %6666 = vmatprep.subr.mxu0 0.0
    %6667 = vmatpush1.msra.mxu0 %v4873
    %6668 = vmatprep.subr.mxu0 0.0
    %6669 = vmatpush1.msra.mxu0 %v4878
    %6670 = vmatprep.subr.mxu0 0.0
    %6671 = vmatpush1.msra.mxu0 %v4883
    %6672 = vmatprep.mubr.f32.mxu0 %v4701
    %6673 = vmatmul.mubr.f32.gmra.mrb[0].mxu0 %v4700
    %v6674 = vpop.f32.mrb[0].mxu0
    %v6675 = vadd.f32 0.0, %v6674
    %v6676 = vpop.f32.mrb[0].mxu0
    %6677 = vmatprep.mubr.f32.mxu0 %v4713
    %6678 = vmatmul.mubr.f32.gmra.mrb[0].mxu0 %v4712
    %v6679 = vpop.f32.mrb[0].mxu0
    %v6680 = vadd.f32 0.0, %v6679
    %v6681 = vpop.f32.mrb[0].mxu0
    %6682 = vdwg.mxu0
    %6683 = vmatprep.subr.mxu0 0.0
    %6684 = vmatpush1.msra.mxu0 %v4888
    %6685 = vmatprep.subr.mxu0 0.0
    %6686 = vmatpush1.msra.mxu0 %v4893
    %6687 = vmatprep.subr.mxu0 0.0
    %6688 = vmatpush1.msra.mxu0 %v4898
    %6689 = vmatprep.subr.mxu0 0.0
    %6690 = vmatpush1.msra.mxu0 %v4903
    %6691 = vmatprep.subr.mxu0 0.0
    %6692 = vmatpush1.msra.mxu0 %v4908
    %6693 = vmatprep.subr.mxu0 0.0
    %6694 = vmatpush1.msra.mxu0 %v4913
    %6695 = vmatprep.subr.mxu0 0.0
    %6696 = vmatpush1.msra.mxu0 %v4918
    %6697 = vmatprep.subr.mxu0 0.0
    %6698 = vmatpush1.msra.mxu0 %v4923
    %6699 = vmatprep.subr.mxu0 0.0
    %6700 = vmatpush1.msra.mxu0 %v4928
    %6701 = vmatprep.subr.mxu0 0.0
    %6702 = vmatpush1.msra.mxu0 %v4933
    %6703 = vmatprep.subr.mxu0 0.0
    %6704 = vmatpush1.msra.mxu0 %v4938
    %6705 = vmatprep.subr.mxu0 0.0
    %6706 = vmatpush1.msra.mxu0 %v4943
    %6707 = vmatprep.subr.mxu0 0.0
    %6708 = vmatpush1.msra.mxu0 %v4948
    %6709 = vmatprep.subr.mxu0 0.0
    %6710 = vmatpush1.msra.mxu0 %v4953
    %6711 = vmatprep.subr.mxu0 0.0
    %6712 = vmatpush1.msra.mxu0 %v4958
    %6713 = vmatprep.subr.mxu0 0.0
    %6714 = vmatpush1.msra.mxu0 %v4963
    %6715 = vmatprep.subr.mxu0 0.0
    %6716 = vmatpush1.msra.mxu0 %v4968
    %6717 = vmatprep.subr.mxu0 0.0
    %6718 = vmatpush1.msra.mxu0 %v4973
    %6719 = vmatprep.subr.mxu0 0.0
    %6720 = vmatpush1.msra.mxu0 %v4978
    %6721 = vmatprep.subr.mxu0 0.0
    %6722 = vmatpush1.msra.mxu0 %v4983
    %6723 = vmatprep.subr.mxu0 0.0
    %6724 = vmatpush1.msra.mxu0 %v4988
    %6725 = vmatprep.subr.mxu0 0.0
    %6726 = vmatpush1.msra.mxu0 %v4993
    %6727 = vmatprep.subr.mxu0 0.0
    %6728 = vmatpush1.msra.mxu0 %v4998
    %6729 = vmatprep.subr.mxu0 0.0
    %6730 = vmatpush1.msra.mxu0 %v5003
    %6731 = vmatprep.subr.mxu0 0.0
    %6732 = vmatpush1.msra.mxu0 %v5008
    %6733 = vmatprep.subr.mxu0 0.0
    %6734 = vmatpush1.msra.mxu0 %v5013
    %6735 = vmatprep.subr.mxu0 0.0
    %6736 = vmatpush1.msra.mxu0 %v5018
    %6737 = vmatprep.subr.mxu0 0.0
    %6738 = vmatpush1.msra.mxu0 %v5023
    %6739 = vmatprep.subr.mxu0 0.0
    %6740 = vmatpush1.msra.mxu0 %v5028
    %6741 = vmatprep.subr.mxu0 0.0
    %6742 = vmatpush1.msra.mxu0 %v5033
    %6743 = vmatprep.subr.mxu0 0.0
    %6744 = vmatpush1.msra.mxu0 %v5038
    %6745 = vmatprep.subr.mxu0 0.0
    %6746 = vmatpush1.msra.mxu0 %v5043
    %6747 = vmatprep.mubr.f32.mxu0 %v4703
    %6748 = vmatmul.mubr.f32.gmra.mrb[0].mxu0 %v4702
    %v6749 = vpop.f32.mrb[0].mxu0
    %v6750 = vadd.f32 %v6675, %v6749
    %v6751 = vpop.f32.mrb[0].mxu0
    %6752 = vmatprep.mubr.f32.mxu0 %v4715
    %6753 = vmatmul.mubr.f32.gmra.mrb[0].mxu0 %v4714
    %v6754 = vpop.f32.mrb[0].mxu0
    %v6755 = vadd.f32 %v6680, %v6754
    %v6756 = vpop.f32.mrb[0].mxu0
    %6757 = vdwg.mxu0
    %6758 = vmatprep.subr.mxu0 0.0
    %6759 = vmatpush1.msra.mxu0 %v5048
    %6760 = vmatprep.subr.mxu0 0.0
    %6761 = vmatpush1.msra.mxu0 %v5053
    %6762 = vmatprep.subr.mxu0 0.0
    %6763 = vmatpush1.msra.mxu0 %v5058
    %6764 = vmatprep.subr.mxu0 0.0
    %6765 = vmatpush1.msra.mxu0 %v5063
    %6766 = vmatprep.subr.mxu0 0.0
    %6767 = vmatpush1.msra.mxu0 %v5068
    %6768 = vmatprep.subr.mxu0 0.0
    %6769 = vmatpush1.msra.mxu0 %v5073
    %6770 = vmatprep.subr.mxu0 0.0
    %6771 = vmatpush1.msra.mxu0 %v5078
    %6772 = vmatprep.subr.mxu0 0.0
    %6773 = vmatpush1.msra.mxu0 %v5083
    %6774 = vmatprep.subr.mxu0 0.0
    %6775 = vmatpush1.msra.mxu0 %v5088
    %6776 = vmatprep.subr.mxu0 0.0
    %6777 = vmatpush1.msra.mxu0 %v5093
    %6778 = vmatprep.subr.mxu0 0.0
    %6779 = vmatpush1.msra.mxu0 %v5098
    %6780 = vmatprep.subr.mxu0 0.0
    %6781 = vmatpush1.msra.mxu0 %v5103
    %6782 = vmatprep.subr.mxu0 0.0
    %6783 = vmatpush1.msra.mxu0 %v5108
    %6784 = vmatprep.subr.mxu0 0.0
    %6785 = vmatpush1.msra.mxu0 %v5113
    %6786 = vmatprep.subr.mxu0 0.0
    %6787 = vmatpush1.msra.mxu0 %v5118
    %6788 = vmatprep.subr.mxu0 0.0
    %6789 = vmatpush1.msra.mxu0 %v5123
    %6790 = vmatprep.subr.mxu0 0.0
    %6791 = vmatpush1.msra.mxu0 %v5128
    %6792 = vmatprep.subr.mxu0 0.0
    %6793 = vmatpush1.msra.mxu0 %v5133
    %6794 = vmatprep.subr.mxu0 0.0
    %6795 = vmatpush1.msra.mxu0 %v5138
    %6796 = vmatprep.subr.mxu0 0.0
    %6797 = vmatpush1.msra.mxu0 %v5143
    %6798 = vmatprep.subr.mxu0 0.0
    %6799 = vmatpush1.msra.mxu0 %v5148
    %6800 = vmatprep.subr.mxu0 0.0
    %6801 = vmatpush1.msra.mxu0 %v5153
    %6802 = vmatprep.subr.mxu0 0.0
    %6803 = vmatpush1.msra.mxu0 %v5158
    %6804 = vmatprep.subr.mxu0 0.0
    %6805 = vmatpush1.msra.mxu0 %v5163
    %6806 = vmatprep.subr.mxu0 0.0
    %6807 = vmatpush1.msra.mxu0 %v5168
    %6808 = vmatprep.subr.mxu0 0.0
    %6809 = vmatpush1.msra.mxu0 %v5173
    %6810 = vmatprep.subr.mxu0 0.0
    %6811 = vmatpush1.msra.mxu0 %v5178
    %6812 = vmatprep.subr.mxu0 0.0
    %6813 = vmatpush1.msra.mxu0 %v5183
    %6814 = vmatprep.subr.mxu0 0.0
    %6815 = vmatpush1.msra.mxu0 %v5188
    %6816 = vmatprep.subr.mxu0 0.0
    %6817 = vmatpush1.msra.mxu0 %v5193
    %6818 = vmatprep.subr.mxu0 0.0
    %6819 = vmatpush1.msra.mxu0 %v5198
    %6820 = vmatprep.subr.mxu0 0.0
    %6821 = vmatpush1.msra.mxu0 %v5203
    %6822 = vmatprep.mubr.f32.mxu0 %v4705
    %6823 = vmatmul.mubr.f32.gmra.mrb[0].mxu0 %v4704
    %v6824 = vpop.f32.mrb[0].mxu0
    %v6825 = vadd.f32 %v6750, %v6824
    %v6826 = vpop.f32.mrb[0].mxu0
    %6827 = vmatprep.mubr.f32.mxu0 %v4717
    %6828 = vmatmul.mubr.f32.gmra.mrb[0].mxu0 %v4716
    %v6829 = vpop.f32.mrb[0].mxu0
    %v6830 = vadd.f32 %v6755, %v6829
    %v6831 = vpop.f32.mrb[0].mxu0
    %6832 = vdwg.mxu0
    %6833 = vmatprep.subr.mxu0 0.0
    %6834 = vmatpush1.msra.mxu0 %v5208
    %6835 = vmatprep.subr.mxu0 0.0
    %6836 = vmatpush1.msra.mxu0 %v5213
    %6837 = vmatprep.subr.mxu0 0.0
    %6838 = vmatpush1.msra.mxu0 %v5218
    %6839 = vmatprep.subr.mxu0 0.0
    %6840 = vmatpush1.msra.mxu0 %v5223
    %6841 = vmatprep.subr.mxu0 0.0
    %6842 = vmatpush1.msra.mxu0 %v5228
    %6843 = vmatprep.subr.mxu0 0.0
    %6844 = vmatpush1.msra.mxu0 %v5233
    %6845 = vmatprep.subr.mxu0 0.0
    %6846 = vmatpush1.msra.mxu0 %v5238
    %6847 = vmatprep.subr.mxu0 0.0
    %6848 = vmatpush1.msra.mxu0 %v5243
    %6849 = vmatprep.subr.mxu0 0.0
    %6850 = vmatpush1.msra.mxu0 %v5248
    %6851 = vmatprep.subr.mxu0 0.0
    %6852 = vmatpush1.msra.mxu0 %v5253
    %6853 = vmatprep.subr.mxu0 0.0
    %6854 = vmatpush1.msra.mxu0 %v5258
    %6855 = vmatprep.subr.mxu0 0.0
    %6856 = vmatpush1.msra.mxu0 %v5263
    %6857 = vmatprep.subr.mxu0 0.0
    %6858 = vmatpush1.msra.mxu0 %v5268
    %6859 = vmatprep.subr.mxu0 0.0
    %6860 = vmatpush1.msra.mxu0 %v5273
    %6861 = vmatprep.subr.mxu0 0.0
    %6862 = vmatpush1.msra.mxu0 %v5278
    %6863 = vmatprep.subr.mxu0 0.0
    %6864 = vmatpush1.msra.mxu0 %v5283
    %6865 = vmatprep.subr.mxu0 0.0
    %6866 = vmatpush1.msra.mxu0 %v5288
    %6867 = vmatprep.subr.mxu0 0.0
    %6868 = vmatpush1.msra.mxu0 %v5293
    %6869 = vmatprep.subr.mxu0 0.0
    %6870 = vmatpush1.msra.mxu0 %v5298
    %6871 = vmatprep.subr.mxu0 0.0
    %6872 = vmatpush1.msra.mxu0 %v5303
    %6873 = vmatprep.subr.mxu0 0.0
    %6874 = vmatpush1.msra.mxu0 %v5308
    %6875 = vmatprep.subr.mxu0 0.0
    %6876 = vmatpush1.msra.mxu0 %v5313
    %6877 = vmatprep.subr.mxu0 0.0
    %6878 = vmatpush1.msra.mxu0 %v5318
    %6879 = vmatprep.subr.mxu0 0.0
    %6880 = vmatpush1.msra.mxu0 %v5323
    %6881 = vmatprep.subr.mxu0 0.0
    %6882 = vmatpush1.msra.mxu0 %v5328
    %6883 = vmatprep.subr.mxu0 0.0
    %6884 = vmatpush1.msra.mxu0 %v5333
    %6885 = vmatprep.subr.mxu0 0.0
    %6886 = vmatpush1.msra.mxu0 %v5338
    %6887 = vmatprep.subr.mxu0 0.0
    %6888 = vmatpush1.msra.mxu0 %v5343
    %6889 = vmatprep.subr.mxu0 0.0
    %6890 = vmatpush1.msra.mxu0 %v5348
    %6891 = vmatprep.subr.mxu0 0.0
    %6892 = vmatpush1.msra.mxu0 %v5353
    %6893 = vmatprep.subr.mxu0 0.0
    %6894 = vmatpush1.msra.mxu0 %v5358
    %6895 = vmatprep.subr.mxu0 0.0
    %6896 = vmatpush1.msra.mxu0 %v5363
    %6897 = vmatprep.mubr.f32.mxu0 %v4707
    %6898 = vmatmul.mubr.f32.gmra.mrb[0].mxu0 %v4706
    %v6899 = vpop.f32.mrb[0].mxu0
    %v6900 = vadd.f32 %v6825, %v6899
    %v6901 = vpop.f32.mrb[0].mxu0
    %6902 = vmatprep.mubr.f32.mxu0 %v4719
    %6903 = vmatmul.mubr.f32.gmra.mrb[0].mxu0 %v4718
    %v6904 = vpop.f32.mrb[0].mxu0
    %v6905 = vadd.f32 %v6830, %v6904
    %v6906 = vpop.f32.mrb[0].mxu0
    %6907 = vdwg.mxu0
    %6908 = vmatprep.subr.mxu0 0.0
    %6909 = vmatpush1.msra.mxu0 %v5368
    %6910 = vmatprep.subr.mxu0 0.0
    %6911 = vmatpush1.msra.mxu0 %v5373
    %6912 = vmatprep.subr.mxu0 0.0
    %6913 = vmatpush1.msra.mxu0 %v5378
    %6914 = vmatprep.subr.mxu0 0.0
    %6915 = vmatpush1.msra.mxu0 %v5383
    %6916 = vmatprep.subr.mxu0 0.0
    %6917 = vmatpush1.msra.mxu0 %v5388
    %6918 = vmatprep.subr.mxu0 0.0
    %6919 = vmatpush1.msra.mxu0 %v5393
    %6920 = vmatprep.subr.mxu0 0.0
    %6921 = vmatpush1.msra.mxu0 %v5398
    %6922 = vmatprep.subr.mxu0 0.0
    %6923 = vmatpush1.msra.mxu0 %v5403
    %6924 = vmatprep.subr.mxu0 0.0
    %6925 = vmatpush1.msra.mxu0 %v5408
    %6926 = vmatprep.subr.mxu0 0.0
    %6927 = vmatpush1.msra.mxu0 %v5413
    %6928 = vmatprep.subr.mxu0 0.0
    %6929 = vmatpush1.msra.mxu0 %v5418
    %6930 = vmatprep.subr.mxu0 0.0
    %6931 = vmatpush1.msra.mxu0 %v5423
    %6932 = vmatprep.subr.mxu0 0.0
    %6933 = vmatpush1.msra.mxu0 %v5428
    %6934 = vmatprep.subr.mxu0 0.0
    %6935 = vmatpush1.msra.mxu0 %v5433
    %6936 = vmatprep.subr.mxu0 0.0
    %6937 = vmatpush1.msra.mxu0 %v5438
    %6938 = vmatprep.subr.mxu0 0.0
    %6939 = vmatpush1.msra.mxu0 %v5443
    %6940 = vmatprep.subr.mxu0 0.0
    %6941 = vmatpush1.msra.mxu0 %v5448
    %6942 = vmatprep.subr.mxu0 0.0
    %6943 = vmatpush1.msra.mxu0 %v5453
    %6944 = vmatprep.subr.mxu0 0.0
    %6945 = vmatpush1.msra.mxu0 %v5458
    %6946 = vmatprep.subr.mxu0 0.0
    %6947 = vmatpush1.msra.mxu0 %v5463
    %6948 = vmatprep.subr.mxu0 0.0
    %6949 = vmatpush1.msra.mxu0 %v5468
    %6950 = vmatprep.subr.mxu0 0.0
    %6951 = vmatpush1.msra.mxu0 %v5473
    %6952 = vmatprep.subr.mxu0 0.0
    %6953 = vmatpush1.msra.mxu0 %v5478
    %6954 = vmatprep.subr.mxu0 0.0
    %6955 = vmatpush1.msra.mxu0 %v5483
    %6956 = vmatprep.subr.mxu0 0.0
    %6957 = vmatpush1.msra.mxu0 %v5488
    %6958 = vmatprep.subr.mxu0 0.0
    %6959 = vmatpush1.msra.mxu0 %v5493
    %6960 = vmatprep.subr.mxu0 0.0
    %6961 = vmatpush1.msra.mxu0 %v5498
    %6962 = vmatprep.subr.mxu0 0.0
    %6963 = vmatpush1.msra.mxu0 %v5503
    %6964 = vmatprep.subr.mxu0 0.0
    %6965 = vmatpush1.msra.mxu0 %v5508
    %6966 = vmatprep.subr.mxu0 0.0
    %6967 = vmatpush1.msra.mxu0 %v5513
    %6968 = vmatprep.subr.mxu0 0.0
    %6969 = vmatpush1.msra.mxu0 %v5518
    %6970 = vmatprep.subr.mxu0 0.0
    %6971 = vmatpush1.msra.mxu0 %v5523
    %6972 = vmatprep.mubr.f32.mxu0 %v4709
    %6973 = vmatmul.mubr.f32.gmra.mrb[0].mxu0 %v4708
    %v6974 = vpop.f32.mrb[0].mxu0
    %v6975 = vadd.f32 %v6900, %v6974
    %v6976 = vpop.f32.mrb[0].mxu0
    %6977 = vmatprep.mubr.f32.mxu0 %v4721
    %6978 = vmatmul.mubr.f32.gmra.mrb[0].mxu0 %v4720
    %v6979 = vpop.f32.mrb[0].mxu0
    %v6980 = vadd.f32 %v6905, %v6979
    %v6981 = vpop.f32.mrb[0].mxu0
    %6982 = vdwg.mxu0
    %6983 = vmatprep.subr.mxu0 0.0
    %6984 = vmatpush1.msra.mxu0 %v5528
    %6985 = vmatprep.subr.mxu0 0.0
    %6986 = vmatpush1.msra.mxu0 %v5533
    %6987 = vmatprep.subr.mxu0 0.0
    %6988 = vmatpush1.msra.mxu0 %v5538
    %6989 = vmatprep.subr.mxu0 0.0
    %6990 = vmatpush1.msra.mxu0 %v5543
    %6991 = vmatprep.subr.mxu0 0.0
    %6992 = vmatpush1.msra.mxu0 %v5548
    %6993 = vmatprep.subr.mxu0 0.0
    %6994 = vmatpush1.msra.mxu0 %v5553
    %6995 = vmatprep.subr.mxu0 0.0
    %6996 = vmatpush1.msra.mxu0 %v5558
    %6997 = vmatprep.subr.mxu0 0.0
    %6998 = vmatpush1.msra.mxu0 %v5563
    %6999 = vmatprep.subr.mxu0 0.0
    %7000 = vmatpush1.msra.mxu0 %v5568
    %7001 = vmatprep.subr.mxu0 0.0
    %7002 = vmatpush1.msra.mxu0 %v5573
    %7003 = vmatprep.subr.mxu0 0.0
    %7004 = vmatpush1.msra.mxu0 %v5578
    %7005 = vmatprep.subr.mxu0 0.0
    %7006 = vmatpush1.msra.mxu0 %v5583
    %7007 = vmatprep.subr.mxu0 0.0
    %7008 = vmatpush1.msra.mxu0 %v5588
    %7009 = vmatprep.subr.mxu0 0.0
    %7010 = vmatpush1.msra.mxu0 %v5593
    %7011 = vmatprep.subr.mxu0 0.0
    %7012 = vmatpush1.msra.mxu0 %v5598
    %7013 = vmatprep.subr.mxu0 0.0
    %7014 = vmatpush1.msra.mxu0 %v5603
    %7015 = vmatprep.subr.mxu0 0.0
    %7016 = vmatpush1.msra.mxu0 %v5608
    %7017 = vmatprep.subr.mxu0 0.0
    %7018 = vmatpush1.msra.mxu0 %v5613
    %7019 = vmatprep.subr.mxu0 0.0
    %7020 = vmatpush1.msra.mxu0 %v5618
    %7021 = vmatprep.subr.mxu0 0.0
    %7022 = vmatpush1.msra.mxu0 %v5623
    %7023 = vmatprep.subr.mxu0 0.0
    %7024 = vmatpush1.msra.mxu0 %v5628
    %7025 = vmatprep.subr.mxu0 0.0
    %7026 = vmatpush1.msra.mxu0 %v5633
    %7027 = vmatprep.subr.mxu0 0.0
    %7028 = vmatpush1.msra.mxu0 %v5638
    %7029 = vmatprep.subr.mxu0 0.0
    %7030 = vmatpush1.msra.mxu0 %v5643
    %7031 = vmatprep.subr.mxu0 0.0
    %7032 = vmatpush1.msra.mxu0 %v5648
    %7033 = vmatprep.subr.mxu0 0.0
    %7034 = vmatpush1.msra.mxu0 %v5653
    %7035 = vmatprep.subr.mxu0 0.0
    %7036 = vmatpush1.msra.mxu0 %v5658
    %7037 = vmatprep.subr.mxu0 0.0
    %7038 = vmatpush1.msra.mxu0 %v5663
    %7039 = vmatprep.subr.mxu0 0.0
    %7040 = vmatpush1.msra.mxu0 %v5668
    %7041 = vmatprep.subr.mxu0 0.0
    %7042 = vmatpush1.msra.mxu0 %v5673
    %7043 = vmatprep.subr.mxu0 0.0
    %7044 = vmatpush1.msra.mxu0 %v5678
    %7045 = vmatprep.subr.mxu0 0.0
    %7046 = vmatpush1.msra.mxu0 %v5683
    %7047 = vmatprep.mubr.f32.mxu0 %v4711
    %7048 = vmatmul.mubr.f32.gmra.mrb[0].mxu0 %v4710
    %v7049 = vpop.f32.mrb[0].mxu0
    %v7050 = vadd.f32 %v6975, %v7049
    %v7051 = vpop.f32.mrb[0].mxu0
    %7052 = vmatprep.mubr.f32.mxu0 %v4723
    %7053 = vmatmul.mubr.f32.gmra.mrb[0].mxu0 %v4722
    %v7054 = vpop.f32.mrb[0].mxu0
    %v7055 = vadd.f32 %v6980, %v7054
    %v7056 = vpop.f32.mrb[0].mxu0
    %7057 = vdwg.mxu0
    %7058 = vst [vmem:[#allocation2] sm:$0xff] %v6136
    %7059 = vst [vmem:[#allocation2 + $0x8] sm:$0xff] %v6138
    %7060 = vst [vmem:[#allocation2 + $0x10] sm:$0xff] %v6598
    %7061 = vst [vmem:[#allocation2 + $0x18] sm:$0xff] %v6600
    %7062 = vst.msk [vmem:[#allocation2 + $0x20] sm:$0xff] %vm1753, %v7050
    %7063 = vst [vmem:[#allocation2 + $0x28] sm:$0xff] %v6142
    %7064 = vst [vmem:[#allocation2 + $0x30] sm:$0xff] %v6144
    %7065 = vst [vmem:[#allocation2 + $0x38] sm:$0xff] %v6604
    %7066 = vst [vmem:[#allocation2 + $0x40] sm:$0xff] %v6606
    %7067 = vst.msk [vmem:[#allocation2 + $0x48] sm:$0xff] %vm1753, %v7055
    // Predicated region
    $region14: #{smollm2_mlp.1} parent=1 // pred_check
      _
    $region15: #{smollm2_mlp.1} parent=1 // pred_check_branch
      %7069 = sbr.rel (0) target = $region17
    $region16: #{smollm2_mlp.1} parent=1 // pred_region
      %s7071 = ssub.s32 1280, 1280
      %7072 = vsyncadd [#allocation3], %s7071
      %s7073 = sshll.u32 [#allocation2], 4
      %s7074 = int_to_ptr.vmem [resolvable:$true] %s7073
      %7079 = dma.vmem_to_hbm [thread:$0]  %s7074, 1280, %s3, [#allocation3], 640, 640, 40
    $region17: #{smollm2_mlp.1} parent=1 // pred_fallthru
      _
    // Predicated region
    $region18: #{smollm2_mlp.1} parent=1 // pred_check
      _
    $region19: #{smollm2_mlp.1} parent=1 // pred_check_branch
      %7081 = sbr.rel (0) target = $region21
    $region20: #{smollm2_mlp.1} parent=1 // pred_region
      %7082 = dma.done [#allocation3], 1280
    $region21: #{smollm2_mlp.1} parent=1 // pred_fallthru
      _
    %7083 = vsyncpa [#allocation3], 1

</llo_original>
